<compile_context>
chip_gen: v6e
topology: v6e:2x2x1
jax: 0.10.0
libtpu: 0.0.40
codegen_flags: <defaults>
</compile_context>

<pallas_src>
import jax
import jax.numpy as jnp
from jax.experimental import pallas as pl
from jax.experimental.pallas import tpu as pltpu

# ----------------------------- model dims ----------------------------------
B = 16           # batch (fills one bf16 sublane tile)
X_DIM = 256      # x_dimension (gene-expression dim)
Y_DIM = 16       # y_dimension (condition one-hot dim)
Z_DIM = 32       # latent dim
H = 800          # hidden width hard-coded in the torch module
MULV_PAD = 128   # mu|log_var head padded to a full 128-lane vreg
DROPOUT = 0.2
BN_EPS = 1e-5
LEAKY_SLOPE = 0.01


# ------------------------------ shared math ---------------------------------
def _bn_train(h, gamma, beta):
    """BatchNorm1d training mode: batch mean / biased batch variance (f32)."""
    mean = jnp.mean(h, axis=0, keepdims=True)
    var = jnp.mean((h - mean) ** 2, axis=0, keepdims=True)
    return (h - mean) * jax.lax.rsqrt(var + BN_EPS) * gamma + beta


def _leaky_relu(h):
    return jnp.where(h > 0, h, LEAKY_SLOPE * h)


def _bdot(a_f32, w_bf16):
    """bf16 x bf16 matmul with f32 accumulation (MXU-native everywhere)."""
    return jnp.dot(a_f32.astype(jnp.bfloat16), w_bf16,
                   preferred_element_type=jnp.float32)


def _qdot(a_f32, w_i8, col_scale_f32):
    """int8 weight-only matmul: dequant int8->bf16, bf16 MXU dot with f32
    accumulation, then the per-output-column scale on the small (B, N) result.
    Exact w.r.t. the quantized representation (int8 values are exact in bf16)."""
    out = jnp.dot(a_f32.astype(jnp.bfloat16), w_i8.astype(jnp.bfloat16),
                  preferred_element_type=jnp.float32)
    return out * col_scale_f32


# ------------------------------ the fused kernel ----------------------------
def cvae_kernel(
    # --- auto-DMA'd (VMEM) inputs ---
    x_ref, y_ref,
    w1x_ref, s1x_ref, w1y_ref, g1_ref, b1_ref, m1_ref,
    s2_ref, g2_ref, b2_ref, m2_ref,
    bmulv_ref, eps_ref,
    wd1z_ref, wd1y_ref, gd1_ref, bd1_ref, m3_ref,
    sd2_ref, gd2_ref, bd2_ref, m4_ref,
    sd3_ref, bd3_ref,
    # --- HBM-resident large weights (manual DMA, overlapped with compute) ---
    w2_hbm, wmulv_hbm, wd2_hbm, wd3_hbm,
    # --- outputs ---
    xhat_ref, mulv_ref,
    # --- scratch ---
    w2_vmem, wmulv_vmem, wd2_vmem, wd3_vmem, dma_sem,
):
    # Kick off the late-layer weight transfers immediately so they overlap the
    # encoder block-1 compute.  w2 is needed first, so it goes to the head of
    # the DMA queue; wd3 (needed last) is deferred until after cp_w2.wait()
    # so its bytes never contend with w2 on the critical path.
    cp_w2 = pltpu.make_async_copy(w2_hbm, w2_vmem, dma_sem.at[0])
    cp_wmulv = pltpu.make_async_copy(wmulv_hbm, wmulv_vmem, dma_sem.at[1])
    cp_wd2 = pltpu.make_async_copy(wd2_hbm, wd2_vmem, dma_sem.at[2])
    cp_wd3 = pltpu.make_async_copy(wd3_hbm, wd3_vmem, dma_sem.at[3])
    cp_w2.start()
    cp_wmulv.start()
    cp_wd2.start()

    x = x_ref[...]
    y = y_ref[...]

    # ---- encoder block 1: Linear(x|y -> 800, bias=False) + BN + LeakyReLU + Dropout
    # y is one-hot, so the K=16 bf16 matmul is an exact row gather of w1y.
    h = _qdot(x, w1x_ref[...], s1x_ref[...]) + _bdot(y, w1y_ref[...])
    h = _leaky_relu(_bn_train(h, g1_ref[...], b1_ref[...])) * m1_ref[...]

    # ---- encoder block 2: Linear(800 -> 800, bias=False) + BN + LeakyReLU + Dropout
    cp_w2.wait()
    cp_wd3.start()  # deferred: start only once w2's bytes have landed
    # TODO(synk): on v7x, chunking w2/wd2 into K-slabs with per-slab semaphores
    # would hide the block-2 matmul under the tail of its own transfer.
    h = _qdot(h, w2_vmem[...], s2_ref[...])
    h = _leaky_relu(_bn_train(h, g2_ref[...], b2_ref[...])) * m2_ref[...]

    # ---- latent heads: [mu | log_var | 0-pad] fused into one (800, 128) matmul
    cp_wmulv.wait()
    ml = _bdot(h, wmulv_vmem[...]) + bmulv_ref[...]
    mulv_ref[...] = ml                       # lane-dense (B, 128) unmasked store
    mu = ml[:, :Z_DIM]
    lv = ml[:, Z_DIM:2 * Z_DIM]

    # ---- reparameterization z = mu + eps * exp(0.5 * log_var)
    z = mu + eps_ref[...] * jnp.exp(0.5 * lv)

    # ---- decoder block 1: Linear(z|y -> 800, bias=False) + BN + LeakyReLU + Dropout
    d = _bdot(z, wd1z_ref[...]) + _bdot(y, wd1y_ref[...])
    d = _leaky_relu(_bn_train(d, gd1_ref[...], bd1_ref[...])) * m3_ref[...]

    # ---- decoder block 2: Linear(800 -> 800, bias=False) + BN + LeakyReLU + Dropout
    cp_wd2.wait()
    d = _qdot(d, wd2_vmem[...], sd2_ref[...])
    d = _leaky_relu(_bn_train(d, gd2_ref[...], bd2_ref[...])) * m4_ref[...]

    # ---- decoder output: Linear(800 -> x_dim) + ReLU
    cp_wd3.wait()
    xh = _qdot(d, wd3_vmem[...], sd3_ref[...]) + bd3_ref[...]
    xhat_ref[...] = jnp.maximum(xh, 0.0)


# ------------------------------ wrapper --------------------------------------
@jax.jit
def cvae_forward(x, y, kp, masks, eps):
    """Whole CVAE forward in one Pallas kernel invocation."""
    vmem = pl.BlockSpec(memory_space=pltpu.MemorySpace.VMEM)
    hbm = pl.BlockSpec(memory_space=pl.ANY)

    vmem_inputs = (
        x, y,
        kp["w1x_q"], kp["s1x"], kp["w1y"], kp["g1"], kp["b1"], masks["m1"],
        kp["s2"], kp["g2"], kp["b2"], masks["m2"],
        kp["bmulv"], eps,
        kp["wd1z"], kp["wd1y"], kp["gd1"], kp["bd1"], masks["m3"],
        kp["sd2"], kp["gd2"], kp["bd2"], masks["m4"],
        kp["sd3"], kp["bd3"],
    )
    hbm_inputs = (kp["w2_q"], kp["wmulv"], kp["wd2_q"], kp["wd3_q"])

    out_shape = (
        jax.ShapeDtypeStruct((B, X_DIM), jnp.float32),       # x_hat
        jax.ShapeDtypeStruct((B, MULV_PAD), jnp.float32),    # [mu | log_var | pad]
    )
    xhat, mulv = pl.pallas_call(
        cvae_kernel,
        out_shape=out_shape,
        in_specs=[vmem] * len(vmem_inputs) + [hbm] * len(hbm_inputs),
        out_specs=(vmem, vmem),
        scratch_shapes=[
            pltpu.VMEM((H, H), jnp.int8),             # w2 (quantized)
            pltpu.VMEM((H, MULV_PAD), jnp.bfloat16),  # wmulv
            pltpu.VMEM((H, H), jnp.int8),             # wd2 (quantized)
            pltpu.VMEM((H, X_DIM), jnp.int8),         # wd3 (quantized)
            pltpu.SemaphoreType.DMA((4,)),
        ],
        compiler_params=pltpu.CompilerParams(vmem_limit_bytes=16 << 20),
    )(*vmem_inputs, *hbm_inputs)
    return xhat, mulv[:, :Z_DIM], mulv[:, Z_DIM:2 * Z_DIM]


# ------------------------------ pure-JAX reference (identical math) ----------
@jax.jit
def cvae_reference(x, y, kp, m, eps):
    h = _qdot(x, kp["w1x_q"], kp["s1x"]) + _bdot(y, kp["w1y"])
    h = _leaky_relu(_bn_train(h, kp["g1"], kp["b1"])) * m["m1"]
    h = _qdot(h, kp["w2_q"], kp["s2"])
    h = _leaky_relu(_bn_train(h, kp["g2"], kp["b2"])) * m["m2"]
    ml = _bdot(h, kp["wmulv"]) + kp["bmulv"]
    mu, lv = ml[:, :Z_DIM], ml[:, Z_DIM:2 * Z_DIM]
    z = mu + eps * jnp.exp(0.5 * lv)
    d = _bdot(z, kp["wd1z"]) + _bdot(y, kp["wd1y"])
    d = _leaky_relu(_bn_train(d, kp["gd1"], kp["bd1"])) * m["m3"]
    d = _qdot(d, kp["wd2_q"], kp["sd2"])
    d = _leaky_relu(_bn_train(d, kp["gd2"], kp["bd2"])) * m["m4"]
    xh = _qdot(d, kp["wd3_q"], kp["sd3"]) + kp["bd3"]
    return jnp.maximum(xh, 0.0), mu, lv


# ------------------------------ params ---------------------------------------
def init_params(key):
    ks = jax.random.split(key, 10)

    def w(k, shape, fan_in):
        return jax.random.normal(k, shape, jnp.float32) / jnp.sqrt(fan_in)

    return {
        # encoder Linear(x_dim + y_dim -> H, bias=False), split into x/y parts
        "w1x": w(ks[0], (X_DIM, H), X_DIM + Y_DIM),
        "w1y": w(ks[1], (Y_DIM, H), X_DIM + Y_DIM),
        "g1": jnp.ones((1, H), jnp.float32), "b1": jnp.zeros((1, H), jnp.float32),
        "w2": w(ks[2], (H, H), H),
        "g2": jnp.ones((1, H), jnp.float32), "b2": jnp.zeros((1, H), jnp.float32),
        # latent heads (with bias)
        "wmu": w(ks[3], (H, Z_DIM), H), "bmu": jnp.zeros((1, Z_DIM), jnp.float32),
        "wlv": w(ks[4], (H, Z_DIM), H), "blv": jnp.zeros((1, Z_DIM), jnp.float32),
        # decoder Linear(z_dim + y_dim -> H, bias=False), split into z/y parts
        "wd1z": w(ks[5], (Z_DIM, H), Z_DIM + Y_DIM),
        "wd1y": w(ks[6], (Y_DIM, H), Z_DIM + Y_DIM),
        "gd1": jnp.ones((1, H), jnp.float32), "bd1": jnp.zeros((1, H), jnp.float32),
        "wd2": w(ks[7], (H, H), H),
        "gd2": jnp.ones((1, H), jnp.float32), "bd2": jnp.zeros((1, H), jnp.float32),
        # decoder output Linear(H -> x_dim) with bias
        "wd3": w(ks[8], (H, X_DIM), H),
        "bd3": 0.01 * jax.random.normal(ks[9], (1, X_DIM), jnp.float32),
    }


def _quant_i8_cols(w_f32):
    """Per-output-column absmax int8 quantization; returns (int8 weight, f32 scale)."""
    amax = jnp.max(jnp.abs(w_f32), axis=0, keepdims=True)
    scale = jnp.maximum(amax, 1e-30) / 127.0
    q = jnp.round(w_f32 / scale).astype(jnp.int8)
    return q, scale.astype(jnp.float32)


def prepare_kernel_params(p):
    """One-time prep: int8 big weights + per-column scales, bf16 small weights,
    fused & 128-lane-padded mu|log_var head."""
    bf = lambda a: a.astype(jnp.bfloat16)
    w1x_q, s1x = _quant_i8_cols(p["w1x"])
    w2_q, s2 = _quant_i8_cols(p["w2"])
    wd2_q, sd2 = _quant_i8_cols(p["wd2"])
    wd3_q, sd3 = _quant_i8_cols(p["wd3"])
    pad_w = jnp.zeros((H, MULV_PAD - 2 * Z_DIM), jnp.float32)
    pad_b = jnp.zeros((1, MULV_PAD - 2 * Z_DIM), jnp.float32)
    return {
        "w1x_q": w1x_q, "s1x": s1x,
        "w1y": bf(p["w1y"]),
        "g1": p["g1"], "b1": p["b1"],
        "w2_q": w2_q, "s2": s2,
        "g2": p["g2"], "b2": p["b2"],
        "wmulv": bf(jnp.concatenate([p["wmu"], p["wlv"], pad_w], axis=1)),
        "bmulv": jnp.concatenate([p["bmu"], p["blv"], pad_b], axis=1),
        "wd1z": bf(p["wd1z"]),
        "wd1y": bf(p["wd1y"]),
        "gd1": p["gd1"], "bd1": p["bd1"],
        "wd2_q": wd2_q, "sd2": sd2,
        "gd2": p["gd2"], "bd2": p["bd2"],
        "wd3_q": wd3_q, "sd3": sd3,
        "bd3": p["bd3"],
    }


if __name__ == "__main__":
    key = jax.random.PRNGKey(0)
    k_param, k_x, k_y, k_m1, k_m2, k_m3, k_m4, k_eps = jax.random.split(key, 8)

    params = init_params(k_param)
    kparams = prepare_kernel_params(params)

    x = jax.random.normal(k_x, (B, X_DIM), jnp.float32)
    y_idx = jax.random.randint(k_y, (B,), 0, Y_DIM)
    y = jax.nn.one_hot(y_idx, Y_DIM, dtype=jnp.float32)   # condition one-hot

    keep = 1.0 - DROPOUT
    # Dropout keep-masks as bf16: 0 and 1.25 are exact in bf16, halving mask
    # HBM bytes while staying bit-identical to the f32 masks.
    # TODO(synk): masks / eps could be generated in-kernel with
    # pltpu.prng_seed + pltpu.prng_random_bits; kept host-side so the random
    # stream exactly matches the pure-JAX reference used for verification.
    def mk_mask(k):
        return jnp.where(jax.random.bernoulli(k, keep, (B, H)),
                         1.0 / keep, 0.0).astype(jnp.bfloat16)

    masks = {"m1": mk_mask(k_m1), "m2": mk_mask(k_m2),
             "m3": mk_mask(k_m3), "m4": mk_mask(k_m4)}
    eps = jax.random.normal(k_eps, (B, Z_DIM), jnp.float32)

    x_hat, mu, log_var = cvae_forward(x, y, kparams, masks, eps)
    jax.block_until_ready((x_hat, mu, log_var))

    # correctness check against a pure-JAX reference of the identical math
    x_hat_r, mu_r, lv_r = cvae_reference(x, y, kparams, masks, eps)
    assert x_hat.shape == (B, X_DIM)
    assert mu.shape == (B, Z_DIM) and log_var.shape == (B, Z_DIM)
    assert jnp.allclose(x_hat, x_hat_r, rtol=2e-3, atol=2e-3)
    assert jnp.allclose(mu, mu_r, rtol=2e-3, atol=2e-3)
    assert jnp.allclose(log_var, lv_r, rtol=2e-3, atol=2e-3)

    print("KERNEL_OK")
</pallas_src>

<mosaic_0001>
module attributes {stable_mosaic.version = 11 : i64} {
  func.func @cvae_kernel(%arg0: memref<16x256xf32, #tpu.memory_space<vmem>>, %arg1: memref<16x16xf32, #tpu.memory_space<vmem>>, %arg2: memref<256x800xi8, #tpu.memory_space<vmem>>, %arg3: memref<1x800xf32, #tpu.memory_space<vmem>>, %arg4: memref<16x800xbf16, #tpu.memory_space<vmem>>, %arg5: memref<1x800xf32, #tpu.memory_space<vmem>>, %arg6: memref<1x800xf32, #tpu.memory_space<vmem>>, %arg7: memref<16x800xbf16, #tpu.memory_space<vmem>>, %arg8: memref<1x800xf32, #tpu.memory_space<vmem>>, %arg9: memref<1x800xf32, #tpu.memory_space<vmem>>, %arg10: memref<1x800xf32, #tpu.memory_space<vmem>>, %arg11: memref<16x800xbf16, #tpu.memory_space<vmem>>, %arg12: memref<1x128xf32, #tpu.memory_space<vmem>>, %arg13: memref<16x32xf32, #tpu.memory_space<vmem>>, %arg14: memref<32x800xbf16, #tpu.memory_space<vmem>>, %arg15: memref<16x800xbf16, #tpu.memory_space<vmem>>, %arg16: memref<1x800xf32, #tpu.memory_space<vmem>>, %arg17: memref<1x800xf32, #tpu.memory_space<vmem>>, %arg18: memref<16x800xbf16, #tpu.memory_space<vmem>>, %arg19: memref<1x800xf32, #tpu.memory_space<vmem>>, %arg20: memref<1x800xf32, #tpu.memory_space<vmem>>, %arg21: memref<1x800xf32, #tpu.memory_space<vmem>>, %arg22: memref<16x800xbf16, #tpu.memory_space<vmem>>, %arg23: memref<1x256xf32, #tpu.memory_space<vmem>>, %arg24: memref<1x256xf32, #tpu.memory_space<vmem>>, %arg25: memref<800x800xi8, #tpu.memory_space<any>>, %arg26: memref<800x128xbf16, #tpu.memory_space<any>>, %arg27: memref<800x800xi8, #tpu.memory_space<any>>, %arg28: memref<800x256xi8, #tpu.memory_space<any>>, %arg29: memref<16x256xf32, #tpu.memory_space<vmem>>, %arg30: memref<16x128xf32, #tpu.memory_space<vmem>>, %arg31: memref<800x800xi8, #tpu.memory_space<vmem>>, %arg32: memref<800x128xbf16, #tpu.memory_space<vmem>>, %arg33: memref<800x800xi8, #tpu.memory_space<vmem>>, %arg34: memref<800x256xi8, #tpu.memory_space<vmem>>, %arg35: memref<4x!tpu.dma_semaphore, #tpu.memory_space<semaphore_mem>>) attributes {dimension_semantics = [], scalar_prefetch = 0 : i64, scratch_operands = 5 : i64, tpu.core_type = #tpu.core_type<tc>} {
    %c0_i32 = arith.constant 0 : i32
    %0 = tpu.memref_slice %arg35[%c0_i32] : memref<4x!tpu.dma_semaphore, #tpu.memory_space<semaphore_mem>> -> memref<1x!tpu.dma_semaphore, #tpu.memory_space<semaphore_mem>>
    %1 = tpu.memref_squeeze %0 : memref<1x!tpu.dma_semaphore, #tpu.memory_space<semaphore_mem>> -> memref<!tpu.dma_semaphore, #tpu.memory_space<semaphore_mem>>
    tpu.enqueue_dma source(%arg25 : memref<800x800xi8, #tpu.memory_space<any>>) target(%arg31 : memref<800x800xi8, #tpu.memory_space<vmem>>) target_semaphore(%1 : memref<!tpu.dma_semaphore, #tpu.memory_space<semaphore_mem>>)
    %c1_i32 = arith.constant 1 : i32
    %2 = tpu.memref_slice %arg35[%c1_i32] : memref<4x!tpu.dma_semaphore, #tpu.memory_space<semaphore_mem>> -> memref<1x!tpu.dma_semaphore, #tpu.memory_space<semaphore_mem>>
    %3 = tpu.memref_squeeze %2 : memref<1x!tpu.dma_semaphore, #tpu.memory_space<semaphore_mem>> -> memref<!tpu.dma_semaphore, #tpu.memory_space<semaphore_mem>>
    tpu.enqueue_dma source(%arg26 : memref<800x128xbf16, #tpu.memory_space<any>>) target(%arg32 : memref<800x128xbf16, #tpu.memory_space<vmem>>) target_semaphore(%3 : memref<!tpu.dma_semaphore, #tpu.memory_space<semaphore_mem>>)
    %c2_i32 = arith.constant 2 : i32
    %4 = tpu.memref_slice %arg35[%c2_i32] : memref<4x!tpu.dma_semaphore, #tpu.memory_space<semaphore_mem>> -> memref<1x!tpu.dma_semaphore, #tpu.memory_space<semaphore_mem>>
    %5 = tpu.memref_squeeze %4 : memref<1x!tpu.dma_semaphore, #tpu.memory_space<semaphore_mem>> -> memref<!tpu.dma_semaphore, #tpu.memory_space<semaphore_mem>>
    tpu.enqueue_dma source(%arg27 : memref<800x800xi8, #tpu.memory_space<any>>) target(%arg33 : memref<800x800xi8, #tpu.memory_space<vmem>>) target_semaphore(%5 : memref<!tpu.dma_semaphore, #tpu.memory_space<semaphore_mem>>)
    %c0 = arith.constant 0 : index
    %c0_0 = arith.constant 0 : index
    %6 = vector.load %arg0[%c0, %c0_0] : memref<16x256xf32, #tpu.memory_space<vmem>>, vector<16x256xf32>
    %c0_1 = arith.constant 0 : index
    %c0_2 = arith.constant 0 : index
    %7 = vector.load %arg1[%c0_1, %c0_2] : memref<16x16xf32, #tpu.memory_space<vmem>>, vector<16x16xf32>
    %c0_3 = arith.constant 0 : index
    %c0_4 = arith.constant 0 : index
    %8 = vector.load %arg2[%c0_3, %c0_4] : memref<256x800xi8, #tpu.memory_space<vmem>>, vector<256x800xi8>
    %c0_5 = arith.constant 0 : index
    %c0_6 = arith.constant 0 : index
    %9 = vector.load %arg3[%c0_5, %c0_6] : memref<1x800xf32, #tpu.memory_space<vmem>>, vector<1x800xf32>
    %10 = arith.truncf %6 : vector<16x256xf32> to vector<16x256xbf16>
    %11 = arith.sitofp %8 : vector<256x800xi8> to vector<256x800xbf16>
    %cst = arith.constant dense<0.000000e+00> : vector<16x800xf32>
    %12 = tpu.matmul %10, %11, %cst {dimension_numbers = #tpu.dot_dimension_numbers<[1], [0], [0], [1], [0, 0, 1, 1], [], []>} : vector<16x256xbf16>, vector<256x800xbf16>, vector<16x800xf32> -> vector<16x800xf32>
    %13 = vector.broadcast %9 : vector<1x800xf32> to vector<16x800xf32>
    %14 = arith.mulf %12, %13 : vector<16x800xf32>
    %c0_7 = arith.constant 0 : index
    %c0_8 = arith.constant 0 : index
    %15 = vector.load %arg4[%c0_7, %c0_8] : memref<16x800xbf16, #tpu.memory_space<vmem>>, vector<16x800xbf16>
    %16 = arith.truncf %7 : vector<16x16xf32> to vector<16x16xbf16>
    %cst_9 = arith.constant dense<0.000000e+00> : vector<16x800xf32>
    %17 = tpu.matmul %16, %15, %cst_9 {dimension_numbers = #tpu.dot_dimension_numbers<[1], [0], [0], [1], [0, 0, 1, 1], [], []>} : vector<16x16xbf16>, vector<16x800xbf16>, vector<16x800xf32> -> vector<16x800xf32>
    %18 = arith.addf %14, %17 : vector<16x800xf32>
    %c0_10 = arith.constant 0 : index
    %c0_11 = arith.constant 0 : index
    %19 = vector.load %arg5[%c0_10, %c0_11] : memref<1x800xf32, #tpu.memory_space<vmem>>, vector<1x800xf32>
    %c0_12 = arith.constant 0 : index
    %c0_13 = arith.constant 0 : index
    %20 = vector.load %arg6[%c0_12, %c0_13] : memref<1x800xf32, #tpu.memory_space<vmem>>, vector<1x800xf32>
    %cst_14 = arith.constant dense<0.000000e+00> : vector<800xf32>
    %21 = vector.multi_reduction <add>, %18, %cst_14 [0] : vector<16x800xf32> to vector<800xf32>
    %22 = vector.shape_cast %21 : vector<800xf32> to vector<1x800xf32>
    %cst_15 = arith.constant 1.600000e+01 : f32
    %23 = vector.broadcast %cst_15 : f32 to vector<1x800xf32>
    %24 = arith.divf %22, %23 : vector<1x800xf32>
    %25 = vector.broadcast %24 : vector<1x800xf32> to vector<16x800xf32>
    %26 = arith.subf %18, %25 : vector<16x800xf32>
    %27 = arith.mulf %26, %26 : vector<16x800xf32>
    %cst_16 = arith.constant dense<0.000000e+00> : vector<800xf32>
    %28 = vector.multi_reduction <add>, %27, %cst_16 [0] : vector<16x800xf32> to vector<800xf32>
    %29 = vector.shape_cast %28 : vector<800xf32> to vector<1x800xf32>
    %cst_17 = arith.constant 1.600000e+01 : f32
    %30 = vector.broadcast %cst_17 : f32 to vector<1x800xf32>
    %31 = arith.divf %29, %30 : vector<1x800xf32>
    %32 = vector.broadcast %24 : vector<1x800xf32> to vector<16x800xf32>
    %33 = arith.subf %18, %32 : vector<16x800xf32>
    %cst_18 = arith.constant 9.99999974E-6 : f32
    %34 = vector.broadcast %cst_18 : f32 to vector<1x800xf32>
    %35 = arith.addf %31, %34 : vector<1x800xf32>
    %36 = math.rsqrt %35 : vector<1x800xf32>
    %37 = vector.broadcast %36 : vector<1x800xf32> to vector<16x800xf32>
    %38 = arith.mulf %33, %37 : vector<16x800xf32>
    %39 = vector.broadcast %19 : vector<1x800xf32> to vector<16x800xf32>
    %40 = arith.mulf %38, %39 : vector<16x800xf32>
    %41 = vector.broadcast %20 : vector<1x800xf32> to vector<16x800xf32>
    %42 = arith.addf %40, %41 : vector<16x800xf32>
    %cst_19 = arith.constant 0.000000e+00 : f32
    %43 = vector.broadcast %cst_19 : f32 to vector<16x800xf32>
    %44 = arith.cmpf ogt, %42, %43 : vector<16x800xf32>
    %cst_20 = arith.constant 0.00999999977 : f32
    %45 = vector.broadcast %cst_20 : f32 to vector<16x800xf32>
    %46 = arith.mulf %45, %42 : vector<16x800xf32>
    %47 = arith.select %44, %42, %46 : vector<16x800xi1>, vector<16x800xf32>
    %c0_21 = arith.constant 0 : index
    %c0_22 = arith.constant 0 : index
    %48 = vector.load %arg7[%c0_21, %c0_22] : memref<16x800xbf16, #tpu.memory_space<vmem>>, vector<16x800xbf16>
    %49 = arith.extf %48 : vector<16x800xbf16> to vector<16x800xf32>
    %50 = arith.mulf %47, %49 : vector<16x800xf32>
    %c0_i32_23 = arith.constant 0 : i32
    %51 = tpu.memref_slice %arg35[%c0_i32_23] : memref<4x!tpu.dma_semaphore, #tpu.memory_space<semaphore_mem>> -> memref<1x!tpu.dma_semaphore, #tpu.memory_space<semaphore_mem>>
    %52 = tpu.memref_squeeze %51 : memref<1x!tpu.dma_semaphore, #tpu.memory_space<semaphore_mem>> -> memref<!tpu.dma_semaphore, #tpu.memory_space<semaphore_mem>>
    tpu.wait_dma2 semaphore(%52 : memref<!tpu.dma_semaphore, #tpu.memory_space<semaphore_mem>>) src(%arg25 : memref<800x800xi8, #tpu.memory_space<any>>) dst(%arg31 : memref<800x800xi8, #tpu.memory_space<vmem>>)
    %c3_i32 = arith.constant 3 : i32
    %53 = tpu.memref_slice %arg35[%c3_i32] : memref<4x!tpu.dma_semaphore, #tpu.memory_space<semaphore_mem>> -> memref<1x!tpu.dma_semaphore, #tpu.memory_space<semaphore_mem>>
    %54 = tpu.memref_squeeze %53 : memref<1x!tpu.dma_semaphore, #tpu.memory_space<semaphore_mem>> -> memref<!tpu.dma_semaphore, #tpu.memory_space<semaphore_mem>>
    tpu.enqueue_dma source(%arg28 : memref<800x256xi8, #tpu.memory_space<any>>) target(%arg34 : memref<800x256xi8, #tpu.memory_space<vmem>>) target_semaphore(%54 : memref<!tpu.dma_semaphore, #tpu.memory_space<semaphore_mem>>)
    %c0_24 = arith.constant 0 : index
    %c0_25 = arith.constant 0 : index
    %55 = vector.load %arg31[%c0_24, %c0_25] : memref<800x800xi8, #tpu.memory_space<vmem>>, vector<800x800xi8>
    %c0_26 = arith.constant 0 : index
    %c0_27 = arith.constant 0 : index
    %56 = vector.load %arg8[%c0_26, %c0_27] : memref<1x800xf32, #tpu.memory_space<vmem>>, vector<1x800xf32>
    %57 = arith.truncf %50 : vector<16x800xf32> to vector<16x800xbf16>
    %58 = arith.sitofp %55 : vector<800x800xi8> to vector<800x800xbf16>
    %cst_28 = arith.constant dense<0.000000e+00> : vector<16x800xf32>
    %59 = tpu.matmul %57, %58, %cst_28 {dimension_numbers = #tpu.dot_dimension_numbers<[1], [0], [0], [1], [0, 0, 1, 1], [], []>} : vector<16x800xbf16>, vector<800x800xbf16>, vector<16x800xf32> -> vector<16x800xf32>
    %60 = vector.broadcast %56 : vector<1x800xf32> to vector<16x800xf32>
    %61 = arith.mulf %59, %60 : vector<16x800xf32>
    %c0_29 = arith.constant 0 : index
    %c0_30 = arith.constant 0 : index
    %62 = vector.load %arg9[%c0_29, %c0_30] : memref<1x800xf32, #tpu.memory_space<vmem>>, vector<1x800xf32>
    %c0_31 = arith.constant 0 : index
    %c0_32 = arith.constant 0 : index
    %63 = vector.load %arg10[%c0_31, %c0_32] : memref<1x800xf32, #tpu.memory_space<vmem>>, vector<1x800xf32>
    %cst_33 = arith.constant dense<0.000000e+00> : vector<800xf32>
    %64 = vector.multi_reduction <add>, %61, %cst_33 [0] : vector<16x800xf32> to vector<800xf32>
    %65 = vector.shape_cast %64 : vector<800xf32> to vector<1x800xf32>
    %cst_34 = arith.constant 1.600000e+01 : f32
    %66 = vector.broadcast %cst_34 : f32 to vector<1x800xf32>
    %67 = arith.divf %65, %66 : vector<1x800xf32>
    %68 = vector.broadcast %67 : vector<1x800xf32> to vector<16x800xf32>
    %69 = arith.subf %61, %68 : vector<16x800xf32>
    %70 = arith.mulf %69, %69 : vector<16x800xf32>
    %cst_35 = arith.constant dense<0.000000e+00> : vector<800xf32>
    %71 = vector.multi_reduction <add>, %70, %cst_35 [0] : vector<16x800xf32> to vector<800xf32>
    %72 = vector.shape_cast %71 : vector<800xf32> to vector<1x800xf32>
    %cst_36 = arith.constant 1.600000e+01 : f32
    %73 = vector.broadcast %cst_36 : f32 to vector<1x800xf32>
    %74 = arith.divf %72, %73 : vector<1x800xf32>
    %75 = vector.broadcast %67 : vector<1x800xf32> to vector<16x800xf32>
    %76 = arith.subf %61, %75 : vector<16x800xf32>
    %cst_37 = arith.constant 9.99999974E-6 : f32
    %77 = vector.broadcast %cst_37 : f32 to vector<1x800xf32>
    %78 = arith.addf %74, %77 : vector<1x800xf32>
    %79 = math.rsqrt %78 : vector<1x800xf32>
    %80 = vector.broadcast %79 : vector<1x800xf32> to vector<16x800xf32>
    %81 = arith.mulf %76, %80 : vector<16x800xf32>
    %82 = vector.broadcast %62 : vector<1x800xf32> to vector<16x800xf32>
    %83 = arith.mulf %81, %82 : vector<16x800xf32>
    %84 = vector.broadcast %63 : vector<1x800xf32> to vector<16x800xf32>
    %85 = arith.addf %83, %84 : vector<16x800xf32>
    %cst_38 = arith.constant 0.000000e+00 : f32
    %86 = vector.broadcast %cst_38 : f32 to vector<16x800xf32>
    %87 = arith.cmpf ogt, %85, %86 : vector<16x800xf32>
    %cst_39 = arith.constant 0.00999999977 : f32
    %88 = vector.broadcast %cst_39 : f32 to vector<16x800xf32>
    %89 = arith.mulf %88, %85 : vector<16x800xf32>
    %90 = arith.select %87, %85, %89 : vector<16x800xi1>, vector<16x800xf32>
    %c0_40 = arith.constant 0 : index
    %c0_41 = arith.constant 0 : index
    %91 = vector.load %arg11[%c0_40, %c0_41] : memref<16x800xbf16, #tpu.memory_space<vmem>>, vector<16x800xbf16>
    %92 = arith.extf %91 : vector<16x800xbf16> to vector<16x800xf32>
    %93 = arith.mulf %90, %92 : vector<16x800xf32>
    %c1_i32_42 = arith.constant 1 : i32
    %94 = tpu.memref_slice %arg35[%c1_i32_42] : memref<4x!tpu.dma_semaphore, #tpu.memory_space<semaphore_mem>> -> memref<1x!tpu.dma_semaphore, #tpu.memory_space<semaphore_mem>>
    %95 = tpu.memref_squeeze %94 : memref<1x!tpu.dma_semaphore, #tpu.memory_space<semaphore_mem>> -> memref<!tpu.dma_semaphore, #tpu.memory_space<semaphore_mem>>
    tpu.wait_dma2 semaphore(%95 : memref<!tpu.dma_semaphore, #tpu.memory_space<semaphore_mem>>) src(%arg26 : memref<800x128xbf16, #tpu.memory_space<any>>) dst(%arg32 : memref<800x128xbf16, #tpu.memory_space<vmem>>)
    %c0_43 = arith.constant 0 : index
    %c0_44 = arith.constant 0 : index
    %96 = vector.load %arg32[%c0_43, %c0_44] : memref<800x128xbf16, #tpu.memory_space<vmem>>, vector<800x128xbf16>
    %97 = arith.truncf %93 : vector<16x800xf32> to vector<16x800xbf16>
    %cst_45 = arith.constant dense<0.000000e+00> : vector<16x128xf32>
    %98 = tpu.matmul %97, %96, %cst_45 {dimension_numbers = #tpu.dot_dimension_numbers<[1], [0], [0], [1], [0, 0, 1, 1], [], []>} : vector<16x800xbf16>, vector<800x128xbf16>, vector<16x128xf32> -> vector<16x128xf32>
    %c0_46 = arith.constant 0 : index
    %c0_47 = arith.constant 0 : index
    %99 = vector.load %arg12[%c0_46, %c0_47] : memref<1x128xf32, #tpu.memory_space<vmem>>, vector<1x128xf32>
    %100 = vector.broadcast %99 : vector<1x128xf32> to vector<16x128xf32>
    %101 = arith.addf %98, %100 : vector<16x128xf32>
    %c0_48 = arith.constant 0 : index
    %c0_49 = arith.constant 0 : index
    %102 = vector.load %arg30[%c0_48, %c0_49] : memref<16x128xf32, #tpu.memory_space<vmem>>, vector<16x128xf32>
    tpu.vector_store %arg30[%c0_48, %c0_49], %101 {strides = array<i32>} : memref<16x128xf32, #tpu.memory_space<vmem>>, vector<16x128xf32>,
    %103 = vector.extract_strided_slice %101 {offsets = [0, 0], sizes = [16, 32], strides = [1, 1]} : vector<16x128xf32> to vector<16x32xf32>
    %104 = vector.extract_strided_slice %101 {offsets = [0, 32], sizes = [16, 32], strides = [1, 1]} : vector<16x128xf32> to vector<16x32xf32>
    %c0_50 = arith.constant 0 : index
    %c0_51 = arith.constant 0 : index
    %105 = vector.load %arg13[%c0_50, %c0_51] : memref<16x32xf32, #tpu.memory_space<vmem>>, vector<16x32xf32>
    %cst_52 = arith.constant 5.000000e-01 : f32
    %106 = vector.broadcast %cst_52 : f32 to vector<16x32xf32>
    %107 = arith.mulf %106, %104 : vector<16x32xf32>
    %108 = math.exp %107 : vector<16x32xf32>
    %109 = arith.mulf %105, %108 : vector<16x32xf32>
    %110 = arith.addf %103, %109 : vector<16x32xf32>
    %c0_53 = arith.constant 0 : index
    %c0_54 = arith.constant 0 : index
    %111 = vector.load %arg14[%c0_53, %c0_54] : memref<32x800xbf16, #tpu.memory_space<vmem>>, vector<32x800xbf16>
    %112 = arith.truncf %110 : vector<16x32xf32> to vector<16x32xbf16>
    %cst_55 = arith.constant dense<0.000000e+00> : vector<16x800xf32>
    %113 = tpu.matmul %112, %111, %cst_55 {dimension_numbers = #tpu.dot_dimension_numbers<[1], [0], [0], [1], [0, 0, 1, 1], [], []>} : vector<16x32xbf16>, vector<32x800xbf16>, vector<16x800xf32> -> vector<16x800xf32>
    %c0_56 = arith.constant 0 : index
    %c0_57 = arith.constant 0 : index
    %114 = vector.load %arg15[%c0_56, %c0_57] : memref<16x800xbf16, #tpu.memory_space<vmem>>, vector<16x800xbf16>
    %115 = arith.truncf %7 : vector<16x16xf32> to vector<16x16xbf16>
    %cst_58 = arith.constant dense<0.000000e+00> : vector<16x800xf32>
    %116 = tpu.matmul %115, %114, %cst_58 {dimension_numbers = #tpu.dot_dimension_numbers<[1], [0], [0], [1], [0, 0, 1, 1], [], []>} : vector<16x16xbf16>, vector<16x800xbf16>, vector<16x800xf32> -> vector<16x800xf32>
    %117 = arith.addf %113, %116 : vector<16x800xf32>
    %c0_59 = arith.constant 0 : index
    %c0_60 = arith.constant 0 : index
    %118 = vector.load %arg16[%c0_59, %c0_60] : memref<1x800xf32, #tpu.memory_space<vmem>>, vector<1x800xf32>
    %c0_61 = arith.constant 0 : index
    %c0_62 = arith.constant 0 : index
    %119 = vector.load %arg17[%c0_61, %c0_62] : memref<1x800xf32, #tpu.memory_space<vmem>>, vector<1x800xf32>
    %cst_63 = arith.constant dense<0.000000e+00> : vector<800xf32>
    %120 = vector.multi_reduction <add>, %117, %cst_63 [0] : vector<16x800xf32> to vector<800xf32>
    %121 = vector.shape_cast %120 : vector<800xf32> to vector<1x800xf32>
    %cst_64 = arith.constant 1.600000e+01 : f32
    %122 = vector.broadcast %cst_64 : f32 to vector<1x800xf32>
    %123 = arith.divf %121, %122 : vector<1x800xf32>
    %124 = vector.broadcast %123 : vector<1x800xf32> to vector<16x800xf32>
    %125 = arith.subf %117, %124 : vector<16x800xf32>
    %126 = arith.mulf %125, %125 : vector<16x800xf32>
    %cst_65 = arith.constant dense<0.000000e+00> : vector<800xf32>
    %127 = vector.multi_reduction <add>, %126, %cst_65 [0] : vector<16x800xf32> to vector<800xf32>
    %128 = vector.shape_cast %127 : vector<800xf32> to vector<1x800xf32>
    %cst_66 = arith.constant 1.600000e+01 : f32
    %129 = vector.broadcast %cst_66 : f32 to vector<1x800xf32>
    %130 = arith.divf %128, %129 : vector<1x800xf32>
    %131 = vector.broadcast %123 : vector<1x800xf32> to vector<16x800xf32>
    %132 = arith.subf %117, %131 : vector<16x800xf32>
    %cst_67 = arith.constant 9.99999974E-6 : f32
    %133 = vector.broadcast %cst_67 : f32 to vector<1x800xf32>
    %134 = arith.addf %130, %133 : vector<1x800xf32>
    %135 = math.rsqrt %134 : vector<1x800xf32>
    %136 = vector.broadcast %135 : vector<1x800xf32> to vector<16x800xf32>
    %137 = arith.mulf %132, %136 : vector<16x800xf32>
    %138 = vector.broadcast %118 : vector<1x800xf32> to vector<16x800xf32>
    %139 = arith.mulf %137, %138 : vector<16x800xf32>
    %140 = vector.broadcast %119 : vector<1x800xf32> to vector<16x800xf32>
    %141 = arith.addf %139, %140 : vector<16x800xf32>
    %cst_68 = arith.constant 0.000000e+00 : f32
    %142 = vector.broadcast %cst_68 : f32 to vector<16x800xf32>
    %143 = arith.cmpf ogt, %141, %142 : vector<16x800xf32>
    %cst_69 = arith.constant 0.00999999977 : f32
    %144 = vector.broadcast %cst_69 : f32 to vector<16x800xf32>
    %145 = arith.mulf %144, %141 : vector<16x800xf32>
    %146 = arith.select %143, %141, %145 : vector<16x800xi1>, vector<16x800xf32>
    %c0_70 = arith.constant 0 : index
    %c0_71 = arith.constant 0 : index
    %147 = vector.load %arg18[%c0_70, %c0_71] : memref<16x800xbf16, #tpu.memory_space<vmem>>, vector<16x800xbf16>
    %148 = arith.extf %147 : vector<16x800xbf16> to vector<16x800xf32>
    %149 = arith.mulf %146, %148 : vector<16x800xf32>
    %c2_i32_72 = arith.constant 2 : i32
    %150 = tpu.memref_slice %arg35[%c2_i32_72] : memref<4x!tpu.dma_semaphore, #tpu.memory_space<semaphore_mem>> -> memref<1x!tpu.dma_semaphore, #tpu.memory_space<semaphore_mem>>
    %151 = tpu.memref_squeeze %150 : memref<1x!tpu.dma_semaphore, #tpu.memory_space<semaphore_mem>> -> memref<!tpu.dma_semaphore, #tpu.memory_space<semaphore_mem>>
    tpu.wait_dma2 semaphore(%151 : memref<!tpu.dma_semaphore, #tpu.memory_space<semaphore_mem>>) src(%arg27 : memref<800x800xi8, #tpu.memory_space<any>>) dst(%arg33 : memref<800x800xi8, #tpu.memory_space<vmem>>)
    %c0_73 = arith.constant 0 : index
    %c0_74 = arith.constant 0 : index
    %152 = vector.load %arg33[%c0_73, %c0_74] : memref<800x800xi8, #tpu.memory_space<vmem>>, vector<800x800xi8>
    %c0_75 = arith.constant 0 : index
    %c0_76 = arith.constant 0 : index
    %153 = vector.load %arg19[%c0_75, %c0_76] : memref<1x800xf32, #tpu.memory_space<vmem>>, vector<1x800xf32>
    %154 = arith.truncf %149 : vector<16x800xf32> to vector<16x800xbf16>
    %155 = arith.sitofp %152 : vector<800x800xi8> to vector<800x800xbf16>
    %cst_77 = arith.constant dense<0.000000e+00> : vector<16x800xf32>
    %156 = tpu.matmul %154, %155, %cst_77 {dimension_numbers = #tpu.dot_dimension_numbers<[1], [0], [0], [1], [0, 0, 1, 1], [], []>} : vector<16x800xbf16>, vector<800x800xbf16>, vector<16x800xf32> -> vector<16x800xf32>
    %157 = vector.broadcast %153 : vector<1x800xf32> to vector<16x800xf32>
    %158 = arith.mulf %156, %157 : vector<16x800xf32>
    %c0_78 = arith.constant 0 : index
    %c0_79 = arith.constant 0 : index
    %159 = vector.load %arg20[%c0_78, %c0_79] : memref<1x800xf32, #tpu.memory_space<vmem>>, vector<1x800xf32>
    %c0_80 = arith.constant 0 : index
    %c0_81 = arith.constant 0 : index
    %160 = vector.load %arg21[%c0_80, %c0_81] : memref<1x800xf32, #tpu.memory_space<vmem>>, vector<1x800xf32>
    %cst_82 = arith.constant dense<0.000000e+00> : vector<800xf32>
    %161 = vector.multi_reduction <add>, %158, %cst_82 [0] : vector<16x800xf32> to vector<800xf32>
    %162 = vector.shape_cast %161 : vector<800xf32> to vector<1x800xf32>
    %cst_83 = arith.constant 1.600000e+01 : f32
    %163 = vector.broadcast %cst_83 : f32 to vector<1x800xf32>
    %164 = arith.divf %162, %163 : vector<1x800xf32>
    %165 = vector.broadcast %164 : vector<1x800xf32> to vector<16x800xf32>
    %166 = arith.subf %158, %165 : vector<16x800xf32>
    %167 = arith.mulf %166, %166 : vector<16x800xf32>
    %cst_84 = arith.constant dense<0.000000e+00> : vector<800xf32>
    %168 = vector.multi_reduction <add>, %167, %cst_84 [0] : vector<16x800xf32> to vector<800xf32>
    %169 = vector.shape_cast %168 : vector<800xf32> to vector<1x800xf32>
    %cst_85 = arith.constant 1.600000e+01 : f32
    %170 = vector.broadcast %cst_85 : f32 to vector<1x800xf32>
    %171 = arith.divf %169, %170 : vector<1x800xf32>
    %172 = vector.broadcast %164 : vector<1x800xf32> to vector<16x800xf32>
    %173 = arith.subf %158, %172 : vector<16x800xf32>
    %cst_86 = arith.constant 9.99999974E-6 : f32
    %174 = vector.broadcast %cst_86 : f32 to vector<1x800xf32>
    %175 = arith.addf %171, %174 : vector<1x800xf32>
    %176 = math.rsqrt %175 : vector<1x800xf32>
    %177 = vector.broadcast %176 : vector<1x800xf32> to vector<16x800xf32>
    %178 = arith.mulf %173, %177 : vector<16x800xf32>
    %179 = vector.broadcast %159 : vector<1x800xf32> to vector<16x800xf32>
    %180 = arith.mulf %178, %179 : vector<16x800xf32>
    %181 = vector.broadcast %160 : vector<1x800xf32> to vector<16x800xf32>
    %182 = arith.addf %180, %181 : vector<16x800xf32>
    %cst_87 = arith.constant 0.000000e+00 : f32
    %183 = vector.broadcast %cst_87 : f32 to vector<16x800xf32>
    %184 = arith.cmpf ogt, %182, %183 : vector<16x800xf32>
    %cst_88 = arith.constant 0.00999999977 : f32
    %185 = vector.broadcast %cst_88 : f32 to vector<16x800xf32>
    %186 = arith.mulf %185, %182 : vector<16x800xf32>
    %187 = arith.select %184, %182, %186 : vector<16x800xi1>, vector<16x800xf32>
    %c0_89 = arith.constant 0 : index
    %c0_90 = arith.constant 0 : index
    %188 = vector.load %arg22[%c0_89, %c0_90] : memref<16x800xbf16, #tpu.memory_space<vmem>>, vector<16x800xbf16>
    %189 = arith.extf %188 : vector<16x800xbf16> to vector<16x800xf32>
    %190 = arith.mulf %187, %189 : vector<16x800xf32>
    %c3_i32_91 = arith.constant 3 : i32
    %191 = tpu.memref_slice %arg35[%c3_i32_91] : memref<4x!tpu.dma_semaphore, #tpu.memory_space<semaphore_mem>> -> memref<1x!tpu.dma_semaphore, #tpu.memory_space<semaphore_mem>>
    %192 = tpu.memref_squeeze %191 : memref<1x!tpu.dma_semaphore, #tpu.memory_space<semaphore_mem>> -> memref<!tpu.dma_semaphore, #tpu.memory_space<semaphore_mem>>
    tpu.wait_dma2 semaphore(%192 : memref<!tpu.dma_semaphore, #tpu.memory_space<semaphore_mem>>) src(%arg28 : memref<800x256xi8, #tpu.memory_space<any>>) dst(%arg34 : memref<800x256xi8, #tpu.memory_space<vmem>>)
    %c0_92 = arith.constant 0 : index
    %c0_93 = arith.constant 0 : index
    %193 = vector.load %arg34[%c0_92, %c0_93] : memref<800x256xi8, #tpu.memory_space<vmem>>, vector<800x256xi8>
    %c0_94 = arith.constant 0 : index
    %c0_95 = arith.constant 0 : index
    %194 = vector.load %arg23[%c0_94, %c0_95] : memref<1x256xf32, #tpu.memory_space<vmem>>, vector<1x256xf32>
    %195 = arith.truncf %190 : vector<16x800xf32> to vector<16x800xbf16>
    %196 = arith.sitofp %193 : vector<800x256xi8> to vector<800x256xbf16>
    %cst_96 = arith.constant dense<0.000000e+00> : vector<16x256xf32>
    %197 = tpu.matmul %195, %196, %cst_96 {dimension_numbers = #tpu.dot_dimension_numbers<[1], [0], [0], [1], [0, 0, 1, 1], [], []>} : vector<16x800xbf16>, vector<800x256xbf16>, vector<16x256xf32> -> vector<16x256xf32>
    %198 = vector.broadcast %194 : vector<1x256xf32> to vector<16x256xf32>
    %199 = arith.mulf %197, %198 : vector<16x256xf32>
    %c0_97 = arith.constant 0 : index
    %c0_98 = arith.constant 0 : index
    %200 = vector.load %arg24[%c0_97, %c0_98] : memref<1x256xf32, #tpu.memory_space<vmem>>, vector<1x256xf32>
    %201 = vector.broadcast %200 : vector<1x256xf32> to vector<16x256xf32>
    %202 = arith.addf %199, %201 : vector<16x256xf32>
    %cst_99 = arith.constant 0.000000e+00 : f32
    %203 = vector.broadcast %cst_99 : f32 to vector<16x256xf32>
    %204 = arith.maximumf %202, %203 : vector<16x256xf32>
    %c0_100 = arith.constant 0 : index
    %c0_101 = arith.constant 0 : index
    %205 = vector.load %arg29[%c0_100, %c0_101] : memref<16x256xf32, #tpu.memory_space<vmem>>, vector<16x256xf32>
    tpu.vector_store %arg29[%c0_100, %c0_101], %204 {strides = array<i32>} : memref<16x256xf32, #tpu.memory_space<vmem>>, vector<16x256xf32>,
    return
  }
}

</mosaic_0001>

<llo_original>
// kernel: cvae_forward.1
$region0: #{cvae_forward.1}
  #allocation0 [shape = 'u32[]', space=smem, size = 0x4, offset = 0x4, fixed_abs, tag = 'smem constant byte address 0x4 - core index']
  #allocation1 [shape = 'u32[144,128]{1,0:T(1,128)}', space=vmem, size = 0x12000, scoped, tag = 'internal scratch']
  #allocation2 [shape = 's8[800,800]{1,0:T(32,128)(4,1)}', space=vmem, size = 0xaf000, scoped, tag = 'scratch operand']
  #allocation3 [shape = 'bf16[800,128]{1,0:T(8,128)(2,1)}', space=vmem, size = 0x32000, scoped, tag = 'scratch operand']
  #allocation4 [shape = 's8[800,800]{1,0:T(32,128)(4,1)}', space=vmem, size = 0xaf000, scoped, tag = 'scratch operand']
  #allocation5 [shape = 's8[800,256]{1,0:T(32,128)(4,1)}', space=vmem, size = 0x32000, scoped, tag = 'scratch operand']
  #allocation6 [shape = 's32[4]{0}', space=sflag, size = 0x10, scoped, tag = 'scratch operand']
  #allocation40 [shape = 's32[]', space=sflag, size = 0x4, offset = 0, fixed_abs, tag = 'sflag constant byte address 0x0 - dummy sync flag']
  #allocation41 [shape = 's32[]', space=sflag, size = 0x4, offset = 0, fixed_abs, tag = 'sflag constant byte address 0x0 - dummy sync flag']
  #allocation42 [shape = 'u32[]', space=smem, size = 0x4, offset = 0x44, fixed_abs, tag = 'smem constant byte address 0x44 - assertion arg 0']
  #allocation43 [shape = 'u32[]', space=smem, size = 0x4, offset = 0x48, fixed_abs, tag = 'smem constant byte address 0x48 - assertion arg 1']
  #allocation44 [shape = 's32[]', space=sflag, size = 0x4, offset = 0, fixed_abs, tag = 'sflag constant byte address 0x0 - dummy sync flag']
  #allocation45 [shape = 's32[]', space=sflag, size = 0x4, offset = 0, fixed_abs, tag = 'sflag constant byte address 0x0 - dummy sync flag']
  #allocation46 [shape = 's32[]', space=sflag, size = 0x4, offset = 0, fixed_abs, tag = 'sflag constant byte address 0x0 - dummy sync flag']
  #allocation47 [shape = 's32[]', space=sflag, size = 0x4, offset = 0, fixed_abs, tag = 'sflag constant byte address 0x0 - dummy sync flag']
  %s0 = inlined_call_operand.smem [shape: u32[31], index: -1, kind: input, shape index: {}]
  %s1 = sld [smem:[%s0]]
  %s2 = scalar_lea.smem %s0, 1
  %s3 = sld [smem:[%s2]]
  %s4 = scalar_lea.smem %s0, 2
  %s5 = sld [smem:[%s4]]
  %s6 = scalar_lea.smem %s0, 3
  %s7 = sld [smem:[%s6]]
  %s8 = scalar_lea.smem %s0, 4
  %s9 = sld [smem:[%s8]]
  %s10 = scalar_lea.smem %s0, 5
  %s11 = sld [smem:[%s10]]
  %s12 = scalar_lea.smem %s0, 6
  %s13 = sld [smem:[%s12]]
  %s14 = scalar_lea.smem %s0, 7
  %s15 = sld [smem:[%s14]]
  %s16 = scalar_lea.smem %s0, 8
  %s17 = sld [smem:[%s16]]
  %s18 = scalar_lea.smem %s0, 9
  %s19 = sld [smem:[%s18]]
  %s20 = scalar_lea.smem %s0, 10
  %s21 = sld [smem:[%s20]]
  %s22 = scalar_lea.smem %s0, 11
  %s23 = sld [smem:[%s22]]
  %s24 = scalar_lea.smem %s0, 12
  %s25 = sld [smem:[%s24]]
  %s26 = scalar_lea.smem %s0, 13
  %s27 = sld [smem:[%s26]]
  %s28 = scalar_lea.smem %s0, 14
  %s29 = sld [smem:[%s28]]
  %s30 = scalar_lea.smem %s0, 15
  %s31 = sld [smem:[%s30]]
  %s32 = scalar_lea.smem %s0, 16
  %s33 = sld [smem:[%s32]]
  %s34 = scalar_lea.smem %s0, 17
  %s35 = sld [smem:[%s34]]
  %s36 = scalar_lea.smem %s0, 18
  %s37 = sld [smem:[%s36]]
  %s38 = scalar_lea.smem %s0, 19
  %s39 = sld [smem:[%s38]]
  %s40 = scalar_lea.smem %s0, 20
  %s41 = sld [smem:[%s40]]
  %s42 = scalar_lea.smem %s0, 21
  %s43 = sld [smem:[%s42]]
  %s44 = scalar_lea.smem %s0, 22
  %s45 = sld [smem:[%s44]]
  %s46 = scalar_lea.smem %s0, 23
  %s47 = sld [smem:[%s46]]
  %s48 = scalar_lea.smem %s0, 24
  %s49 = sld [smem:[%s48]]
  %s50 = scalar_lea.smem %s0, 25
  %s51 = sld [smem:[%s50]]
  %s52 = scalar_lea.smem %s0, 26
  %s53 = sld [smem:[%s52]]
  %s54 = scalar_lea.smem %s0, 27
  %s55 = sld [smem:[%s54]]
  %s56 = scalar_lea.smem %s0, 28
  %s57 = sld [smem:[%s56]]
  %s58 = scalar_lea.smem %s0, 29
  %s59 = sld [smem:[%s58]]
  %s60 = scalar_lea.smem %s0, 30
  %s61 = sld [smem:[%s60]]
  %62 = xla_tuple %s59, %s61
  %s63 = sld [smem:[#allocation0]]
  $region274: #{cvae_forward.1} parent=0
    _
  %s65 = ssub.s32 1, %s63
  %s66 = scalar_select 0, %s65, %s63
  $region1: #{cvae_forward.1} parent=0
    #allocation7 [shape = 'u8[16384]{0}', space=vmem, size = 0x4000, scoped, tag = 'input window, operand 0, single buffered']
    #allocation8 [shape = 's32[1]{0}', space=sflag, size = 0x4, scoped, tag = 'scoped memory for cvae_forward.1']
    #allocation9 [shape = 's32[1]{0}', space=sflag, size = 0x4, scoped, tag = 'scoped memory for cvae_forward.1']
    #allocation10 [shape = 'u8[8192]{0}', space=vmem, size = 0x2000, scoped, tag = 'input window, operand 1, single buffered']
    #allocation11 [shape = 's32[1]{0}', space=sflag, size = 0x4, scoped, tag = 'scoped memory for cvae_forward.1']
    #allocation12 [shape = 'u8[3584]{0}', space=vmem, size = 0x1000, scoped, tag = 'input window, operand 3, single buffered']
    #allocation13 [shape = 'u8[3584]{0}', space=vmem, size = 0x1000, scoped, tag = 'input window, operand 5, single buffered']
    #allocation14 [shape = 's32[1]{0}', space=sflag, size = 0x4, scoped, tag = 'scoped memory for cvae_forward.1']
    #allocation15 [shape = 'u8[3584]{0}', space=vmem, size = 0x1000, scoped, tag = 'input window, operand 6, single buffered']
    #allocation16 [shape = 'u8[28672]{0}', space=vmem, size = 0x7000, scoped, tag = 'input window, operand 7, single buffered']
    #allocation17 [shape = 's32[1]{0}', space=sflag, size = 0x4, scoped, tag = 'scoped memory for cvae_forward.1']
    #allocation18 [shape = 'u8[3584]{0}', space=vmem, size = 0x1000, scoped, tag = 'input window, operand 8, single buffered']
    #allocation19 [shape = 'u8[3584]{0}', space=vmem, size = 0x1000, scoped, tag = 'input window, operand 9, single buffered']
    #allocation20 [shape = 's32[1]{0}', space=sflag, size = 0x4, scoped, tag = 'scoped memory for cvae_forward.1']
    #allocation21 [shape = 'u8[3584]{0}', space=vmem, size = 0x1000, scoped, tag = 'input window, operand 10, single buffered']
    #allocation22 [shape = 'u8[28672]{0}', space=vmem, size = 0x7000, scoped, tag = 'input window, operand 11, single buffered']
    #allocation23 [shape = 's32[1]{0}', space=sflag, size = 0x4, scoped, tag = 'scoped memory for cvae_forward.1']
    #allocation24 [shape = 'u8[57344]{0}', space=vmem, size = 0xe000, scoped, tag = 'input window, operand 14, single buffered']
    #allocation25 [shape = 'u8[28672]{0}', space=vmem, size = 0x7000, scoped, tag = 'input window, operand 15, single buffered']
    #allocation26 [shape = 's32[1]{0}', space=sflag, size = 0x4, scoped, tag = 'scoped memory for cvae_forward.1']
    #allocation27 [shape = 'u8[3584]{0}', space=vmem, size = 0x1000, scoped, tag = 'input window, operand 16, single buffered']
    #allocation28 [shape = 'u8[3584]{0}', space=vmem, size = 0x1000, scoped, tag = 'input window, operand 17, single buffered']
    #allocation29 [shape = 's32[1]{0}', space=sflag, size = 0x4, scoped, tag = 'scoped memory for cvae_forward.1']
    #allocation30 [shape = 'u8[28672]{0}', space=vmem, size = 0x7000, scoped, tag = 'input window, operand 18, single buffered']
    #allocation31 [shape = 'u8[3584]{0}', space=vmem, size = 0x1000, scoped, tag = 'input window, operand 19, single buffered']
    #allocation32 [shape = 's32[1]{0}', space=sflag, size = 0x4, scoped, tag = 'scoped memory for cvae_forward.1']
    #allocation33 [shape = 'u8[3584]{0}', space=vmem, size = 0x1000, scoped, tag = 'input window, operand 20, single buffered']
    #allocation34 [shape = 'u8[3584]{0}', space=vmem, size = 0x1000, scoped, tag = 'input window, operand 21, single buffered']
    #allocation35 [shape = 's32[1]{0}', space=sflag, size = 0x4, scoped, tag = 'scoped memory for cvae_forward.1']
    #allocation36 [shape = 'u8[28672]{0}', space=vmem, size = 0x7000, scoped, tag = 'input window, operand 22, single buffered']
    #allocation37 [shape = 'u8[1024]{0}', space=vmem, size = 0x400, scoped, tag = 'input window, operand 24, single buffered']
    #allocation38 [shape = 's32[1]{0}', space=sflag, size = 0x4, scoped, tag = 'scoped memory for cvae_forward.1']
    #allocation39 [shape = 'u8[16384]{0}', space=vmem, size = 0x4000, scoped, tag = 'output window, operand 0, single buffered']
    %67 = vsyncpa [#allocation8], 0
    %68 = vsyncpa [#allocation11], 0
    %69 = vsyncpa [#allocation14], 0
    %70 = vsyncpa [#allocation17], 0
    %71 = vsyncpa [#allocation20], 0
    %72 = vsyncpa [#allocation23], 0
    %73 = vsyncpa [#allocation26], 0
    %74 = vsyncpa [#allocation29], 0
    %75 = vsyncpa [#allocation32], 0
    %76 = vsyncpa [#allocation35], 0
    %77 = vsyncpa [#allocation38], 0
    %78 = vsyncpa [#allocation9], 0
    // Predicated region
    $region2: #{cvae_forward.1} parent=1 // pred_check
      _
    $region3: #{cvae_forward.1} parent=1 // pred_check_branch
      %80 = sbr.rel (0) target = $region5
    $region4: #{cvae_forward.1} parent=1 // pred_region
      %s82 = ssub.s32 512, 512
      %83 = vsyncadd [#allocation8], %s82
      %s84 = sshll.u32 [#allocation7], 4
      %s85 = int_to_ptr.vmem [resolvable:$true] %s84
      %90 = dma.hbm_to_vmem [thread:$0]  %s1, 512, %s85, [#allocation8], 256, 256, 16
    $region5: #{cvae_forward.1} parent=1 // pred_fallthru
      _
    // Predicated region
    $region6: #{cvae_forward.1} parent=1 // pred_check
      _
    $region7: #{cvae_forward.1} parent=1 // pred_check_branch
      %92 = sbr.rel (0) target = $region9
    $region8: #{cvae_forward.1} parent=1 // pred_region
      %s94 = ssub.s32 256, 256
      %95 = vsyncadd [#allocation11], %s94
      %s96 = sshll.u32 [#allocation10], 4
      %s97 = int_to_ptr.vmem [resolvable:$true] %s96
      %102 = dma.hbm_to_vmem [thread:$0]  %s3, 256, %s97, [#allocation11], 128, 128, 8
    $region9: #{cvae_forward.1} parent=1 // pred_fallthru
      _
    // Predicated region
    $region10: #{cvae_forward.1} parent=1 // pred_check
      _
    $region11: #{cvae_forward.1} parent=1 // pred_check_branch
      %104 = sbr.rel (0) target = $region13
    $region12: #{cvae_forward.1} parent=1 // pred_region
      _
    $region13: #{cvae_forward.1} parent=1 // pred_fallthru
      _
    // Predicated region
    $region14: #{cvae_forward.1} parent=1 // pred_check
      _
    $region15: #{cvae_forward.1} parent=1 // pred_check_branch
      %106 = sbr.rel (0) target = $region17
    $region16: #{cvae_forward.1} parent=1 // pred_region
      %s108 = ssub.s32 112, 112
      %109 = vsyncadd [#allocation11], %s108
      %s111 = sshll.u32 [#allocation12], 4
      %s112 = int_to_ptr.vmem [resolvable:$true] %s111
      %114 = dma.hbm_to_vmem [thread:$0]  %s7, 112, %s112, [#allocation11]
    $region17: #{cvae_forward.1} parent=1 // pred_fallthru
      _
    // Predicated region
    $region18: #{cvae_forward.1} parent=1 // pred_check
      _
    $region19: #{cvae_forward.1} parent=1 // pred_check_branch
      %116 = sbr.rel (0) target = $region21
    $region20: #{cvae_forward.1} parent=1 // pred_region
      _
    $region21: #{cvae_forward.1} parent=1 // pred_fallthru
      _
    // Predicated region
    $region22: #{cvae_forward.1} parent=1 // pred_check
      _
    $region23: #{cvae_forward.1} parent=1 // pred_check_branch
      %118 = sbr.rel (0) target = $region25
    $region24: #{cvae_forward.1} parent=1 // pred_region
      %s120 = ssub.s32 112, 112
      %121 = vsyncadd [#allocation14], %s120
      %s123 = sshll.u32 [#allocation13], 4
      %s124 = int_to_ptr.vmem [resolvable:$true] %s123
      %126 = dma.hbm_to_vmem [thread:$0]  %s11, 112, %s124, [#allocation14]
    $region25: #{cvae_forward.1} parent=1 // pred_fallthru
      _
    // Predicated region
    $region26: #{cvae_forward.1} parent=1 // pred_check
      _
    $region27: #{cvae_forward.1} parent=1 // pred_check_branch
      %128 = sbr.rel (0) target = $region29
    $region28: #{cvae_forward.1} parent=1 // pred_region
      %s130 = ssub.s32 112, 112
      %131 = vsyncadd [#allocation14], %s130
      %s133 = sshll.u32 [#allocation15], 4
      %s134 = int_to_ptr.vmem [resolvable:$true] %s133
      %136 = dma.hbm_to_vmem [thread:$0]  %s13, 112, %s134, [#allocation14]
    $region29: #{cvae_forward.1} parent=1 // pred_fallthru
      _
    // Predicated region
    $region30: #{cvae_forward.1} parent=1 // pred_check
      _
    $region31: #{cvae_forward.1} parent=1 // pred_check_branch
      %138 = sbr.rel (0) target = $region33
    $region32: #{cvae_forward.1} parent=1 // pred_region
      %s140 = ssub.s32 896, 896
      %141 = vsyncadd [#allocation17], %s140
      %s142 = sshll.u32 [#allocation16], 4
      %s143 = int_to_ptr.vmem [resolvable:$true] %s142
      %148 = dma.hbm_to_vmem [thread:$0]  %s15, 896, %s143, [#allocation17], 448, 448, 28
    $region33: #{cvae_forward.1} parent=1 // pred_fallthru
      _
    // Predicated region
    $region34: #{cvae_forward.1} parent=1 // pred_check
      _
    $region35: #{cvae_forward.1} parent=1 // pred_check_branch
      %150 = sbr.rel (0) target = $region37
    $region36: #{cvae_forward.1} parent=1 // pred_region
      %s152 = ssub.s32 112, 112
      %153 = vsyncadd [#allocation17], %s152
      %s155 = sshll.u32 [#allocation18], 4
      %s156 = int_to_ptr.vmem [resolvable:$true] %s155
      %158 = dma.hbm_to_vmem [thread:$0]  %s17, 112, %s156, [#allocation17]
    $region37: #{cvae_forward.1} parent=1 // pred_fallthru
      _
    // Predicated region
    $region38: #{cvae_forward.1} parent=1 // pred_check
      _
    $region39: #{cvae_forward.1} parent=1 // pred_check_branch
      %160 = sbr.rel (0) target = $region41
    $region40: #{cvae_forward.1} parent=1 // pred_region
      %s162 = ssub.s32 112, 112
      %163 = vsyncadd [#allocation20], %s162
      %s165 = sshll.u32 [#allocation19], 4
      %s166 = int_to_ptr.vmem [resolvable:$true] %s165
      %168 = dma.hbm_to_vmem [thread:$0]  %s19, 112, %s166, [#allocation20]
    $region41: #{cvae_forward.1} parent=1 // pred_fallthru
      _
    // Predicated region
    $region42: #{cvae_forward.1} parent=1 // pred_check
      _
    $region43: #{cvae_forward.1} parent=1 // pred_check_branch
      %170 = sbr.rel (0) target = $region45
    $region44: #{cvae_forward.1} parent=1 // pred_region
      %s172 = ssub.s32 112, 112
      %173 = vsyncadd [#allocation20], %s172
      %s175 = sshll.u32 [#allocation21], 4
      %s176 = int_to_ptr.vmem [resolvable:$true] %s175
      %178 = dma.hbm_to_vmem [thread:$0]  %s21, 112, %s176, [#allocation20]
    $region45: #{cvae_forward.1} parent=1 // pred_fallthru
      _
    // Predicated region
    $region46: #{cvae_forward.1} parent=1 // pred_check
      _
    $region47: #{cvae_forward.1} parent=1 // pred_check_branch
      %180 = sbr.rel (0) target = $region49
    $region48: #{cvae_forward.1} parent=1 // pred_region
      %s182 = ssub.s32 896, 896
      %183 = vsyncadd [#allocation23], %s182
      %s184 = sshll.u32 [#allocation22], 4
      %s185 = int_to_ptr.vmem [resolvable:$true] %s184
      %190 = dma.hbm_to_vmem [thread:$0]  %s23, 896, %s185, [#allocation23], 448, 448, 28
    $region49: #{cvae_forward.1} parent=1 // pred_fallthru
      _
    // Predicated region
    $region50: #{cvae_forward.1} parent=1 // pred_check
      _
    $region51: #{cvae_forward.1} parent=1 // pred_check_branch
      %192 = sbr.rel (0) target = $region53
    $region52: #{cvae_forward.1} parent=1 // pred_region
      _
    $region53: #{cvae_forward.1} parent=1 // pred_fallthru
      _
    // Predicated region
    $region54: #{cvae_forward.1} parent=1 // pred_check
      _
    $region55: #{cvae_forward.1} parent=1 // pred_check_branch
      %194 = sbr.rel (0) target = $region57
    $region56: #{cvae_forward.1} parent=1 // pred_region
      _
    $region57: #{cvae_forward.1} parent=1 // pred_fallthru
      _
    // Predicated region
    $region58: #{cvae_forward.1} parent=1 // pred_check
      _
    $region59: #{cvae_forward.1} parent=1 // pred_check_branch
      %196 = sbr.rel (0) target = $region61
    $region60: #{cvae_forward.1} parent=1 // pred_region
      %s198 = ssub.s32 1792, 1792
      %199 = vsyncadd [#allocation23], %s198
      %s200 = sshll.u32 [#allocation24], 4
      %s201 = int_to_ptr.vmem [resolvable:$true] %s200
      %206 = dma.hbm_to_vmem [thread:$0]  %s29, 1792, %s201, [#allocation23], 448, 448, 28
    $region61: #{cvae_forward.1} parent=1 // pred_fallthru
      _
    // Predicated region
    $region62: #{cvae_forward.1} parent=1 // pred_check
      _
    $region63: #{cvae_forward.1} parent=1 // pred_check_branch
      %208 = sbr.rel (0) target = $region65
    $region64: #{cvae_forward.1} parent=1 // pred_region
      %s210 = ssub.s32 896, 896
      %211 = vsyncadd [#allocation26], %s210
      %s212 = sshll.u32 [#allocation25], 4
      %s213 = int_to_ptr.vmem [resolvable:$true] %s212
      %218 = dma.hbm_to_vmem [thread:$0]  %s31, 896, %s213, [#allocation26], 448, 448, 28
    $region65: #{cvae_forward.1} parent=1 // pred_fallthru
      _
    // Predicated region
    $region66: #{cvae_forward.1} parent=1 // pred_check
      _
    $region67: #{cvae_forward.1} parent=1 // pred_check_branch
      %220 = sbr.rel (0) target = $region69
    $region68: #{cvae_forward.1} parent=1 // pred_region
      %s222 = ssub.s32 112, 112
      %223 = vsyncadd [#allocation26], %s222
      %s225 = sshll.u32 [#allocation27], 4
      %s226 = int_to_ptr.vmem [resolvable:$true] %s225
      %228 = dma.hbm_to_vmem [thread:$0]  %s33, 112, %s226, [#allocation26]
    $region69: #{cvae_forward.1} parent=1 // pred_fallthru
      _
    // Predicated region
    $region70: #{cvae_forward.1} parent=1 // pred_check
      _
    $region71: #{cvae_forward.1} parent=1 // pred_check_branch
      %230 = sbr.rel (0) target = $region73
    $region72: #{cvae_forward.1} parent=1 // pred_region
      %s232 = ssub.s32 112, 112
      %233 = vsyncadd [#allocation29], %s232
      %s235 = sshll.u32 [#allocation28], 4
      %s236 = int_to_ptr.vmem [resolvable:$true] %s235
      %238 = dma.hbm_to_vmem [thread:$0]  %s35, 112, %s236, [#allocation29]
    $region73: #{cvae_forward.1} parent=1 // pred_fallthru
      _
    // Predicated region
    $region74: #{cvae_forward.1} parent=1 // pred_check
      _
    $region75: #{cvae_forward.1} parent=1 // pred_check_branch
      %240 = sbr.rel (0) target = $region77
    $region76: #{cvae_forward.1} parent=1 // pred_region
      %s242 = ssub.s32 896, 896
      %243 = vsyncadd [#allocation29], %s242
      %s244 = sshll.u32 [#allocation30], 4
      %s245 = int_to_ptr.vmem [resolvable:$true] %s244
      %250 = dma.hbm_to_vmem [thread:$0]  %s37, 896, %s245, [#allocation29], 448, 448, 28
    $region77: #{cvae_forward.1} parent=1 // pred_fallthru
      _
    // Predicated region
    $region78: #{cvae_forward.1} parent=1 // pred_check
      _
    $region79: #{cvae_forward.1} parent=1 // pred_check_branch
      %252 = sbr.rel (0) target = $region81
    $region80: #{cvae_forward.1} parent=1 // pred_region
      %s254 = ssub.s32 112, 112
      %255 = vsyncadd [#allocation32], %s254
      %s257 = sshll.u32 [#allocation31], 4
      %s258 = int_to_ptr.vmem [resolvable:$true] %s257
      %260 = dma.hbm_to_vmem [thread:$0]  %s39, 112, %s258, [#allocation32]
    $region81: #{cvae_forward.1} parent=1 // pred_fallthru
      _
    // Predicated region
    $region82: #{cvae_forward.1} parent=1 // pred_check
      _
    $region83: #{cvae_forward.1} parent=1 // pred_check_branch
      %262 = sbr.rel (0) target = $region85
    $region84: #{cvae_forward.1} parent=1 // pred_region
      %s264 = ssub.s32 112, 112
      %265 = vsyncadd [#allocation32], %s264
      %s267 = sshll.u32 [#allocation33], 4
      %s268 = int_to_ptr.vmem [resolvable:$true] %s267
      %270 = dma.hbm_to_vmem [thread:$0]  %s41, 112, %s268, [#allocation32]
    $region85: #{cvae_forward.1} parent=1 // pred_fallthru
      _
    // Predicated region
    $region86: #{cvae_forward.1} parent=1 // pred_check
      _
    $region87: #{cvae_forward.1} parent=1 // pred_check_branch
      %272 = sbr.rel (0) target = $region89
    $region88: #{cvae_forward.1} parent=1 // pred_region
      %s274 = ssub.s32 112, 112
      %275 = vsyncadd [#allocation35], %s274
      %s277 = sshll.u32 [#allocation34], 4
      %s278 = int_to_ptr.vmem [resolvable:$true] %s277
      %280 = dma.hbm_to_vmem [thread:$0]  %s43, 112, %s278, [#allocation35]
    $region89: #{cvae_forward.1} parent=1 // pred_fallthru
      _
    // Predicated region
    $region90: #{cvae_forward.1} parent=1 // pred_check
      _
    $region91: #{cvae_forward.1} parent=1 // pred_check_branch
      %282 = sbr.rel (0) target = $region93
    $region92: #{cvae_forward.1} parent=1 // pred_region
      %s284 = ssub.s32 896, 896
      %285 = vsyncadd [#allocation35], %s284
      %s286 = sshll.u32 [#allocation36], 4
      %s287 = int_to_ptr.vmem [resolvable:$true] %s286
      %292 = dma.hbm_to_vmem [thread:$0]  %s45, 896, %s287, [#allocation35], 448, 448, 28
    $region93: #{cvae_forward.1} parent=1 // pred_fallthru
      _
    // Predicated region
    $region94: #{cvae_forward.1} parent=1 // pred_check
      _
    $region95: #{cvae_forward.1} parent=1 // pred_check_branch
      %294 = sbr.rel (0) target = $region97
    $region96: #{cvae_forward.1} parent=1 // pred_region
      _
    $region97: #{cvae_forward.1} parent=1 // pred_fallthru
      _
    // Predicated region
    $region98: #{cvae_forward.1} parent=1 // pred_check
      _
    $region99: #{cvae_forward.1} parent=1 // pred_check_branch
      %296 = sbr.rel (0) target = $region101
    $region100: #{cvae_forward.1} parent=1 // pred_region
      %s298 = ssub.s32 32, 32
      %299 = vsyncadd [#allocation38], %s298
      %s301 = sshll.u32 [#allocation37], 4
      %s302 = int_to_ptr.vmem [resolvable:$true] %s301
      %304 = dma.hbm_to_vmem [thread:$0]  %s49, 32, %s302, [#allocation38]
    $region101: #{cvae_forward.1} parent=1 // pred_fallthru
      _
    // Predicated region
    $region102: #{cvae_forward.1} parent=1 // pred_check
      _
    $region103: #{cvae_forward.1} parent=1 // pred_check_branch
      %306 = sbr.rel (0) target = $region105
    $region104: #{cvae_forward.1} parent=1 // pred_region
      %307 = dma.done [#allocation8], 512
    $region105: #{cvae_forward.1} parent=1 // pred_fallthru
      _
    // Predicated region
    $region106: #{cvae_forward.1} parent=1 // pred_check
      _
    $region107: #{cvae_forward.1} parent=1 // pred_check_branch
      %309 = sbr.rel (0) target = $region109
    $region108: #{cvae_forward.1} parent=1 // pred_region
      %310 = dma.done [#allocation11], 256
    $region109: #{cvae_forward.1} parent=1 // pred_fallthru
      _
    // Predicated region
    $region110: #{cvae_forward.1} parent=1 // pred_check
      _
    $region111: #{cvae_forward.1} parent=1 // pred_check_branch
      %312 = sbr.rel (0) target = $region113
    $region112: #{cvae_forward.1} parent=1 // pred_region
      %313 = dma.done [#allocation11], 112
    $region113: #{cvae_forward.1} parent=1 // pred_fallthru
      _
    // Predicated region
    $region114: #{cvae_forward.1} parent=1 // pred_check
      _
    $region115: #{cvae_forward.1} parent=1 // pred_check_branch
      %315 = sbr.rel (0) target = $region117
    $region116: #{cvae_forward.1} parent=1 // pred_region
      %316 = dma.done [#allocation14], 112
    $region117: #{cvae_forward.1} parent=1 // pred_fallthru
      _
    // Predicated region
    $region118: #{cvae_forward.1} parent=1 // pred_check
      _
    $region119: #{cvae_forward.1} parent=1 // pred_check_branch
      %318 = sbr.rel (0) target = $region121
    $region120: #{cvae_forward.1} parent=1 // pred_region
      %319 = dma.done [#allocation14], 112
    $region121: #{cvae_forward.1} parent=1 // pred_fallthru
      _
    // Predicated region
    $region122: #{cvae_forward.1} parent=1 // pred_check
      _
    $region123: #{cvae_forward.1} parent=1 // pred_check_branch
      %321 = sbr.rel (0) target = $region125
    $region124: #{cvae_forward.1} parent=1 // pred_region
      %322 = dma.done [#allocation17], 896
    $region125: #{cvae_forward.1} parent=1 // pred_fallthru
      _
    // Predicated region
    $region126: #{cvae_forward.1} parent=1 // pred_check
      _
    $region127: #{cvae_forward.1} parent=1 // pred_check_branch
      %324 = sbr.rel (0) target = $region129
    $region128: #{cvae_forward.1} parent=1 // pred_region
      %325 = dma.done [#allocation17], 112
    $region129: #{cvae_forward.1} parent=1 // pred_fallthru
      _
    // Predicated region
    $region130: #{cvae_forward.1} parent=1 // pred_check
      _
    $region131: #{cvae_forward.1} parent=1 // pred_check_branch
      %327 = sbr.rel (0) target = $region133
    $region132: #{cvae_forward.1} parent=1 // pred_region
      %328 = dma.done [#allocation20], 112
    $region133: #{cvae_forward.1} parent=1 // pred_fallthru
      _
    // Predicated region
    $region134: #{cvae_forward.1} parent=1 // pred_check
      _
    $region135: #{cvae_forward.1} parent=1 // pred_check_branch
      %330 = sbr.rel (0) target = $region137
    $region136: #{cvae_forward.1} parent=1 // pred_region
      %331 = dma.done [#allocation20], 112
    $region137: #{cvae_forward.1} parent=1 // pred_fallthru
      _
    // Predicated region
    $region138: #{cvae_forward.1} parent=1 // pred_check
      _
    $region139: #{cvae_forward.1} parent=1 // pred_check_branch
      %333 = sbr.rel (0) target = $region141
    $region140: #{cvae_forward.1} parent=1 // pred_region
      %334 = dma.done [#allocation23], 896
    $region141: #{cvae_forward.1} parent=1 // pred_fallthru
      _
    // Predicated region
    $region142: #{cvae_forward.1} parent=1 // pred_check
      _
    $region143: #{cvae_forward.1} parent=1 // pred_check_branch
      %336 = sbr.rel (0) target = $region145
    $region144: #{cvae_forward.1} parent=1 // pred_region
      %337 = dma.done [#allocation23], 1792
    $region145: #{cvae_forward.1} parent=1 // pred_fallthru
      _
    // Predicated region
    $region146: #{cvae_forward.1} parent=1 // pred_check
      _
    $region147: #{cvae_forward.1} parent=1 // pred_check_branch
      %339 = sbr.rel (0) target = $region149
    $region148: #{cvae_forward.1} parent=1 // pred_region
      %340 = dma.done [#allocation26], 896
    $region149: #{cvae_forward.1} parent=1 // pred_fallthru
      _
    // Predicated region
    $region150: #{cvae_forward.1} parent=1 // pred_check
      _
    $region151: #{cvae_forward.1} parent=1 // pred_check_branch
      %342 = sbr.rel (0) target = $region153
    $region152: #{cvae_forward.1} parent=1 // pred_region
      %343 = dma.done [#allocation26], 112
    $region153: #{cvae_forward.1} parent=1 // pred_fallthru
      _
    // Predicated region
    $region154: #{cvae_forward.1} parent=1 // pred_check
      _
    $region155: #{cvae_forward.1} parent=1 // pred_check_branch
      %345 = sbr.rel (0) target = $region157
    $region156: #{cvae_forward.1} parent=1 // pred_region
      %346 = dma.done [#allocation29], 112
    $region157: #{cvae_forward.1} parent=1 // pred_fallthru
      _
    // Predicated region
    $region158: #{cvae_forward.1} parent=1 // pred_check
      _
    $region159: #{cvae_forward.1} parent=1 // pred_check_branch
      %348 = sbr.rel (0) target = $region161
    $region160: #{cvae_forward.1} parent=1 // pred_region
      %349 = dma.done [#allocation29], 896
    $region161: #{cvae_forward.1} parent=1 // pred_fallthru
      _
    // Predicated region
    $region162: #{cvae_forward.1} parent=1 // pred_check
      _
    $region163: #{cvae_forward.1} parent=1 // pred_check_branch
      %351 = sbr.rel (0) target = $region165
    $region164: #{cvae_forward.1} parent=1 // pred_region
      %352 = dma.done [#allocation32], 112
    $region165: #{cvae_forward.1} parent=1 // pred_fallthru
      _
    // Predicated region
    $region166: #{cvae_forward.1} parent=1 // pred_check
      _
    $region167: #{cvae_forward.1} parent=1 // pred_check_branch
      %354 = sbr.rel (0) target = $region169
    $region168: #{cvae_forward.1} parent=1 // pred_region
      %355 = dma.done [#allocation32], 112
    $region169: #{cvae_forward.1} parent=1 // pred_fallthru
      _
    // Predicated region
    $region170: #{cvae_forward.1} parent=1 // pred_check
      _
    $region171: #{cvae_forward.1} parent=1 // pred_check_branch
      %357 = sbr.rel (0) target = $region173
    $region172: #{cvae_forward.1} parent=1 // pred_region
      %358 = dma.done [#allocation35], 112
    $region173: #{cvae_forward.1} parent=1 // pred_fallthru
      _
    // Predicated region
    $region174: #{cvae_forward.1} parent=1 // pred_check
      _
    $region175: #{cvae_forward.1} parent=1 // pred_check_branch
      %360 = sbr.rel (0) target = $region177
    $region176: #{cvae_forward.1} parent=1 // pred_region
      %361 = dma.done [#allocation35], 896
    $region177: #{cvae_forward.1} parent=1 // pred_fallthru
      _
    // Predicated region
    $region178: #{cvae_forward.1} parent=1 // pred_check
      _
    $region179: #{cvae_forward.1} parent=1 // pred_check_branch
      %363 = sbr.rel (0) target = $region181
    $region180: #{cvae_forward.1} parent=1 // pred_region
      %364 = dma.done [#allocation38], 32
    $region181: #{cvae_forward.1} parent=1 // pred_fallthru
      _
    // Predicated region
    $region182: #{cvae_forward.1} parent=1 // pred_check
      _
    $region183: #{cvae_forward.1} parent=1 // pred_check_branch
      %367 = sbr.rel target = $region185
    $region184: #{cvae_forward.1} parent=1 // pred_region
      %368 = sst [smem:[#allocation42]] [#allocation41]
      %369 = sst [smem:[#allocation43]] [#allocation40]
    $region185: #{cvae_forward.1} parent=1 // pred_fallthru
      _
    %371 = shalt.err (0)
    %s373 = sshll.u32 [#allocation2], 4
    %s374 = int_to_ptr.vmem [resolvable:$true] %s373
    %376 = dma.hbm_to_vmem [thread:$0]  %s51, 22400, %s374, [#allocation6]
    %s377 = scalar_lea.sflag [#allocation6], 1
    %p379 = scmp.lt.u32.totalorder 400, 8
    %p380 = pneg %p379
    // Predicated region
    $region186: #{cvae_forward.1} parent=1 // pred_check
      _
    $region187: #{cvae_forward.1} parent=1 // pred_check_branch
      %382 = sbr.rel (%p379) target = $region189
    $region188: #{cvae_forward.1} parent=1 // pred_region
      %s398 = sand.u32 400, 7
      %p399 = scmp.eq.s32.totalorder %s398, 0
      // Predicated region
      $region201: #{cvae_forward.1} parent=188 // pred_check
        %p400 = pneg %p399
      $region202: #{cvae_forward.1} parent=188 // pred_check_branch
        %402 = sbr.rel (%p400) target = $region204
      $region203: #{cvae_forward.1} parent=188 // pred_region
        loop: start=0, step=1, limit=1
        $region205: #{cvae_forward.1} parent=203 // loop_pre_header
          _
        $region206: #{cvae_forward.1} parent=203 // loop_header
          %s404 = sphi 0, %s408
          %p405 = scmp.ge.s32.totalorder %s404, 1
          %s409 = sphi %s53, %s53
          %s410 = sphi [#allocation3], [#allocation3]
        $region207: #{cvae_forward.1} parent=203 // loop_header_branch
          %407 = sbr.rel (%p405) target = $region211
        $region208: #{cvae_forward.1} parent=203 // loop_body
          %v411 = vld [vmem:[%s409] sm:$0xff]
          %412 = vst [vmem:[%s410] sm:$0xff] %v411
          %v413 = vld [vmem:[%s409 + $0x8] sm:$0xff]
          %414 = vst [vmem:[%s410 + $0x8] sm:$0xff] %v413
          %v415 = vld [vmem:[%s409 + $0x10] sm:$0xff]
          %416 = vst [vmem:[%s410 + $0x10] sm:$0xff] %v415
          %v417 = vld [vmem:[%s409 + $0x18] sm:$0xff]
          %418 = vst [vmem:[%s410 + $0x18] sm:$0xff] %v417
          %v419 = vld [vmem:[%s409 + $0x20] sm:$0xff]
          %420 = vst [vmem:[%s410 + $0x20] sm:$0xff] %v419
          %v421 = vld [vmem:[%s409 + $0x28] sm:$0xff]
          %422 = vst [vmem:[%s410 + $0x28] sm:$0xff] %v421
          %v423 = vld [vmem:[%s409 + $0x30] sm:$0xff]
          %424 = vst [vmem:[%s410 + $0x30] sm:$0xff] %v423
          %v425 = vld [vmem:[%s409 + $0x38] sm:$0xff]
          %426 = vst [vmem:[%s410 + $0x38] sm:$0xff] %v425
          %v427 = vld [vmem:[%s409 + $0x40] sm:$0xff]
          %428 = vst [vmem:[%s410 + $0x40] sm:$0xff] %v427
          %v429 = vld [vmem:[%s409 + $0x48] sm:$0xff]
          %430 = vst [vmem:[%s410 + $0x48] sm:$0xff] %v429
          %v431 = vld [vmem:[%s409 + $0x50] sm:$0xff]
          %432 = vst [vmem:[%s410 + $0x50] sm:$0xff] %v431
          %v433 = vld [vmem:[%s409 + $0x58] sm:$0xff]
          %434 = vst [vmem:[%s410 + $0x58] sm:$0xff] %v433
          %v435 = vld [vmem:[%s409 + $0x60] sm:$0xff]
          %436 = vst [vmem:[%s410 + $0x60] sm:$0xff] %v435
          %v437 = vld [vmem:[%s409 + $0x68] sm:$0xff]
          %438 = vst [vmem:[%s410 + $0x68] sm:$0xff] %v437
          %v439 = vld [vmem:[%s409 + $0x70] sm:$0xff]
          %440 = vst [vmem:[%s410 + $0x70] sm:$0xff] %v439
          %v441 = vld [vmem:[%s409 + $0x78] sm:$0xff]
          %442 = vst [vmem:[%s410 + $0x78] sm:$0xff] %v441
          %v443 = vld [vmem:[%s409 + $0x80] sm:$0xff]
          %444 = vst [vmem:[%s410 + $0x80] sm:$0xff] %v443
          %v445 = vld [vmem:[%s409 + $0x88] sm:$0xff]
          %446 = vst [vmem:[%s410 + $0x88] sm:$0xff] %v445
          %v447 = vld [vmem:[%s409 + $0x90] sm:$0xff]
          %448 = vst [vmem:[%s410 + $0x90] sm:$0xff] %v447
          %v449 = vld [vmem:[%s409 + $0x98] sm:$0xff]
          %450 = vst [vmem:[%s410 + $0x98] sm:$0xff] %v449
          %v451 = vld [vmem:[%s409 + $0xa0] sm:$0xff]
          %452 = vst [vmem:[%s410 + $0xa0] sm:$0xff] %v451
          %v453 = vld [vmem:[%s409 + $0xa8] sm:$0xff]
          %454 = vst [vmem:[%s410 + $0xa8] sm:$0xff] %v453
          %v455 = vld [vmem:[%s409 + $0xb0] sm:$0xff]
          %456 = vst [vmem:[%s410 + $0xb0] sm:$0xff] %v455
          %v457 = vld [vmem:[%s409 + $0xb8] sm:$0xff]
          %458 = vst [vmem:[%s410 + $0xb8] sm:$0xff] %v457
          %v459 = vld [vmem:[%s409 + $0xc0] sm:$0xff]
          %460 = vst [vmem:[%s410 + $0xc0] sm:$0xff] %v459
          %v461 = vld [vmem:[%s409 + $0xc8] sm:$0xff]
          %462 = vst [vmem:[%s410 + $0xc8] sm:$0xff] %v461
          %v463 = vld [vmem:[%s409 + $0xd0] sm:$0xff]
          %464 = vst [vmem:[%s410 + $0xd0] sm:$0xff] %v463
          %v465 = vld [vmem:[%s409 + $0xd8] sm:$0xff]
          %466 = vst [vmem:[%s410 + $0xd8] sm:$0xff] %v465
          %v467 = vld [vmem:[%s409 + $0xe0] sm:$0xff]
          %468 = vst [vmem:[%s410 + $0xe0] sm:$0xff] %v467
          %v469 = vld [vmem:[%s409 + $0xe8] sm:$0xff]
          %470 = vst [vmem:[%s410 + $0xe8] sm:$0xff] %v469
          %v471 = vld [vmem:[%s409 + $0xf0] sm:$0xff]
          %472 = vst [vmem:[%s410 + $0xf0] sm:$0xff] %v471
          %v473 = vld [vmem:[%s409 + $0xf8] sm:$0xff]
          %474 = vst [vmem:[%s410 + $0xf8] sm:$0xff] %v473
          %v475 = vld [vmem:[%s409 + $0x100] sm:$0xff]
          %476 = vst [vmem:[%s410 + $0x100] sm:$0xff] %v475
          %v477 = vld [vmem:[%s409 + $0x108] sm:$0xff]
          %478 = vst [vmem:[%s410 + $0x108] sm:$0xff] %v477
          %v479 = vld [vmem:[%s409 + $0x110] sm:$0xff]
          %480 = vst [vmem:[%s410 + $0x110] sm:$0xff] %v479
          %v481 = vld [vmem:[%s409 + $0x118] sm:$0xff]
          %482 = vst [vmem:[%s410 + $0x118] sm:$0xff] %v481
          %v483 = vld [vmem:[%s409 + $0x120] sm:$0xff]
          %484 = vst [vmem:[%s410 + $0x120] sm:$0xff] %v483
          %v485 = vld [vmem:[%s409 + $0x128] sm:$0xff]
          %486 = vst [vmem:[%s410 + $0x128] sm:$0xff] %v485
          %v487 = vld [vmem:[%s409 + $0x130] sm:$0xff]
          %488 = vst [vmem:[%s410 + $0x130] sm:$0xff] %v487
          %v489 = vld [vmem:[%s409 + $0x138] sm:$0xff]
          %490 = vst [vmem:[%s410 + $0x138] sm:$0xff] %v489
          %v491 = vld [vmem:[%s409 + $0x140] sm:$0xff]
          %492 = vst [vmem:[%s410 + $0x140] sm:$0xff] %v491
          %v493 = vld [vmem:[%s409 + $0x148] sm:$0xff]
          %494 = vst [vmem:[%s410 + $0x148] sm:$0xff] %v493
          %v495 = vld [vmem:[%s409 + $0x150] sm:$0xff]
          %496 = vst [vmem:[%s410 + $0x150] sm:$0xff] %v495
          %v497 = vld [vmem:[%s409 + $0x158] sm:$0xff]
          %498 = vst [vmem:[%s410 + $0x158] sm:$0xff] %v497
          %v499 = vld [vmem:[%s409 + $0x160] sm:$0xff]
          %500 = vst [vmem:[%s410 + $0x160] sm:$0xff] %v499
          %v501 = vld [vmem:[%s409 + $0x168] sm:$0xff]
          %502 = vst [vmem:[%s410 + $0x168] sm:$0xff] %v501
          %v503 = vld [vmem:[%s409 + $0x170] sm:$0xff]
          %504 = vst [vmem:[%s410 + $0x170] sm:$0xff] %v503
          %v505 = vld [vmem:[%s409 + $0x178] sm:$0xff]
          %506 = vst [vmem:[%s410 + $0x178] sm:$0xff] %v505
          %v507 = vld [vmem:[%s409 + $0x180] sm:$0xff]
          %508 = vst [vmem:[%s410 + $0x180] sm:$0xff] %v507
          %v509 = vld [vmem:[%s409 + $0x188] sm:$0xff]
          %510 = vst [vmem:[%s410 + $0x188] sm:$0xff] %v509
        $region209: #{cvae_forward.1} parent=203 // loop_footer
          %s408 = sadd.s32 1, %s404
        $region210: #{cvae_forward.1} parent=203 // loop_footer_branch
          %403 = sbr.rel target = $region206
        $region211: #{cvae_forward.1} parent=203 // loop_exit
          _
      $region204: #{cvae_forward.1} parent=188 // pred_fallthru
        _
      %p511 = pneg %p399
      // Predicated region
      $region212: #{cvae_forward.1} parent=188 // pred_check
        _
      $region213: #{cvae_forward.1} parent=188 // pred_check_branch
        %513 = sbr.rel (%p399) target = $region215
      $region214: #{cvae_forward.1} parent=188 // pred_region
        %s514 = sand.u32 400, 7
      $region215: #{cvae_forward.1} parent=188 // pred_fallthru
        _
    $region189: #{cvae_forward.1} parent=1 // pred_fallthru
      _
    // Predicated region
    $region190: #{cvae_forward.1} parent=1 // pred_check
      %p383 = pneg %p379
    $region191: #{cvae_forward.1} parent=1 // pred_check_branch
      %385 = sbr.rel (%p383) target = $region193
    $region192: #{cvae_forward.1} parent=1 // pred_region
      %s386 = sshll.u32 1, 400
      %s387 = ssub.s32 %s386, 1
      loop: start=0, step=1, limit=1
      $region194: #{cvae_forward.1} parent=192 // loop_pre_header
        _
      $region195: #{cvae_forward.1} parent=192 // loop_header
        %s389 = sphi 0, %s393
        %p390 = scmp.ge.s32.totalorder %s389, 1
        %s394 = sphi %s53, %s53
        %s395 = sphi [#allocation3], [#allocation3]
      $region196: #{cvae_forward.1} parent=192 // loop_header_branch
        %392 = sbr.rel (%p390) target = $region200
      $region197: #{cvae_forward.1} parent=192 // loop_body
        %v396 = vld [vmem:[%s394] sm:%s387]
        %397 = vst [vmem:[%s395] sm:%s387] %v396
      $region198: #{cvae_forward.1} parent=192 // loop_footer
        %s393 = sadd.s32 1, %s389
      $region199: #{cvae_forward.1} parent=192 // loop_footer_branch
        %388 = sbr.rel target = $region195
      $region200: #{cvae_forward.1} parent=192 // loop_exit
        _
    $region193: #{cvae_forward.1} parent=1 // pred_fallthru
      _
    // Predicated region
    $region216: #{cvae_forward.1} parent=1 // pred_check
      _
    $region217: #{cvae_forward.1} parent=1 // pred_check_branch
      %517 = sbr.rel (0) target = $region219
    $region218: #{cvae_forward.1} parent=1 // pred_region
      %518 = vsyncadd %s377, 6400
    $region219: #{cvae_forward.1} parent=1 // pred_fallthru
      _
    %s519 = scalar_lea.sflag [#allocation6], 2
    // Predicated region
    $region220: #{cvae_forward.1} parent=1 // pred_check
      _
    $region221: #{cvae_forward.1} parent=1 // pred_check_branch
      %521 = sbr.rel target = $region223
    $region222: #{cvae_forward.1} parent=1 // pred_region
      %522 = sst [smem:[#allocation42]] [#allocation46]
      %523 = sst [smem:[#allocation43]] [#allocation45]
    $region223: #{cvae_forward.1} parent=1 // pred_fallthru
      _
    %525 = shalt.err (0)
    %s527 = sshll.u32 [#allocation4], 4
    %s528 = int_to_ptr.vmem [resolvable:$true] %s527
    %530 = dma.hbm_to_vmem [thread:$0]  %s55, 22400, %s528, %s519
    %v531 = vld [vmem:[#allocation7] sm:$0xff]
    %v532 = vld [vmem:[#allocation7 + $0x8] sm:$0xff]
    %v533 = vld [vmem:[#allocation7 + $0x10] sm:$0xff]
    %v534 = vld [vmem:[#allocation7 + $0x18] sm:$0xff]
    %v535 = vld [vmem:[#allocation10] sm:$0xff]
    %v536 = vld [vmem:[#allocation10 + $0x8] sm:$0xff]
    %v537 = vld [vmem:[%s5] sm:$0xff]
    %v538 = vld [vmem:[%s5 + $0x8] sm:$0xff]
    %v539 = vld [vmem:[%s5 + $0x10] sm:$0xff]
    %v540 = vld [vmem:[%s5 + $0x18] sm:$0xff]
    %v541 = vld [vmem:[%s5 + $0x20] sm:$0xff]
    %v542 = vld [vmem:[%s5 + $0x28] sm:$0xff]
    %v543 = vld [vmem:[%s5 + $0x30] sm:$0xff]
    %v544 = vld [vmem:[%s5 + $0x38] sm:$0xff]
    %v545 = vld [vmem:[%s5 + $0x40] sm:$0xff]
    %v546 = vld [vmem:[%s5 + $0x48] sm:$0xff]
    %v547 = vld [vmem:[%s5 + $0x50] sm:$0xff]
    %v548 = vld [vmem:[%s5 + $0x58] sm:$0xff]
    %v549 = vld [vmem:[%s5 + $0x60] sm:$0xff]
    %v550 = vld [vmem:[%s5 + $0x68] sm:$0xff]
    %v551 = vld [vmem:[%s5 + $0x70] sm:$0xff]
    %v552 = vld [vmem:[%s5 + $0x78] sm:$0xff]
    %v553 = vld [vmem:[%s5 + $0x80] sm:$0xff]
    %v554 = vld [vmem:[%s5 + $0x88] sm:$0xff]
    %v555 = vld [vmem:[%s5 + $0x90] sm:$0xff]
    %v556 = vld [vmem:[%s5 + $0x98] sm:$0xff]
    %v557 = vld [vmem:[%s5 + $0xa0] sm:$0xff]
    %v558 = vld [vmem:[%s5 + $0xa8] sm:$0xff]
    %v559 = vld [vmem:[%s5 + $0xb0] sm:$0xff]
    %v560 = vld [vmem:[%s5 + $0xb8] sm:$0xff]
    %v561 = vld [vmem:[%s5 + $0xc0] sm:$0xff]
    %v562 = vld [vmem:[%s5 + $0xc8] sm:$0xff]
    %v563 = vld [vmem:[%s5 + $0xd0] sm:$0xff]
    %v564 = vld [vmem:[%s5 + $0xd8] sm:$0xff]
    %v565 = vld [vmem:[%s5 + $0xe0] sm:$0xff]
    %v566 = vld [vmem:[%s5 + $0xe8] sm:$0xff]
    %v567 = vld [vmem:[%s5 + $0xf0] sm:$0xff]
    %v568 = vld [vmem:[%s5 + $0xf8] sm:$0xff]
    %v569 = vld [vmem:[%s5 + $0x100] sm:$0xff]
    %v570 = vld [vmem:[%s5 + $0x108] sm:$0xff]
    %v571 = vld [vmem:[%s5 + $0x110] sm:$0xff]
    %v572 = vld [vmem:[%s5 + $0x118] sm:$0xff]
    %v573 = vld [vmem:[%s5 + $0x120] sm:$0xff]
    %v574 = vld [vmem:[%s5 + $0x128] sm:$0xff]
    %v575 = vld [vmem:[%s5 + $0x130] sm:$0xff]
    %v576 = vld [vmem:[%s5 + $0x138] sm:$0xff]
    %v577 = vld [vmem:[%s5 + $0x140] sm:$0xff]
    %v578 = vld [vmem:[%s5 + $0x148] sm:$0xff]
    %v579 = vld [vmem:[%s5 + $0x150] sm:$0xff]
    %v580 = vld [vmem:[%s5 + $0x158] sm:$0xff]
    %v581 = vld [vmem:[%s5 + $0x160] sm:$0xff]
    %v582 = vld [vmem:[%s5 + $0x168] sm:$0xff]
    %v583 = vld [vmem:[%s5 + $0x170] sm:$0xff]
    %v584 = vld [vmem:[%s5 + $0x178] sm:$0xff]
    %v585 = vld [vmem:[%s5 + $0x180] sm:$0xff]
    %v586 = vld [vmem:[%s5 + $0x188] sm:$0xff]
    %v587 = vld [vmem:[%s5 + $0x190] sm:$0xff]
    %v588 = vld [vmem:[%s5 + $0x198] sm:$0xff]
    %v589 = vld [vmem:[%s5 + $0x1a0] sm:$0xff]
    %v590 = vld [vmem:[%s5 + $0x1a8] sm:$0xff]
    %v591 = vld [vmem:[%s5 + $0x1b0] sm:$0xff]
    %v592 = vld [vmem:[%s5 + $0x1b8] sm:$0xff]
    %v593 = vld [vmem:[#allocation12] sm:$0x7f]
    %v594 = vpack.c.bf16 %v533, %v531
    %v595 = vpack.c.bf16 %v534, %v532
    %v596 = vunpack.c.l.s8.bf16 %v537
    %v597 = vunpack.c.l.s8.bf16 %v538
    %v598 = vunpack.c.l.s8.bf16 %v539
    %v599 = vunpack.c.l.s8.bf16 %v540
    %v600 = vunpack.c.l.s8.bf16 %v541
    %v601 = vunpack.c.l.s8.bf16 %v542
    %v602 = vunpack.c.l.s8.bf16 %v543
    %v603 = vunpack.c.h.s8.bf16 %v537
    %v604 = vunpack.c.h.s8.bf16 %v538
    %v605 = vunpack.c.h.s8.bf16 %v539
    %v606 = vunpack.c.h.s8.bf16 %v540
    %v607 = vunpack.c.h.s8.bf16 %v541
    %v608 = vunpack.c.h.s8.bf16 %v542
    %v609 = vunpack.c.h.s8.bf16 %v543
    %v610 = vunpack.c.l.s8.bf16 %v544
    %v611 = vunpack.c.l.s8.bf16 %v545
    %v612 = vunpack.c.l.s8.bf16 %v546
    %v613 = vunpack.c.l.s8.bf16 %v547
    %v614 = vunpack.c.l.s8.bf16 %v548
    %v615 = vunpack.c.l.s8.bf16 %v549
    %v616 = vunpack.c.l.s8.bf16 %v550
    %v617 = vunpack.c.h.s8.bf16 %v544
    %v618 = vunpack.c.h.s8.bf16 %v545
    %v619 = vunpack.c.h.s8.bf16 %v546
    %v620 = vunpack.c.h.s8.bf16 %v547
    %v621 = vunpack.c.h.s8.bf16 %v548
    %v622 = vunpack.c.h.s8.bf16 %v549
    %v623 = vunpack.c.h.s8.bf16 %v550
    %v624 = vunpack.c.l.s8.bf16 %v551
    %v625 = vunpack.c.l.s8.bf16 %v552
    %v626 = vunpack.c.l.s8.bf16 %v553
    %v627 = vunpack.c.l.s8.bf16 %v554
    %v628 = vunpack.c.l.s8.bf16 %v555
    %v629 = vunpack.c.l.s8.bf16 %v556
    %v630 = vunpack.c.l.s8.bf16 %v557
    %v631 = vunpack.c.h.s8.bf16 %v551
    %v632 = vunpack.c.h.s8.bf16 %v552
    %v633 = vunpack.c.h.s8.bf16 %v553
    %v634 = vunpack.c.h.s8.bf16 %v554
    %v635 = vunpack.c.h.s8.bf16 %v555
    %v636 = vunpack.c.h.s8.bf16 %v556
    %v637 = vunpack.c.h.s8.bf16 %v557
    %v638 = vunpack.c.l.s8.bf16 %v558
    %v639 = vunpack.c.l.s8.bf16 %v559
    %v640 = vunpack.c.l.s8.bf16 %v560
    %v641 = vunpack.c.l.s8.bf16 %v561
    %v642 = vunpack.c.l.s8.bf16 %v562
    %v643 = vunpack.c.l.s8.bf16 %v563
    %v644 = vunpack.c.l.s8.bf16 %v564
    %v645 = vunpack.c.h.s8.bf16 %v558
    %v646 = vunpack.c.h.s8.bf16 %v559
    %v647 = vunpack.c.h.s8.bf16 %v560
    %v648 = vunpack.c.h.s8.bf16 %v561
    %v649 = vunpack.c.h.s8.bf16 %v562
    %v650 = vunpack.c.h.s8.bf16 %v563
    %v651 = vunpack.c.h.s8.bf16 %v564
    %v652 = vunpack.c.l.s8.bf16 %v565
    %v653 = vunpack.c.l.s8.bf16 %v566
    %v654 = vunpack.c.l.s8.bf16 %v567
    %v655 = vunpack.c.l.s8.bf16 %v568
    %v656 = vunpack.c.l.s8.bf16 %v569
    %v657 = vunpack.c.l.s8.bf16 %v570
    %v658 = vunpack.c.l.s8.bf16 %v571
    %v659 = vunpack.c.h.s8.bf16 %v565
    %v660 = vunpack.c.h.s8.bf16 %v566
    %v661 = vunpack.c.h.s8.bf16 %v567
    %v662 = vunpack.c.h.s8.bf16 %v568
    %v663 = vunpack.c.h.s8.bf16 %v569
    %v664 = vunpack.c.h.s8.bf16 %v570
    %v665 = vunpack.c.h.s8.bf16 %v571
    %v666 = vunpack.c.l.s8.bf16 %v572
    %v667 = vunpack.c.l.s8.bf16 %v573
    %v668 = vunpack.c.l.s8.bf16 %v574
    %v669 = vunpack.c.l.s8.bf16 %v575
    %v670 = vunpack.c.l.s8.bf16 %v576
    %v671 = vunpack.c.l.s8.bf16 %v577
    %v672 = vunpack.c.l.s8.bf16 %v578
    %v673 = vunpack.c.h.s8.bf16 %v572
    %v674 = vunpack.c.h.s8.bf16 %v573
    %v675 = vunpack.c.h.s8.bf16 %v574
    %v676 = vunpack.c.h.s8.bf16 %v575
    %v677 = vunpack.c.h.s8.bf16 %v576
    %v678 = vunpack.c.h.s8.bf16 %v577
    %v679 = vunpack.c.h.s8.bf16 %v578
    %v680 = vunpack.c.l.s8.bf16 %v579
    %v681 = vunpack.c.l.s8.bf16 %v580
    %v682 = vunpack.c.l.s8.bf16 %v581
    %v683 = vunpack.c.l.s8.bf16 %v582
    %v684 = vunpack.c.l.s8.bf16 %v583
    %v685 = vunpack.c.l.s8.bf16 %v584
    %v686 = vunpack.c.l.s8.bf16 %v585
    %v687 = vunpack.c.h.s8.bf16 %v579
    %v688 = vunpack.c.h.s8.bf16 %v580
    %v689 = vunpack.c.h.s8.bf16 %v581
    %v690 = vunpack.c.h.s8.bf16 %v582
    %v691 = vunpack.c.h.s8.bf16 %v583
    %v692 = vunpack.c.h.s8.bf16 %v584
    %v693 = vunpack.c.h.s8.bf16 %v585
    %v694 = vunpack.c.l.s8.bf16 %v586
    %v695 = vunpack.c.l.s8.bf16 %v587
    %v696 = vunpack.c.l.s8.bf16 %v588
    %v697 = vunpack.c.l.s8.bf16 %v589
    %v698 = vunpack.c.l.s8.bf16 %v590
    %v699 = vunpack.c.l.s8.bf16 %v591
    %v700 = vunpack.c.l.s8.bf16 %v592
    %v701 = vunpack.c.h.s8.bf16 %v586
    %v702 = vunpack.c.h.s8.bf16 %v587
    %v703 = vunpack.c.h.s8.bf16 %v588
    %v704 = vunpack.c.h.s8.bf16 %v589
    %v705 = vunpack.c.h.s8.bf16 %v590
    %v706 = vunpack.c.h.s8.bf16 %v591
    %v707 = vunpack.c.h.s8.bf16 %v592
    %708 = vmatprep.subr.bf16.mxu0 %v646
    %709 = vmatpush1.bf16.msra.mxu0 %v645
    %710 = vmatprep.subr.bf16.mxu0 %v639
    %711 = vmatpush1.bf16.msra.mxu0 %v638
    %712 = vmatprep.subr.bf16.mxu0 %v632
    %713 = vmatpush1.bf16.msra.mxu0 %v631
    %714 = vmatprep.subr.bf16.mxu0 %v625
    %715 = vmatpush1.bf16.msra.mxu0 %v624
    %716 = vmatprep.subr.bf16.mxu0 %v618
    %717 = vmatpush1.bf16.msra.mxu0 %v617
    %718 = vmatprep.subr.bf16.mxu0 %v611
    %719 = vmatpush1.bf16.msra.mxu0 %v610
    %720 = vmatprep.subr.bf16.mxu0 %v604
    %721 = vmatpush1.bf16.msra.mxu0 %v603
    %722 = vmatprep.subr.bf16.mxu0 %v597
    %723 = vmatpush1.bf16.msra.mxu0 %v596
    %724 = vmatprep.subr.bf16.mxu0 %v702
    %725 = vmatpush2.bf16.msra.mxu0 %v701
    %726 = vmatprep.subr.bf16.mxu0 %v695
    %727 = vmatpush2.bf16.msra.mxu0 %v694
    %728 = vmatprep.subr.bf16.mxu0 %v688
    %729 = vmatpush2.bf16.msra.mxu0 %v687
    %730 = vmatprep.subr.bf16.mxu0 %v681
    %731 = vmatpush2.bf16.msra.mxu0 %v680
    %732 = vmatprep.subr.bf16.mxu0 %v674
    %733 = vmatpush2.bf16.msra.mxu0 %v673
    %734 = vmatprep.subr.bf16.mxu0 %v667
    %735 = vmatpush2.bf16.msra.mxu0 %v666
    %736 = vmatprep.subr.bf16.mxu0 %v660
    %737 = vmatpush2.bf16.msra.mxu0 %v659
    %738 = vmatprep.subr.bf16.mxu0 %v653
    %739 = vmatpush2.bf16.msra.mxu0 %v652
    %740 = vmatprep.mubr.bf16.mxu0 %v595
    %741 = vmatmul.mubr.bf16.gmra.mxu0 %v594
    %v742 = vpop.f32.mrf.mxu0
    %v743 = vadd.f32 0.0, %v742
    %v744 = vpop.f32.mrf.mxu0
    %v745 = vadd.f32 0.0, %v744
    %v746 = vpop.f32.mrf.mxu0
    %v747 = vadd.f32 0.0, %v746
    %v748 = vpop.f32.mrf.mxu0
    %v749 = vadd.f32 0.0, %v748
    %750 = vdwg.mxu0
    %751 = vmatprep.subr.bf16.mxu0 %v648
    %752 = vmatpush1.bf16.msra.mxu0 %v647
    %753 = vmatprep.subr.bf16.mxu0 %v641
    %754 = vmatpush1.bf16.msra.mxu0 %v640
    %755 = vmatprep.subr.bf16.mxu0 %v634
    %756 = vmatpush1.bf16.msra.mxu0 %v633
    %757 = vmatprep.subr.bf16.mxu0 %v627
    %758 = vmatpush1.bf16.msra.mxu0 %v626
    %759 = vmatprep.subr.bf16.mxu0 %v620
    %760 = vmatpush1.bf16.msra.mxu0 %v619
    %761 = vmatprep.subr.bf16.mxu0 %v613
    %762 = vmatpush1.bf16.msra.mxu0 %v612
    %763 = vmatprep.subr.bf16.mxu0 %v606
    %764 = vmatpush1.bf16.msra.mxu0 %v605
    %765 = vmatprep.subr.bf16.mxu0 %v599
    %766 = vmatpush1.bf16.msra.mxu0 %v598
    %767 = vmatprep.subr.bf16.mxu0 %v704
    %768 = vmatpush2.bf16.msra.mxu0 %v703
    %769 = vmatprep.subr.bf16.mxu0 %v697
    %770 = vmatpush2.bf16.msra.mxu0 %v696
    %771 = vmatprep.subr.bf16.mxu0 %v690
    %772 = vmatpush2.bf16.msra.mxu0 %v689
    %773 = vmatprep.subr.bf16.mxu0 %v683
    %774 = vmatpush2.bf16.msra.mxu0 %v682
    %775 = vmatprep.subr.bf16.mxu0 %v676
    %776 = vmatpush2.bf16.msra.mxu0 %v675
    %777 = vmatprep.subr.bf16.mxu0 %v669
    %778 = vmatpush2.bf16.msra.mxu0 %v668
    %779 = vmatprep.subr.bf16.mxu0 %v662
    %780 = vmatpush2.bf16.msra.mxu0 %v661
    %781 = vmatprep.subr.bf16.mxu0 %v655
    %782 = vmatpush2.bf16.msra.mxu0 %v654
    %783 = vmatprep.mubr.bf16.mxu0 %v595
    %784 = vmatmul.mubr.bf16.gmra.mxu0 %v594
    %v785 = vpop.f32.mrf.mxu0
    %v786 = vadd.f32 0.0, %v785
    %v787 = vpop.f32.mrf.mxu0
    %v788 = vadd.f32 0.0, %v787
    %v789 = vpop.f32.mrf.mxu0
    %v790 = vadd.f32 0.0, %v789
    %v791 = vpop.f32.mrf.mxu0
    %v792 = vadd.f32 0.0, %v791
    %793 = vdwg.mxu0
    %794 = vmatprep.subr.bf16.mxu0 %v650
    %795 = vmatpush1.bf16.msra.mxu0 %v649
    %796 = vmatprep.subr.bf16.mxu0 %v643
    %797 = vmatpush1.bf16.msra.mxu0 %v642
    %798 = vmatprep.subr.bf16.mxu0 %v636
    %799 = vmatpush1.bf16.msra.mxu0 %v635
    %800 = vmatprep.subr.bf16.mxu0 %v629
    %801 = vmatpush1.bf16.msra.mxu0 %v628
    %802 = vmatprep.subr.bf16.mxu0 %v622
    %803 = vmatpush1.bf16.msra.mxu0 %v621
    %804 = vmatprep.subr.bf16.mxu0 %v615
    %805 = vmatpush1.bf16.msra.mxu0 %v614
    %806 = vmatprep.subr.bf16.mxu0 %v608
    %807 = vmatpush1.bf16.msra.mxu0 %v607
    %808 = vmatprep.subr.bf16.mxu0 %v601
    %809 = vmatpush1.bf16.msra.mxu0 %v600
    %810 = vmatprep.subr.bf16.mxu0 %v706
    %811 = vmatpush2.bf16.msra.mxu0 %v705
    %812 = vmatprep.subr.bf16.mxu0 %v699
    %813 = vmatpush2.bf16.msra.mxu0 %v698
    %814 = vmatprep.subr.bf16.mxu0 %v692
    %815 = vmatpush2.bf16.msra.mxu0 %v691
    %816 = vmatprep.subr.bf16.mxu0 %v685
    %817 = vmatpush2.bf16.msra.mxu0 %v684
    %818 = vmatprep.subr.bf16.mxu0 %v678
    %819 = vmatpush2.bf16.msra.mxu0 %v677
    %820 = vmatprep.subr.bf16.mxu0 %v671
    %821 = vmatpush2.bf16.msra.mxu0 %v670
    %822 = vmatprep.subr.bf16.mxu0 %v664
    %823 = vmatpush2.bf16.msra.mxu0 %v663
    %824 = vmatprep.subr.bf16.mxu0 %v657
    %825 = vmatpush2.bf16.msra.mxu0 %v656
    %826 = vmatprep.mubr.bf16.mxu0 %v595
    %827 = vmatmul.mubr.bf16.gmra.mxu0 %v594
    %v828 = vpop.f32.mrf.mxu0
    %v829 = vadd.f32 0.0, %v828
    %v830 = vpop.f32.mrf.mxu0
    %v831 = vadd.f32 0.0, %v830
    %v832 = vpop.f32.mrf.mxu0
    %v833 = vadd.f32 0.0, %v832
    %v834 = vpop.f32.mrf.mxu0
    %v835 = vadd.f32 0.0, %v834
    %836 = vdwg.mxu0
    %837 = vmatprep.subr.bf16.mxu0 0
    %838 = vmatpush1.bf16.msra.mxu0 %v651
    %839 = vmatprep.subr.bf16.mxu0 0
    %840 = vmatpush1.bf16.msra.mxu0 %v644
    %841 = vmatprep.subr.bf16.mxu0 0
    %842 = vmatpush1.bf16.msra.mxu0 %v637
    %843 = vmatprep.subr.bf16.mxu0 0
    %844 = vmatpush1.bf16.msra.mxu0 %v630
    %845 = vmatprep.subr.bf16.mxu0 0
    %846 = vmatpush1.bf16.msra.mxu0 %v623
    %847 = vmatprep.subr.bf16.mxu0 0
    %848 = vmatpush1.bf16.msra.mxu0 %v616
    %849 = vmatprep.subr.bf16.mxu0 0
    %850 = vmatpush1.bf16.msra.mxu0 %v609
    %851 = vmatprep.subr.bf16.mxu0 0
    %852 = vmatpush1.bf16.msra.mxu0 %v602
    %853 = vmatprep.subr.bf16.mxu0 0
    %854 = vmatpush2.bf16.msra.mxu0 %v707
    %855 = vmatprep.subr.bf16.mxu0 0
    %856 = vmatpush2.bf16.msra.mxu0 %v700
    %857 = vmatprep.subr.bf16.mxu0 0
    %858 = vmatpush2.bf16.msra.mxu0 %v693
    %859 = vmatprep.subr.bf16.mxu0 0
    %860 = vmatpush2.bf16.msra.mxu0 %v686
    %861 = vmatprep.subr.bf16.mxu0 0
    %862 = vmatpush2.bf16.msra.mxu0 %v679
    %863 = vmatprep.subr.bf16.mxu0 0
    %864 = vmatpush2.bf16.msra.mxu0 %v672
    %865 = vmatprep.subr.bf16.mxu0 0
    %866 = vmatpush2.bf16.msra.mxu0 %v665
    %867 = vmatprep.subr.bf16.mxu0 0
    %868 = vmatpush2.bf16.msra.mxu0 %v658
    %869 = vmatprep.mubr.bf16.mxu0 %v595
    %870 = vmatmul.mubr.bf16.gmra.mxu0 %v594
    %v871 = vpop.f32.mrf.mxu0
    %v872 = vadd.f32 0.0, %v871
    %v873 = vpop.f32.mrf.mxu0
    %v874 = vpop.f32.mrf.mxu0
    %v875 = vadd.f32 0.0, %v874
    %v876 = vpop.f32.mrf.mxu0
    %877 = vdwg.mxu0
    %v879 = vlaneseq
    %v880 = vshrl.u32 %v879, 7
    %v881 = vsub.s32 0, %v880
    %v882 = vrot.slane %v593, %v881
    %v883 = vlaneseq
    %v884 = vshrl.u32 %v883, 7
    %v885 = vsub.s32 1, %v884
    %v886 = vrot.slane %v593, %v885
    %v887 = vlaneseq
    %v888 = vshrl.u32 %v887, 7
    %v889 = vsub.s32 2, %v888
    %v890 = vrot.slane %v593, %v889
    %v891 = vlaneseq
    %v892 = vshrl.u32 %v891, 7
    %v893 = vsub.s32 3, %v892
    %v894 = vrot.slane %v593, %v893
    %v895 = vlaneseq
    %v896 = vshrl.u32 %v895, 7
    %v897 = vsub.s32 4, %v896
    %v898 = vrot.slane %v593, %v897
    %v899 = vlaneseq
    %v900 = vshrl.u32 %v899, 7
    %v901 = vsub.s32 5, %v900
    %v902 = vrot.slane %v593, %v901
    %v903 = vlaneseq
    %v904 = vshrl.u32 %v903, 7
    %v905 = vsub.s32 6, %v904
    %v906 = vrot.slane %v593, %v905
    %v914 = vmul.f32 %v743, %v882
    %v915 = vmul.f32 %v745, %v886
    %v916 = vmul.f32 %v786, %v890
    %v917 = vmul.f32 %v788, %v894
    %v918 = vmul.f32 %v829, %v898
    %v919 = vmul.f32 %v831, %v902
    %v920 = vmul.f32 %v872, %v906
    %v921 = vmul.f32 %v747, %v882
    %v922 = vmul.f32 %v749, %v886
    %v923 = vmul.f32 %v790, %v890
    %v924 = vmul.f32 %v792, %v894
    %v925 = vmul.f32 %v833, %v898
    %v926 = vmul.f32 %v835, %v902
    %v927 = vmul.f32 %v875, %v906
    %v928 = vld [vmem:[%s9] sm:$0xff]
    %v929 = vld [vmem:[%s9 + $0x8] sm:$0xff]
    %v930 = vld [vmem:[%s9 + $0x10] sm:$0xff]
    %v931 = vld [vmem:[%s9 + $0x18] sm:$0xf]
    %v932 = vld [vmem:[%s9 + $0x1c] sm:$0xff]
    %v933 = vld [vmem:[%s9 + $0x24] sm:$0xff]
    %v934 = vld [vmem:[%s9 + $0x2c] sm:$0xff]
    %v935 = vld [vmem:[%s9 + $0x34] sm:$0xf]
    %v936 = vpack.c.bf16 %v536, %v535
    %v945 = vunpack.c.l.b16 %v928
    %v946 = vunpack.c.h.b16 %v928
    %v947 = vunpack.c.l.b16 %v929
    %v948 = vunpack.c.h.b16 %v929
    %v949 = vunpack.c.l.b16 %v930
    %v950 = vunpack.c.h.b16 %v930
    %v951 = vunpack.c.l.b16 %v931
    %v952 = vunpack.c.l.b16 %v932
    %v953 = vunpack.c.h.b16 %v932
    %v954 = vunpack.c.l.b16 %v933
    %v955 = vunpack.c.h.b16 %v933
    %v956 = vunpack.c.l.b16 %v934
    %v957 = vunpack.c.h.b16 %v934
    %v958 = vunpack.c.l.b16 %v935
    %v959 = vpack.c.b16 %v952, %v945
    %v960 = vpack.c.b16 %v953, %v946
    %v961 = vpack.c.b16 %v954, %v947
    %v962 = vpack.c.b16 %v955, %v948
    %v963 = vpack.c.b16 %v956, %v949
    %v964 = vpack.c.b16 %v957, %v950
    %v965 = vpack.c.b16 %v958, %v951
    %vm973 = vcmask 130048
    %v975 = vsel %vm973, %v936, 0
    %977 = vmatprep.subr.bf16.mxu0 0
    %978 = vmatpush1.bf16.msra.mxu0 0
    %979 = vmatprep.subr.bf16.mxu0 0
    %980 = vmatpush1.bf16.msra.mxu0 0
    %981 = vmatprep.subr.bf16.mxu0 0
    %982 = vmatpush1.bf16.msra.mxu0 0
    %983 = vmatprep.subr.bf16.mxu0 0
    %984 = vmatpush1.bf16.msra.mxu0 0
    %985 = vmatprep.subr.bf16.mxu0 0
    %986 = vmatpush1.bf16.msra.mxu0 0
    %987 = vmatprep.subr.bf16.mxu0 0
    %988 = vmatpush1.bf16.msra.mxu0 0
    %989 = vmatprep.subr.bf16.mxu0 0
    %990 = vmatpush1.bf16.msra.mxu0 0
    %991 = vmatprep.subr.bf16.mxu0 %v960
    %992 = vmatpush1.bf16.msra.mxu0 %v959
    %993 = vmatprep.subr.bf16.mxu0 0
    %994 = vmatpush2.bf16.msra.mxu0 0
    %995 = vmatprep.subr.bf16.mxu0 0
    %996 = vmatpush2.bf16.msra.mxu0 0
    %997 = vmatprep.subr.bf16.mxu0 0
    %998 = vmatpush2.bf16.msra.mxu0 0
    %999 = vmatprep.subr.bf16.mxu0 0
    %1000 = vmatpush2.bf16.msra.mxu0 0
    %1001 = vmatprep.subr.bf16.mxu0 0
    %1002 = vmatpush2.bf16.msra.mxu0 0
    %1003 = vmatprep.subr.bf16.mxu0 0
    %1004 = vmatpush2.bf16.msra.mxu0 0
    %1005 = vmatprep.subr.bf16.mxu0 0
    %1006 = vmatpush2.bf16.msra.mxu0 0
    %1007 = vmatprep.subr.bf16.mxu0 0
    %1008 = vmatpush2.bf16.msra.mxu0 0
    %1009 = vmatprep.mubr.bf16.mxu0 0
    %1010 = vmatmul.mubr.bf16.gmra.mxu0 %v975
    %v1011 = vpop.f32.mrf.mxu0
    %v1012 = vadd.f32 0.0, %v1011
    %v1013 = vpop.f32.mrf.mxu0
    %v1014 = vadd.f32 0.0, %v1013
    %v1015 = vpop.f32.mrf.mxu0
    %v1016 = vadd.f32 0.0, %v1015
    %v1017 = vpop.f32.mrf.mxu0
    %v1018 = vadd.f32 0.0, %v1017
    %1019 = vdwg.mxu0
    %1020 = vmatprep.subr.bf16.mxu0 0
    %1021 = vmatpush1.bf16.msra.mxu0 0
    %1022 = vmatprep.subr.bf16.mxu0 0
    %1023 = vmatpush1.bf16.msra.mxu0 0
    %1024 = vmatprep.subr.bf16.mxu0 0
    %1025 = vmatpush1.bf16.msra.mxu0 0
    %1026 = vmatprep.subr.bf16.mxu0 0
    %1027 = vmatpush1.bf16.msra.mxu0 0
    %1028 = vmatprep.subr.bf16.mxu0 0
    %1029 = vmatpush1.bf16.msra.mxu0 0
    %1030 = vmatprep.subr.bf16.mxu0 0
    %1031 = vmatpush1.bf16.msra.mxu0 0
    %1032 = vmatprep.subr.bf16.mxu0 0
    %1033 = vmatpush1.bf16.msra.mxu0 0
    %1034 = vmatprep.subr.bf16.mxu0 %v962
    %1035 = vmatpush1.bf16.msra.mxu0 %v961
    %1036 = vmatprep.subr.bf16.mxu0 0
    %1037 = vmatpush2.bf16.msra.mxu0 0
    %1038 = vmatprep.subr.bf16.mxu0 0
    %1039 = vmatpush2.bf16.msra.mxu0 0
    %1040 = vmatprep.subr.bf16.mxu0 0
    %1041 = vmatpush2.bf16.msra.mxu0 0
    %1042 = vmatprep.subr.bf16.mxu0 0
    %1043 = vmatpush2.bf16.msra.mxu0 0
    %1044 = vmatprep.subr.bf16.mxu0 0
    %1045 = vmatpush2.bf16.msra.mxu0 0
    %1046 = vmatprep.subr.bf16.mxu0 0
    %1047 = vmatpush2.bf16.msra.mxu0 0
    %1048 = vmatprep.subr.bf16.mxu0 0
    %1049 = vmatpush2.bf16.msra.mxu0 0
    %1050 = vmatprep.subr.bf16.mxu0 0
    %1051 = vmatpush2.bf16.msra.mxu0 0
    %1052 = vmatprep.mubr.bf16.mxu0 0
    %1053 = vmatmul.mubr.bf16.gmra.mxu0 %v975
    %v1054 = vpop.f32.mrf.mxu0
    %v1055 = vadd.f32 0.0, %v1054
    %v1056 = vpop.f32.mrf.mxu0
    %v1057 = vadd.f32 0.0, %v1056
    %v1058 = vpop.f32.mrf.mxu0
    %v1059 = vadd.f32 0.0, %v1058
    %v1060 = vpop.f32.mrf.mxu0
    %v1061 = vadd.f32 0.0, %v1060
    %1062 = vdwg.mxu0
    %1063 = vmatprep.subr.bf16.mxu0 0
    %1064 = vmatpush1.bf16.msra.mxu0 0
    %1065 = vmatprep.subr.bf16.mxu0 0
    %1066 = vmatpush1.bf16.msra.mxu0 0
    %1067 = vmatprep.subr.bf16.mxu0 0
    %1068 = vmatpush1.bf16.msra.mxu0 0
    %1069 = vmatprep.subr.bf16.mxu0 0
    %1070 = vmatpush1.bf16.msra.mxu0 0
    %1071 = vmatprep.subr.bf16.mxu0 0
    %1072 = vmatpush1.bf16.msra.mxu0 0
    %1073 = vmatprep.subr.bf16.mxu0 0
    %1074 = vmatpush1.bf16.msra.mxu0 0
    %1075 = vmatprep.subr.bf16.mxu0 0
    %1076 = vmatpush1.bf16.msra.mxu0 0
    %1077 = vmatprep.subr.bf16.mxu0 %v964
    %1078 = vmatpush1.bf16.msra.mxu0 %v963
    %1079 = vmatprep.subr.bf16.mxu0 0
    %1080 = vmatpush2.bf16.msra.mxu0 0
    %1081 = vmatprep.subr.bf16.mxu0 0
    %1082 = vmatpush2.bf16.msra.mxu0 0
    %1083 = vmatprep.subr.bf16.mxu0 0
    %1084 = vmatpush2.bf16.msra.mxu0 0
    %1085 = vmatprep.subr.bf16.mxu0 0
    %1086 = vmatpush2.bf16.msra.mxu0 0
    %1087 = vmatprep.subr.bf16.mxu0 0
    %1088 = vmatpush2.bf16.msra.mxu0 0
    %1089 = vmatprep.subr.bf16.mxu0 0
    %1090 = vmatpush2.bf16.msra.mxu0 0
    %1091 = vmatprep.subr.bf16.mxu0 0
    %1092 = vmatpush2.bf16.msra.mxu0 0
    %1093 = vmatprep.subr.bf16.mxu0 0
    %1094 = vmatpush2.bf16.msra.mxu0 0
    %1095 = vmatprep.mubr.bf16.mxu0 0
    %1096 = vmatmul.mubr.bf16.gmra.mxu0 %v975
    %v1097 = vpop.f32.mrf.mxu0
    %v1098 = vadd.f32 0.0, %v1097
    %v1099 = vpop.f32.mrf.mxu0
    %v1100 = vadd.f32 0.0, %v1099
    %v1101 = vpop.f32.mrf.mxu0
    %v1102 = vadd.f32 0.0, %v1101
    %v1103 = vpop.f32.mrf.mxu0
    %v1104 = vadd.f32 0.0, %v1103
    %1105 = vdwg.mxu0
    %1106 = vmatprep.subr.bf16.mxu0 0
    %1107 = vmatpush1.bf16.msra.mxu0 0
    %1108 = vmatprep.subr.bf16.mxu0 0
    %1109 = vmatpush1.bf16.msra.mxu0 0
    %1110 = vmatprep.subr.bf16.mxu0 0
    %1111 = vmatpush1.bf16.msra.mxu0 0
    %1112 = vmatprep.subr.bf16.mxu0 0
    %1113 = vmatpush1.bf16.msra.mxu0 0
    %1114 = vmatprep.subr.bf16.mxu0 0
    %1115 = vmatpush1.bf16.msra.mxu0 0
    %1116 = vmatprep.subr.bf16.mxu0 0
    %1117 = vmatpush1.bf16.msra.mxu0 0
    %1118 = vmatprep.subr.bf16.mxu0 0
    %1119 = vmatpush1.bf16.msra.mxu0 0
    %1120 = vmatprep.subr.bf16.mxu0 0
    %1121 = vmatpush1.bf16.msra.mxu0 %v965
    %1122 = vmatprep.subr.bf16.mxu0 0
    %1123 = vmatpush2.bf16.msra.mxu0 0
    %1124 = vmatprep.subr.bf16.mxu0 0
    %1125 = vmatpush2.bf16.msra.mxu0 0
    %1126 = vmatprep.subr.bf16.mxu0 0
    %1127 = vmatpush2.bf16.msra.mxu0 0
    %1128 = vmatprep.subr.bf16.mxu0 0
    %1129 = vmatpush2.bf16.msra.mxu0 0
    %1130 = vmatprep.subr.bf16.mxu0 0
    %1131 = vmatpush2.bf16.msra.mxu0 0
    %1132 = vmatprep.subr.bf16.mxu0 0
    %1133 = vmatpush2.bf16.msra.mxu0 0
    %1134 = vmatprep.subr.bf16.mxu0 0
    %1135 = vmatpush2.bf16.msra.mxu0 0
    %1136 = vmatprep.subr.bf16.mxu0 0
    %1137 = vmatpush2.bf16.msra.mxu0 0
    %1138 = vmatprep.mubr.bf16.mxu0 0
    %1139 = vmatmul.mubr.bf16.gmra.mxu0 %v975
    %v1140 = vpop.f32.mrf.mxu0
    %v1141 = vadd.f32 0.0, %v1140
    %v1142 = vpop.f32.mrf.mxu0
    %v1143 = vpop.f32.mrf.mxu0
    %v1144 = vadd.f32 0.0, %v1143
    %v1145 = vpop.f32.mrf.mxu0
    %1146 = vdwg.mxu0
    %v1147 = vadd.f32 %v914, %v1012
    %v1148 = vadd.f32 %v915, %v1014
    %v1149 = vadd.f32 %v916, %v1055
    %v1150 = vadd.f32 %v917, %v1057
    %v1151 = vadd.f32 %v918, %v1098
    %v1152 = vadd.f32 %v919, %v1100
    %v1153 = vadd.f32 %v920, %v1141
    %v1154 = vadd.f32 %v921, %v1016
    %v1155 = vadd.f32 %v922, %v1018
    %v1156 = vadd.f32 %v923, %v1059
    %v1157 = vadd.f32 %v924, %v1061
    %v1158 = vadd.f32 %v925, %v1102
    %v1159 = vadd.f32 %v926, %v1104
    %v1160 = vadd.f32 %v927, %v1144
    %v1161 = vld [vmem:[#allocation13] sm:$0x7f]
    %v1162 = vld [vmem:[#allocation15] sm:$0x7f]
    %v1163 = vadd.f32 %v1147, %v1154
    %v1164 = vrot.slane %v1163, 4
    %v1165 = vadd.f32 %v1163, %v1164
    %v1166 = vrot.slane %v1165, 2
    %v1167 = vadd.f32 %v1165, %v1166
    %v1168 = vrot.slane %v1167, 1
    %v1169 = vadd.f32 %v1167, %v1168
    %v1170 = vadd.f32 %v1148, %v1155
    %v1171 = vrot.slane %v1170, 4
    %v1172 = vadd.f32 %v1170, %v1171
    %v1173 = vrot.slane %v1172, 2
    %v1174 = vadd.f32 %v1172, %v1173
    %v1175 = vrot.slane %v1174, 1
    %v1176 = vadd.f32 %v1174, %v1175
    %v1177 = vadd.f32 %v1149, %v1156
    %v1178 = vrot.slane %v1177, 4
    %v1179 = vadd.f32 %v1177, %v1178
    %v1180 = vrot.slane %v1179, 2
    %v1181 = vadd.f32 %v1179, %v1180
    %v1182 = vrot.slane %v1181, 1
    %v1183 = vadd.f32 %v1181, %v1182
    %v1184 = vadd.f32 %v1150, %v1157
    %v1185 = vrot.slane %v1184, 4
    %v1186 = vadd.f32 %v1184, %v1185
    %v1187 = vrot.slane %v1186, 2
    %v1188 = vadd.f32 %v1186, %v1187
    %v1189 = vrot.slane %v1188, 1
    %v1190 = vadd.f32 %v1188, %v1189
    %v1191 = vadd.f32 %v1151, %v1158
    %v1192 = vrot.slane %v1191, 4
    %v1193 = vadd.f32 %v1191, %v1192
    %v1194 = vrot.slane %v1193, 2
    %v1195 = vadd.f32 %v1193, %v1194
    %v1196 = vrot.slane %v1195, 1
    %v1197 = vadd.f32 %v1195, %v1196
    %v1198 = vadd.f32 %v1152, %v1159
    %v1199 = vrot.slane %v1198, 4
    %v1200 = vadd.f32 %v1198, %v1199
    %v1201 = vrot.slane %v1200, 2
    %v1202 = vadd.f32 %v1200, %v1201
    %v1203 = vrot.slane %v1202, 1
    %v1204 = vadd.f32 %v1202, %v1203
    %vm1205 = vcmask 261120
    %v1206 = vsel %vm1205, %v1153, 0.0
    %v1207 = vsel %vm1205, %v1160, 0.0
    %v1208 = vadd.f32 %v1206, %v1207
    %v1209 = vrot.slane %v1208, 4
    %v1210 = vadd.f32 %v1208, %v1209
    %v1211 = vrot.slane %v1210, 2
    %v1212 = vadd.f32 %v1210, %v1211
    %v1213 = vrot.slane %v1212, 1
    %v1214 = vadd.f32 %v1212, %v1213
    %v1215 = vrcp.pop 16.0
    %v1216 = vmul.f32 %v1169, %v1215
    %v1217 = vmul.f32 %v1176, %v1215
    %v1218 = vmul.f32 %v1183, %v1215
    %v1219 = vmul.f32 %v1190, %v1215
    %v1220 = vmul.f32 %v1197, %v1215
    %v1221 = vmul.f32 %v1204, %v1215
    %v1222 = vmul.f32 %v1214, %v1215
    %v1223 = vsub.f32 %v1147, %v1216
    %v1224 = vsub.f32 %v1148, %v1217
    %v1225 = vsub.f32 %v1149, %v1218
    %v1226 = vsub.f32 %v1150, %v1219
    %v1227 = vsub.f32 %v1151, %v1220
    %v1228 = vsub.f32 %v1152, %v1221
    %v1229 = vsub.f32 %v1153, %v1222
    %v1230 = vsub.f32 %v1154, %v1216
    %v1231 = vsub.f32 %v1155, %v1217
    %v1232 = vsub.f32 %v1156, %v1218
    %v1233 = vsub.f32 %v1157, %v1219
    %v1234 = vsub.f32 %v1158, %v1220
    %v1235 = vsub.f32 %v1159, %v1221
    %v1236 = vsub.f32 %v1160, %v1222
    %v1237 = vmul.f32 %v1223, %v1223
    %v1238 = vmul.f32 %v1224, %v1224
    %v1239 = vmul.f32 %v1225, %v1225
    %v1240 = vmul.f32 %v1226, %v1226
    %v1241 = vmul.f32 %v1227, %v1227
    %v1242 = vmul.f32 %v1228, %v1228
    %v1243 = vmul.f32 %v1229, %v1229
    %v1244 = vmul.f32 %v1230, %v1230
    %v1245 = vmul.f32 %v1231, %v1231
    %v1246 = vmul.f32 %v1232, %v1232
    %v1247 = vmul.f32 %v1233, %v1233
    %v1248 = vmul.f32 %v1234, %v1234
    %v1249 = vmul.f32 %v1235, %v1235
    %v1250 = vmul.f32 %v1236, %v1236
    %v1251 = vadd.f32 %v1237, %v1244
    %v1252 = vrot.slane %v1251, 4
    %v1253 = vadd.f32 %v1251, %v1252
    %v1254 = vrot.slane %v1253, 2
    %v1255 = vadd.f32 %v1253, %v1254
    %v1256 = vrot.slane %v1255, 1
    %v1257 = vadd.f32 %v1255, %v1256
    %v1258 = vadd.f32 %v1238, %v1245
    %v1259 = vrot.slane %v1258, 4
    %v1260 = vadd.f32 %v1258, %v1259
    %v1261 = vrot.slane %v1260, 2
    %v1262 = vadd.f32 %v1260, %v1261
    %v1263 = vrot.slane %v1262, 1
    %v1264 = vadd.f32 %v1262, %v1263
    %v1265 = vadd.f32 %v1239, %v1246
    %v1266 = vrot.slane %v1265, 4
    %v1267 = vadd.f32 %v1265, %v1266
    %v1268 = vrot.slane %v1267, 2
    %v1269 = vadd.f32 %v1267, %v1268
    %v1270 = vrot.slane %v1269, 1
    %v1271 = vadd.f32 %v1269, %v1270
    %v1272 = vadd.f32 %v1240, %v1247
    %v1273 = vrot.slane %v1272, 4
    %v1274 = vadd.f32 %v1272, %v1273
    %v1275 = vrot.slane %v1274, 2
    %v1276 = vadd.f32 %v1274, %v1275
    %v1277 = vrot.slane %v1276, 1
    %v1278 = vadd.f32 %v1276, %v1277
    %v1279 = vadd.f32 %v1241, %v1248
    %v1280 = vrot.slane %v1279, 4
    %v1281 = vadd.f32 %v1279, %v1280
    %v1282 = vrot.slane %v1281, 2
    %v1283 = vadd.f32 %v1281, %v1282
    %v1284 = vrot.slane %v1283, 1
    %v1285 = vadd.f32 %v1283, %v1284
    %v1286 = vadd.f32 %v1242, %v1249
    %v1287 = vrot.slane %v1286, 4
    %v1288 = vadd.f32 %v1286, %v1287
    %v1289 = vrot.slane %v1288, 2
    %v1290 = vadd.f32 %v1288, %v1289
    %v1291 = vrot.slane %v1290, 1
    %v1292 = vadd.f32 %v1290, %v1291
    %v1293 = vsel %vm1205, %v1243, 0.0
    %v1294 = vsel %vm1205, %v1250, 0.0
    %v1295 = vadd.f32 %v1293, %v1294
    %v1296 = vrot.slane %v1295, 4
    %v1297 = vadd.f32 %v1295, %v1296
    %v1298 = vrot.slane %v1297, 2
    %v1299 = vadd.f32 %v1297, %v1298
    %v1300 = vrot.slane %v1299, 1
    %v1301 = vadd.f32 %v1299, %v1300
    %v1302 = vmul.f32 %v1257, %v1215
    %v1303 = vmul.f32 %v1264, %v1215
    %v1304 = vmul.f32 %v1271, %v1215
    %v1305 = vmul.f32 %v1278, %v1215
    %v1306 = vmul.f32 %v1285, %v1215
    %v1307 = vmul.f32 %v1292, %v1215
    %v1308 = vmul.f32 %v1301, %v1215
    %v1309 = vadd.f32 %v1302, 1e-05
    %v1310 = vadd.f32 %v1303, 1e-05
    %v1311 = vadd.f32 %v1304, 1e-05
    %v1312 = vadd.f32 %v1305, 1e-05
    %v1313 = vadd.f32 %v1306, 1e-05
    %v1314 = vadd.f32 %v1307, 1e-05
    %v1315 = vadd.f32 %v1308, 1e-05
    %v1316 = vrsqrt.pop %v1309
    %v1317 = vrsqrt.pop %v1310
    %v1318 = vrsqrt.pop %v1311
    %v1319 = vrsqrt.pop %v1312
    %v1320 = vrsqrt.pop %v1313
    %v1321 = vrsqrt.pop %v1314
    %v1322 = vrsqrt.pop %v1315
    %v1323 = vmul.f32 %v1223, %v1316
    %v1324 = vmul.f32 %v1224, %v1317
    %v1325 = vmul.f32 %v1225, %v1318
    %v1326 = vmul.f32 %v1226, %v1319
    %v1327 = vmul.f32 %v1227, %v1320
    %v1328 = vmul.f32 %v1228, %v1321
    %v1329 = vmul.f32 %v1229, %v1322
    %v1330 = vmul.f32 %v1230, %v1316
    %v1331 = vmul.f32 %v1231, %v1317
    %v1332 = vmul.f32 %v1232, %v1318
    %v1333 = vmul.f32 %v1233, %v1319
    %v1334 = vmul.f32 %v1234, %v1320
    %v1335 = vmul.f32 %v1235, %v1321
    %v1336 = vmul.f32 %v1236, %v1322
    %v1338 = vlaneseq
    %v1339 = vshrl.u32 %v1338, 7
    %v1340 = vsub.s32 0, %v1339
    %v1341 = vrot.slane %v1161, %v1340
    %v1342 = vlaneseq
    %v1343 = vshrl.u32 %v1342, 7
    %v1344 = vsub.s32 1, %v1343
    %v1345 = vrot.slane %v1161, %v1344
    %v1346 = vlaneseq
    %v1347 = vshrl.u32 %v1346, 7
    %v1348 = vsub.s32 2, %v1347
    %v1349 = vrot.slane %v1161, %v1348
    %v1350 = vlaneseq
    %v1351 = vshrl.u32 %v1350, 7
    %v1352 = vsub.s32 3, %v1351
    %v1353 = vrot.slane %v1161, %v1352
    %v1354 = vlaneseq
    %v1355 = vshrl.u32 %v1354, 7
    %v1356 = vsub.s32 4, %v1355
    %v1357 = vrot.slane %v1161, %v1356
    %v1358 = vlaneseq
    %v1359 = vshrl.u32 %v1358, 7
    %v1360 = vsub.s32 5, %v1359
    %v1361 = vrot.slane %v1161, %v1360
    %v1362 = vlaneseq
    %v1363 = vshrl.u32 %v1362, 7
    %v1364 = vsub.s32 6, %v1363
    %v1365 = vrot.slane %v1161, %v1364
    %v1373 = vmul.f32 %v1323, %v1341
    %v1374 = vmul.f32 %v1324, %v1345
    %v1375 = vmul.f32 %v1325, %v1349
    %v1376 = vmul.f32 %v1326, %v1353
    %v1377 = vmul.f32 %v1327, %v1357
    %v1378 = vmul.f32 %v1328, %v1361
    %v1379 = vmul.f32 %v1329, %v1365
    %v1380 = vmul.f32 %v1330, %v1341
    %v1381 = vmul.f32 %v1331, %v1345
    %v1382 = vmul.f32 %v1332, %v1349
    %v1383 = vmul.f32 %v1333, %v1353
    %v1384 = vmul.f32 %v1334, %v1357
    %v1385 = vmul.f32 %v1335, %v1361
    %v1386 = vmul.f32 %v1336, %v1365
    %v1388 = vlaneseq
    %v1389 = vshrl.u32 %v1388, 7
    %v1390 = vsub.s32 0, %v1389
    %v1391 = vrot.slane %v1162, %v1390
    %v1392 = vlaneseq
    %v1393 = vshrl.u32 %v1392, 7
    %v1394 = vsub.s32 1, %v1393
    %v1395 = vrot.slane %v1162, %v1394
    %v1396 = vlaneseq
    %v1397 = vshrl.u32 %v1396, 7
    %v1398 = vsub.s32 2, %v1397
    %v1399 = vrot.slane %v1162, %v1398
    %v1400 = vlaneseq
    %v1401 = vshrl.u32 %v1400, 7
    %v1402 = vsub.s32 3, %v1401
    %v1403 = vrot.slane %v1162, %v1402
    %v1404 = vlaneseq
    %v1405 = vshrl.u32 %v1404, 7
    %v1406 = vsub.s32 4, %v1405
    %v1407 = vrot.slane %v1162, %v1406
    %v1408 = vlaneseq
    %v1409 = vshrl.u32 %v1408, 7
    %v1410 = vsub.s32 5, %v1409
    %v1411 = vrot.slane %v1162, %v1410
    %v1412 = vlaneseq
    %v1413 = vshrl.u32 %v1412, 7
    %v1414 = vsub.s32 6, %v1413
    %v1415 = vrot.slane %v1162, %v1414
    %v1423 = vadd.f32 %v1373, %v1391
    %v1424 = vadd.f32 %v1374, %v1395
    %v1425 = vadd.f32 %v1375, %v1399
    %v1426 = vadd.f32 %v1376, %v1403
    %v1427 = vadd.f32 %v1377, %v1407
    %v1428 = vadd.f32 %v1378, %v1411
    %v1429 = vadd.f32 %v1379, %v1415
    %v1430 = vadd.f32 %v1380, %v1391
    %v1431 = vadd.f32 %v1381, %v1395
    %v1432 = vadd.f32 %v1382, %v1399
    %v1433 = vadd.f32 %v1383, %v1403
    %v1434 = vadd.f32 %v1384, %v1407
    %v1435 = vadd.f32 %v1385, %v1411
    %v1436 = vadd.f32 %v1386, %v1415
    %vm1437 = vcmp.gt.f32.partialorder %v1423, 0.0
    %vm1438 = vcmp.gt.f32.partialorder %v1424, 0.0
    %vm1439 = vcmp.gt.f32.partialorder %v1425, 0.0
    %vm1440 = vcmp.gt.f32.partialorder %v1426, 0.0
    %vm1441 = vcmp.gt.f32.partialorder %v1427, 0.0
    %vm1442 = vcmp.gt.f32.partialorder %v1428, 0.0
    %vm1443 = vcmp.gt.f32.partialorder %v1429, 0.0
    %vm1444 = vcmp.gt.f32.partialorder %v1430, 0.0
    %vm1445 = vcmp.gt.f32.partialorder %v1431, 0.0
    %vm1446 = vcmp.gt.f32.partialorder %v1432, 0.0
    %vm1447 = vcmp.gt.f32.partialorder %v1433, 0.0
    %vm1448 = vcmp.gt.f32.partialorder %v1434, 0.0
    %vm1449 = vcmp.gt.f32.partialorder %v1435, 0.0
    %vm1450 = vcmp.gt.f32.partialorder %v1436, 0.0
    %v1451 = vmul.f32 %v1423, 0.01
    %v1452 = vmul.f32 %v1424, 0.01
    %v1453 = vmul.f32 %v1425, 0.01
    %v1454 = vmul.f32 %v1426, 0.01
    %v1455 = vmul.f32 %v1427, 0.01
    %v1456 = vmul.f32 %v1428, 0.01
    %v1457 = vmul.f32 %v1429, 0.01
    %v1458 = vmul.f32 %v1430, 0.01
    %v1459 = vmul.f32 %v1431, 0.01
    %v1460 = vmul.f32 %v1432, 0.01
    %v1461 = vmul.f32 %v1433, 0.01
    %v1462 = vmul.f32 %v1434, 0.01
    %v1463 = vmul.f32 %v1435, 0.01
    %v1464 = vmul.f32 %v1436, 0.01
    %v1465 = vsel %vm1437, %v1423, %v1451
    %v1466 = vsel %vm1438, %v1424, %v1452
    %v1467 = vsel %vm1439, %v1425, %v1453
    %v1468 = vsel %vm1440, %v1426, %v1454
    %v1469 = vsel %vm1441, %v1427, %v1455
    %v1470 = vsel %vm1442, %v1428, %v1456
    %v1471 = vsel %vm1443, %v1429, %v1457
    %v1472 = vsel %vm1444, %v1430, %v1458
    %v1473 = vsel %vm1445, %v1431, %v1459
    %v1474 = vsel %vm1446, %v1432, %v1460
    %v1475 = vsel %vm1447, %v1433, %v1461
    %v1476 = vsel %vm1448, %v1434, %v1462
    %v1477 = vsel %vm1449, %v1435, %v1463
    %v1478 = vsel %vm1450, %v1436, %v1464
    %v1479 = vld [vmem:[#allocation16] sm:$0xff]
    %v1480 = vld [vmem:[#allocation16 + $0x8] sm:$0xff]
    %v1481 = vld [vmem:[#allocation16 + $0x10] sm:$0xff]
    %v1482 = vld [vmem:[#allocation16 + $0x18] sm:$0xf]
    %v1483 = vld [vmem:[#allocation16 + $0x1c] sm:$0xff]
    %v1484 = vld [vmem:[#allocation16 + $0x24] sm:$0xff]
    %v1485 = vld [vmem:[#allocation16 + $0x2c] sm:$0xff]
    %v1486 = vld [vmem:[#allocation16 + $0x34] sm:$0xf]
    %v1487 = vunpack.c.l.bf16 %v1479
    %v1488 = vunpack.c.h.bf16 %v1479
    %v1489 = vunpack.c.l.bf16 %v1480
    %v1490 = vunpack.c.h.bf16 %v1480
    %v1491 = vunpack.c.l.bf16 %v1481
    %v1492 = vunpack.c.h.bf16 %v1481
    %v1493 = vunpack.c.l.bf16 %v1482
    %v1494 = vunpack.c.l.bf16 %v1483
    %v1495 = vunpack.c.h.bf16 %v1483
    %v1496 = vunpack.c.l.bf16 %v1484
    %v1497 = vunpack.c.h.bf16 %v1484
    %v1498 = vunpack.c.l.bf16 %v1485
    %v1499 = vunpack.c.h.bf16 %v1485
    %v1500 = vunpack.c.l.bf16 %v1486
    %v1501 = vmul.f32 %v1465, %v1487
    %v1502 = vmul.f32 %v1466, %v1488
    %v1503 = vmul.f32 %v1467, %v1489
    %v1504 = vmul.f32 %v1468, %v1490
    %v1505 = vmul.f32 %v1469, %v1491
    %v1506 = vmul.f32 %v1470, %v1492
    %v1507 = vmul.f32 %v1471, %v1493
    %v1508 = vmul.f32 %v1472, %v1494
    %v1509 = vmul.f32 %v1473, %v1495
    %v1510 = vmul.f32 %v1474, %v1496
    %v1511 = vmul.f32 %v1475, %v1497
    %v1512 = vmul.f32 %v1476, %v1498
    %v1513 = vmul.f32 %v1477, %v1499
    %v1514 = vmul.f32 %v1478, %v1500
    %s1515 = smul.u32 2, 100
    %s1516 = smul.u32 %s1515, 7
    %s1517 = sshll.u32 %s1516, 4
    %1518 = dma.done [#allocation6], %s1517
    %s1519 = scalar_lea.sflag [#allocation6], 3
    %p1521 = scmp.lt.u32.totalorder 400, 8
    %p1522 = pneg %p1521
    // Predicated region
    $region224: #{cvae_forward.1} parent=1 // pred_check
      _
    $region225: #{cvae_forward.1} parent=1 // pred_check_branch
      %1524 = sbr.rel (%p1521) target = $region227
    $region226: #{cvae_forward.1} parent=1 // pred_region
      %s1540 = sand.u32 400, 7
      %p1541 = scmp.eq.s32.totalorder %s1540, 0
      // Predicated region
      $region239: #{cvae_forward.1} parent=226 // pred_check
        %p1542 = pneg %p1541
      $region240: #{cvae_forward.1} parent=226 // pred_check_branch
        %1544 = sbr.rel (%p1542) target = $region242
      $region241: #{cvae_forward.1} parent=226 // pred_region
        loop: start=0, step=1, limit=1
        $region243: #{cvae_forward.1} parent=241 // loop_pre_header
          _
        $region244: #{cvae_forward.1} parent=241 // loop_header
          %s1546 = sphi 0, %s1550
          %p1547 = scmp.ge.s32.totalorder %s1546, 1
          %s1551 = sphi %s57, %s57
          %s1552 = sphi [#allocation5], [#allocation5]
        $region245: #{cvae_forward.1} parent=241 // loop_header_branch
          %1549 = sbr.rel (%p1547) target = $region249
        $region246: #{cvae_forward.1} parent=241 // loop_body
          %v1553 = vld [vmem:[%s1551] sm:$0xff]
          %1554 = vst [vmem:[%s1552] sm:$0xff] %v1553
          %v1555 = vld [vmem:[%s1551 + $0x8] sm:$0xff]
          %1556 = vst [vmem:[%s1552 + $0x8] sm:$0xff] %v1555
          %v1557 = vld [vmem:[%s1551 + $0x10] sm:$0xff]
          %1558 = vst [vmem:[%s1552 + $0x10] sm:$0xff] %v1557
          %v1559 = vld [vmem:[%s1551 + $0x18] sm:$0xff]
          %1560 = vst [vmem:[%s1552 + $0x18] sm:$0xff] %v1559
          %v1561 = vld [vmem:[%s1551 + $0x20] sm:$0xff]
          %1562 = vst [vmem:[%s1552 + $0x20] sm:$0xff] %v1561
          %v1563 = vld [vmem:[%s1551 + $0x28] sm:$0xff]
          %1564 = vst [vmem:[%s1552 + $0x28] sm:$0xff] %v1563
          %v1565 = vld [vmem:[%s1551 + $0x30] sm:$0xff]
          %1566 = vst [vmem:[%s1552 + $0x30] sm:$0xff] %v1565
          %v1567 = vld [vmem:[%s1551 + $0x38] sm:$0xff]
          %1568 = vst [vmem:[%s1552 + $0x38] sm:$0xff] %v1567
          %v1569 = vld [vmem:[%s1551 + $0x40] sm:$0xff]
          %1570 = vst [vmem:[%s1552 + $0x40] sm:$0xff] %v1569
          %v1571 = vld [vmem:[%s1551 + $0x48] sm:$0xff]
          %1572 = vst [vmem:[%s1552 + $0x48] sm:$0xff] %v1571
          %v1573 = vld [vmem:[%s1551 + $0x50] sm:$0xff]
          %1574 = vst [vmem:[%s1552 + $0x50] sm:$0xff] %v1573
          %v1575 = vld [vmem:[%s1551 + $0x58] sm:$0xff]
          %1576 = vst [vmem:[%s1552 + $0x58] sm:$0xff] %v1575
          %v1577 = vld [vmem:[%s1551 + $0x60] sm:$0xff]
          %1578 = vst [vmem:[%s1552 + $0x60] sm:$0xff] %v1577
          %v1579 = vld [vmem:[%s1551 + $0x68] sm:$0xff]
          %1580 = vst [vmem:[%s1552 + $0x68] sm:$0xff] %v1579
          %v1581 = vld [vmem:[%s1551 + $0x70] sm:$0xff]
          %1582 = vst [vmem:[%s1552 + $0x70] sm:$0xff] %v1581
          %v1583 = vld [vmem:[%s1551 + $0x78] sm:$0xff]
          %1584 = vst [vmem:[%s1552 + $0x78] sm:$0xff] %v1583
          %v1585 = vld [vmem:[%s1551 + $0x80] sm:$0xff]
          %1586 = vst [vmem:[%s1552 + $0x80] sm:$0xff] %v1585
          %v1587 = vld [vmem:[%s1551 + $0x88] sm:$0xff]
          %1588 = vst [vmem:[%s1552 + $0x88] sm:$0xff] %v1587
          %v1589 = vld [vmem:[%s1551 + $0x90] sm:$0xff]
          %1590 = vst [vmem:[%s1552 + $0x90] sm:$0xff] %v1589
          %v1591 = vld [vmem:[%s1551 + $0x98] sm:$0xff]
          %1592 = vst [vmem:[%s1552 + $0x98] sm:$0xff] %v1591
          %v1593 = vld [vmem:[%s1551 + $0xa0] sm:$0xff]
          %1594 = vst [vmem:[%s1552 + $0xa0] sm:$0xff] %v1593
          %v1595 = vld [vmem:[%s1551 + $0xa8] sm:$0xff]
          %1596 = vst [vmem:[%s1552 + $0xa8] sm:$0xff] %v1595
          %v1597 = vld [vmem:[%s1551 + $0xb0] sm:$0xff]
          %1598 = vst [vmem:[%s1552 + $0xb0] sm:$0xff] %v1597
          %v1599 = vld [vmem:[%s1551 + $0xb8] sm:$0xff]
          %1600 = vst [vmem:[%s1552 + $0xb8] sm:$0xff] %v1599
          %v1601 = vld [vmem:[%s1551 + $0xc0] sm:$0xff]
          %1602 = vst [vmem:[%s1552 + $0xc0] sm:$0xff] %v1601
          %v1603 = vld [vmem:[%s1551 + $0xc8] sm:$0xff]
          %1604 = vst [vmem:[%s1552 + $0xc8] sm:$0xff] %v1603
          %v1605 = vld [vmem:[%s1551 + $0xd0] sm:$0xff]
          %1606 = vst [vmem:[%s1552 + $0xd0] sm:$0xff] %v1605
          %v1607 = vld [vmem:[%s1551 + $0xd8] sm:$0xff]
          %1608 = vst [vmem:[%s1552 + $0xd8] sm:$0xff] %v1607
          %v1609 = vld [vmem:[%s1551 + $0xe0] sm:$0xff]
          %1610 = vst [vmem:[%s1552 + $0xe0] sm:$0xff] %v1609
          %v1611 = vld [vmem:[%s1551 + $0xe8] sm:$0xff]
          %1612 = vst [vmem:[%s1552 + $0xe8] sm:$0xff] %v1611
          %v1613 = vld [vmem:[%s1551 + $0xf0] sm:$0xff]
          %1614 = vst [vmem:[%s1552 + $0xf0] sm:$0xff] %v1613
          %v1615 = vld [vmem:[%s1551 + $0xf8] sm:$0xff]
          %1616 = vst [vmem:[%s1552 + $0xf8] sm:$0xff] %v1615
          %v1617 = vld [vmem:[%s1551 + $0x100] sm:$0xff]
          %1618 = vst [vmem:[%s1552 + $0x100] sm:$0xff] %v1617
          %v1619 = vld [vmem:[%s1551 + $0x108] sm:$0xff]
          %1620 = vst [vmem:[%s1552 + $0x108] sm:$0xff] %v1619
          %v1621 = vld [vmem:[%s1551 + $0x110] sm:$0xff]
          %1622 = vst [vmem:[%s1552 + $0x110] sm:$0xff] %v1621
          %v1623 = vld [vmem:[%s1551 + $0x118] sm:$0xff]
          %1624 = vst [vmem:[%s1552 + $0x118] sm:$0xff] %v1623
          %v1625 = vld [vmem:[%s1551 + $0x120] sm:$0xff]
          %1626 = vst [vmem:[%s1552 + $0x120] sm:$0xff] %v1625
          %v1627 = vld [vmem:[%s1551 + $0x128] sm:$0xff]
          %1628 = vst [vmem:[%s1552 + $0x128] sm:$0xff] %v1627
          %v1629 = vld [vmem:[%s1551 + $0x130] sm:$0xff]
          %1630 = vst [vmem:[%s1552 + $0x130] sm:$0xff] %v1629
          %v1631 = vld [vmem:[%s1551 + $0x138] sm:$0xff]
          %1632 = vst [vmem:[%s1552 + $0x138] sm:$0xff] %v1631
          %v1633 = vld [vmem:[%s1551 + $0x140] sm:$0xff]
          %1634 = vst [vmem:[%s1552 + $0x140] sm:$0xff] %v1633
          %v1635 = vld [vmem:[%s1551 + $0x148] sm:$0xff]
          %1636 = vst [vmem:[%s1552 + $0x148] sm:$0xff] %v1635
          %v1637 = vld [vmem:[%s1551 + $0x150] sm:$0xff]
          %1638 = vst [vmem:[%s1552 + $0x150] sm:$0xff] %v1637
          %v1639 = vld [vmem:[%s1551 + $0x158] sm:$0xff]
          %1640 = vst [vmem:[%s1552 + $0x158] sm:$0xff] %v1639
          %v1641 = vld [vmem:[%s1551 + $0x160] sm:$0xff]
          %1642 = vst [vmem:[%s1552 + $0x160] sm:$0xff] %v1641
          %v1643 = vld [vmem:[%s1551 + $0x168] sm:$0xff]
          %1644 = vst [vmem:[%s1552 + $0x168] sm:$0xff] %v1643
          %v1645 = vld [vmem:[%s1551 + $0x170] sm:$0xff]
          %1646 = vst [vmem:[%s1552 + $0x170] sm:$0xff] %v1645
          %v1647 = vld [vmem:[%s1551 + $0x178] sm:$0xff]
          %1648 = vst [vmem:[%s1552 + $0x178] sm:$0xff] %v1647
          %v1649 = vld [vmem:[%s1551 + $0x180] sm:$0xff]
          %1650 = vst [vmem:[%s1552 + $0x180] sm:$0xff] %v1649
          %v1651 = vld [vmem:[%s1551 + $0x188] sm:$0xff]
          %1652 = vst [vmem:[%s1552 + $0x188] sm:$0xff] %v1651
        $region247: #{cvae_forward.1} parent=241 // loop_footer
          %s1550 = sadd.s32 1, %s1546
        $region248: #{cvae_forward.1} parent=241 // loop_footer_branch
          %1545 = sbr.rel target = $region244
        $region249: #{cvae_forward.1} parent=241 // loop_exit
          _
      $region242: #{cvae_forward.1} parent=226 // pred_fallthru
        _
      %p1653 = pneg %p1541
      // Predicated region
      $region250: #{cvae_forward.1} parent=226 // pred_check
        _
      $region251: #{cvae_forward.1} parent=226 // pred_check_branch
        %1655 = sbr.rel (%p1541) target = $region253
      $region252: #{cvae_forward.1} parent=226 // pred_region
        %s1656 = sand.u32 400, 7
      $region253: #{cvae_forward.1} parent=226 // pred_fallthru
        _
    $region227: #{cvae_forward.1} parent=1 // pred_fallthru
      _
    // Predicated region
    $region228: #{cvae_forward.1} parent=1 // pred_check
      %p1525 = pneg %p1521
    $region229: #{cvae_forward.1} parent=1 // pred_check_branch
      %1527 = sbr.rel (%p1525) target = $region231
    $region230: #{cvae_forward.1} parent=1 // pred_region
      %s1528 = sshll.u32 1, 400
      %s1529 = ssub.s32 %s1528, 1
      loop: start=0, step=1, limit=1
      $region232: #{cvae_forward.1} parent=230 // loop_pre_header
        _
      $region233: #{cvae_forward.1} parent=230 // loop_header
        %s1531 = sphi 0, %s1535
        %p1532 = scmp.ge.s32.totalorder %s1531, 1
        %s1536 = sphi %s57, %s57
        %s1537 = sphi [#allocation5], [#allocation5]
      $region234: #{cvae_forward.1} parent=230 // loop_header_branch
        %1534 = sbr.rel (%p1532) target = $region238
      $region235: #{cvae_forward.1} parent=230 // loop_body
        %v1538 = vld [vmem:[%s1536] sm:%s1529]
        %1539 = vst [vmem:[%s1537] sm:%s1529] %v1538
      $region236: #{cvae_forward.1} parent=230 // loop_footer
        %s1535 = sadd.s32 1, %s1531
      $region237: #{cvae_forward.1} parent=230 // loop_footer_branch
        %1530 = sbr.rel target = $region233
      $region238: #{cvae_forward.1} parent=230 // loop_exit
        _
    $region231: #{cvae_forward.1} parent=1 // pred_fallthru
      _
    // Predicated region
    $region254: #{cvae_forward.1} parent=1 // pred_check
      _
    $region255: #{cvae_forward.1} parent=1 // pred_check_branch
      %1659 = sbr.rel (0) target = $region257
    $region256: #{cvae_forward.1} parent=1 // pred_region
      %1660 = vsyncadd %s1519, 6400
    $region257: #{cvae_forward.1} parent=1 // pred_fallthru
      _
    %v1661 = vld [vmem:[#allocation2] sm:$0xff]
    %v1662 = vld [vmem:[#allocation2 + $0x8] sm:$0xff]
    %v1663 = vld [vmem:[#allocation2 + $0x10] sm:$0xff]
    %v1664 = vld [vmem:[#allocation2 + $0x18] sm:$0xff]
    %v1665 = vld [vmem:[#allocation2 + $0x20] sm:$0xff]
    %v1666 = vld [vmem:[#allocation2 + $0x28] sm:$0xff]
    %v1667 = vld [vmem:[#allocation2 + $0x30] sm:$0xff]
    %v1668 = vld [vmem:[#allocation2 + $0x38] sm:$0xff]
    %v1669 = vld [vmem:[#allocation2 + $0x40] sm:$0xff]
    %v1670 = vld [vmem:[#allocation2 + $0x48] sm:$0xff]
    %v1671 = vld [vmem:[#allocation2 + $0x50] sm:$0xff]
    %v1672 = vld [vmem:[#allocation2 + $0x58] sm:$0xff]
    %v1673 = vld [vmem:[#allocation2 + $0x60] sm:$0xff]
    %v1674 = vld [vmem:[#allocation2 + $0x68] sm:$0xff]
    %v1675 = vld [vmem:[#allocation2 + $0x70] sm:$0xff]
    %v1676 = vld [vmem:[#allocation2 + $0x78] sm:$0xff]
    %v1677 = vld [vmem:[#allocation2 + $0x80] sm:$0xff]
    %v1678 = vld [vmem:[#allocation2 + $0x88] sm:$0xff]
    %v1679 = vld [vmem:[#allocation2 + $0x90] sm:$0xff]
    %v1680 = vld [vmem:[#allocation2 + $0x98] sm:$0xff]
    %v1681 = vld [vmem:[#allocation2 + $0xa0] sm:$0xff]
    %v1682 = vld [vmem:[#allocation2 + $0xa8] sm:$0xff]
    %v1683 = vld [vmem:[#allocation2 + $0xb0] sm:$0xff]
    %v1684 = vld [vmem:[#allocation2 + $0xb8] sm:$0xff]
    %v1685 = vld [vmem:[#allocation2 + $0xc0] sm:$0xff]
    %v1686 = vld [vmem:[#allocation2 + $0xc8] sm:$0xff]
    %v1687 = vld [vmem:[#allocation2 + $0xd0] sm:$0xff]
    %v1688 = vld [vmem:[#allocation2 + $0xd8] sm:$0xff]
    %v1689 = vld [vmem:[#allocation2 + $0xe0] sm:$0xff]
    %v1690 = vld [vmem:[#allocation2 + $0xe8] sm:$0xff]
    %v1691 = vld [vmem:[#allocation2 + $0xf0] sm:$0xff]
    %v1692 = vld [vmem:[#allocation2 + $0xf8] sm:$0xff]
    %v1693 = vld [vmem:[#allocation2 + $0x100] sm:$0xff]
    %v1694 = vld [vmem:[#allocation2 + $0x108] sm:$0xff]
    %v1695 = vld [vmem:[#allocation2 + $0x110] sm:$0xff]
    %v1696 = vld [vmem:[#allocation2 + $0x118] sm:$0xff]
    %v1697 = vld [vmem:[#allocation2 + $0x120] sm:$0xff]
    %v1698 = vld [vmem:[#allocation2 + $0x128] sm:$0xff]
    %v1699 = vld [vmem:[#allocation2 + $0x130] sm:$0xff]
    %v1700 = vld [vmem:[#allocation2 + $0x138] sm:$0xff]
    %v1701 = vld [vmem:[#allocation2 + $0x140] sm:$0xff]
    %v1702 = vld [vmem:[#allocation2 + $0x148] sm:$0xff]
    %v1703 = vld [vmem:[#allocation2 + $0x150] sm:$0xff]
    %v1704 = vld [vmem:[#allocation2 + $0x158] sm:$0xff]
    %v1705 = vld [vmem:[#allocation2 + $0x160] sm:$0xff]
    %v1706 = vld [vmem:[#allocation2 + $0x168] sm:$0xff]
    %v1707 = vld [vmem:[#allocation2 + $0x170] sm:$0xff]
    %v1708 = vld [vmem:[#allocation2 + $0x178] sm:$0xff]
    %v1709 = vld [vmem:[#allocation2 + $0x180] sm:$0xff]
    %v1710 = vld [vmem:[#allocation2 + $0x188] sm:$0xff]
    %v1711 = vld [vmem:[#allocation2 + $0x190] sm:$0xff]
    %v1712 = vld [vmem:[#allocation2 + $0x198] sm:$0xff]
    %v1713 = vld [vmem:[#allocation2 + $0x1a0] sm:$0xff]
    %v1714 = vld [vmem:[#allocation2 + $0x1a8] sm:$0xff]
    %v1715 = vld [vmem:[#allocation2 + $0x1b0] sm:$0xff]
    %v1716 = vld [vmem:[#allocation2 + $0x1b8] sm:$0xff]
    %v1717 = vld [vmem:[#allocation2 + $0x1c0] sm:$0xff]
    %v1718 = vld [vmem:[#allocation2 + $0x1c8] sm:$0xff]
    %v1719 = vld [vmem:[#allocation2 + $0x1d0] sm:$0xff]
    %v1720 = vld [vmem:[#allocation2 + $0x1d8] sm:$0xff]
    %v1721 = vld [vmem:[#allocation2 + $0x1e0] sm:$0xff]
    %v1722 = vld [vmem:[#allocation2 + $0x1e8] sm:$0xff]
    %v1723 = vld [vmem:[#allocation2 + $0x1f0] sm:$0xff]
    %v1724 = vld [vmem:[#allocation2 + $0x1f8] sm:$0xff]
    %v1725 = vld [vmem:[#allocation2 + $0x200] sm:$0xff]
    %v1726 = vld [vmem:[#allocation2 + $0x208] sm:$0xff]
    %v1727 = vld [vmem:[#allocation2 + $0x210] sm:$0xff]
    %v1728 = vld [vmem:[#allocation2 + $0x218] sm:$0xff]
    %v1729 = vld [vmem:[#allocation2 + $0x220] sm:$0xff]
    %v1730 = vld [vmem:[#allocation2 + $0x228] sm:$0xff]
    %v1731 = vld [vmem:[#allocation2 + $0x230] sm:$0xff]
    %v1732 = vld [vmem:[#allocation2 + $0x238] sm:$0xff]
    %v1733 = vld [vmem:[#allocation2 + $0x240] sm:$0xff]
    %v1734 = vld [vmem:[#allocation2 + $0x248] sm:$0xff]
    %v1735 = vld [vmem:[#allocation2 + $0x250] sm:$0xff]
    %v1736 = vld [vmem:[#allocation2 + $0x258] sm:$0xff]
    %v1737 = vld [vmem:[#allocation2 + $0x260] sm:$0xff]
    %v1738 = vld [vmem:[#allocation2 + $0x268] sm:$0xff]
    %v1739 = vld [vmem:[#allocation2 + $0x270] sm:$0xff]
    %v1740 = vld [vmem:[#allocation2 + $0x278] sm:$0xff]
    %v1741 = vld [vmem:[#allocation2 + $0x280] sm:$0xff]
    %v1742 = vld [vmem:[#allocation2 + $0x288] sm:$0xff]
    %v1743 = vld [vmem:[#allocation2 + $0x290] sm:$0xff]
    %v1744 = vld [vmem:[#allocation2 + $0x298] sm:$0xff]
    %v1745 = vld [vmem:[#allocation2 + $0x2a0] sm:$0xff]
    %v1746 = vld [vmem:[#allocation2 + $0x2a8] sm:$0xff]
    %v1747 = vld [vmem:[#allocation2 + $0x2b0] sm:$0xff]
    %v1748 = vld [vmem:[#allocation2 + $0x2b8] sm:$0xff]
    %v1749 = vld [vmem:[#allocation2 + $0x2c0] sm:$0xff]
    %v1750 = vld [vmem:[#allocation2 + $0x2c8] sm:$0xff]
    %v1751 = vld [vmem:[#allocation2 + $0x2d0] sm:$0xff]
    %v1752 = vld [vmem:[#allocation2 + $0x2d8] sm:$0xff]
    %v1753 = vld [vmem:[#allocation2 + $0x2e0] sm:$0xff]
    %v1754 = vld [vmem:[#allocation2 + $0x2e8] sm:$0xff]
    %v1755 = vld [vmem:[#allocation2 + $0x2f0] sm:$0xff]
    %v1756 = vld [vmem:[#allocation2 + $0x2f8] sm:$0xff]
    %v1757 = vld [vmem:[#allocation2 + $0x300] sm:$0xff]
    %v1758 = vld [vmem:[#allocation2 + $0x308] sm:$0xff]
    %v1759 = vld [vmem:[#allocation2 + $0x310] sm:$0xff]
    %v1760 = vld [vmem:[#allocation2 + $0x318] sm:$0xff]
    %v1761 = vld [vmem:[#allocation2 + $0x320] sm:$0xff]
    %v1762 = vld [vmem:[#allocation2 + $0x328] sm:$0xff]
    %v1763 = vld [vmem:[#allocation2 + $0x330] sm:$0xff]
    %v1764 = vld [vmem:[#allocation2 + $0x338] sm:$0xff]
    %v1765 = vld [vmem:[#allocation2 + $0x340] sm:$0xff]
    %v1766 = vld [vmem:[#allocation2 + $0x348] sm:$0xff]
    %v1767 = vld [vmem:[#allocation2 + $0x350] sm:$0xff]
    %v1768 = vld [vmem:[#allocation2 + $0x358] sm:$0xff]
    %v1769 = vld [vmem:[#allocation2 + $0x360] sm:$0xff]
    %v1770 = vld [vmem:[#allocation2 + $0x368] sm:$0xff]
    %v1771 = vld [vmem:[#allocation2 + $0x370] sm:$0xff]
    %v1772 = vld [vmem:[#allocation2 + $0x378] sm:$0xff]
    %v1773 = vld [vmem:[#allocation2 + $0x380] sm:$0xff]
    %v1774 = vld [vmem:[#allocation2 + $0x388] sm:$0xff]
    %v1775 = vld [vmem:[#allocation2 + $0x390] sm:$0xff]
    %v1776 = vld [vmem:[#allocation2 + $0x398] sm:$0xff]
    %v1777 = vld [vmem:[#allocation2 + $0x3a0] sm:$0xff]
    %v1778 = vld [vmem:[#allocation2 + $0x3a8] sm:$0xff]
    %v1779 = vld [vmem:[#allocation2 + $0x3b0] sm:$0xff]
    %v1780 = vld [vmem:[#allocation2 + $0x3b8] sm:$0xff]
    %v1781 = vld [vmem:[#allocation2 + $0x3c0] sm:$0xff]
    %v1782 = vld [vmem:[#allocation2 + $0x3c8] sm:$0xff]
    %v1783 = vld [vmem:[#allocation2 + $0x3d0] sm:$0xff]
    %v1784 = vld [vmem:[#allocation2 + $0x3d8] sm:$0xff]
    %v1785 = vld [vmem:[#allocation2 + $0x3e0] sm:$0xff]
    %v1786 = vld [vmem:[#allocation2 + $0x3e8] sm:$0xff]
    %v1787 = vld [vmem:[#allocation2 + $0x3f0] sm:$0xff]
    %v1788 = vld [vmem:[#allocation2 + $0x3f8] sm:$0xff]
    %v1789 = vld [vmem:[#allocation2 + $0x400] sm:$0xff]
    %v1790 = vld [vmem:[#allocation2 + $0x408] sm:$0xff]
    %v1791 = vld [vmem:[#allocation2 + $0x410] sm:$0xff]
    %v1792 = vld [vmem:[#allocation2 + $0x418] sm:$0xff]
    %v1793 = vld [vmem:[#allocation2 + $0x420] sm:$0xff]
    %v1794 = vld [vmem:[#allocation2 + $0x428] sm:$0xff]
    %v1795 = vld [vmem:[#allocation2 + $0x430] sm:$0xff]
    %v1796 = vld [vmem:[#allocation2 + $0x438] sm:$0xff]
    %v1797 = vld [vmem:[#allocation2 + $0x440] sm:$0xff]
    %v1798 = vld [vmem:[#allocation2 + $0x448] sm:$0xff]
    %v1799 = vld [vmem:[#allocation2 + $0x450] sm:$0xff]
    %v1800 = vld [vmem:[#allocation2 + $0x458] sm:$0xff]
    %v1801 = vld [vmem:[#allocation2 + $0x460] sm:$0xff]
    %v1802 = vld [vmem:[#allocation2 + $0x468] sm:$0xff]
    %v1803 = vld [vmem:[#allocation2 + $0x470] sm:$0xff]
    %v1804 = vld [vmem:[#allocation2 + $0x478] sm:$0xff]
    %v1805 = vld [vmem:[#allocation2 + $0x480] sm:$0xff]
    %v1806 = vld [vmem:[#allocation2 + $0x488] sm:$0xff]
    %v1807 = vld [vmem:[#allocation2 + $0x490] sm:$0xff]
    %v1808 = vld [vmem:[#allocation2 + $0x498] sm:$0xff]
    %v1809 = vld [vmem:[#allocation2 + $0x4a0] sm:$0xff]
    %v1810 = vld [vmem:[#allocation2 + $0x4a8] sm:$0xff]
    %v1811 = vld [vmem:[#allocation2 + $0x4b0] sm:$0xff]
    %v1812 = vld [vmem:[#allocation2 + $0x4b8] sm:$0xff]
    %v1813 = vld [vmem:[#allocation2 + $0x4c0] sm:$0xff]
    %v1814 = vld [vmem:[#allocation2 + $0x4c8] sm:$0xff]
    %v1815 = vld [vmem:[#allocation2 + $0x4d0] sm:$0xff]
    %v1816 = vld [vmem:[#allocation2 + $0x4d8] sm:$0xff]
    %v1817 = vld [vmem:[#allocation2 + $0x4e0] sm:$0xff]
    %v1818 = vld [vmem:[#allocation2 + $0x4e8] sm:$0xff]
    %v1819 = vld [vmem:[#allocation2 + $0x4f0] sm:$0xff]
    %v1820 = vld [vmem:[#allocation2 + $0x4f8] sm:$0xff]
    %v1821 = vld [vmem:[#allocation2 + $0x500] sm:$0xff]
    %v1822 = vld [vmem:[#allocation2 + $0x508] sm:$0xff]
    %v1823 = vld [vmem:[#allocation2 + $0x510] sm:$0xff]
    %v1824 = vld [vmem:[#allocation2 + $0x518] sm:$0xff]
    %v1825 = vld [vmem:[#allocation2 + $0x520] sm:$0xff]
    %v1826 = vld [vmem:[#allocation2 + $0x528] sm:$0xff]
    %v1827 = vld [vmem:[#allocation2 + $0x530] sm:$0xff]
    %v1828 = vld [vmem:[#allocation2 + $0x538] sm:$0xff]
    %v1829 = vld [vmem:[#allocation2 + $0x540] sm:$0xff]
    %v1830 = vld [vmem:[#allocation2 + $0x548] sm:$0xff]
    %v1831 = vld [vmem:[#allocation2 + $0x550] sm:$0xff]
    %v1832 = vld [vmem:[#allocation2 + $0x558] sm:$0xff]
    %v1833 = vld [vmem:[#allocation2 + $0x560] sm:$0xff]
    %v1834 = vld [vmem:[#allocation2 + $0x568] sm:$0xff]
    %v1835 = vld [vmem:[#allocation2 + $0x570] sm:$0xff]
    %v1836 = vld [vmem:[#allocation18] sm:$0x7f]
    %v1837 = vpack.c.bf16 %v1508, %v1501
    %v1838 = vpack.c.bf16 %v1509, %v1502
    %v1839 = vpack.c.bf16 %v1510, %v1503
    %v1840 = vpack.c.bf16 %v1511, %v1504
    %v1841 = vpack.c.bf16 %v1512, %v1505
    %v1842 = vpack.c.bf16 %v1513, %v1506
    %v1843 = vpack.c.bf16 %v1514, %v1507
    %v1844 = vunpack.c.l.s8.bf16 %v1661
    %v1845 = vunpack.c.l.s8.bf16 %v1662
    %v1846 = vunpack.c.l.s8.bf16 %v1663
    %v1847 = vunpack.c.l.s8.bf16 %v1664
    %v1848 = vunpack.c.l.s8.bf16 %v1665
    %v1849 = vunpack.c.l.s8.bf16 %v1666
    %v1850 = vunpack.c.l.s8.bf16 %v1667
    %v1851 = vunpack.c.h.s8.bf16 %v1661
    %v1852 = vunpack.c.h.s8.bf16 %v1662
    %v1853 = vunpack.c.h.s8.bf16 %v1663
    %v1854 = vunpack.c.h.s8.bf16 %v1664
    %v1855 = vunpack.c.h.s8.bf16 %v1665
    %v1856 = vunpack.c.h.s8.bf16 %v1666
    %v1857 = vunpack.c.h.s8.bf16 %v1667
    %v1858 = vunpack.c.l.s8.bf16 %v1668
    %v1859 = vunpack.c.l.s8.bf16 %v1669
    %v1860 = vunpack.c.l.s8.bf16 %v1670
    %v1861 = vunpack.c.l.s8.bf16 %v1671
    %v1862 = vunpack.c.l.s8.bf16 %v1672
    %v1863 = vunpack.c.l.s8.bf16 %v1673
    %v1864 = vunpack.c.l.s8.bf16 %v1674
    %v1865 = vunpack.c.h.s8.bf16 %v1668
    %v1866 = vunpack.c.h.s8.bf16 %v1669
    %v1867 = vunpack.c.h.s8.bf16 %v1670
    %v1868 = vunpack.c.h.s8.bf16 %v1671
    %v1869 = vunpack.c.h.s8.bf16 %v1672
    %v1870 = vunpack.c.h.s8.bf16 %v1673
    %v1871 = vunpack.c.h.s8.bf16 %v1674
    %v1872 = vunpack.c.l.s8.bf16 %v1675
    %v1873 = vunpack.c.l.s8.bf16 %v1676
    %v1874 = vunpack.c.l.s8.bf16 %v1677
    %v1875 = vunpack.c.l.s8.bf16 %v1678
    %v1876 = vunpack.c.l.s8.bf16 %v1679
    %v1877 = vunpack.c.l.s8.bf16 %v1680
    %v1878 = vunpack.c.l.s8.bf16 %v1681
    %v1879 = vunpack.c.h.s8.bf16 %v1675
    %v1880 = vunpack.c.h.s8.bf16 %v1676
    %v1881 = vunpack.c.h.s8.bf16 %v1677
    %v1882 = vunpack.c.h.s8.bf16 %v1678
    %v1883 = vunpack.c.h.s8.bf16 %v1679
    %v1884 = vunpack.c.h.s8.bf16 %v1680
    %v1885 = vunpack.c.h.s8.bf16 %v1681
    %v1886 = vunpack.c.l.s8.bf16 %v1682
    %v1887 = vunpack.c.l.s8.bf16 %v1683
    %v1888 = vunpack.c.l.s8.bf16 %v1684
    %v1889 = vunpack.c.l.s8.bf16 %v1685
    %v1890 = vunpack.c.l.s8.bf16 %v1686
    %v1891 = vunpack.c.l.s8.bf16 %v1687
    %v1892 = vunpack.c.l.s8.bf16 %v1688
    %v1893 = vunpack.c.h.s8.bf16 %v1682
    %v1894 = vunpack.c.h.s8.bf16 %v1683
    %v1895 = vunpack.c.h.s8.bf16 %v1684
    %v1896 = vunpack.c.h.s8.bf16 %v1685
    %v1897 = vunpack.c.h.s8.bf16 %v1686
    %v1898 = vunpack.c.h.s8.bf16 %v1687
    %v1899 = vunpack.c.h.s8.bf16 %v1688
    %v1900 = vunpack.c.l.s8.bf16 %v1689
    %v1901 = vunpack.c.l.s8.bf16 %v1690
    %v1902 = vunpack.c.l.s8.bf16 %v1691
    %v1903 = vunpack.c.l.s8.bf16 %v1692
    %v1904 = vunpack.c.l.s8.bf16 %v1693
    %v1905 = vunpack.c.l.s8.bf16 %v1694
    %v1906 = vunpack.c.l.s8.bf16 %v1695
    %v1907 = vunpack.c.h.s8.bf16 %v1689
    %v1908 = vunpack.c.h.s8.bf16 %v1690
    %v1909 = vunpack.c.h.s8.bf16 %v1691
    %v1910 = vunpack.c.h.s8.bf16 %v1692
    %v1911 = vunpack.c.h.s8.bf16 %v1693
    %v1912 = vunpack.c.h.s8.bf16 %v1694
    %v1913 = vunpack.c.h.s8.bf16 %v1695
    %v1914 = vunpack.c.l.s8.bf16 %v1696
    %v1915 = vunpack.c.l.s8.bf16 %v1697
    %v1916 = vunpack.c.l.s8.bf16 %v1698
    %v1917 = vunpack.c.l.s8.bf16 %v1699
    %v1918 = vunpack.c.l.s8.bf16 %v1700
    %v1919 = vunpack.c.l.s8.bf16 %v1701
    %v1920 = vunpack.c.l.s8.bf16 %v1702
    %v1921 = vunpack.c.h.s8.bf16 %v1696
    %v1922 = vunpack.c.h.s8.bf16 %v1697
    %v1923 = vunpack.c.h.s8.bf16 %v1698
    %v1924 = vunpack.c.h.s8.bf16 %v1699
    %v1925 = vunpack.c.h.s8.bf16 %v1700
    %v1926 = vunpack.c.h.s8.bf16 %v1701
    %v1927 = vunpack.c.h.s8.bf16 %v1702
    %v1928 = vunpack.c.l.s8.bf16 %v1703
    %v1929 = vunpack.c.l.s8.bf16 %v1704
    %v1930 = vunpack.c.l.s8.bf16 %v1705
    %v1931 = vunpack.c.l.s8.bf16 %v1706
    %v1932 = vunpack.c.l.s8.bf16 %v1707
    %v1933 = vunpack.c.l.s8.bf16 %v1708
    %v1934 = vunpack.c.l.s8.bf16 %v1709
    %v1935 = vunpack.c.h.s8.bf16 %v1703
    %v1936 = vunpack.c.h.s8.bf16 %v1704
    %v1937 = vunpack.c.h.s8.bf16 %v1705
    %v1938 = vunpack.c.h.s8.bf16 %v1706
    %v1939 = vunpack.c.h.s8.bf16 %v1707
    %v1940 = vunpack.c.h.s8.bf16 %v1708
    %v1941 = vunpack.c.h.s8.bf16 %v1709
    %v1942 = vunpack.c.l.s8.bf16 %v1710
    %v1943 = vunpack.c.l.s8.bf16 %v1711
    %v1944 = vunpack.c.l.s8.bf16 %v1712
    %v1945 = vunpack.c.l.s8.bf16 %v1713
    %v1946 = vunpack.c.l.s8.bf16 %v1714
    %v1947 = vunpack.c.l.s8.bf16 %v1715
    %v1948 = vunpack.c.l.s8.bf16 %v1716
    %v1949 = vunpack.c.h.s8.bf16 %v1710
    %v1950 = vunpack.c.h.s8.bf16 %v1711
    %v1951 = vunpack.c.h.s8.bf16 %v1712
    %v1952 = vunpack.c.h.s8.bf16 %v1713
    %v1953 = vunpack.c.h.s8.bf16 %v1714
    %v1954 = vunpack.c.h.s8.bf16 %v1715
    %v1955 = vunpack.c.h.s8.bf16 %v1716
    %v1956 = vunpack.c.l.s8.bf16 %v1717
    %v1957 = vunpack.c.l.s8.bf16 %v1718
    %v1958 = vunpack.c.l.s8.bf16 %v1719
    %v1959 = vunpack.c.l.s8.bf16 %v1720
    %v1960 = vunpack.c.l.s8.bf16 %v1721
    %v1961 = vunpack.c.l.s8.bf16 %v1722
    %v1962 = vunpack.c.l.s8.bf16 %v1723
    %v1963 = vunpack.c.h.s8.bf16 %v1717
    %v1964 = vunpack.c.h.s8.bf16 %v1718
    %v1965 = vunpack.c.h.s8.bf16 %v1719
    %v1966 = vunpack.c.h.s8.bf16 %v1720
    %v1967 = vunpack.c.h.s8.bf16 %v1721
    %v1968 = vunpack.c.h.s8.bf16 %v1722
    %v1969 = vunpack.c.h.s8.bf16 %v1723
    %v1970 = vunpack.c.l.s8.bf16 %v1724
    %v1971 = vunpack.c.l.s8.bf16 %v1725
    %v1972 = vunpack.c.l.s8.bf16 %v1726
    %v1973 = vunpack.c.l.s8.bf16 %v1727
    %v1974 = vunpack.c.l.s8.bf16 %v1728
    %v1975 = vunpack.c.l.s8.bf16 %v1729
    %v1976 = vunpack.c.l.s8.bf16 %v1730
    %v1977 = vunpack.c.h.s8.bf16 %v1724
    %v1978 = vunpack.c.h.s8.bf16 %v1725
    %v1979 = vunpack.c.h.s8.bf16 %v1726
    %v1980 = vunpack.c.h.s8.bf16 %v1727
    %v1981 = vunpack.c.h.s8.bf16 %v1728
    %v1982 = vunpack.c.h.s8.bf16 %v1729
    %v1983 = vunpack.c.h.s8.bf16 %v1730
    %v1984 = vunpack.c.l.s8.bf16 %v1731
    %v1985 = vunpack.c.l.s8.bf16 %v1732
    %v1986 = vunpack.c.l.s8.bf16 %v1733
    %v1987 = vunpack.c.l.s8.bf16 %v1734
    %v1988 = vunpack.c.l.s8.bf16 %v1735
    %v1989 = vunpack.c.l.s8.bf16 %v1736
    %v1990 = vunpack.c.l.s8.bf16 %v1737
    %v1991 = vunpack.c.h.s8.bf16 %v1731
    %v1992 = vunpack.c.h.s8.bf16 %v1732
    %v1993 = vunpack.c.h.s8.bf16 %v1733
    %v1994 = vunpack.c.h.s8.bf16 %v1734
    %v1995 = vunpack.c.h.s8.bf16 %v1735
    %v1996 = vunpack.c.h.s8.bf16 %v1736
    %v1997 = vunpack.c.h.s8.bf16 %v1737
    %v1998 = vunpack.c.l.s8.bf16 %v1738
    %v1999 = vunpack.c.l.s8.bf16 %v1739
    %v2000 = vunpack.c.l.s8.bf16 %v1740
    %v2001 = vunpack.c.l.s8.bf16 %v1741
    %v2002 = vunpack.c.l.s8.bf16 %v1742
    %v2003 = vunpack.c.l.s8.bf16 %v1743
    %v2004 = vunpack.c.l.s8.bf16 %v1744
    %v2005 = vunpack.c.h.s8.bf16 %v1738
    %v2006 = vunpack.c.h.s8.bf16 %v1739
    %v2007 = vunpack.c.h.s8.bf16 %v1740
    %v2008 = vunpack.c.h.s8.bf16 %v1741
    %v2009 = vunpack.c.h.s8.bf16 %v1742
    %v2010 = vunpack.c.h.s8.bf16 %v1743
    %v2011 = vunpack.c.h.s8.bf16 %v1744
    %v2012 = vunpack.c.l.s8.bf16 %v1745
    %v2013 = vunpack.c.l.s8.bf16 %v1746
    %v2014 = vunpack.c.l.s8.bf16 %v1747
    %v2015 = vunpack.c.l.s8.bf16 %v1748
    %v2016 = vunpack.c.l.s8.bf16 %v1749
    %v2017 = vunpack.c.l.s8.bf16 %v1750
    %v2018 = vunpack.c.l.s8.bf16 %v1751
    %v2019 = vunpack.c.h.s8.bf16 %v1745
    %v2020 = vunpack.c.h.s8.bf16 %v1746
    %v2021 = vunpack.c.h.s8.bf16 %v1747
    %v2022 = vunpack.c.h.s8.bf16 %v1748
    %v2023 = vunpack.c.h.s8.bf16 %v1749
    %v2024 = vunpack.c.h.s8.bf16 %v1750
    %v2025 = vunpack.c.h.s8.bf16 %v1751
    %v2026 = vunpack.c.l.s8.bf16 %v1752
    %v2027 = vunpack.c.l.s8.bf16 %v1753
    %v2028 = vunpack.c.l.s8.bf16 %v1754
    %v2029 = vunpack.c.l.s8.bf16 %v1755
    %v2030 = vunpack.c.l.s8.bf16 %v1756
    %v2031 = vunpack.c.l.s8.bf16 %v1757
    %v2032 = vunpack.c.l.s8.bf16 %v1758
    %v2033 = vunpack.c.h.s8.bf16 %v1752
    %v2034 = vunpack.c.h.s8.bf16 %v1753
    %v2035 = vunpack.c.h.s8.bf16 %v1754
    %v2036 = vunpack.c.h.s8.bf16 %v1755
    %v2037 = vunpack.c.h.s8.bf16 %v1756
    %v2038 = vunpack.c.h.s8.bf16 %v1757
    %v2039 = vunpack.c.h.s8.bf16 %v1758
    %v2040 = vunpack.c.l.s8.bf16 %v1759
    %v2041 = vunpack.c.l.s8.bf16 %v1760
    %v2042 = vunpack.c.l.s8.bf16 %v1761
    %v2043 = vunpack.c.l.s8.bf16 %v1762
    %v2044 = vunpack.c.l.s8.bf16 %v1763
    %v2045 = vunpack.c.l.s8.bf16 %v1764
    %v2046 = vunpack.c.l.s8.bf16 %v1765
    %v2047 = vunpack.c.h.s8.bf16 %v1759
    %v2048 = vunpack.c.h.s8.bf16 %v1760
    %v2049 = vunpack.c.h.s8.bf16 %v1761
    %v2050 = vunpack.c.h.s8.bf16 %v1762
    %v2051 = vunpack.c.h.s8.bf16 %v1763
    %v2052 = vunpack.c.h.s8.bf16 %v1764
    %v2053 = vunpack.c.h.s8.bf16 %v1765
    %v2054 = vunpack.c.l.s8.bf16 %v1766
    %v2055 = vunpack.c.l.s8.bf16 %v1767
    %v2056 = vunpack.c.l.s8.bf16 %v1768
    %v2057 = vunpack.c.l.s8.bf16 %v1769
    %v2058 = vunpack.c.l.s8.bf16 %v1770
    %v2059 = vunpack.c.l.s8.bf16 %v1771
    %v2060 = vunpack.c.l.s8.bf16 %v1772
    %v2061 = vunpack.c.h.s8.bf16 %v1766
    %v2062 = vunpack.c.h.s8.bf16 %v1767
    %v2063 = vunpack.c.h.s8.bf16 %v1768
    %v2064 = vunpack.c.h.s8.bf16 %v1769
    %v2065 = vunpack.c.h.s8.bf16 %v1770
    %v2066 = vunpack.c.h.s8.bf16 %v1771
    %v2067 = vunpack.c.h.s8.bf16 %v1772
    %v2068 = vunpack.c.l.s8.bf16 %v1773
    %v2069 = vunpack.c.l.s8.bf16 %v1774
    %v2070 = vunpack.c.l.s8.bf16 %v1775
    %v2071 = vunpack.c.l.s8.bf16 %v1776
    %v2072 = vunpack.c.l.s8.bf16 %v1777
    %v2073 = vunpack.c.l.s8.bf16 %v1778
    %v2074 = vunpack.c.l.s8.bf16 %v1779
    %v2075 = vunpack.c.h.s8.bf16 %v1773
    %v2076 = vunpack.c.h.s8.bf16 %v1774
    %v2077 = vunpack.c.h.s8.bf16 %v1775
    %v2078 = vunpack.c.h.s8.bf16 %v1776
    %v2079 = vunpack.c.h.s8.bf16 %v1777
    %v2080 = vunpack.c.h.s8.bf16 %v1778
    %v2081 = vunpack.c.h.s8.bf16 %v1779
    %v2082 = vunpack.c.l.s8.bf16 %v1780
    %v2083 = vunpack.c.l.s8.bf16 %v1781
    %v2084 = vunpack.c.l.s8.bf16 %v1782
    %v2085 = vunpack.c.l.s8.bf16 %v1783
    %v2086 = vunpack.c.l.s8.bf16 %v1784
    %v2087 = vunpack.c.l.s8.bf16 %v1785
    %v2088 = vunpack.c.l.s8.bf16 %v1786
    %v2089 = vunpack.c.h.s8.bf16 %v1780
    %v2090 = vunpack.c.h.s8.bf16 %v1781
    %v2091 = vunpack.c.h.s8.bf16 %v1782
    %v2092 = vunpack.c.h.s8.bf16 %v1783
    %v2093 = vunpack.c.h.s8.bf16 %v1784
    %v2094 = vunpack.c.h.s8.bf16 %v1785
    %v2095 = vunpack.c.h.s8.bf16 %v1786
    %v2096 = vunpack.c.l.s8.bf16 %v1787
    %v2097 = vunpack.c.l.s8.bf16 %v1788
    %v2098 = vunpack.c.l.s8.bf16 %v1789
    %v2099 = vunpack.c.l.s8.bf16 %v1790
    %v2100 = vunpack.c.l.s8.bf16 %v1791
    %v2101 = vunpack.c.l.s8.bf16 %v1792
    %v2102 = vunpack.c.l.s8.bf16 %v1793
    %v2103 = vunpack.c.h.s8.bf16 %v1787
    %v2104 = vunpack.c.h.s8.bf16 %v1788
    %v2105 = vunpack.c.h.s8.bf16 %v1789
    %v2106 = vunpack.c.h.s8.bf16 %v1790
    %v2107 = vunpack.c.h.s8.bf16 %v1791
    %v2108 = vunpack.c.h.s8.bf16 %v1792
    %v2109 = vunpack.c.h.s8.bf16 %v1793
    %v2110 = vunpack.c.l.s8.bf16 %v1794
    %v2111 = vunpack.c.l.s8.bf16 %v1795
    %v2112 = vunpack.c.l.s8.bf16 %v1796
    %v2113 = vunpack.c.l.s8.bf16 %v1797
    %v2114 = vunpack.c.l.s8.bf16 %v1798
    %v2115 = vunpack.c.l.s8.bf16 %v1799
    %v2116 = vunpack.c.l.s8.bf16 %v1800
    %v2117 = vunpack.c.h.s8.bf16 %v1794
    %v2118 = vunpack.c.h.s8.bf16 %v1795
    %v2119 = vunpack.c.h.s8.bf16 %v1796
    %v2120 = vunpack.c.h.s8.bf16 %v1797
    %v2121 = vunpack.c.h.s8.bf16 %v1798
    %v2122 = vunpack.c.h.s8.bf16 %v1799
    %v2123 = vunpack.c.h.s8.bf16 %v1800
    %v2124 = vunpack.c.l.s8.bf16 %v1801
    %v2125 = vunpack.c.l.s8.bf16 %v1802
    %v2126 = vunpack.c.l.s8.bf16 %v1803
    %v2127 = vunpack.c.l.s8.bf16 %v1804
    %v2128 = vunpack.c.l.s8.bf16 %v1805
    %v2129 = vunpack.c.l.s8.bf16 %v1806
    %v2130 = vunpack.c.l.s8.bf16 %v1807
    %v2131 = vunpack.c.h.s8.bf16 %v1801
    %v2132 = vunpack.c.h.s8.bf16 %v1802
    %v2133 = vunpack.c.h.s8.bf16 %v1803
    %v2134 = vunpack.c.h.s8.bf16 %v1804
    %v2135 = vunpack.c.h.s8.bf16 %v1805
    %v2136 = vunpack.c.h.s8.bf16 %v1806
    %v2137 = vunpack.c.h.s8.bf16 %v1807
    %v2138 = vunpack.c.l.s8.bf16 %v1808
    %v2139 = vunpack.c.l.s8.bf16 %v1809
    %v2140 = vunpack.c.l.s8.bf16 %v1810
    %v2141 = vunpack.c.l.s8.bf16 %v1811
    %v2142 = vunpack.c.l.s8.bf16 %v1812
    %v2143 = vunpack.c.l.s8.bf16 %v1813
    %v2144 = vunpack.c.l.s8.bf16 %v1814
    %v2145 = vunpack.c.h.s8.bf16 %v1808
    %v2146 = vunpack.c.h.s8.bf16 %v1809
    %v2147 = vunpack.c.h.s8.bf16 %v1810
    %v2148 = vunpack.c.h.s8.bf16 %v1811
    %v2149 = vunpack.c.h.s8.bf16 %v1812
    %v2150 = vunpack.c.h.s8.bf16 %v1813
    %v2151 = vunpack.c.h.s8.bf16 %v1814
    %v2152 = vunpack.c.l.s8.bf16 %v1815
    %v2153 = vunpack.c.l.s8.bf16 %v1816
    %v2154 = vunpack.c.l.s8.bf16 %v1817
    %v2155 = vunpack.c.l.s8.bf16 %v1818
    %v2156 = vunpack.c.l.s8.bf16 %v1819
    %v2157 = vunpack.c.l.s8.bf16 %v1820
    %v2158 = vunpack.c.l.s8.bf16 %v1821
    %v2159 = vunpack.c.h.s8.bf16 %v1815
    %v2160 = vunpack.c.h.s8.bf16 %v1816
    %v2161 = vunpack.c.h.s8.bf16 %v1817
    %v2162 = vunpack.c.h.s8.bf16 %v1818
    %v2163 = vunpack.c.h.s8.bf16 %v1819
    %v2164 = vunpack.c.h.s8.bf16 %v1820
    %v2165 = vunpack.c.h.s8.bf16 %v1821
    %v2166 = vunpack.c.l.s8.bf16 %v1822
    %v2167 = vunpack.c.l.s8.bf16 %v1823
    %v2168 = vunpack.c.l.s8.bf16 %v1824
    %v2169 = vunpack.c.l.s8.bf16 %v1825
    %v2170 = vunpack.c.l.s8.bf16 %v1826
    %v2171 = vunpack.c.l.s8.bf16 %v1827
    %v2172 = vunpack.c.l.s8.bf16 %v1828
    %v2173 = vunpack.c.h.s8.bf16 %v1822
    %v2174 = vunpack.c.h.s8.bf16 %v1823
    %v2175 = vunpack.c.h.s8.bf16 %v1824
    %v2176 = vunpack.c.h.s8.bf16 %v1825
    %v2177 = vunpack.c.h.s8.bf16 %v1826
    %v2178 = vunpack.c.h.s8.bf16 %v1827
    %v2179 = vunpack.c.h.s8.bf16 %v1828
    %v2180 = vunpack.c.l.s8.bf16 %v1829
    %v2181 = vunpack.c.l.s8.bf16 %v1830
    %v2182 = vunpack.c.l.s8.bf16 %v1831
    %v2183 = vunpack.c.l.s8.bf16 %v1832
    %v2184 = vunpack.c.l.s8.bf16 %v1833
    %v2185 = vunpack.c.l.s8.bf16 %v1834
    %v2186 = vunpack.c.l.s8.bf16 %v1835
    %v2187 = vunpack.c.h.s8.bf16 %v1829
    %v2188 = vunpack.c.h.s8.bf16 %v1830
    %v2189 = vunpack.c.h.s8.bf16 %v1831
    %v2190 = vunpack.c.h.s8.bf16 %v1832
    %v2191 = vunpack.c.h.s8.bf16 %v1833
    %v2192 = vunpack.c.h.s8.bf16 %v1834
    %v2193 = vunpack.c.h.s8.bf16 %v1835
    %v2195 = vsel %vm1205, %v1843, 0
    %2197 = vmatprep.subr.bf16.mxu0 %v1894
    %2198 = vmatpush1.bf16.msra.mxu0 %v1893
    %2199 = vmatprep.subr.bf16.mxu0 %v1887
    %2200 = vmatpush1.bf16.msra.mxu0 %v1886
    %2201 = vmatprep.subr.bf16.mxu0 %v1880
    %2202 = vmatpush1.bf16.msra.mxu0 %v1879
    %2203 = vmatprep.subr.bf16.mxu0 %v1873
    %2204 = vmatpush1.bf16.msra.mxu0 %v1872
    %2205 = vmatprep.subr.bf16.mxu0 %v1866
    %2206 = vmatpush1.bf16.msra.mxu0 %v1865
    %2207 = vmatprep.subr.bf16.mxu0 %v1859
    %2208 = vmatpush1.bf16.msra.mxu0 %v1858
    %2209 = vmatprep.subr.bf16.mxu0 %v1852
    %2210 = vmatpush1.bf16.msra.mxu0 %v1851
    %2211 = vmatprep.subr.bf16.mxu0 %v1845
    %2212 = vmatpush1.bf16.msra.mxu0 %v1844
    %2213 = vmatprep.subr.bf16.mxu0 %v1950
    %2214 = vmatpush2.bf16.msra.mxu0 %v1949
    %2215 = vmatprep.subr.bf16.mxu0 %v1943
    %2216 = vmatpush2.bf16.msra.mxu0 %v1942
    %2217 = vmatprep.subr.bf16.mxu0 %v1936
    %2218 = vmatpush2.bf16.msra.mxu0 %v1935
    %2219 = vmatprep.subr.bf16.mxu0 %v1929
    %2220 = vmatpush2.bf16.msra.mxu0 %v1928
    %2221 = vmatprep.subr.bf16.mxu0 %v1922
    %2222 = vmatpush2.bf16.msra.mxu0 %v1921
    %2223 = vmatprep.subr.bf16.mxu0 %v1915
    %2224 = vmatpush2.bf16.msra.mxu0 %v1914
    %2225 = vmatprep.subr.bf16.mxu0 %v1908
    %2226 = vmatpush2.bf16.msra.mxu0 %v1907
    %2227 = vmatprep.subr.bf16.mxu0 %v1901
    %2228 = vmatpush2.bf16.msra.mxu0 %v1900
    %2229 = vmatprep.mubr.bf16.mxu0 %v1838
    %2230 = vmatmul.mubr.bf16.gmra.mxu0 %v1837
    %v2231 = vpop.f32.mrf.mxu0
    %v2232 = vadd.f32 0.0, %v2231
    %v2233 = vpop.f32.mrf.mxu0
    %v2234 = vadd.f32 0.0, %v2233
    %v2235 = vpop.f32.mrf.mxu0
    %v2236 = vadd.f32 0.0, %v2235
    %v2237 = vpop.f32.mrf.mxu0
    %v2238 = vadd.f32 0.0, %v2237
    %2239 = vdwg.mxu0
    %2240 = vmatprep.subr.bf16.mxu0 %v2006
    %2241 = vmatpush1.bf16.msra.mxu0 %v2005
    %2242 = vmatprep.subr.bf16.mxu0 %v1999
    %2243 = vmatpush1.bf16.msra.mxu0 %v1998
    %2244 = vmatprep.subr.bf16.mxu0 %v1992
    %2245 = vmatpush1.bf16.msra.mxu0 %v1991
    %2246 = vmatprep.subr.bf16.mxu0 %v1985
    %2247 = vmatpush1.bf16.msra.mxu0 %v1984
    %2248 = vmatprep.subr.bf16.mxu0 %v1978
    %2249 = vmatpush1.bf16.msra.mxu0 %v1977
    %2250 = vmatprep.subr.bf16.mxu0 %v1971
    %2251 = vmatpush1.bf16.msra.mxu0 %v1970
    %2252 = vmatprep.subr.bf16.mxu0 %v1964
    %2253 = vmatpush1.bf16.msra.mxu0 %v1963
    %2254 = vmatprep.subr.bf16.mxu0 %v1957
    %2255 = vmatpush1.bf16.msra.mxu0 %v1956
    %2256 = vmatprep.subr.bf16.mxu0 %v2062
    %2257 = vmatpush2.bf16.msra.mxu0 %v2061
    %2258 = vmatprep.subr.bf16.mxu0 %v2055
    %2259 = vmatpush2.bf16.msra.mxu0 %v2054
    %2260 = vmatprep.subr.bf16.mxu0 %v2048
    %2261 = vmatpush2.bf16.msra.mxu0 %v2047
    %2262 = vmatprep.subr.bf16.mxu0 %v2041
    %2263 = vmatpush2.bf16.msra.mxu0 %v2040
    %2264 = vmatprep.subr.bf16.mxu0 %v2034
    %2265 = vmatpush2.bf16.msra.mxu0 %v2033
    %2266 = vmatprep.subr.bf16.mxu0 %v2027
    %2267 = vmatpush2.bf16.msra.mxu0 %v2026
    %2268 = vmatprep.subr.bf16.mxu0 %v2020
    %2269 = vmatpush2.bf16.msra.mxu0 %v2019
    %2270 = vmatprep.subr.bf16.mxu0 %v2013
    %2271 = vmatpush2.bf16.msra.mxu0 %v2012
    %2272 = vmatprep.mubr.bf16.mxu0 %v1840
    %2273 = vmatmul.mubr.bf16.gmra.mxu0 %v1839
    %v2274 = vpop.f32.mrf.mxu0
    %v2275 = vadd.f32 %v2232, %v2274
    %v2276 = vpop.f32.mrf.mxu0
    %v2277 = vadd.f32 %v2234, %v2276
    %v2278 = vpop.f32.mrf.mxu0
    %v2279 = vadd.f32 %v2236, %v2278
    %v2280 = vpop.f32.mrf.mxu0
    %v2281 = vadd.f32 %v2238, %v2280
    %2282 = vdwg.mxu0
    %2283 = vmatprep.subr.bf16.mxu0 %v2118
    %2284 = vmatpush1.bf16.msra.mxu0 %v2117
    %2285 = vmatprep.subr.bf16.mxu0 %v2111
    %2286 = vmatpush1.bf16.msra.mxu0 %v2110
    %2287 = vmatprep.subr.bf16.mxu0 %v2104
    %2288 = vmatpush1.bf16.msra.mxu0 %v2103
    %2289 = vmatprep.subr.bf16.mxu0 %v2097
    %2290 = vmatpush1.bf16.msra.mxu0 %v2096
    %2291 = vmatprep.subr.bf16.mxu0 %v2090
    %2292 = vmatpush1.bf16.msra.mxu0 %v2089
    %2293 = vmatprep.subr.bf16.mxu0 %v2083
    %2294 = vmatpush1.bf16.msra.mxu0 %v2082
    %2295 = vmatprep.subr.bf16.mxu0 %v2076
    %2296 = vmatpush1.bf16.msra.mxu0 %v2075
    %2297 = vmatprep.subr.bf16.mxu0 %v2069
    %2298 = vmatpush1.bf16.msra.mxu0 %v2068
    %2299 = vmatprep.subr.bf16.mxu0 %v2174
    %2300 = vmatpush2.bf16.msra.mxu0 %v2173
    %2301 = vmatprep.subr.bf16.mxu0 %v2167
    %2302 = vmatpush2.bf16.msra.mxu0 %v2166
    %2303 = vmatprep.subr.bf16.mxu0 %v2160
    %2304 = vmatpush2.bf16.msra.mxu0 %v2159
    %2305 = vmatprep.subr.bf16.mxu0 %v2153
    %2306 = vmatpush2.bf16.msra.mxu0 %v2152
    %2307 = vmatprep.subr.bf16.mxu0 %v2146
    %2308 = vmatpush2.bf16.msra.mxu0 %v2145
    %2309 = vmatprep.subr.bf16.mxu0 %v2139
    %2310 = vmatpush2.bf16.msra.mxu0 %v2138
    %2311 = vmatprep.subr.bf16.mxu0 %v2132
    %2312 = vmatpush2.bf16.msra.mxu0 %v2131
    %2313 = vmatprep.subr.bf16.mxu0 %v2125
    %2314 = vmatpush2.bf16.msra.mxu0 %v2124
    %2315 = vmatprep.mubr.bf16.mxu0 %v1842
    %2316 = vmatmul.mubr.bf16.gmra.mxu0 %v1841
    %v2317 = vpop.f32.mrf.mxu0
    %v2318 = vadd.f32 %v2275, %v2317
    %v2319 = vpop.f32.mrf.mxu0
    %v2320 = vadd.f32 %v2277, %v2319
    %v2321 = vpop.f32.mrf.mxu0
    %v2322 = vadd.f32 %v2279, %v2321
    %v2323 = vpop.f32.mrf.mxu0
    %v2324 = vadd.f32 %v2281, %v2323
    %2325 = vdwg.mxu0
    %2326 = vmatprep.subr.bf16.mxu0 0
    %2327 = vmatpush1.bf16.msra.mxu0 0
    %2328 = vmatprep.subr.bf16.mxu0 0
    %2329 = vmatpush1.bf16.msra.mxu0 0
    %2330 = vmatprep.subr.bf16.mxu0 0
    %2331 = vmatpush1.bf16.msra.mxu0 0
    %2332 = vmatprep.subr.bf16.mxu0 0
    %2333 = vmatpush1.bf16.msra.mxu0 0
    %2334 = vmatprep.subr.bf16.mxu0 0
    %2335 = vmatpush1.bf16.msra.mxu0 0
    %2336 = vmatprep.subr.bf16.mxu0 0
    %2337 = vmatpush1.bf16.msra.mxu0 0
    %2338 = vmatprep.subr.bf16.mxu0 %v2188
    %2339 = vmatpush1.bf16.msra.mxu0 %v2187
    %2340 = vmatprep.subr.bf16.mxu0 %v2181
    %2341 = vmatpush1.bf16.msra.mxu0 %v2180
    %2342 = vmatprep.subr.bf16.mxu0 0
    %2343 = vmatpush2.bf16.msra.mxu0 0
    %2344 = vmatprep.subr.bf16.mxu0 0
    %2345 = vmatpush2.bf16.msra.mxu0 0
    %2346 = vmatprep.subr.bf16.mxu0 0
    %2347 = vmatpush2.bf16.msra.mxu0 0
    %2348 = vmatprep.subr.bf16.mxu0 0
    %2349 = vmatpush2.bf16.msra.mxu0 0
    %2350 = vmatprep.subr.bf16.mxu0 0
    %2351 = vmatpush2.bf16.msra.mxu0 0
    %2352 = vmatprep.subr.bf16.mxu0 0
    %2353 = vmatpush2.bf16.msra.mxu0 0
    %2354 = vmatprep.subr.bf16.mxu0 0
    %2355 = vmatpush2.bf16.msra.mxu0 0
    %2356 = vmatprep.subr.bf16.mxu0 0
    %2357 = vmatpush2.bf16.msra.mxu0 0
    %2358 = vmatprep.mubr.bf16.mxu0 0
    %2359 = vmatmul.mubr.bf16.gmra.mxu0 %v2195
    %v2360 = vpop.f32.mrf.mxu0
    %v2361 = vadd.f32 %v2318, %v2360
    %v2362 = vpop.f32.mrf.mxu0
    %v2363 = vadd.f32 %v2320, %v2362
    %v2364 = vpop.f32.mrf.mxu0
    %v2365 = vadd.f32 %v2322, %v2364
    %v2366 = vpop.f32.mrf.mxu0
    %v2367 = vadd.f32 %v2324, %v2366
    %2368 = vdwg.mxu0
    %2369 = vmatprep.subr.bf16.mxu0 %v1896
    %2370 = vmatpush1.bf16.msra.mxu0 %v1895
    %2371 = vmatprep.subr.bf16.mxu0 %v1889
    %2372 = vmatpush1.bf16.msra.mxu0 %v1888
    %2373 = vmatprep.subr.bf16.mxu0 %v1882
    %2374 = vmatpush1.bf16.msra.mxu0 %v1881
    %2375 = vmatprep.subr.bf16.mxu0 %v1875
    %2376 = vmatpush1.bf16.msra.mxu0 %v1874
    %2377 = vmatprep.subr.bf16.mxu0 %v1868
    %2378 = vmatpush1.bf16.msra.mxu0 %v1867
    %2379 = vmatprep.subr.bf16.mxu0 %v1861
    %2380 = vmatpush1.bf16.msra.mxu0 %v1860
    %2381 = vmatprep.subr.bf16.mxu0 %v1854
    %2382 = vmatpush1.bf16.msra.mxu0 %v1853
    %2383 = vmatprep.subr.bf16.mxu0 %v1847
    %2384 = vmatpush1.bf16.msra.mxu0 %v1846
    %2385 = vmatprep.subr.bf16.mxu0 %v1952
    %2386 = vmatpush2.bf16.msra.mxu0 %v1951
    %2387 = vmatprep.subr.bf16.mxu0 %v1945
    %2388 = vmatpush2.bf16.msra.mxu0 %v1944
    %2389 = vmatprep.subr.bf16.mxu0 %v1938
    %2390 = vmatpush2.bf16.msra.mxu0 %v1937
    %2391 = vmatprep.subr.bf16.mxu0 %v1931
    %2392 = vmatpush2.bf16.msra.mxu0 %v1930
    %2393 = vmatprep.subr.bf16.mxu0 %v1924
    %2394 = vmatpush2.bf16.msra.mxu0 %v1923
    %2395 = vmatprep.subr.bf16.mxu0 %v1917
    %2396 = vmatpush2.bf16.msra.mxu0 %v1916
    %2397 = vmatprep.subr.bf16.mxu0 %v1910
    %2398 = vmatpush2.bf16.msra.mxu0 %v1909
    %2399 = vmatprep.subr.bf16.mxu0 %v1903
    %2400 = vmatpush2.bf16.msra.mxu0 %v1902
    %2401 = vmatprep.mubr.bf16.mxu0 %v1838
    %2402 = vmatmul.mubr.bf16.gmra.mxu0 %v1837
    %v2403 = vpop.f32.mrf.mxu0
    %v2404 = vadd.f32 0.0, %v2403
    %v2405 = vpop.f32.mrf.mxu0
    %v2406 = vadd.f32 0.0, %v2405
    %v2407 = vpop.f32.mrf.mxu0
    %v2408 = vadd.f32 0.0, %v2407
    %v2409 = vpop.f32.mrf.mxu0
    %v2410 = vadd.f32 0.0, %v2409
    %2411 = vdwg.mxu0
    %2412 = vmatprep.subr.bf16.mxu0 %v2008
    %2413 = vmatpush1.bf16.msra.mxu0 %v2007
    %2414 = vmatprep.subr.bf16.mxu0 %v2001
    %2415 = vmatpush1.bf16.msra.mxu0 %v2000
    %2416 = vmatprep.subr.bf16.mxu0 %v1994
    %2417 = vmatpush1.bf16.msra.mxu0 %v1993
    %2418 = vmatprep.subr.bf16.mxu0 %v1987
    %2419 = vmatpush1.bf16.msra.mxu0 %v1986
    %2420 = vmatprep.subr.bf16.mxu0 %v1980
    %2421 = vmatpush1.bf16.msra.mxu0 %v1979
    %2422 = vmatprep.subr.bf16.mxu0 %v1973
    %2423 = vmatpush1.bf16.msra.mxu0 %v1972
    %2424 = vmatprep.subr.bf16.mxu0 %v1966
    %2425 = vmatpush1.bf16.msra.mxu0 %v1965
    %2426 = vmatprep.subr.bf16.mxu0 %v1959
    %2427 = vmatpush1.bf16.msra.mxu0 %v1958
    %2428 = vmatprep.subr.bf16.mxu0 %v2064
    %2429 = vmatpush2.bf16.msra.mxu0 %v2063
    %2430 = vmatprep.subr.bf16.mxu0 %v2057
    %2431 = vmatpush2.bf16.msra.mxu0 %v2056
    %2432 = vmatprep.subr.bf16.mxu0 %v2050
    %2433 = vmatpush2.bf16.msra.mxu0 %v2049
    %2434 = vmatprep.subr.bf16.mxu0 %v2043
    %2435 = vmatpush2.bf16.msra.mxu0 %v2042
    %2436 = vmatprep.subr.bf16.mxu0 %v2036
    %2437 = vmatpush2.bf16.msra.mxu0 %v2035
    %2438 = vmatprep.subr.bf16.mxu0 %v2029
    %2439 = vmatpush2.bf16.msra.mxu0 %v2028
    %2440 = vmatprep.subr.bf16.mxu0 %v2022
    %2441 = vmatpush2.bf16.msra.mxu0 %v2021
    %2442 = vmatprep.subr.bf16.mxu0 %v2015
    %2443 = vmatpush2.bf16.msra.mxu0 %v2014
    %2444 = vmatprep.mubr.bf16.mxu0 %v1840
    %2445 = vmatmul.mubr.bf16.gmra.mxu0 %v1839
    %v2446 = vpop.f32.mrf.mxu0
    %v2447 = vadd.f32 %v2404, %v2446
    %v2448 = vpop.f32.mrf.mxu0
    %v2449 = vadd.f32 %v2406, %v2448
    %v2450 = vpop.f32.mrf.mxu0
    %v2451 = vadd.f32 %v2408, %v2450
    %v2452 = vpop.f32.mrf.mxu0
    %v2453 = vadd.f32 %v2410, %v2452
    %2454 = vdwg.mxu0
    %2455 = vmatprep.subr.bf16.mxu0 %v2120
    %2456 = vmatpush1.bf16.msra.mxu0 %v2119
    %2457 = vmatprep.subr.bf16.mxu0 %v2113
    %2458 = vmatpush1.bf16.msra.mxu0 %v2112
    %2459 = vmatprep.subr.bf16.mxu0 %v2106
    %2460 = vmatpush1.bf16.msra.mxu0 %v2105
    %2461 = vmatprep.subr.bf16.mxu0 %v2099
    %2462 = vmatpush1.bf16.msra.mxu0 %v2098
    %2463 = vmatprep.subr.bf16.mxu0 %v2092
    %2464 = vmatpush1.bf16.msra.mxu0 %v2091
    %2465 = vmatprep.subr.bf16.mxu0 %v2085
    %2466 = vmatpush1.bf16.msra.mxu0 %v2084
    %2467 = vmatprep.subr.bf16.mxu0 %v2078
    %2468 = vmatpush1.bf16.msra.mxu0 %v2077
    %2469 = vmatprep.subr.bf16.mxu0 %v2071
    %2470 = vmatpush1.bf16.msra.mxu0 %v2070
    %2471 = vmatprep.subr.bf16.mxu0 %v2176
    %2472 = vmatpush2.bf16.msra.mxu0 %v2175
    %2473 = vmatprep.subr.bf16.mxu0 %v2169
    %2474 = vmatpush2.bf16.msra.mxu0 %v2168
    %2475 = vmatprep.subr.bf16.mxu0 %v2162
    %2476 = vmatpush2.bf16.msra.mxu0 %v2161
    %2477 = vmatprep.subr.bf16.mxu0 %v2155
    %2478 = vmatpush2.bf16.msra.mxu0 %v2154
    %2479 = vmatprep.subr.bf16.mxu0 %v2148
    %2480 = vmatpush2.bf16.msra.mxu0 %v2147
    %2481 = vmatprep.subr.bf16.mxu0 %v2141
    %2482 = vmatpush2.bf16.msra.mxu0 %v2140
    %2483 = vmatprep.subr.bf16.mxu0 %v2134
    %2484 = vmatpush2.bf16.msra.mxu0 %v2133
    %2485 = vmatprep.subr.bf16.mxu0 %v2127
    %2486 = vmatpush2.bf16.msra.mxu0 %v2126
    %2487 = vmatprep.mubr.bf16.mxu0 %v1842
    %2488 = vmatmul.mubr.bf16.gmra.mxu0 %v1841
    %v2489 = vpop.f32.mrf.mxu0
    %v2490 = vadd.f32 %v2447, %v2489
    %v2491 = vpop.f32.mrf.mxu0
    %v2492 = vadd.f32 %v2449, %v2491
    %v2493 = vpop.f32.mrf.mxu0
    %v2494 = vadd.f32 %v2451, %v2493
    %v2495 = vpop.f32.mrf.mxu0
    %v2496 = vadd.f32 %v2453, %v2495
    %2497 = vdwg.mxu0
    %2498 = vmatprep.subr.bf16.mxu0 0
    %2499 = vmatpush1.bf16.msra.mxu0 0
    %2500 = vmatprep.subr.bf16.mxu0 0
    %2501 = vmatpush1.bf16.msra.mxu0 0
    %2502 = vmatprep.subr.bf16.mxu0 0
    %2503 = vmatpush1.bf16.msra.mxu0 0
    %2504 = vmatprep.subr.bf16.mxu0 0
    %2505 = vmatpush1.bf16.msra.mxu0 0
    %2506 = vmatprep.subr.bf16.mxu0 0
    %2507 = vmatpush1.bf16.msra.mxu0 0
    %2508 = vmatprep.subr.bf16.mxu0 0
    %2509 = vmatpush1.bf16.msra.mxu0 0
    %2510 = vmatprep.subr.bf16.mxu0 %v2190
    %2511 = vmatpush1.bf16.msra.mxu0 %v2189
    %2512 = vmatprep.subr.bf16.mxu0 %v2183
    %2513 = vmatpush1.bf16.msra.mxu0 %v2182
    %2514 = vmatprep.subr.bf16.mxu0 0
    %2515 = vmatpush2.bf16.msra.mxu0 0
    %2516 = vmatprep.subr.bf16.mxu0 0
    %2517 = vmatpush2.bf16.msra.mxu0 0
    %2518 = vmatprep.subr.bf16.mxu0 0
    %2519 = vmatpush2.bf16.msra.mxu0 0
    %2520 = vmatprep.subr.bf16.mxu0 0
    %2521 = vmatpush2.bf16.msra.mxu0 0
    %2522 = vmatprep.subr.bf16.mxu0 0
    %2523 = vmatpush2.bf16.msra.mxu0 0
    %2524 = vmatprep.subr.bf16.mxu0 0
    %2525 = vmatpush2.bf16.msra.mxu0 0
    %2526 = vmatprep.subr.bf16.mxu0 0
    %2527 = vmatpush2.bf16.msra.mxu0 0
    %2528 = vmatprep.subr.bf16.mxu0 0
    %2529 = vmatpush2.bf16.msra.mxu0 0
    %2530 = vmatprep.mubr.bf16.mxu0 0
    %2531 = vmatmul.mubr.bf16.gmra.mxu0 %v2195
    %v2532 = vpop.f32.mrf.mxu0
    %v2533 = vadd.f32 %v2490, %v2532
    %v2534 = vpop.f32.mrf.mxu0
    %v2535 = vadd.f32 %v2492, %v2534
    %v2536 = vpop.f32.mrf.mxu0
    %v2537 = vadd.f32 %v2494, %v2536
    %v2538 = vpop.f32.mrf.mxu0
    %v2539 = vadd.f32 %v2496, %v2538
    %2540 = vdwg.mxu0
    %2541 = vmatprep.subr.bf16.mxu0 %v1898
    %2542 = vmatpush1.bf16.msra.mxu0 %v1897
    %2543 = vmatprep.subr.bf16.mxu0 %v1891
    %2544 = vmatpush1.bf16.msra.mxu0 %v1890
    %2545 = vmatprep.subr.bf16.mxu0 %v1884
    %2546 = vmatpush1.bf16.msra.mxu0 %v1883
    %2547 = vmatprep.subr.bf16.mxu0 %v1877
    %2548 = vmatpush1.bf16.msra.mxu0 %v1876
    %2549 = vmatprep.subr.bf16.mxu0 %v1870
    %2550 = vmatpush1.bf16.msra.mxu0 %v1869
    %2551 = vmatprep.subr.bf16.mxu0 %v1863
    %2552 = vmatpush1.bf16.msra.mxu0 %v1862
    %2553 = vmatprep.subr.bf16.mxu0 %v1856
    %2554 = vmatpush1.bf16.msra.mxu0 %v1855
    %2555 = vmatprep.subr.bf16.mxu0 %v1849
    %2556 = vmatpush1.bf16.msra.mxu0 %v1848
    %2557 = vmatprep.subr.bf16.mxu0 %v1954
    %2558 = vmatpush2.bf16.msra.mxu0 %v1953
    %2559 = vmatprep.subr.bf16.mxu0 %v1947
    %2560 = vmatpush2.bf16.msra.mxu0 %v1946
    %2561 = vmatprep.subr.bf16.mxu0 %v1940
    %2562 = vmatpush2.bf16.msra.mxu0 %v1939
    %2563 = vmatprep.subr.bf16.mxu0 %v1933
    %2564 = vmatpush2.bf16.msra.mxu0 %v1932
    %2565 = vmatprep.subr.bf16.mxu0 %v1926
    %2566 = vmatpush2.bf16.msra.mxu0 %v1925
    %2567 = vmatprep.subr.bf16.mxu0 %v1919
    %2568 = vmatpush2.bf16.msra.mxu0 %v1918
    %2569 = vmatprep.subr.bf16.mxu0 %v1912
    %2570 = vmatpush2.bf16.msra.mxu0 %v1911
    %2571 = vmatprep.subr.bf16.mxu0 %v1905
    %2572 = vmatpush2.bf16.msra.mxu0 %v1904
    %2573 = vmatprep.mubr.bf16.mxu0 %v1838
    %2574 = vmatmul.mubr.bf16.gmra.mxu0 %v1837
    %v2575 = vpop.f32.mrf.mxu0
    %v2576 = vadd.f32 0.0, %v2575
    %v2577 = vpop.f32.mrf.mxu0
    %v2578 = vadd.f32 0.0, %v2577
    %v2579 = vpop.f32.mrf.mxu0
    %v2580 = vadd.f32 0.0, %v2579
    %v2581 = vpop.f32.mrf.mxu0
    %v2582 = vadd.f32 0.0, %v2581
    %2583 = vdwg.mxu0
    %2584 = vmatprep.subr.bf16.mxu0 %v2010
    %2585 = vmatpush1.bf16.msra.mxu0 %v2009
    %2586 = vmatprep.subr.bf16.mxu0 %v2003
    %2587 = vmatpush1.bf16.msra.mxu0 %v2002
    %2588 = vmatprep.subr.bf16.mxu0 %v1996
    %2589 = vmatpush1.bf16.msra.mxu0 %v1995
    %2590 = vmatprep.subr.bf16.mxu0 %v1989
    %2591 = vmatpush1.bf16.msra.mxu0 %v1988
    %2592 = vmatprep.subr.bf16.mxu0 %v1982
    %2593 = vmatpush1.bf16.msra.mxu0 %v1981
    %2594 = vmatprep.subr.bf16.mxu0 %v1975
    %2595 = vmatpush1.bf16.msra.mxu0 %v1974
    %2596 = vmatprep.subr.bf16.mxu0 %v1968
    %2597 = vmatpush1.bf16.msra.mxu0 %v1967
    %2598 = vmatprep.subr.bf16.mxu0 %v1961
    %2599 = vmatpush1.bf16.msra.mxu0 %v1960
    %2600 = vmatprep.subr.bf16.mxu0 %v2066
    %2601 = vmatpush2.bf16.msra.mxu0 %v2065
    %2602 = vmatprep.subr.bf16.mxu0 %v2059
    %2603 = vmatpush2.bf16.msra.mxu0 %v2058
    %2604 = vmatprep.subr.bf16.mxu0 %v2052
    %2605 = vmatpush2.bf16.msra.mxu0 %v2051
    %2606 = vmatprep.subr.bf16.mxu0 %v2045
    %2607 = vmatpush2.bf16.msra.mxu0 %v2044
    %2608 = vmatprep.subr.bf16.mxu0 %v2038
    %2609 = vmatpush2.bf16.msra.mxu0 %v2037
    %2610 = vmatprep.subr.bf16.mxu0 %v2031
    %2611 = vmatpush2.bf16.msra.mxu0 %v2030
    %2612 = vmatprep.subr.bf16.mxu0 %v2024
    %2613 = vmatpush2.bf16.msra.mxu0 %v2023
    %2614 = vmatprep.subr.bf16.mxu0 %v2017
    %2615 = vmatpush2.bf16.msra.mxu0 %v2016
    %2616 = vmatprep.mubr.bf16.mxu0 %v1840
    %2617 = vmatmul.mubr.bf16.gmra.mxu0 %v1839
    %v2618 = vpop.f32.mrf.mxu0
    %v2619 = vadd.f32 %v2576, %v2618
    %v2620 = vpop.f32.mrf.mxu0
    %v2621 = vadd.f32 %v2578, %v2620
    %v2622 = vpop.f32.mrf.mxu0
    %v2623 = vadd.f32 %v2580, %v2622
    %v2624 = vpop.f32.mrf.mxu0
    %v2625 = vadd.f32 %v2582, %v2624
    %2626 = vdwg.mxu0
    %2627 = vmatprep.subr.bf16.mxu0 %v2122
    %2628 = vmatpush1.bf16.msra.mxu0 %v2121
    %2629 = vmatprep.subr.bf16.mxu0 %v2115
    %2630 = vmatpush1.bf16.msra.mxu0 %v2114
    %2631 = vmatprep.subr.bf16.mxu0 %v2108
    %2632 = vmatpush1.bf16.msra.mxu0 %v2107
    %2633 = vmatprep.subr.bf16.mxu0 %v2101
    %2634 = vmatpush1.bf16.msra.mxu0 %v2100
    %2635 = vmatprep.subr.bf16.mxu0 %v2094
    %2636 = vmatpush1.bf16.msra.mxu0 %v2093
    %2637 = vmatprep.subr.bf16.mxu0 %v2087
    %2638 = vmatpush1.bf16.msra.mxu0 %v2086
    %2639 = vmatprep.subr.bf16.mxu0 %v2080
    %2640 = vmatpush1.bf16.msra.mxu0 %v2079
    %2641 = vmatprep.subr.bf16.mxu0 %v2073
    %2642 = vmatpush1.bf16.msra.mxu0 %v2072
    %2643 = vmatprep.subr.bf16.mxu0 %v2178
    %2644 = vmatpush2.bf16.msra.mxu0 %v2177
    %2645 = vmatprep.subr.bf16.mxu0 %v2171
    %2646 = vmatpush2.bf16.msra.mxu0 %v2170
    %2647 = vmatprep.subr.bf16.mxu0 %v2164
    %2648 = vmatpush2.bf16.msra.mxu0 %v2163
    %2649 = vmatprep.subr.bf16.mxu0 %v2157
    %2650 = vmatpush2.bf16.msra.mxu0 %v2156
    %2651 = vmatprep.subr.bf16.mxu0 %v2150
    %2652 = vmatpush2.bf16.msra.mxu0 %v2149
    %2653 = vmatprep.subr.bf16.mxu0 %v2143
    %2654 = vmatpush2.bf16.msra.mxu0 %v2142
    %2655 = vmatprep.subr.bf16.mxu0 %v2136
    %2656 = vmatpush2.bf16.msra.mxu0 %v2135
    %2657 = vmatprep.subr.bf16.mxu0 %v2129
    %2658 = vmatpush2.bf16.msra.mxu0 %v2128
    %2659 = vmatprep.mubr.bf16.mxu0 %v1842
    %2660 = vmatmul.mubr.bf16.gmra.mxu0 %v1841
    %v2661 = vpop.f32.mrf.mxu0
    %v2662 = vadd.f32 %v2619, %v2661
    %v2663 = vpop.f32.mrf.mxu0
    %v2664 = vadd.f32 %v2621, %v2663
    %v2665 = vpop.f32.mrf.mxu0
    %v2666 = vadd.f32 %v2623, %v2665
    %v2667 = vpop.f32.mrf.mxu0
    %v2668 = vadd.f32 %v2625, %v2667
    %2669 = vdwg.mxu0
    %2670 = vmatprep.subr.bf16.mxu0 0
    %2671 = vmatpush1.bf16.msra.mxu0 0
    %2672 = vmatprep.subr.bf16.mxu0 0
    %2673 = vmatpush1.bf16.msra.mxu0 0
    %2674 = vmatprep.subr.bf16.mxu0 0
    %2675 = vmatpush1.bf16.msra.mxu0 0
    %2676 = vmatprep.subr.bf16.mxu0 0
    %2677 = vmatpush1.bf16.msra.mxu0 0
    %2678 = vmatprep.subr.bf16.mxu0 0
    %2679 = vmatpush1.bf16.msra.mxu0 0
    %2680 = vmatprep.subr.bf16.mxu0 0
    %2681 = vmatpush1.bf16.msra.mxu0 0
    %2682 = vmatprep.subr.bf16.mxu0 %v2192
    %2683 = vmatpush1.bf16.msra.mxu0 %v2191
    %2684 = vmatprep.subr.bf16.mxu0 %v2185
    %2685 = vmatpush1.bf16.msra.mxu0 %v2184
    %2686 = vmatprep.subr.bf16.mxu0 0
    %2687 = vmatpush2.bf16.msra.mxu0 0
    %2688 = vmatprep.subr.bf16.mxu0 0
    %2689 = vmatpush2.bf16.msra.mxu0 0
    %2690 = vmatprep.subr.bf16.mxu0 0
    %2691 = vmatpush2.bf16.msra.mxu0 0
    %2692 = vmatprep.subr.bf16.mxu0 0
    %2693 = vmatpush2.bf16.msra.mxu0 0
    %2694 = vmatprep.subr.bf16.mxu0 0
    %2695 = vmatpush2.bf16.msra.mxu0 0
    %2696 = vmatprep.subr.bf16.mxu0 0
    %2697 = vmatpush2.bf16.msra.mxu0 0
    %2698 = vmatprep.subr.bf16.mxu0 0
    %2699 = vmatpush2.bf16.msra.mxu0 0
    %2700 = vmatprep.subr.bf16.mxu0 0
    %2701 = vmatpush2.bf16.msra.mxu0 0
    %2702 = vmatprep.mubr.bf16.mxu0 0
    %2703 = vmatmul.mubr.bf16.gmra.mxu0 %v2195
    %v2704 = vpop.f32.mrf.mxu0
    %v2705 = vadd.f32 %v2662, %v2704
    %v2706 = vpop.f32.mrf.mxu0
    %v2707 = vadd.f32 %v2664, %v2706
    %v2708 = vpop.f32.mrf.mxu0
    %v2709 = vadd.f32 %v2666, %v2708
    %v2710 = vpop.f32.mrf.mxu0
    %v2711 = vadd.f32 %v2668, %v2710
    %2712 = vdwg.mxu0
    %2713 = vmatprep.subr.bf16.mxu0 0
    %2714 = vmatpush1.bf16.msra.mxu0 %v1899
    %2715 = vmatprep.subr.bf16.mxu0 0
    %2716 = vmatpush1.bf16.msra.mxu0 %v1892
    %2717 = vmatprep.subr.bf16.mxu0 0
    %2718 = vmatpush1.bf16.msra.mxu0 %v1885
    %2719 = vmatprep.subr.bf16.mxu0 0
    %2720 = vmatpush1.bf16.msra.mxu0 %v1878
    %2721 = vmatprep.subr.bf16.mxu0 0
    %2722 = vmatpush1.bf16.msra.mxu0 %v1871
    %2723 = vmatprep.subr.bf16.mxu0 0
    %2724 = vmatpush1.bf16.msra.mxu0 %v1864
    %2725 = vmatprep.subr.bf16.mxu0 0
    %2726 = vmatpush1.bf16.msra.mxu0 %v1857
    %2727 = vmatprep.subr.bf16.mxu0 0
    %2728 = vmatpush1.bf16.msra.mxu0 %v1850
    %2729 = vmatprep.subr.bf16.mxu0 0
    %2730 = vmatpush2.bf16.msra.mxu0 %v1955
    %2731 = vmatprep.subr.bf16.mxu0 0
    %2732 = vmatpush2.bf16.msra.mxu0 %v1948
    %2733 = vmatprep.subr.bf16.mxu0 0
    %2734 = vmatpush2.bf16.msra.mxu0 %v1941
    %2735 = vmatprep.subr.bf16.mxu0 0
    %2736 = vmatpush2.bf16.msra.mxu0 %v1934
    %2737 = vmatprep.subr.bf16.mxu0 0
    %2738 = vmatpush2.bf16.msra.mxu0 %v1927
    %2739 = vmatprep.subr.bf16.mxu0 0
    %2740 = vmatpush2.bf16.msra.mxu0 %v1920
    %2741 = vmatprep.subr.bf16.mxu0 0
    %2742 = vmatpush2.bf16.msra.mxu0 %v1913
    %2743 = vmatprep.subr.bf16.mxu0 0
    %2744 = vmatpush2.bf16.msra.mxu0 %v1906
    %2745 = vmatprep.mubr.bf16.mxu0 %v1838
    %2746 = vmatmul.mubr.bf16.gmra.mxu0 %v1837
    %v2747 = vpop.f32.mrf.mxu0
    %v2748 = vadd.f32 0.0, %v2747
    %v2749 = vpop.f32.mrf.mxu0
    %v2750 = vpop.f32.mrf.mxu0
    %v2751 = vadd.f32 0.0, %v2750
    %v2752 = vpop.f32.mrf.mxu0
    %2753 = vdwg.mxu0
    %2754 = vmatprep.subr.bf16.mxu0 0
    %2755 = vmatpush1.bf16.msra.mxu0 %v2011
    %2756 = vmatprep.subr.bf16.mxu0 0
    %2757 = vmatpush1.bf16.msra.mxu0 %v2004
    %2758 = vmatprep.subr.bf16.mxu0 0
    %2759 = vmatpush1.bf16.msra.mxu0 %v1997
    %2760 = vmatprep.subr.bf16.mxu0 0
    %2761 = vmatpush1.bf16.msra.mxu0 %v1990
    %2762 = vmatprep.subr.bf16.mxu0 0
    %2763 = vmatpush1.bf16.msra.mxu0 %v1983
    %2764 = vmatprep.subr.bf16.mxu0 0
    %2765 = vmatpush1.bf16.msra.mxu0 %v1976
    %2766 = vmatprep.subr.bf16.mxu0 0
    %2767 = vmatpush1.bf16.msra.mxu0 %v1969
    %2768 = vmatprep.subr.bf16.mxu0 0
    %2769 = vmatpush1.bf16.msra.mxu0 %v1962
    %2770 = vmatprep.subr.bf16.mxu0 0
    %2771 = vmatpush2.bf16.msra.mxu0 %v2067
    %2772 = vmatprep.subr.bf16.mxu0 0
    %2773 = vmatpush2.bf16.msra.mxu0 %v2060
    %2774 = vmatprep.subr.bf16.mxu0 0
    %2775 = vmatpush2.bf16.msra.mxu0 %v2053
    %2776 = vmatprep.subr.bf16.mxu0 0
    %2777 = vmatpush2.bf16.msra.mxu0 %v2046
    %2778 = vmatprep.subr.bf16.mxu0 0
    %2779 = vmatpush2.bf16.msra.mxu0 %v2039
    %2780 = vmatprep.subr.bf16.mxu0 0
    %2781 = vmatpush2.bf16.msra.mxu0 %v2032
    %2782 = vmatprep.subr.bf16.mxu0 0
    %2783 = vmatpush2.bf16.msra.mxu0 %v2025
    %2784 = vmatprep.subr.bf16.mxu0 0
    %2785 = vmatpush2.bf16.msra.mxu0 %v2018
    %2786 = vmatprep.mubr.bf16.mxu0 %v1840
    %2787 = vmatmul.mubr.bf16.gmra.mxu0 %v1839
    %v2788 = vpop.f32.mrf.mxu0
    %v2789 = vadd.f32 %v2748, %v2788
    %v2790 = vpop.f32.mrf.mxu0
    %v2791 = vpop.f32.mrf.mxu0
    %v2792 = vadd.f32 %v2751, %v2791
    %v2793 = vpop.f32.mrf.mxu0
    %2794 = vdwg.mxu0
    %2795 = vmatprep.subr.bf16.mxu0 0
    %2796 = vmatpush1.bf16.msra.mxu0 %v2123
    %2797 = vmatprep.subr.bf16.mxu0 0
    %2798 = vmatpush1.bf16.msra.mxu0 %v2116
    %2799 = vmatprep.subr.bf16.mxu0 0
    %2800 = vmatpush1.bf16.msra.mxu0 %v2109
    %2801 = vmatprep.subr.bf16.mxu0 0
    %2802 = vmatpush1.bf16.msra.mxu0 %v2102
    %2803 = vmatprep.subr.bf16.mxu0 0
    %2804 = vmatpush1.bf16.msra.mxu0 %v2095
    %2805 = vmatprep.subr.bf16.mxu0 0
    %2806 = vmatpush1.bf16.msra.mxu0 %v2088
    %2807 = vmatprep.subr.bf16.mxu0 0
    %2808 = vmatpush1.bf16.msra.mxu0 %v2081
    %2809 = vmatprep.subr.bf16.mxu0 0
    %2810 = vmatpush1.bf16.msra.mxu0 %v2074
    %2811 = vmatprep.subr.bf16.mxu0 0
    %2812 = vmatpush2.bf16.msra.mxu0 %v2179
    %2813 = vmatprep.subr.bf16.mxu0 0
    %2814 = vmatpush2.bf16.msra.mxu0 %v2172
    %2815 = vmatprep.subr.bf16.mxu0 0
    %2816 = vmatpush2.bf16.msra.mxu0 %v2165
    %2817 = vmatprep.subr.bf16.mxu0 0
    %2818 = vmatpush2.bf16.msra.mxu0 %v2158
    %2819 = vmatprep.subr.bf16.mxu0 0
    %2820 = vmatpush2.bf16.msra.mxu0 %v2151
    %2821 = vmatprep.subr.bf16.mxu0 0
    %2822 = vmatpush2.bf16.msra.mxu0 %v2144
    %2823 = vmatprep.subr.bf16.mxu0 0
    %2824 = vmatpush2.bf16.msra.mxu0 %v2137
    %2825 = vmatprep.subr.bf16.mxu0 0
    %2826 = vmatpush2.bf16.msra.mxu0 %v2130
    %2827 = vmatprep.mubr.bf16.mxu0 %v1842
    %2828 = vmatmul.mubr.bf16.gmra.mxu0 %v1841
    %v2829 = vpop.f32.mrf.mxu0
    %v2830 = vadd.f32 %v2789, %v2829
    %v2831 = vpop.f32.mrf.mxu0
    %v2832 = vpop.f32.mrf.mxu0
    %v2833 = vadd.f32 %v2792, %v2832
    %v2834 = vpop.f32.mrf.mxu0
    %2835 = vdwg.mxu0
    %2836 = vmatprep.subr.bf16.mxu0 0
    %2837 = vmatpush1.bf16.msra.mxu0 0
    %2838 = vmatprep.subr.bf16.mxu0 0
    %2839 = vmatpush1.bf16.msra.mxu0 0
    %2840 = vmatprep.subr.bf16.mxu0 0
    %2841 = vmatpush1.bf16.msra.mxu0 0
    %2842 = vmatprep.subr.bf16.mxu0 0
    %2843 = vmatpush1.bf16.msra.mxu0 0
    %2844 = vmatprep.subr.bf16.mxu0 0
    %2845 = vmatpush1.bf16.msra.mxu0 0
    %2846 = vmatprep.subr.bf16.mxu0 0
    %2847 = vmatpush1.bf16.msra.mxu0 0
    %2848 = vmatprep.subr.bf16.mxu0 0
    %2849 = vmatpush1.bf16.msra.mxu0 %v2193
    %2850 = vmatprep.subr.bf16.mxu0 0
    %2851 = vmatpush1.bf16.msra.mxu0 %v2186
    %2852 = vmatprep.subr.bf16.mxu0 0
    %2853 = vmatpush2.bf16.msra.mxu0 0
    %2854 = vmatprep.subr.bf16.mxu0 0
    %2855 = vmatpush2.bf16.msra.mxu0 0
    %2856 = vmatprep.subr.bf16.mxu0 0
    %2857 = vmatpush2.bf16.msra.mxu0 0
    %2858 = vmatprep.subr.bf16.mxu0 0
    %2859 = vmatpush2.bf16.msra.mxu0 0
    %2860 = vmatprep.subr.bf16.mxu0 0
    %2861 = vmatpush2.bf16.msra.mxu0 0
    %2862 = vmatprep.subr.bf16.mxu0 0
    %2863 = vmatpush2.bf16.msra.mxu0 0
    %2864 = vmatprep.subr.bf16.mxu0 0
    %2865 = vmatpush2.bf16.msra.mxu0 0
    %2866 = vmatprep.subr.bf16.mxu0 0
    %2867 = vmatpush2.bf16.msra.mxu0 0
    %2868 = vmatprep.mubr.bf16.mxu0 0
    %2869 = vmatmul.mubr.bf16.gmra.mxu0 %v2195
    %v2870 = vpop.f32.mrf.mxu0
    %v2871 = vadd.f32 %v2830, %v2870
    %v2872 = vpop.f32.mrf.mxu0
    %v2873 = vpop.f32.mrf.mxu0
    %v2874 = vadd.f32 %v2833, %v2873
    %v2875 = vpop.f32.mrf.mxu0
    %2876 = vdwg.mxu0
    %v2878 = vlaneseq
    %v2879 = vshrl.u32 %v2878, 7
    %v2880 = vsub.s32 0, %v2879
    %v2881 = vrot.slane %v1836, %v2880
    %v2882 = vlaneseq
    %v2883 = vshrl.u32 %v2882, 7
    %v2884 = vsub.s32 1, %v2883
    %v2885 = vrot.slane %v1836, %v2884
    %v2886 = vlaneseq
    %v2887 = vshrl.u32 %v2886, 7
    %v2888 = vsub.s32 2, %v2887
    %v2889 = vrot.slane %v1836, %v2888
    %v2890 = vlaneseq
    %v2891 = vshrl.u32 %v2890, 7
    %v2892 = vsub.s32 3, %v2891
    %v2893 = vrot.slane %v1836, %v2892
    %v2894 = vlaneseq
    %v2895 = vshrl.u32 %v2894, 7
    %v2896 = vsub.s32 4, %v2895
    %v2897 = vrot.slane %v1836, %v2896
    %v2898 = vlaneseq
    %v2899 = vshrl.u32 %v2898, 7
    %v2900 = vsub.s32 5, %v2899
    %v2901 = vrot.slane %v1836, %v2900
    %v2902 = vlaneseq
    %v2903 = vshrl.u32 %v2902, 7
    %v2904 = vsub.s32 6, %v2903
    %v2905 = vrot.slane %v1836, %v2904
    %v2913 = vmul.f32 %v2361, %v2881
    %v2914 = vmul.f32 %v2363, %v2885
    %v2915 = vmul.f32 %v2533, %v2889
    %v2916 = vmul.f32 %v2535, %v2893
    %v2917 = vmul.f32 %v2705, %v2897
    %v2918 = vmul.f32 %v2707, %v2901
    %v2919 = vmul.f32 %v2871, %v2905
    %v2920 = vmul.f32 %v2365, %v2881
    %v2921 = vmul.f32 %v2367, %v2885
    %v2922 = vmul.f32 %v2537, %v2889
    %v2923 = vmul.f32 %v2539, %v2893
    %v2924 = vmul.f32 %v2709, %v2897
    %v2925 = vmul.f32 %v2711, %v2901
    %v2926 = vmul.f32 %v2874, %v2905
    %v2927 = vld [vmem:[#allocation19] sm:$0x7f]
    %v2928 = vld [vmem:[#allocation21] sm:$0x7f]
    %v2929 = vadd.f32 %v2913, %v2920
    %v2930 = vrot.slane %v2929, 4
    %v2931 = vadd.f32 %v2929, %v2930
    %v2932 = vrot.slane %v2931, 2
    %v2933 = vadd.f32 %v2931, %v2932
    %v2934 = vrot.slane %v2933, 1
    %v2935 = vadd.f32 %v2933, %v2934
    %v2936 = vadd.f32 %v2914, %v2921
    %v2937 = vrot.slane %v2936, 4
    %v2938 = vadd.f32 %v2936, %v2937
    %v2939 = vrot.slane %v2938, 2
    %v2940 = vadd.f32 %v2938, %v2939
    %v2941 = vrot.slane %v2940, 1
    %v2942 = vadd.f32 %v2940, %v2941
    %v2943 = vadd.f32 %v2915, %v2922
    %v2944 = vrot.slane %v2943, 4
    %v2945 = vadd.f32 %v2943, %v2944
    %v2946 = vrot.slane %v2945, 2
    %v2947 = vadd.f32 %v2945, %v2946
    %v2948 = vrot.slane %v2947, 1
    %v2949 = vadd.f32 %v2947, %v2948
    %v2950 = vadd.f32 %v2916, %v2923
    %v2951 = vrot.slane %v2950, 4
    %v2952 = vadd.f32 %v2950, %v2951
    %v2953 = vrot.slane %v2952, 2
    %v2954 = vadd.f32 %v2952, %v2953
    %v2955 = vrot.slane %v2954, 1
    %v2956 = vadd.f32 %v2954, %v2955
    %v2957 = vadd.f32 %v2917, %v2924
    %v2958 = vrot.slane %v2957, 4
    %v2959 = vadd.f32 %v2957, %v2958
    %v2960 = vrot.slane %v2959, 2
    %v2961 = vadd.f32 %v2959, %v2960
    %v2962 = vrot.slane %v2961, 1
    %v2963 = vadd.f32 %v2961, %v2962
    %v2964 = vadd.f32 %v2918, %v2925
    %v2965 = vrot.slane %v2964, 4
    %v2966 = vadd.f32 %v2964, %v2965
    %v2967 = vrot.slane %v2966, 2
    %v2968 = vadd.f32 %v2966, %v2967
    %v2969 = vrot.slane %v2968, 1
    %v2970 = vadd.f32 %v2968, %v2969
    %v2971 = vsel %vm1205, %v2919, 0.0
    %v2972 = vsel %vm1205, %v2926, 0.0
    %v2973 = vadd.f32 %v2971, %v2972
    %v2974 = vrot.slane %v2973, 4
    %v2975 = vadd.f32 %v2973, %v2974
    %v2976 = vrot.slane %v2975, 2
    %v2977 = vadd.f32 %v2975, %v2976
    %v2978 = vrot.slane %v2977, 1
    %v2979 = vadd.f32 %v2977, %v2978
    %v2980 = vmul.f32 %v2935, %v1215
    %v2981 = vmul.f32 %v2942, %v1215
    %v2982 = vmul.f32 %v2949, %v1215
    %v2983 = vmul.f32 %v2956, %v1215
    %v2984 = vmul.f32 %v2963, %v1215
    %v2985 = vmul.f32 %v2970, %v1215
    %v2986 = vmul.f32 %v2979, %v1215
    %v2987 = vsub.f32 %v2913, %v2980
    %v2988 = vsub.f32 %v2914, %v2981
    %v2989 = vsub.f32 %v2915, %v2982
    %v2990 = vsub.f32 %v2916, %v2983
    %v2991 = vsub.f32 %v2917, %v2984
    %v2992 = vsub.f32 %v2918, %v2985
    %v2993 = vsub.f32 %v2919, %v2986
    %v2994 = vsub.f32 %v2920, %v2980
    %v2995 = vsub.f32 %v2921, %v2981
    %v2996 = vsub.f32 %v2922, %v2982
    %v2997 = vsub.f32 %v2923, %v2983
    %v2998 = vsub.f32 %v2924, %v2984
    %v2999 = vsub.f32 %v2925, %v2985
    %v3000 = vsub.f32 %v2926, %v2986
    %v3001 = vmul.f32 %v2987, %v2987
    %v3002 = vmul.f32 %v2988, %v2988
    %v3003 = vmul.f32 %v2989, %v2989
    %v3004 = vmul.f32 %v2990, %v2990
    %v3005 = vmul.f32 %v2991, %v2991
    %v3006 = vmul.f32 %v2992, %v2992
    %v3007 = vmul.f32 %v2993, %v2993
    %v3008 = vmul.f32 %v2994, %v2994
    %v3009 = vmul.f32 %v2995, %v2995
    %v3010 = vmul.f32 %v2996, %v2996
    %v3011 = vmul.f32 %v2997, %v2997
    %v3012 = vmul.f32 %v2998, %v2998
    %v3013 = vmul.f32 %v2999, %v2999
    %v3014 = vmul.f32 %v3000, %v3000
    %v3015 = vadd.f32 %v3001, %v3008
    %v3016 = vrot.slane %v3015, 4
    %v3017 = vadd.f32 %v3015, %v3016
    %v3018 = vrot.slane %v3017, 2
    %v3019 = vadd.f32 %v3017, %v3018
    %v3020 = vrot.slane %v3019, 1
    %v3021 = vadd.f32 %v3019, %v3020
    %v3022 = vadd.f32 %v3002, %v3009
    %v3023 = vrot.slane %v3022, 4
    %v3024 = vadd.f32 %v3022, %v3023
    %v3025 = vrot.slane %v3024, 2
    %v3026 = vadd.f32 %v3024, %v3025
    %v3027 = vrot.slane %v3026, 1
    %v3028 = vadd.f32 %v3026, %v3027
    %v3029 = vadd.f32 %v3003, %v3010
    %v3030 = vrot.slane %v3029, 4
    %v3031 = vadd.f32 %v3029, %v3030
    %v3032 = vrot.slane %v3031, 2
    %v3033 = vadd.f32 %v3031, %v3032
    %v3034 = vrot.slane %v3033, 1
    %v3035 = vadd.f32 %v3033, %v3034
    %v3036 = vadd.f32 %v3004, %v3011
    %v3037 = vrot.slane %v3036, 4
    %v3038 = vadd.f32 %v3036, %v3037
    %v3039 = vrot.slane %v3038, 2
    %v3040 = vadd.f32 %v3038, %v3039
    %v3041 = vrot.slane %v3040, 1
    %v3042 = vadd.f32 %v3040, %v3041
    %v3043 = vadd.f32 %v3005, %v3012
    %v3044 = vrot.slane %v3043, 4
    %v3045 = vadd.f32 %v3043, %v3044
    %v3046 = vrot.slane %v3045, 2
    %v3047 = vadd.f32 %v3045, %v3046
    %v3048 = vrot.slane %v3047, 1
    %v3049 = vadd.f32 %v3047, %v3048
    %v3050 = vadd.f32 %v3006, %v3013
    %v3051 = vrot.slane %v3050, 4
    %v3052 = vadd.f32 %v3050, %v3051
    %v3053 = vrot.slane %v3052, 2
    %v3054 = vadd.f32 %v3052, %v3053
    %v3055 = vrot.slane %v3054, 1
    %v3056 = vadd.f32 %v3054, %v3055
    %v3057 = vsel %vm1205, %v3007, 0.0
    %v3058 = vsel %vm1205, %v3014, 0.0
    %v3059 = vadd.f32 %v3057, %v3058
    %v3060 = vrot.slane %v3059, 4
    %v3061 = vadd.f32 %v3059, %v3060
    %v3062 = vrot.slane %v3061, 2
    %v3063 = vadd.f32 %v3061, %v3062
    %v3064 = vrot.slane %v3063, 1
    %v3065 = vadd.f32 %v3063, %v3064
    %v3066 = vmul.f32 %v3021, %v1215
    %v3067 = vmul.f32 %v3028, %v1215
    %v3068 = vmul.f32 %v3035, %v1215
    %v3069 = vmul.f32 %v3042, %v1215
    %v3070 = vmul.f32 %v3049, %v1215
    %v3071 = vmul.f32 %v3056, %v1215
    %v3072 = vmul.f32 %v3065, %v1215
    %v3073 = vadd.f32 %v3066, 1e-05
    %v3074 = vadd.f32 %v3067, 1e-05
    %v3075 = vadd.f32 %v3068, 1e-05
    %v3076 = vadd.f32 %v3069, 1e-05
    %v3077 = vadd.f32 %v3070, 1e-05
    %v3078 = vadd.f32 %v3071, 1e-05
    %v3079 = vadd.f32 %v3072, 1e-05
    %v3080 = vrsqrt.pop %v3073
    %v3081 = vrsqrt.pop %v3074
    %v3082 = vrsqrt.pop %v3075
    %v3083 = vrsqrt.pop %v3076
    %v3084 = vrsqrt.pop %v3077
    %v3085 = vrsqrt.pop %v3078
    %v3086 = vrsqrt.pop %v3079
    %v3087 = vmul.f32 %v2987, %v3080
    %v3088 = vmul.f32 %v2988, %v3081
    %v3089 = vmul.f32 %v2989, %v3082
    %v3090 = vmul.f32 %v2990, %v3083
    %v3091 = vmul.f32 %v2991, %v3084
    %v3092 = vmul.f32 %v2992, %v3085
    %v3093 = vmul.f32 %v2993, %v3086
    %v3094 = vmul.f32 %v2994, %v3080
    %v3095 = vmul.f32 %v2995, %v3081
    %v3096 = vmul.f32 %v2996, %v3082
    %v3097 = vmul.f32 %v2997, %v3083
    %v3098 = vmul.f32 %v2998, %v3084
    %v3099 = vmul.f32 %v2999, %v3085
    %v3100 = vmul.f32 %v3000, %v3086
    %v3102 = vlaneseq
    %v3103 = vshrl.u32 %v3102, 7
    %v3104 = vsub.s32 0, %v3103
    %v3105 = vrot.slane %v2927, %v3104
    %v3106 = vlaneseq
    %v3107 = vshrl.u32 %v3106, 7
    %v3108 = vsub.s32 1, %v3107
    %v3109 = vrot.slane %v2927, %v3108
    %v3110 = vlaneseq
    %v3111 = vshrl.u32 %v3110, 7
    %v3112 = vsub.s32 2, %v3111
    %v3113 = vrot.slane %v2927, %v3112
    %v3114 = vlaneseq
    %v3115 = vshrl.u32 %v3114, 7
    %v3116 = vsub.s32 3, %v3115
    %v3117 = vrot.slane %v2927, %v3116
    %v3118 = vlaneseq
    %v3119 = vshrl.u32 %v3118, 7
    %v3120 = vsub.s32 4, %v3119
    %v3121 = vrot.slane %v2927, %v3120
    %v3122 = vlaneseq
    %v3123 = vshrl.u32 %v3122, 7
    %v3124 = vsub.s32 5, %v3123
    %v3125 = vrot.slane %v2927, %v3124
    %v3126 = vlaneseq
    %v3127 = vshrl.u32 %v3126, 7
    %v3128 = vsub.s32 6, %v3127
    %v3129 = vrot.slane %v2927, %v3128
    %v3137 = vmul.f32 %v3087, %v3105
    %v3138 = vmul.f32 %v3088, %v3109
    %v3139 = vmul.f32 %v3089, %v3113
    %v3140 = vmul.f32 %v3090, %v3117
    %v3141 = vmul.f32 %v3091, %v3121
    %v3142 = vmul.f32 %v3092, %v3125
    %v3143 = vmul.f32 %v3093, %v3129
    %v3144 = vmul.f32 %v3094, %v3105
    %v3145 = vmul.f32 %v3095, %v3109
    %v3146 = vmul.f32 %v3096, %v3113
    %v3147 = vmul.f32 %v3097, %v3117
    %v3148 = vmul.f32 %v3098, %v3121
    %v3149 = vmul.f32 %v3099, %v3125
    %v3150 = vmul.f32 %v3100, %v3129
    %v3152 = vlaneseq
    %v3153 = vshrl.u32 %v3152, 7
    %v3154 = vsub.s32 0, %v3153
    %v3155 = vrot.slane %v2928, %v3154
    %v3156 = vlaneseq
    %v3157 = vshrl.u32 %v3156, 7
    %v3158 = vsub.s32 1, %v3157
    %v3159 = vrot.slane %v2928, %v3158
    %v3160 = vlaneseq
    %v3161 = vshrl.u32 %v3160, 7
    %v3162 = vsub.s32 2, %v3161
    %v3163 = vrot.slane %v2928, %v3162
    %v3164 = vlaneseq
    %v3165 = vshrl.u32 %v3164, 7
    %v3166 = vsub.s32 3, %v3165
    %v3167 = vrot.slane %v2928, %v3166
    %v3168 = vlaneseq
    %v3169 = vshrl.u32 %v3168, 7
    %v3170 = vsub.s32 4, %v3169
    %v3171 = vrot.slane %v2928, %v3170
    %v3172 = vlaneseq
    %v3173 = vshrl.u32 %v3172, 7
    %v3174 = vsub.s32 5, %v3173
    %v3175 = vrot.slane %v2928, %v3174
    %v3176 = vlaneseq
    %v3177 = vshrl.u32 %v3176, 7
    %v3178 = vsub.s32 6, %v3177
    %v3179 = vrot.slane %v2928, %v3178
    %v3187 = vadd.f32 %v3137, %v3155
    %v3188 = vadd.f32 %v3138, %v3159
    %v3189 = vadd.f32 %v3139, %v3163
    %v3190 = vadd.f32 %v3140, %v3167
    %v3191 = vadd.f32 %v3141, %v3171
    %v3192 = vadd.f32 %v3142, %v3175
    %v3193 = vadd.f32 %v3143, %v3179
    %v3194 = vadd.f32 %v3144, %v3155
    %v3195 = vadd.f32 %v3145, %v3159
    %v3196 = vadd.f32 %v3146, %v3163
    %v3197 = vadd.f32 %v3147, %v3167
    %v3198 = vadd.f32 %v3148, %v3171
    %v3199 = vadd.f32 %v3149, %v3175
    %v3200 = vadd.f32 %v3150, %v3179
    %vm3201 = vcmp.gt.f32.partialorder %v3187, 0.0
    %vm3202 = vcmp.gt.f32.partialorder %v3188, 0.0
    %vm3203 = vcmp.gt.f32.partialorder %v3189, 0.0
    %vm3204 = vcmp.gt.f32.partialorder %v3190, 0.0
    %vm3205 = vcmp.gt.f32.partialorder %v3191, 0.0
    %vm3206 = vcmp.gt.f32.partialorder %v3192, 0.0
    %vm3207 = vcmp.gt.f32.partialorder %v3193, 0.0
    %vm3208 = vcmp.gt.f32.partialorder %v3194, 0.0
    %vm3209 = vcmp.gt.f32.partialorder %v3195, 0.0
    %vm3210 = vcmp.gt.f32.partialorder %v3196, 0.0
    %vm3211 = vcmp.gt.f32.partialorder %v3197, 0.0
    %vm3212 = vcmp.gt.f32.partialorder %v3198, 0.0
    %vm3213 = vcmp.gt.f32.partialorder %v3199, 0.0
    %vm3214 = vcmp.gt.f32.partialorder %v3200, 0.0
    %v3215 = vmul.f32 %v3187, 0.01
    %v3216 = vmul.f32 %v3188, 0.01
    %v3217 = vmul.f32 %v3189, 0.01
    %v3218 = vmul.f32 %v3190, 0.01
    %v3219 = vmul.f32 %v3191, 0.01
    %v3220 = vmul.f32 %v3192, 0.01
    %v3221 = vmul.f32 %v3193, 0.01
    %v3222 = vmul.f32 %v3194, 0.01
    %v3223 = vmul.f32 %v3195, 0.01
    %v3224 = vmul.f32 %v3196, 0.01
    %v3225 = vmul.f32 %v3197, 0.01
    %v3226 = vmul.f32 %v3198, 0.01
    %v3227 = vmul.f32 %v3199, 0.01
    %v3228 = vmul.f32 %v3200, 0.01
    %v3229 = vsel %vm3201, %v3187, %v3215
    %v3230 = vsel %vm3202, %v3188, %v3216
    %v3231 = vsel %vm3203, %v3189, %v3217
    %v3232 = vsel %vm3204, %v3190, %v3218
    %v3233 = vsel %vm3205, %v3191, %v3219
    %v3234 = vsel %vm3206, %v3192, %v3220
    %v3235 = vsel %vm3207, %v3193, %v3221
    %v3236 = vsel %vm3208, %v3194, %v3222
    %v3237 = vsel %vm3209, %v3195, %v3223
    %v3238 = vsel %vm3210, %v3196, %v3224
    %v3239 = vsel %vm3211, %v3197, %v3225
    %v3240 = vsel %vm3212, %v3198, %v3226
    %v3241 = vsel %vm3213, %v3199, %v3227
    %v3242 = vsel %vm3214, %v3200, %v3228
    %v3243 = vld [vmem:[#allocation22] sm:$0xff]
    %v3244 = vld [vmem:[#allocation22 + $0x8] sm:$0xff]
    %v3245 = vld [vmem:[#allocation22 + $0x10] sm:$0xff]
    %v3246 = vld [vmem:[#allocation22 + $0x18] sm:$0xf]
    %v3247 = vld [vmem:[#allocation22 + $0x1c] sm:$0xff]
    %v3248 = vld [vmem:[#allocation22 + $0x24] sm:$0xff]
    %v3249 = vld [vmem:[#allocation22 + $0x2c] sm:$0xff]
    %v3250 = vld [vmem:[#allocation22 + $0x34] sm:$0xf]
    %v3251 = vunpack.c.l.bf16 %v3243
    %v3252 = vunpack.c.h.bf16 %v3243
    %v3253 = vunpack.c.l.bf16 %v3244
    %v3254 = vunpack.c.h.bf16 %v3244
    %v3255 = vunpack.c.l.bf16 %v3245
    %v3256 = vunpack.c.h.bf16 %v3245
    %v3257 = vunpack.c.l.bf16 %v3246
    %v3258 = vunpack.c.l.bf16 %v3247
    %v3259 = vunpack.c.h.bf16 %v3247
    %v3260 = vunpack.c.l.bf16 %v3248
    %v3261 = vunpack.c.h.bf16 %v3248
    %v3262 = vunpack.c.l.bf16 %v3249
    %v3263 = vunpack.c.h.bf16 %v3249
    %v3264 = vunpack.c.l.bf16 %v3250
    %v3265 = vmul.f32 %v3229, %v3251
    %v3266 = vmul.f32 %v3230, %v3252
    %v3267 = vmul.f32 %v3231, %v3253
    %v3268 = vmul.f32 %v3232, %v3254
    %v3269 = vmul.f32 %v3233, %v3255
    %v3270 = vmul.f32 %v3234, %v3256
    %v3271 = vmul.f32 %v3235, %v3257
    %v3272 = vmul.f32 %v3236, %v3258
    %v3273 = vmul.f32 %v3237, %v3259
    %v3274 = vmul.f32 %v3238, %v3260
    %v3275 = vmul.f32 %v3239, %v3261
    %v3276 = vmul.f32 %v3240, %v3262
    %v3277 = vmul.f32 %v3241, %v3263
    %v3278 = vmul.f32 %v3242, %v3264
    %s3279 = smul.u32 4, 100
    %s3280 = smul.u32 %s3279, 1
    %s3281 = sshll.u32 %s3280, 4
    %3282 = dma.done %s377, %s3281
    %v3283 = vld [vmem:[#allocation3] sm:$0xf]
    %v3284 = vld [vmem:[#allocation3 + $0x4] sm:$0xf]
    %v3285 = vld [vmem:[#allocation3 + $0x8] sm:$0xf]
    %v3286 = vld [vmem:[#allocation3 + $0xc] sm:$0xf]
    %v3287 = vld [vmem:[#allocation3 + $0x10] sm:$0xf]
    %v3288 = vld [vmem:[#allocation3 + $0x14] sm:$0xf]
    %v3289 = vld [vmem:[#allocation3 + $0x18] sm:$0xf]
    %v3290 = vld [vmem:[#allocation3 + $0x1c] sm:$0xf]
    %v3291 = vld [vmem:[#allocation3 + $0x20] sm:$0xf]
    %v3292 = vld [vmem:[#allocation3 + $0x24] sm:$0xf]
    %v3293 = vld [vmem:[#allocation3 + $0x28] sm:$0xf]
    %v3294 = vld [vmem:[#allocation3 + $0x2c] sm:$0xf]
    %v3295 = vld [vmem:[#allocation3 + $0x30] sm:$0xf]
    %v3296 = vld [vmem:[#allocation3 + $0x34] sm:$0xf]
    %v3297 = vld [vmem:[#allocation3 + $0x38] sm:$0xf]
    %v3298 = vld [vmem:[#allocation3 + $0x3c] sm:$0xf]
    %v3299 = vld [vmem:[#allocation3 + $0x40] sm:$0xf]
    %v3300 = vld [vmem:[#allocation3 + $0x44] sm:$0xf]
    %v3301 = vld [vmem:[#allocation3 + $0x48] sm:$0xf]
    %v3302 = vld [vmem:[#allocation3 + $0x4c] sm:$0xf]
    %v3303 = vld [vmem:[#allocation3 + $0x50] sm:$0xf]
    %v3304 = vld [vmem:[#allocation3 + $0x54] sm:$0xf]
    %v3305 = vld [vmem:[#allocation3 + $0x58] sm:$0xf]
    %v3306 = vld [vmem:[#allocation3 + $0x5c] sm:$0xf]
    %v3307 = vld [vmem:[#allocation3 + $0x60] sm:$0xf]
    %v3308 = vld [vmem:[#allocation3 + $0x64] sm:$0xf]
    %v3309 = vld [vmem:[#allocation3 + $0x68] sm:$0xf]
    %v3310 = vld [vmem:[#allocation3 + $0x6c] sm:$0xf]
    %v3311 = vld [vmem:[#allocation3 + $0x70] sm:$0xf]
    %v3312 = vld [vmem:[#allocation3 + $0x74] sm:$0xf]
    %v3313 = vld [vmem:[#allocation3 + $0x78] sm:$0xf]
    %v3314 = vld [vmem:[#allocation3 + $0x7c] sm:$0xf]
    %v3315 = vld [vmem:[#allocation3 + $0x80] sm:$0xf]
    %v3316 = vld [vmem:[#allocation3 + $0x84] sm:$0xf]
    %v3317 = vld [vmem:[#allocation3 + $0x88] sm:$0xf]
    %v3318 = vld [vmem:[#allocation3 + $0x8c] sm:$0xf]
    %v3319 = vld [vmem:[#allocation3 + $0x90] sm:$0xf]
    %v3320 = vld [vmem:[#allocation3 + $0x94] sm:$0xf]
    %v3321 = vld [vmem:[#allocation3 + $0x98] sm:$0xf]
    %v3322 = vld [vmem:[#allocation3 + $0x9c] sm:$0xf]
    %v3323 = vld [vmem:[#allocation3 + $0xa0] sm:$0xf]
    %v3324 = vld [vmem:[#allocation3 + $0xa4] sm:$0xf]
    %v3325 = vld [vmem:[#allocation3 + $0xa8] sm:$0xf]
    %v3326 = vld [vmem:[#allocation3 + $0xac] sm:$0xf]
    %v3327 = vld [vmem:[#allocation3 + $0xb0] sm:$0xf]
    %v3328 = vld [vmem:[#allocation3 + $0xb4] sm:$0xf]
    %v3329 = vld [vmem:[#allocation3 + $0xb8] sm:$0xf]
    %v3330 = vld [vmem:[#allocation3 + $0xbc] sm:$0xf]
    %v3331 = vld [vmem:[#allocation3 + $0xc0] sm:$0xf]
    %v3332 = vld [vmem:[#allocation3 + $0xc4] sm:$0xf]
    %v3333 = vld [vmem:[#allocation3 + $0xc8] sm:$0xf]
    %v3334 = vld [vmem:[#allocation3 + $0xcc] sm:$0xf]
    %v3335 = vld [vmem:[#allocation3 + $0xd0] sm:$0xf]
    %v3336 = vld [vmem:[#allocation3 + $0xd4] sm:$0xf]
    %v3337 = vld [vmem:[#allocation3 + $0xd8] sm:$0xf]
    %v3338 = vld [vmem:[#allocation3 + $0xdc] sm:$0xf]
    %v3339 = vld [vmem:[#allocation3 + $0xe0] sm:$0xf]
    %v3340 = vld [vmem:[#allocation3 + $0xe4] sm:$0xf]
    %v3341 = vld [vmem:[#allocation3 + $0xe8] sm:$0xf]
    %v3342 = vld [vmem:[#allocation3 + $0xec] sm:$0xf]
    %v3343 = vld [vmem:[#allocation3 + $0xf0] sm:$0xf]
    %v3344 = vld [vmem:[#allocation3 + $0xf4] sm:$0xf]
    %v3345 = vld [vmem:[#allocation3 + $0xf8] sm:$0xf]
    %v3346 = vld [vmem:[#allocation3 + $0xfc] sm:$0xf]
    %v3347 = vld [vmem:[#allocation3 + $0x100] sm:$0xf]
    %v3348 = vld [vmem:[#allocation3 + $0x104] sm:$0xf]
    %v3349 = vld [vmem:[#allocation3 + $0x108] sm:$0xf]
    %v3350 = vld [vmem:[#allocation3 + $0x10c] sm:$0xf]
    %v3351 = vld [vmem:[#allocation3 + $0x110] sm:$0xf]
    %v3352 = vld [vmem:[#allocation3 + $0x114] sm:$0xf]
    %v3353 = vld [vmem:[#allocation3 + $0x118] sm:$0xf]
    %v3354 = vld [vmem:[#allocation3 + $0x11c] sm:$0xf]
    %v3355 = vld [vmem:[#allocation3 + $0x120] sm:$0xf]
    %v3356 = vld [vmem:[#allocation3 + $0x124] sm:$0xf]
    %v3357 = vld [vmem:[#allocation3 + $0x128] sm:$0xf]
    %v3358 = vld [vmem:[#allocation3 + $0x12c] sm:$0xf]
    %v3359 = vld [vmem:[#allocation3 + $0x130] sm:$0xf]
    %v3360 = vld [vmem:[#allocation3 + $0x134] sm:$0xf]
    %v3361 = vld [vmem:[#allocation3 + $0x138] sm:$0xf]
    %v3362 = vld [vmem:[#allocation3 + $0x13c] sm:$0xf]
    %v3363 = vld [vmem:[#allocation3 + $0x140] sm:$0xf]
    %v3364 = vld [vmem:[#allocation3 + $0x144] sm:$0xf]
    %v3365 = vld [vmem:[#allocation3 + $0x148] sm:$0xf]
    %v3366 = vld [vmem:[#allocation3 + $0x14c] sm:$0xf]
    %v3367 = vld [vmem:[#allocation3 + $0x150] sm:$0xf]
    %v3368 = vld [vmem:[#allocation3 + $0x154] sm:$0xf]
    %v3369 = vld [vmem:[#allocation3 + $0x158] sm:$0xf]
    %v3370 = vld [vmem:[#allocation3 + $0x15c] sm:$0xf]
    %v3371 = vld [vmem:[#allocation3 + $0x160] sm:$0xf]
    %v3372 = vld [vmem:[#allocation3 + $0x164] sm:$0xf]
    %v3373 = vld [vmem:[#allocation3 + $0x168] sm:$0xf]
    %v3374 = vld [vmem:[#allocation3 + $0x16c] sm:$0xf]
    %v3375 = vld [vmem:[#allocation3 + $0x170] sm:$0xf]
    %v3376 = vld [vmem:[#allocation3 + $0x174] sm:$0xf]
    %v3377 = vld [vmem:[#allocation3 + $0x178] sm:$0xf]
    %v3378 = vld [vmem:[#allocation3 + $0x17c] sm:$0xf]
    %v3379 = vld [vmem:[#allocation3 + $0x180] sm:$0xf]
    %v3380 = vld [vmem:[#allocation3 + $0x184] sm:$0xf]
    %v3381 = vld [vmem:[#allocation3 + $0x188] sm:$0xf]
    %v3382 = vld [vmem:[#allocation3 + $0x18c] sm:$0xf]
    %v3383 = vpack.c.bf16 %v3272, %v3265
    %v3384 = vpack.c.bf16 %v3273, %v3266
    %v3385 = vpack.c.bf16 %v3274, %v3267
    %v3386 = vpack.c.bf16 %v3275, %v3268
    %v3387 = vpack.c.bf16 %v3276, %v3269
    %v3388 = vpack.c.bf16 %v3277, %v3270
    %v3389 = vpack.c.bf16 %v3278, %v3271
    %v3390 = vld [vmem:[%s25] sm:$0x1]
    %v3392 = vlaneseq
    %v3393 = vshrl.u32 %v3392, 7
    %v3394 = vsub.s32 0, %v3393
    %v3395 = vrot.slane %v3390, %v3394
    %v3497 = vunpack.c.l.b16 %v3283
    %v3498 = vunpack.c.l.b16 %v3284
    %v3499 = vunpack.c.l.b16 %v3285
    %v3500 = vunpack.c.l.b16 %v3286
    %v3501 = vunpack.c.l.b16 %v3287
    %v3502 = vunpack.c.l.b16 %v3288
    %v3503 = vunpack.c.l.b16 %v3289
    %v3504 = vunpack.c.l.b16 %v3290
    %v3505 = vunpack.c.l.b16 %v3291
    %v3506 = vunpack.c.l.b16 %v3292
    %v3507 = vunpack.c.l.b16 %v3293
    %v3508 = vunpack.c.l.b16 %v3294
    %v3509 = vunpack.c.l.b16 %v3295
    %v3510 = vunpack.c.l.b16 %v3296
    %v3511 = vunpack.c.l.b16 %v3297
    %v3512 = vunpack.c.l.b16 %v3298
    %v3513 = vunpack.c.l.b16 %v3299
    %v3514 = vunpack.c.l.b16 %v3300
    %v3515 = vunpack.c.l.b16 %v3301
    %v3516 = vunpack.c.l.b16 %v3302
    %v3517 = vunpack.c.l.b16 %v3303
    %v3518 = vunpack.c.l.b16 %v3304
    %v3519 = vunpack.c.l.b16 %v3305
    %v3520 = vunpack.c.l.b16 %v3306
    %v3521 = vunpack.c.l.b16 %v3307
    %v3522 = vunpack.c.l.b16 %v3308
    %v3523 = vunpack.c.l.b16 %v3309
    %v3524 = vunpack.c.l.b16 %v3310
    %v3525 = vunpack.c.l.b16 %v3311
    %v3526 = vunpack.c.l.b16 %v3312
    %v3527 = vunpack.c.l.b16 %v3313
    %v3528 = vunpack.c.l.b16 %v3314
    %v3529 = vunpack.c.l.b16 %v3315
    %v3530 = vunpack.c.l.b16 %v3316
    %v3531 = vunpack.c.l.b16 %v3317
    %v3532 = vunpack.c.l.b16 %v3318
    %v3533 = vunpack.c.l.b16 %v3319
    %v3534 = vunpack.c.l.b16 %v3320
    %v3535 = vunpack.c.l.b16 %v3321
    %v3536 = vunpack.c.l.b16 %v3322
    %v3537 = vunpack.c.l.b16 %v3323
    %v3538 = vunpack.c.l.b16 %v3324
    %v3539 = vunpack.c.l.b16 %v3325
    %v3540 = vunpack.c.l.b16 %v3326
    %v3541 = vunpack.c.l.b16 %v3327
    %v3542 = vunpack.c.l.b16 %v3328
    %v3543 = vunpack.c.l.b16 %v3329
    %v3544 = vunpack.c.l.b16 %v3330
    %v3545 = vunpack.c.l.b16 %v3331
    %v3546 = vunpack.c.l.b16 %v3332
    %v3547 = vunpack.c.l.b16 %v3333
    %v3548 = vunpack.c.l.b16 %v3334
    %v3549 = vunpack.c.l.b16 %v3335
    %v3550 = vunpack.c.l.b16 %v3336
    %v3551 = vunpack.c.l.b16 %v3337
    %v3552 = vunpack.c.l.b16 %v3338
    %v3553 = vunpack.c.l.b16 %v3339
    %v3554 = vunpack.c.l.b16 %v3340
    %v3555 = vunpack.c.l.b16 %v3341
    %v3556 = vunpack.c.l.b16 %v3342
    %v3557 = vunpack.c.l.b16 %v3343
    %v3558 = vunpack.c.l.b16 %v3344
    %v3559 = vunpack.c.l.b16 %v3345
    %v3560 = vunpack.c.l.b16 %v3346
    %v3561 = vunpack.c.l.b16 %v3347
    %v3562 = vunpack.c.l.b16 %v3348
    %v3563 = vunpack.c.l.b16 %v3349
    %v3564 = vunpack.c.l.b16 %v3350
    %v3565 = vunpack.c.l.b16 %v3351
    %v3566 = vunpack.c.l.b16 %v3352
    %v3567 = vunpack.c.l.b16 %v3353
    %v3568 = vunpack.c.l.b16 %v3354
    %v3569 = vunpack.c.l.b16 %v3355
    %v3570 = vunpack.c.l.b16 %v3356
    %v3571 = vunpack.c.l.b16 %v3357
    %v3572 = vunpack.c.l.b16 %v3358
    %v3573 = vunpack.c.l.b16 %v3359
    %v3574 = vunpack.c.l.b16 %v3360
    %v3575 = vunpack.c.l.b16 %v3361
    %v3576 = vunpack.c.l.b16 %v3362
    %v3577 = vunpack.c.l.b16 %v3363
    %v3578 = vunpack.c.l.b16 %v3364
    %v3579 = vunpack.c.l.b16 %v3365
    %v3580 = vunpack.c.l.b16 %v3366
    %v3581 = vunpack.c.l.b16 %v3367
    %v3582 = vunpack.c.l.b16 %v3368
    %v3583 = vunpack.c.l.b16 %v3369
    %v3584 = vunpack.c.l.b16 %v3370
    %v3585 = vunpack.c.l.b16 %v3371
    %v3586 = vunpack.c.l.b16 %v3372
    %v3587 = vunpack.c.l.b16 %v3373
    %v3588 = vunpack.c.l.b16 %v3374
    %v3589 = vunpack.c.l.b16 %v3375
    %v3590 = vunpack.c.l.b16 %v3376
    %v3591 = vunpack.c.l.b16 %v3377
    %v3592 = vunpack.c.l.b16 %v3378
    %v3593 = vunpack.c.l.b16 %v3379
    %v3594 = vunpack.c.l.b16 %v3380
    %v3595 = vunpack.c.l.b16 %v3381
    %v3596 = vunpack.c.l.b16 %v3382
    %v3597 = vpack.c.b16 %v3498, %v3497
    %v3598 = vpack.c.b16 %v3500, %v3499
    %v3599 = vpack.c.b16 %v3502, %v3501
    %v3600 = vpack.c.b16 %v3504, %v3503
    %v3601 = vpack.c.b16 %v3506, %v3505
    %v3602 = vpack.c.b16 %v3508, %v3507
    %v3603 = vpack.c.b16 %v3510, %v3509
    %v3604 = vpack.c.b16 %v3512, %v3511
    %v3605 = vpack.c.b16 %v3514, %v3513
    %v3606 = vpack.c.b16 %v3516, %v3515
    %v3607 = vpack.c.b16 %v3518, %v3517
    %v3608 = vpack.c.b16 %v3520, %v3519
    %v3609 = vpack.c.b16 %v3522, %v3521
    %v3610 = vpack.c.b16 %v3524, %v3523
    %v3611 = vpack.c.b16 %v3526, %v3525
    %v3612 = vpack.c.b16 %v3528, %v3527
    %v3613 = vpack.c.b16 %v3530, %v3529
    %v3614 = vpack.c.b16 %v3532, %v3531
    %v3615 = vpack.c.b16 %v3534, %v3533
    %v3616 = vpack.c.b16 %v3536, %v3535
    %v3617 = vpack.c.b16 %v3538, %v3537
    %v3618 = vpack.c.b16 %v3540, %v3539
    %v3619 = vpack.c.b16 %v3542, %v3541
    %v3620 = vpack.c.b16 %v3544, %v3543
    %v3621 = vpack.c.b16 %v3546, %v3545
    %v3622 = vpack.c.b16 %v3548, %v3547
    %v3623 = vpack.c.b16 %v3550, %v3549
    %v3624 = vpack.c.b16 %v3552, %v3551
    %v3625 = vpack.c.b16 %v3554, %v3553
    %v3626 = vpack.c.b16 %v3556, %v3555
    %v3627 = vpack.c.b16 %v3558, %v3557
    %v3628 = vpack.c.b16 %v3560, %v3559
    %v3629 = vpack.c.b16 %v3562, %v3561
    %v3630 = vpack.c.b16 %v3564, %v3563
    %v3631 = vpack.c.b16 %v3566, %v3565
    %v3632 = vpack.c.b16 %v3568, %v3567
    %v3633 = vpack.c.b16 %v3570, %v3569
    %v3634 = vpack.c.b16 %v3572, %v3571
    %v3635 = vpack.c.b16 %v3574, %v3573
    %v3636 = vpack.c.b16 %v3576, %v3575
    %v3637 = vpack.c.b16 %v3578, %v3577
    %v3638 = vpack.c.b16 %v3580, %v3579
    %v3639 = vpack.c.b16 %v3582, %v3581
    %v3640 = vpack.c.b16 %v3584, %v3583
    %v3641 = vpack.c.b16 %v3586, %v3585
    %v3642 = vpack.c.b16 %v3588, %v3587
    %v3643 = vpack.c.b16 %v3590, %v3589
    %v3644 = vpack.c.b16 %v3592, %v3591
    %v3645 = vpack.c.b16 %v3594, %v3593
    %v3646 = vpack.c.b16 %v3596, %v3595
    %v3698 = vsel %vm1205, %v3389, 0
    %3700 = vmatprep.subr.bf16.mxu0 0
    %3701 = vmatpush1.bf16.msra.mxu0 %v3604
    %3702 = vmatprep.subr.bf16.mxu0 0
    %3703 = vmatpush1.bf16.msra.mxu0 %v3603
    %3704 = vmatprep.subr.bf16.mxu0 0
    %3705 = vmatpush1.bf16.msra.mxu0 %v3602
    %3706 = vmatprep.subr.bf16.mxu0 0
    %3707 = vmatpush1.bf16.msra.mxu0 %v3601
    %3708 = vmatprep.subr.bf16.mxu0 0
    %3709 = vmatpush1.bf16.msra.mxu0 %v3600
    %3710 = vmatprep.subr.bf16.mxu0 0
    %3711 = vmatpush1.bf16.msra.mxu0 %v3599
    %3712 = vmatprep.subr.bf16.mxu0 0
    %3713 = vmatpush1.bf16.msra.mxu0 %v3598
    %3714 = vmatprep.subr.bf16.mxu0 0
    %3715 = vmatpush1.bf16.msra.mxu0 %v3597
    %3716 = vmatprep.subr.bf16.mxu0 0
    %3717 = vmatpush2.bf16.msra.mxu0 %v3612
    %3718 = vmatprep.subr.bf16.mxu0 0
    %3719 = vmatpush2.bf16.msra.mxu0 %v3611
    %3720 = vmatprep.subr.bf16.mxu0 0
    %3721 = vmatpush2.bf16.msra.mxu0 %v3610
    %3722 = vmatprep.subr.bf16.mxu0 0
    %3723 = vmatpush2.bf16.msra.mxu0 %v3609
    %3724 = vmatprep.subr.bf16.mxu0 0
    %3725 = vmatpush2.bf16.msra.mxu0 %v3608
    %3726 = vmatprep.subr.bf16.mxu0 0
    %3727 = vmatpush2.bf16.msra.mxu0 %v3607
    %3728 = vmatprep.subr.bf16.mxu0 0
    %3729 = vmatpush2.bf16.msra.mxu0 %v3606
    %3730 = vmatprep.subr.bf16.mxu0 0
    %3731 = vmatpush2.bf16.msra.mxu0 %v3605
    %3732 = vmatprep.mubr.bf16.mxu0 %v3384
    %3733 = vmatmul.mubr.bf16.gmra.mxu0 %v3383
    %v3734 = vpop.f32.mrf.mxu0
    %v3735 = vadd.f32 %v3395, %v3734
    %v3736 = vpop.f32.mrf.mxu0
    %v3737 = vpop.f32.mrf.mxu0
    %v3738 = vadd.f32 %v3395, %v3737
    %v3739 = vpop.f32.mrf.mxu0
    %3740 = vdwg.mxu0
    %3741 = vmatprep.subr.bf16.mxu0 0
    %3742 = vmatpush1.bf16.msra.mxu0 %v3620
    %3743 = vmatprep.subr.bf16.mxu0 0
    %3744 = vmatpush1.bf16.msra.mxu0 %v3619
    %3745 = vmatprep.subr.bf16.mxu0 0
    %3746 = vmatpush1.bf16.msra.mxu0 %v3618
    %3747 = vmatprep.subr.bf16.mxu0 0
    %3748 = vmatpush1.bf16.msra.mxu0 %v3617
    %3749 = vmatprep.subr.bf16.mxu0 0
    %3750 = vmatpush1.bf16.msra.mxu0 %v3616
    %3751 = vmatprep.subr.bf16.mxu0 0
    %3752 = vmatpush1.bf16.msra.mxu0 %v3615
    %3753 = vmatprep.subr.bf16.mxu0 0
    %3754 = vmatpush1.bf16.msra.mxu0 %v3614
    %3755 = vmatprep.subr.bf16.mxu0 0
    %3756 = vmatpush1.bf16.msra.mxu0 %v3613
    %3757 = vmatprep.subr.bf16.mxu0 0
    %3758 = vmatpush2.bf16.msra.mxu0 %v3628
    %3759 = vmatprep.subr.bf16.mxu0 0
    %3760 = vmatpush2.bf16.msra.mxu0 %v3627
    %3761 = vmatprep.subr.bf16.mxu0 0
    %3762 = vmatpush2.bf16.msra.mxu0 %v3626
    %3763 = vmatprep.subr.bf16.mxu0 0
    %3764 = vmatpush2.bf16.msra.mxu0 %v3625
    %3765 = vmatprep.subr.bf16.mxu0 0
    %3766 = vmatpush2.bf16.msra.mxu0 %v3624
    %3767 = vmatprep.subr.bf16.mxu0 0
    %3768 = vmatpush2.bf16.msra.mxu0 %v3623
    %3769 = vmatprep.subr.bf16.mxu0 0
    %3770 = vmatpush2.bf16.msra.mxu0 %v3622
    %3771 = vmatprep.subr.bf16.mxu0 0
    %3772 = vmatpush2.bf16.msra.mxu0 %v3621
    %3773 = vmatprep.mubr.bf16.mxu0 %v3386
    %3774 = vmatmul.mubr.bf16.gmra.mxu0 %v3385
    %v3775 = vpop.f32.mrf.mxu0
    %v3776 = vadd.f32 %v3735, %v3775
    %v3777 = vpop.f32.mrf.mxu0
    %v3778 = vpop.f32.mrf.mxu0
    %v3779 = vadd.f32 %v3738, %v3778
    %v3780 = vpop.f32.mrf.mxu0
    %3781 = vdwg.mxu0
    %3782 = vmatprep.subr.bf16.mxu0 0
    %3783 = vmatpush1.bf16.msra.mxu0 %v3636
    %3784 = vmatprep.subr.bf16.mxu0 0
    %3785 = vmatpush1.bf16.msra.mxu0 %v3635
    %3786 = vmatprep.subr.bf16.mxu0 0
    %3787 = vmatpush1.bf16.msra.mxu0 %v3634
    %3788 = vmatprep.subr.bf16.mxu0 0
    %3789 = vmatpush1.bf16.msra.mxu0 %v3633
    %3790 = vmatprep.subr.bf16.mxu0 0
    %3791 = vmatpush1.bf16.msra.mxu0 %v3632
    %3792 = vmatprep.subr.bf16.mxu0 0
    %3793 = vmatpush1.bf16.msra.mxu0 %v3631
    %3794 = vmatprep.subr.bf16.mxu0 0
    %3795 = vmatpush1.bf16.msra.mxu0 %v3630
    %3796 = vmatprep.subr.bf16.mxu0 0
    %3797 = vmatpush1.bf16.msra.mxu0 %v3629
    %3798 = vmatprep.subr.bf16.mxu0 0
    %3799 = vmatpush2.bf16.msra.mxu0 %v3644
    %3800 = vmatprep.subr.bf16.mxu0 0
    %3801 = vmatpush2.bf16.msra.mxu0 %v3643
    %3802 = vmatprep.subr.bf16.mxu0 0
    %3803 = vmatpush2.bf16.msra.mxu0 %v3642
    %3804 = vmatprep.subr.bf16.mxu0 0
    %3805 = vmatpush2.bf16.msra.mxu0 %v3641
    %3806 = vmatprep.subr.bf16.mxu0 0
    %3807 = vmatpush2.bf16.msra.mxu0 %v3640
    %3808 = vmatprep.subr.bf16.mxu0 0
    %3809 = vmatpush2.bf16.msra.mxu0 %v3639
    %3810 = vmatprep.subr.bf16.mxu0 0
    %3811 = vmatpush2.bf16.msra.mxu0 %v3638
    %3812 = vmatprep.subr.bf16.mxu0 0
    %3813 = vmatpush2.bf16.msra.mxu0 %v3637
    %3814 = vmatprep.mubr.bf16.mxu0 %v3388
    %3815 = vmatmul.mubr.bf16.gmra.mxu0 %v3387
    %v3816 = vpop.f32.mrf.mxu0
    %v3817 = vadd.f32 %v3776, %v3816
    %v3818 = vpop.f32.mrf.mxu0
    %v3819 = vpop.f32.mrf.mxu0
    %v3820 = vadd.f32 %v3779, %v3819
    %v3821 = vpop.f32.mrf.mxu0
    %3822 = vdwg.mxu0
    %3823 = vmatprep.subr.bf16.mxu0 0
    %3824 = vmatpush1.bf16.msra.mxu0 0
    %3825 = vmatprep.subr.bf16.mxu0 0
    %3826 = vmatpush1.bf16.msra.mxu0 0
    %3827 = vmatprep.subr.bf16.mxu0 0
    %3828 = vmatpush1.bf16.msra.mxu0 0
    %3829 = vmatprep.subr.bf16.mxu0 0
    %3830 = vmatpush1.bf16.msra.mxu0 0
    %3831 = vmatprep.subr.bf16.mxu0 0
    %3832 = vmatpush1.bf16.msra.mxu0 0
    %3833 = vmatprep.subr.bf16.mxu0 0
    %3834 = vmatpush1.bf16.msra.mxu0 0
    %3835 = vmatprep.subr.bf16.mxu0 0
    %3836 = vmatpush1.bf16.msra.mxu0 %v3646
    %3837 = vmatprep.subr.bf16.mxu0 0
    %3838 = vmatpush1.bf16.msra.mxu0 %v3645
    %3839 = vmatprep.subr.bf16.mxu0 0
    %3840 = vmatpush2.bf16.msra.mxu0 0
    %3841 = vmatprep.subr.bf16.mxu0 0
    %3842 = vmatpush2.bf16.msra.mxu0 0
    %3843 = vmatprep.subr.bf16.mxu0 0
    %3844 = vmatpush2.bf16.msra.mxu0 0
    %3845 = vmatprep.subr.bf16.mxu0 0
    %3846 = vmatpush2.bf16.msra.mxu0 0
    %3847 = vmatprep.subr.bf16.mxu0 0
    %3848 = vmatpush2.bf16.msra.mxu0 0
    %3849 = vmatprep.subr.bf16.mxu0 0
    %3850 = vmatpush2.bf16.msra.mxu0 0
    %3851 = vmatprep.subr.bf16.mxu0 0
    %3852 = vmatpush2.bf16.msra.mxu0 0
    %3853 = vmatprep.subr.bf16.mxu0 0
    %3854 = vmatpush2.bf16.msra.mxu0 0
    %3855 = vmatprep.mubr.bf16.mxu0 0
    %3856 = vmatmul.mubr.bf16.gmra.mxu0 %v3698
    %v3857 = vpop.f32.mrf.mxu0
    %v3858 = vadd.f32 %v3817, %v3857
    %v3859 = vpop.f32.mrf.mxu0
    %v3860 = vpop.f32.mrf.mxu0
    %v3861 = vadd.f32 %v3820, %v3860
    %v3862 = vpop.f32.mrf.mxu0
    %3863 = vdwg.mxu0
    %3864 = vst [vmem:[%s61] sm:$0xff] %v3858
    %3865 = vst [vmem:[%s61 + $0x8] sm:$0xff] %v3861
    %v3866 = vld [vmem:[%s27] sm:$0xff]
    %v3867 = vld [vmem:[%s27 + $0x8] sm:$0xff]
    %v3868 = vmul.f32 %v3858, 0.5
    %v3869 = vmul.f32 %v3861, 0.5
    %v3870 = vmul.f32 %v3868, 1.442695
    %v3871 = vpow.pop %v3870
    %v3872 = vmul.f32 %v3869, 1.442695
    %v3873 = vpow.pop %v3872
    %3876 = vrot.lane.b32.xlu0 %v3871, 96
    %v3877 = vpop.permute.xlu0 %3876
    %3878 = vrot.lane.b32.xlu0 %v3873, 96
    %v3879 = vpop.permute.xlu0 %3878
    %v3882 = vmul.f32 %v3866, %v3877
    %v3883 = vmul.f32 %v3867, %v3879
    %v3884 = vadd.f32 %v3858, %v3882
    %v3885 = vadd.f32 %v3861, %v3883
    %v3886 = vld [vmem:[#allocation24] sm:$0xff]
    %v3887 = vld [vmem:[#allocation24 + $0x8] sm:$0xff]
    %v3888 = vld [vmem:[#allocation24 + $0x10] sm:$0xff]
    %v3889 = vld [vmem:[#allocation24 + $0x18] sm:$0xf]
    %v3890 = vld [vmem:[#allocation24 + $0x1c] sm:$0xff]
    %v3891 = vld [vmem:[#allocation24 + $0x24] sm:$0xff]
    %v3892 = vld [vmem:[#allocation24 + $0x2c] sm:$0xff]
    %v3893 = vld [vmem:[#allocation24 + $0x34] sm:$0xf]
    %v3894 = vld [vmem:[#allocation24 + $0x38] sm:$0xff]
    %v3895 = vld [vmem:[#allocation24 + $0x40] sm:$0xff]
    %v3896 = vld [vmem:[#allocation24 + $0x48] sm:$0xff]
    %v3897 = vld [vmem:[#allocation24 + $0x50] sm:$0xf]
    %v3898 = vld [vmem:[#allocation24 + $0x54] sm:$0xff]
    %v3899 = vld [vmem:[#allocation24 + $0x5c] sm:$0xff]
    %v3900 = vld [vmem:[#allocation24 + $0x64] sm:$0xff]
    %v3901 = vld [vmem:[#allocation24 + $0x6c] sm:$0xf]
    %v3902 = vpack.c.bf16 %v3885, %v3884
    %v3903 = vld [vmem:[#allocation25] sm:$0xff]
    %v3904 = vld [vmem:[#allocation25 + $0x8] sm:$0xff]
    %v3905 = vld [vmem:[#allocation25 + $0x10] sm:$0xff]
    %v3906 = vld [vmem:[#allocation25 + $0x18] sm:$0xf]
    %v3907 = vld [vmem:[#allocation25 + $0x1c] sm:$0xff]
    %v3908 = vld [vmem:[#allocation25 + $0x24] sm:$0xff]
    %v3909 = vld [vmem:[#allocation25 + $0x2c] sm:$0xff]
    %v3910 = vld [vmem:[#allocation25 + $0x34] sm:$0xf]
    %v3919 = vunpack.c.l.b16 %v3903
    %v3920 = vunpack.c.h.b16 %v3903
    %v3921 = vunpack.c.l.b16 %v3904
    %v3922 = vunpack.c.h.b16 %v3904
    %v3923 = vunpack.c.l.b16 %v3905
    %v3924 = vunpack.c.h.b16 %v3905
    %v3925 = vunpack.c.l.b16 %v3906
    %v3926 = vunpack.c.l.b16 %v3907
    %v3927 = vunpack.c.h.b16 %v3907
    %v3928 = vunpack.c.l.b16 %v3908
    %v3929 = vunpack.c.h.b16 %v3908
    %v3930 = vunpack.c.l.b16 %v3909
    %v3931 = vunpack.c.h.b16 %v3909
    %v3932 = vunpack.c.l.b16 %v3910
    %v3933 = vpack.c.b16 %v3926, %v3919
    %v3934 = vpack.c.b16 %v3927, %v3920
    %v3935 = vpack.c.b16 %v3928, %v3921
    %v3936 = vpack.c.b16 %v3929, %v3922
    %v3937 = vpack.c.b16 %v3930, %v3923
    %v3938 = vpack.c.b16 %v3931, %v3924
    %v3939 = vpack.c.b16 %v3932, %v3925
    %3947 = vmatprep.subr.bf16.mxu0 0
    %3948 = vmatpush1.bf16.msra.mxu0 0
    %3949 = vmatprep.subr.bf16.mxu0 0
    %3950 = vmatpush1.bf16.msra.mxu0 0
    %3951 = vmatprep.subr.bf16.mxu0 0
    %3952 = vmatpush1.bf16.msra.mxu0 0
    %3953 = vmatprep.subr.bf16.mxu0 0
    %3954 = vmatpush1.bf16.msra.mxu0 0
    %3955 = vmatprep.subr.bf16.mxu0 0
    %3956 = vmatpush1.bf16.msra.mxu0 0
    %3957 = vmatprep.subr.bf16.mxu0 0
    %3958 = vmatpush1.bf16.msra.mxu0 0
    %3959 = vmatprep.subr.bf16.mxu0 0
    %3960 = vmatpush1.bf16.msra.mxu0 0
    %3961 = vmatprep.subr.bf16.mxu0 %v3934
    %3962 = vmatpush1.bf16.msra.mxu0 %v3933
    %3963 = vmatprep.subr.bf16.mxu0 0
    %3964 = vmatpush2.bf16.msra.mxu0 0
    %3965 = vmatprep.subr.bf16.mxu0 0
    %3966 = vmatpush2.bf16.msra.mxu0 0
    %3967 = vmatprep.subr.bf16.mxu0 0
    %3968 = vmatpush2.bf16.msra.mxu0 0
    %3969 = vmatprep.subr.bf16.mxu0 0
    %3970 = vmatpush2.bf16.msra.mxu0 0
    %3971 = vmatprep.subr.bf16.mxu0 0
    %3972 = vmatpush2.bf16.msra.mxu0 0
    %3973 = vmatprep.subr.bf16.mxu0 0
    %3974 = vmatpush2.bf16.msra.mxu0 0
    %3975 = vmatprep.subr.bf16.mxu0 0
    %3976 = vmatpush2.bf16.msra.mxu0 0
    %3977 = vmatprep.subr.bf16.mxu0 0
    %3978 = vmatpush2.bf16.msra.mxu0 0
    %3979 = vmatprep.mubr.bf16.mxu0 0
    %3980 = vmatmul.mubr.bf16.gmra.mxu0 %v975
    %v3981 = vpop.f32.mrf.mxu0
    %v3982 = vadd.f32 0.0, %v3981
    %v3983 = vpop.f32.mrf.mxu0
    %v3984 = vadd.f32 0.0, %v3983
    %v3985 = vpop.f32.mrf.mxu0
    %v3986 = vadd.f32 0.0, %v3985
    %v3987 = vpop.f32.mrf.mxu0
    %v3988 = vadd.f32 0.0, %v3987
    %3989 = vdwg.mxu0
    %3990 = vmatprep.subr.bf16.mxu0 0
    %3991 = vmatpush1.bf16.msra.mxu0 0
    %3992 = vmatprep.subr.bf16.mxu0 0
    %3993 = vmatpush1.bf16.msra.mxu0 0
    %3994 = vmatprep.subr.bf16.mxu0 0
    %3995 = vmatpush1.bf16.msra.mxu0 0
    %3996 = vmatprep.subr.bf16.mxu0 0
    %3997 = vmatpush1.bf16.msra.mxu0 0
    %3998 = vmatprep.subr.bf16.mxu0 0
    %3999 = vmatpush1.bf16.msra.mxu0 0
    %4000 = vmatprep.subr.bf16.mxu0 0
    %4001 = vmatpush1.bf16.msra.mxu0 0
    %4002 = vmatprep.subr.bf16.mxu0 0
    %4003 = vmatpush1.bf16.msra.mxu0 0
    %4004 = vmatprep.subr.bf16.mxu0 %v3936
    %4005 = vmatpush1.bf16.msra.mxu0 %v3935
    %4006 = vmatprep.subr.bf16.mxu0 0
    %4007 = vmatpush2.bf16.msra.mxu0 0
    %4008 = vmatprep.subr.bf16.mxu0 0
    %4009 = vmatpush2.bf16.msra.mxu0 0
    %4010 = vmatprep.subr.bf16.mxu0 0
    %4011 = vmatpush2.bf16.msra.mxu0 0
    %4012 = vmatprep.subr.bf16.mxu0 0
    %4013 = vmatpush2.bf16.msra.mxu0 0
    %4014 = vmatprep.subr.bf16.mxu0 0
    %4015 = vmatpush2.bf16.msra.mxu0 0
    %4016 = vmatprep.subr.bf16.mxu0 0
    %4017 = vmatpush2.bf16.msra.mxu0 0
    %4018 = vmatprep.subr.bf16.mxu0 0
    %4019 = vmatpush2.bf16.msra.mxu0 0
    %4020 = vmatprep.subr.bf16.mxu0 0
    %4021 = vmatpush2.bf16.msra.mxu0 0
    %4022 = vmatprep.mubr.bf16.mxu0 0
    %4023 = vmatmul.mubr.bf16.gmra.mxu0 %v975
    %v4024 = vpop.f32.mrf.mxu0
    %v4025 = vadd.f32 0.0, %v4024
    %v4026 = vpop.f32.mrf.mxu0
    %v4027 = vadd.f32 0.0, %v4026
    %v4028 = vpop.f32.mrf.mxu0
    %v4029 = vadd.f32 0.0, %v4028
    %v4030 = vpop.f32.mrf.mxu0
    %v4031 = vadd.f32 0.0, %v4030
    %4032 = vdwg.mxu0
    %4033 = vmatprep.subr.bf16.mxu0 0
    %4034 = vmatpush1.bf16.msra.mxu0 0
    %4035 = vmatprep.subr.bf16.mxu0 0
    %4036 = vmatpush1.bf16.msra.mxu0 0
    %4037 = vmatprep.subr.bf16.mxu0 0
    %4038 = vmatpush1.bf16.msra.mxu0 0
    %4039 = vmatprep.subr.bf16.mxu0 0
    %4040 = vmatpush1.bf16.msra.mxu0 0
    %4041 = vmatprep.subr.bf16.mxu0 0
    %4042 = vmatpush1.bf16.msra.mxu0 0
    %4043 = vmatprep.subr.bf16.mxu0 0
    %4044 = vmatpush1.bf16.msra.mxu0 0
    %4045 = vmatprep.subr.bf16.mxu0 0
    %4046 = vmatpush1.bf16.msra.mxu0 0
    %4047 = vmatprep.subr.bf16.mxu0 %v3938
    %4048 = vmatpush1.bf16.msra.mxu0 %v3937
    %4049 = vmatprep.subr.bf16.mxu0 0
    %4050 = vmatpush2.bf16.msra.mxu0 0
    %4051 = vmatprep.subr.bf16.mxu0 0
    %4052 = vmatpush2.bf16.msra.mxu0 0
    %4053 = vmatprep.subr.bf16.mxu0 0
    %4054 = vmatpush2.bf16.msra.mxu0 0
    %4055 = vmatprep.subr.bf16.mxu0 0
    %4056 = vmatpush2.bf16.msra.mxu0 0
    %4057 = vmatprep.subr.bf16.mxu0 0
    %4058 = vmatpush2.bf16.msra.mxu0 0
    %4059 = vmatprep.subr.bf16.mxu0 0
    %4060 = vmatpush2.bf16.msra.mxu0 0
    %4061 = vmatprep.subr.bf16.mxu0 0
    %4062 = vmatpush2.bf16.msra.mxu0 0
    %4063 = vmatprep.subr.bf16.mxu0 0
    %4064 = vmatpush2.bf16.msra.mxu0 0
    %4065 = vmatprep.mubr.bf16.mxu0 0
    %4066 = vmatmul.mubr.bf16.gmra.mxu0 %v975
    %v4067 = vpop.f32.mrf.mxu0
    %v4068 = vadd.f32 0.0, %v4067
    %v4069 = vpop.f32.mrf.mxu0
    %v4070 = vadd.f32 0.0, %v4069
    %v4071 = vpop.f32.mrf.mxu0
    %v4072 = vadd.f32 0.0, %v4071
    %v4073 = vpop.f32.mrf.mxu0
    %v4074 = vadd.f32 0.0, %v4073
    %4075 = vdwg.mxu0
    %4076 = vmatprep.subr.bf16.mxu0 0
    %4077 = vmatpush1.bf16.msra.mxu0 0
    %4078 = vmatprep.subr.bf16.mxu0 0
    %4079 = vmatpush1.bf16.msra.mxu0 0
    %4080 = vmatprep.subr.bf16.mxu0 0
    %4081 = vmatpush1.bf16.msra.mxu0 0
    %4082 = vmatprep.subr.bf16.mxu0 0
    %4083 = vmatpush1.bf16.msra.mxu0 0
    %4084 = vmatprep.subr.bf16.mxu0 0
    %4085 = vmatpush1.bf16.msra.mxu0 0
    %4086 = vmatprep.subr.bf16.mxu0 0
    %4087 = vmatpush1.bf16.msra.mxu0 0
    %4088 = vmatprep.subr.bf16.mxu0 0
    %4089 = vmatpush1.bf16.msra.mxu0 0
    %4090 = vmatprep.subr.bf16.mxu0 0
    %4091 = vmatpush1.bf16.msra.mxu0 %v3939
    %4092 = vmatprep.subr.bf16.mxu0 0
    %4093 = vmatpush2.bf16.msra.mxu0 0
    %4094 = vmatprep.subr.bf16.mxu0 0
    %4095 = vmatpush2.bf16.msra.mxu0 0
    %4096 = vmatprep.subr.bf16.mxu0 0
    %4097 = vmatpush2.bf16.msra.mxu0 0
    %4098 = vmatprep.subr.bf16.mxu0 0
    %4099 = vmatpush2.bf16.msra.mxu0 0
    %4100 = vmatprep.subr.bf16.mxu0 0
    %4101 = vmatpush2.bf16.msra.mxu0 0
    %4102 = vmatprep.subr.bf16.mxu0 0
    %4103 = vmatpush2.bf16.msra.mxu0 0
    %4104 = vmatprep.subr.bf16.mxu0 0
    %4105 = vmatpush2.bf16.msra.mxu0 0
    %4106 = vmatprep.subr.bf16.mxu0 0
    %4107 = vmatpush2.bf16.msra.mxu0 0
    %4108 = vmatprep.mubr.bf16.mxu0 0
    %4109 = vmatmul.mubr.bf16.gmra.mxu0 %v975
    %v4110 = vpop.f32.mrf.mxu0
    %v4111 = vadd.f32 0.0, %v4110
    %v4112 = vpop.f32.mrf.mxu0
    %v4113 = vpop.f32.mrf.mxu0
    %v4114 = vadd.f32 0.0, %v4113
    %v4115 = vpop.f32.mrf.mxu0
    %4116 = vdwg.mxu0
    %v4133 = vunpack.c.l.b16 %v3886
    %v4134 = vunpack.c.h.b16 %v3886
    %v4135 = vunpack.c.l.b16 %v3887
    %v4136 = vunpack.c.h.b16 %v3887
    %v4137 = vunpack.c.l.b16 %v3888
    %v4138 = vunpack.c.h.b16 %v3888
    %v4139 = vunpack.c.l.b16 %v3889
    %v4140 = vunpack.c.l.b16 %v3890
    %v4141 = vunpack.c.h.b16 %v3890
    %v4142 = vunpack.c.l.b16 %v3891
    %v4143 = vunpack.c.h.b16 %v3891
    %v4144 = vunpack.c.l.b16 %v3892
    %v4145 = vunpack.c.h.b16 %v3892
    %v4146 = vunpack.c.l.b16 %v3893
    %v4147 = vunpack.c.l.b16 %v3894
    %v4148 = vunpack.c.h.b16 %v3894
    %v4149 = vunpack.c.l.b16 %v3895
    %v4150 = vunpack.c.h.b16 %v3895
    %v4151 = vunpack.c.l.b16 %v3896
    %v4152 = vunpack.c.h.b16 %v3896
    %v4153 = vunpack.c.l.b16 %v3897
    %v4154 = vunpack.c.l.b16 %v3898
    %v4155 = vunpack.c.h.b16 %v3898
    %v4156 = vunpack.c.l.b16 %v3899
    %v4157 = vunpack.c.h.b16 %v3899
    %v4158 = vunpack.c.l.b16 %v3900
    %v4159 = vunpack.c.h.b16 %v3900
    %v4160 = vunpack.c.l.b16 %v3901
    %v4161 = vpack.c.b16 %v4140, %v4133
    %v4162 = vpack.c.b16 %v4141, %v4134
    %v4163 = vpack.c.b16 %v4142, %v4135
    %v4164 = vpack.c.b16 %v4143, %v4136
    %v4165 = vpack.c.b16 %v4144, %v4137
    %v4166 = vpack.c.b16 %v4145, %v4138
    %v4167 = vpack.c.b16 %v4146, %v4139
    %v4168 = vpack.c.b16 %v4154, %v4147
    %v4169 = vpack.c.b16 %v4155, %v4148
    %v4170 = vpack.c.b16 %v4156, %v4149
    %v4171 = vpack.c.b16 %v4157, %v4150
    %v4172 = vpack.c.b16 %v4158, %v4151
    %v4173 = vpack.c.b16 %v4159, %v4152
    %v4174 = vpack.c.b16 %v4160, %v4153
    %v4190 = vsel %vm1205, %v3902, 0
    %4192 = vmatprep.subr.bf16.mxu0 0
    %4193 = vmatpush1.bf16.msra.mxu0 0
    %4194 = vmatprep.subr.bf16.mxu0 0
    %4195 = vmatpush1.bf16.msra.mxu0 0
    %4196 = vmatprep.subr.bf16.mxu0 0
    %4197 = vmatpush1.bf16.msra.mxu0 0
    %4198 = vmatprep.subr.bf16.mxu0 0
    %4199 = vmatpush1.bf16.msra.mxu0 0
    %4200 = vmatprep.subr.bf16.mxu0 0
    %4201 = vmatpush1.bf16.msra.mxu0 0
    %4202 = vmatprep.subr.bf16.mxu0 0
    %4203 = vmatpush1.bf16.msra.mxu0 0
    %4204 = vmatprep.subr.bf16.mxu0 %v4169
    %4205 = vmatpush1.bf16.msra.mxu0 %v4168
    %4206 = vmatprep.subr.bf16.mxu0 %v4162
    %4207 = vmatpush1.bf16.msra.mxu0 %v4161
    %4208 = vmatprep.subr.bf16.mxu0 0
    %4209 = vmatpush2.bf16.msra.mxu0 0
    %4210 = vmatprep.subr.bf16.mxu0 0
    %4211 = vmatpush2.bf16.msra.mxu0 0
    %4212 = vmatprep.subr.bf16.mxu0 0
    %4213 = vmatpush2.bf16.msra.mxu0 0
    %4214 = vmatprep.subr.bf16.mxu0 0
    %4215 = vmatpush2.bf16.msra.mxu0 0
    %4216 = vmatprep.subr.bf16.mxu0 0
    %4217 = vmatpush2.bf16.msra.mxu0 0
    %4218 = vmatprep.subr.bf16.mxu0 0
    %4219 = vmatpush2.bf16.msra.mxu0 0
    %4220 = vmatprep.subr.bf16.mxu0 0
    %4221 = vmatpush2.bf16.msra.mxu0 0
    %4222 = vmatprep.subr.bf16.mxu0 0
    %4223 = vmatpush2.bf16.msra.mxu0 0
    %4224 = vmatprep.mubr.bf16.mxu0 0
    %4225 = vmatmul.mubr.bf16.gmra.mxu0 %v4190
    %v4226 = vpop.f32.mrf.mxu0
    %v4227 = vadd.f32 %v3982, %v4226
    %v4228 = vpop.f32.mrf.mxu0
    %v4229 = vadd.f32 %v3984, %v4228
    %v4230 = vpop.f32.mrf.mxu0
    %v4231 = vadd.f32 %v3986, %v4230
    %v4232 = vpop.f32.mrf.mxu0
    %v4233 = vadd.f32 %v3988, %v4232
    %4234 = vdwg.mxu0
    %4235 = vmatprep.subr.bf16.mxu0 0
    %4236 = vmatpush1.bf16.msra.mxu0 0
    %4237 = vmatprep.subr.bf16.mxu0 0
    %4238 = vmatpush1.bf16.msra.mxu0 0
    %4239 = vmatprep.subr.bf16.mxu0 0
    %4240 = vmatpush1.bf16.msra.mxu0 0
    %4241 = vmatprep.subr.bf16.mxu0 0
    %4242 = vmatpush1.bf16.msra.mxu0 0
    %4243 = vmatprep.subr.bf16.mxu0 0
    %4244 = vmatpush1.bf16.msra.mxu0 0
    %4245 = vmatprep.subr.bf16.mxu0 0
    %4246 = vmatpush1.bf16.msra.mxu0 0
    %4247 = vmatprep.subr.bf16.mxu0 %v4171
    %4248 = vmatpush1.bf16.msra.mxu0 %v4170
    %4249 = vmatprep.subr.bf16.mxu0 %v4164
    %4250 = vmatpush1.bf16.msra.mxu0 %v4163
    %4251 = vmatprep.subr.bf16.mxu0 0
    %4252 = vmatpush2.bf16.msra.mxu0 0
    %4253 = vmatprep.subr.bf16.mxu0 0
    %4254 = vmatpush2.bf16.msra.mxu0 0
    %4255 = vmatprep.subr.bf16.mxu0 0
    %4256 = vmatpush2.bf16.msra.mxu0 0
    %4257 = vmatprep.subr.bf16.mxu0 0
    %4258 = vmatpush2.bf16.msra.mxu0 0
    %4259 = vmatprep.subr.bf16.mxu0 0
    %4260 = vmatpush2.bf16.msra.mxu0 0
    %4261 = vmatprep.subr.bf16.mxu0 0
    %4262 = vmatpush2.bf16.msra.mxu0 0
    %4263 = vmatprep.subr.bf16.mxu0 0
    %4264 = vmatpush2.bf16.msra.mxu0 0
    %4265 = vmatprep.subr.bf16.mxu0 0
    %4266 = vmatpush2.bf16.msra.mxu0 0
    %4267 = vmatprep.mubr.bf16.mxu0 0
    %4268 = vmatmul.mubr.bf16.gmra.mxu0 %v4190
    %v4269 = vpop.f32.mrf.mxu0
    %v4270 = vadd.f32 %v4025, %v4269
    %v4271 = vpop.f32.mrf.mxu0
    %v4272 = vadd.f32 %v4027, %v4271
    %v4273 = vpop.f32.mrf.mxu0
    %v4274 = vadd.f32 %v4029, %v4273
    %v4275 = vpop.f32.mrf.mxu0
    %v4276 = vadd.f32 %v4031, %v4275
    %4277 = vdwg.mxu0
    %4278 = vmatprep.subr.bf16.mxu0 0
    %4279 = vmatpush1.bf16.msra.mxu0 0
    %4280 = vmatprep.subr.bf16.mxu0 0
    %4281 = vmatpush1.bf16.msra.mxu0 0
    %4282 = vmatprep.subr.bf16.mxu0 0
    %4283 = vmatpush1.bf16.msra.mxu0 0
    %4284 = vmatprep.subr.bf16.mxu0 0
    %4285 = vmatpush1.bf16.msra.mxu0 0
    %4286 = vmatprep.subr.bf16.mxu0 0
    %4287 = vmatpush1.bf16.msra.mxu0 0
    %4288 = vmatprep.subr.bf16.mxu0 0
    %4289 = vmatpush1.bf16.msra.mxu0 0
    %4290 = vmatprep.subr.bf16.mxu0 %v4173
    %4291 = vmatpush1.bf16.msra.mxu0 %v4172
    %4292 = vmatprep.subr.bf16.mxu0 %v4166
    %4293 = vmatpush1.bf16.msra.mxu0 %v4165
    %4294 = vmatprep.subr.bf16.mxu0 0
    %4295 = vmatpush2.bf16.msra.mxu0 0
    %4296 = vmatprep.subr.bf16.mxu0 0
    %4297 = vmatpush2.bf16.msra.mxu0 0
    %4298 = vmatprep.subr.bf16.mxu0 0
    %4299 = vmatpush2.bf16.msra.mxu0 0
    %4300 = vmatprep.subr.bf16.mxu0 0
    %4301 = vmatpush2.bf16.msra.mxu0 0
    %4302 = vmatprep.subr.bf16.mxu0 0
    %4303 = vmatpush2.bf16.msra.mxu0 0
    %4304 = vmatprep.subr.bf16.mxu0 0
    %4305 = vmatpush2.bf16.msra.mxu0 0
    %4306 = vmatprep.subr.bf16.mxu0 0
    %4307 = vmatpush2.bf16.msra.mxu0 0
    %4308 = vmatprep.subr.bf16.mxu0 0
    %4309 = vmatpush2.bf16.msra.mxu0 0
    %4310 = vmatprep.mubr.bf16.mxu0 0
    %4311 = vmatmul.mubr.bf16.gmra.mxu0 %v4190
    %v4312 = vpop.f32.mrf.mxu0
    %v4313 = vadd.f32 %v4068, %v4312
    %v4314 = vpop.f32.mrf.mxu0
    %v4315 = vadd.f32 %v4070, %v4314
    %v4316 = vpop.f32.mrf.mxu0
    %v4317 = vadd.f32 %v4072, %v4316
    %v4318 = vpop.f32.mrf.mxu0
    %v4319 = vadd.f32 %v4074, %v4318
    %4320 = vdwg.mxu0
    %4321 = vmatprep.subr.bf16.mxu0 0
    %4322 = vmatpush1.bf16.msra.mxu0 0
    %4323 = vmatprep.subr.bf16.mxu0 0
    %4324 = vmatpush1.bf16.msra.mxu0 0
    %4325 = vmatprep.subr.bf16.mxu0 0
    %4326 = vmatpush1.bf16.msra.mxu0 0
    %4327 = vmatprep.subr.bf16.mxu0 0
    %4328 = vmatpush1.bf16.msra.mxu0 0
    %4329 = vmatprep.subr.bf16.mxu0 0
    %4330 = vmatpush1.bf16.msra.mxu0 0
    %4331 = vmatprep.subr.bf16.mxu0 0
    %4332 = vmatpush1.bf16.msra.mxu0 0
    %4333 = vmatprep.subr.bf16.mxu0 0
    %4334 = vmatpush1.bf16.msra.mxu0 %v4174
    %4335 = vmatprep.subr.bf16.mxu0 0
    %4336 = vmatpush1.bf16.msra.mxu0 %v4167
    %4337 = vmatprep.subr.bf16.mxu0 0
    %4338 = vmatpush2.bf16.msra.mxu0 0
    %4339 = vmatprep.subr.bf16.mxu0 0
    %4340 = vmatpush2.bf16.msra.mxu0 0
    %4341 = vmatprep.subr.bf16.mxu0 0
    %4342 = vmatpush2.bf16.msra.mxu0 0
    %4343 = vmatprep.subr.bf16.mxu0 0
    %4344 = vmatpush2.bf16.msra.mxu0 0
    %4345 = vmatprep.subr.bf16.mxu0 0
    %4346 = vmatpush2.bf16.msra.mxu0 0
    %4347 = vmatprep.subr.bf16.mxu0 0
    %4348 = vmatpush2.bf16.msra.mxu0 0
    %4349 = vmatprep.subr.bf16.mxu0 0
    %4350 = vmatpush2.bf16.msra.mxu0 0
    %4351 = vmatprep.subr.bf16.mxu0 0
    %4352 = vmatpush2.bf16.msra.mxu0 0
    %4353 = vmatprep.mubr.bf16.mxu0 0
    %4354 = vmatmul.mubr.bf16.gmra.mxu0 %v4190
    %v4355 = vpop.f32.mrf.mxu0
    %v4356 = vadd.f32 %v4111, %v4355
    %v4357 = vpop.f32.mrf.mxu0
    %v4358 = vpop.f32.mrf.mxu0
    %v4359 = vadd.f32 %v4114, %v4358
    %v4360 = vpop.f32.mrf.mxu0
    %4361 = vdwg.mxu0
    %v4362 = vld [vmem:[#allocation27] sm:$0x7f]
    %v4363 = vld [vmem:[#allocation28] sm:$0x7f]
    %v4364 = vadd.f32 %v4227, %v4231
    %v4365 = vrot.slane %v4364, 4
    %v4366 = vadd.f32 %v4364, %v4365
    %v4367 = vrot.slane %v4366, 2
    %v4368 = vadd.f32 %v4366, %v4367
    %v4369 = vrot.slane %v4368, 1
    %v4370 = vadd.f32 %v4368, %v4369
    %v4371 = vadd.f32 %v4229, %v4233
    %v4372 = vrot.slane %v4371, 4
    %v4373 = vadd.f32 %v4371, %v4372
    %v4374 = vrot.slane %v4373, 2
    %v4375 = vadd.f32 %v4373, %v4374
    %v4376 = vrot.slane %v4375, 1
    %v4377 = vadd.f32 %v4375, %v4376
    %v4378 = vadd.f32 %v4270, %v4274
    %v4379 = vrot.slane %v4378, 4
    %v4380 = vadd.f32 %v4378, %v4379
    %v4381 = vrot.slane %v4380, 2
    %v4382 = vadd.f32 %v4380, %v4381
    %v4383 = vrot.slane %v4382, 1
    %v4384 = vadd.f32 %v4382, %v4383
    %v4385 = vadd.f32 %v4272, %v4276
    %v4386 = vrot.slane %v4385, 4
    %v4387 = vadd.f32 %v4385, %v4386
    %v4388 = vrot.slane %v4387, 2
    %v4389 = vadd.f32 %v4387, %v4388
    %v4390 = vrot.slane %v4389, 1
    %v4391 = vadd.f32 %v4389, %v4390
    %v4392 = vadd.f32 %v4313, %v4317
    %v4393 = vrot.slane %v4392, 4
    %v4394 = vadd.f32 %v4392, %v4393
    %v4395 = vrot.slane %v4394, 2
    %v4396 = vadd.f32 %v4394, %v4395
    %v4397 = vrot.slane %v4396, 1
    %v4398 = vadd.f32 %v4396, %v4397
    %v4399 = vadd.f32 %v4315, %v4319
    %v4400 = vrot.slane %v4399, 4
    %v4401 = vadd.f32 %v4399, %v4400
    %v4402 = vrot.slane %v4401, 2
    %v4403 = vadd.f32 %v4401, %v4402
    %v4404 = vrot.slane %v4403, 1
    %v4405 = vadd.f32 %v4403, %v4404
    %v4406 = vsel %vm1205, %v4356, 0.0
    %v4407 = vsel %vm1205, %v4359, 0.0
    %v4408 = vadd.f32 %v4406, %v4407
    %v4409 = vrot.slane %v4408, 4
    %v4410 = vadd.f32 %v4408, %v4409
    %v4411 = vrot.slane %v4410, 2
    %v4412 = vadd.f32 %v4410, %v4411
    %v4413 = vrot.slane %v4412, 1
    %v4414 = vadd.f32 %v4412, %v4413
    %v4415 = vmul.f32 %v4370, %v1215
    %v4416 = vmul.f32 %v4377, %v1215
    %v4417 = vmul.f32 %v4384, %v1215
    %v4418 = vmul.f32 %v4391, %v1215
    %v4419 = vmul.f32 %v4398, %v1215
    %v4420 = vmul.f32 %v4405, %v1215
    %v4421 = vmul.f32 %v4414, %v1215
    %v4422 = vsub.f32 %v4227, %v4415
    %v4423 = vsub.f32 %v4229, %v4416
    %v4424 = vsub.f32 %v4270, %v4417
    %v4425 = vsub.f32 %v4272, %v4418
    %v4426 = vsub.f32 %v4313, %v4419
    %v4427 = vsub.f32 %v4315, %v4420
    %v4428 = vsub.f32 %v4356, %v4421
    %v4429 = vsub.f32 %v4231, %v4415
    %v4430 = vsub.f32 %v4233, %v4416
    %v4431 = vsub.f32 %v4274, %v4417
    %v4432 = vsub.f32 %v4276, %v4418
    %v4433 = vsub.f32 %v4317, %v4419
    %v4434 = vsub.f32 %v4319, %v4420
    %v4435 = vsub.f32 %v4359, %v4421
    %v4436 = vmul.f32 %v4422, %v4422
    %v4437 = vmul.f32 %v4423, %v4423
    %v4438 = vmul.f32 %v4424, %v4424
    %v4439 = vmul.f32 %v4425, %v4425
    %v4440 = vmul.f32 %v4426, %v4426
    %v4441 = vmul.f32 %v4427, %v4427
    %v4442 = vmul.f32 %v4428, %v4428
    %v4443 = vmul.f32 %v4429, %v4429
    %v4444 = vmul.f32 %v4430, %v4430
    %v4445 = vmul.f32 %v4431, %v4431
    %v4446 = vmul.f32 %v4432, %v4432
    %v4447 = vmul.f32 %v4433, %v4433
    %v4448 = vmul.f32 %v4434, %v4434
    %v4449 = vmul.f32 %v4435, %v4435
    %v4450 = vadd.f32 %v4436, %v4443
    %v4451 = vrot.slane %v4450, 4
    %v4452 = vadd.f32 %v4450, %v4451
    %v4453 = vrot.slane %v4452, 2
    %v4454 = vadd.f32 %v4452, %v4453
    %v4455 = vrot.slane %v4454, 1
    %v4456 = vadd.f32 %v4454, %v4455
    %v4457 = vadd.f32 %v4437, %v4444
    %v4458 = vrot.slane %v4457, 4
    %v4459 = vadd.f32 %v4457, %v4458
    %v4460 = vrot.slane %v4459, 2
    %v4461 = vadd.f32 %v4459, %v4460
    %v4462 = vrot.slane %v4461, 1
    %v4463 = vadd.f32 %v4461, %v4462
    %v4464 = vadd.f32 %v4438, %v4445
    %v4465 = vrot.slane %v4464, 4
    %v4466 = vadd.f32 %v4464, %v4465
    %v4467 = vrot.slane %v4466, 2
    %v4468 = vadd.f32 %v4466, %v4467
    %v4469 = vrot.slane %v4468, 1
    %v4470 = vadd.f32 %v4468, %v4469
    %v4471 = vadd.f32 %v4439, %v4446
    %v4472 = vrot.slane %v4471, 4
    %v4473 = vadd.f32 %v4471, %v4472
    %v4474 = vrot.slane %v4473, 2
    %v4475 = vadd.f32 %v4473, %v4474
    %v4476 = vrot.slane %v4475, 1
    %v4477 = vadd.f32 %v4475, %v4476
    %v4478 = vadd.f32 %v4440, %v4447
    %v4479 = vrot.slane %v4478, 4
    %v4480 = vadd.f32 %v4478, %v4479
    %v4481 = vrot.slane %v4480, 2
    %v4482 = vadd.f32 %v4480, %v4481
    %v4483 = vrot.slane %v4482, 1
    %v4484 = vadd.f32 %v4482, %v4483
    %v4485 = vadd.f32 %v4441, %v4448
    %v4486 = vrot.slane %v4485, 4
    %v4487 = vadd.f32 %v4485, %v4486
    %v4488 = vrot.slane %v4487, 2
    %v4489 = vadd.f32 %v4487, %v4488
    %v4490 = vrot.slane %v4489, 1
    %v4491 = vadd.f32 %v4489, %v4490
    %v4492 = vsel %vm1205, %v4442, 0.0
    %v4493 = vsel %vm1205, %v4449, 0.0
    %v4494 = vadd.f32 %v4492, %v4493
    %v4495 = vrot.slane %v4494, 4
    %v4496 = vadd.f32 %v4494, %v4495
    %v4497 = vrot.slane %v4496, 2
    %v4498 = vadd.f32 %v4496, %v4497
    %v4499 = vrot.slane %v4498, 1
    %v4500 = vadd.f32 %v4498, %v4499
    %v4501 = vmul.f32 %v4456, %v1215
    %v4502 = vmul.f32 %v4463, %v1215
    %v4503 = vmul.f32 %v4470, %v1215
    %v4504 = vmul.f32 %v4477, %v1215
    %v4505 = vmul.f32 %v4484, %v1215
    %v4506 = vmul.f32 %v4491, %v1215
    %v4507 = vmul.f32 %v4500, %v1215
    %v4508 = vadd.f32 %v4501, 1e-05
    %v4509 = vadd.f32 %v4502, 1e-05
    %v4510 = vadd.f32 %v4503, 1e-05
    %v4511 = vadd.f32 %v4504, 1e-05
    %v4512 = vadd.f32 %v4505, 1e-05
    %v4513 = vadd.f32 %v4506, 1e-05
    %v4514 = vadd.f32 %v4507, 1e-05
    %v4515 = vrsqrt.pop %v4508
    %v4516 = vrsqrt.pop %v4509
    %v4517 = vrsqrt.pop %v4510
    %v4518 = vrsqrt.pop %v4511
    %v4519 = vrsqrt.pop %v4512
    %v4520 = vrsqrt.pop %v4513
    %v4521 = vrsqrt.pop %v4514
    %v4522 = vmul.f32 %v4422, %v4515
    %v4523 = vmul.f32 %v4423, %v4516
    %v4524 = vmul.f32 %v4424, %v4517
    %v4525 = vmul.f32 %v4425, %v4518
    %v4526 = vmul.f32 %v4426, %v4519
    %v4527 = vmul.f32 %v4427, %v4520
    %v4528 = vmul.f32 %v4428, %v4521
    %v4529 = vmul.f32 %v4429, %v4515
    %v4530 = vmul.f32 %v4430, %v4516
    %v4531 = vmul.f32 %v4431, %v4517
    %v4532 = vmul.f32 %v4432, %v4518
    %v4533 = vmul.f32 %v4433, %v4519
    %v4534 = vmul.f32 %v4434, %v4520
    %v4535 = vmul.f32 %v4435, %v4521
    %v4537 = vlaneseq
    %v4538 = vshrl.u32 %v4537, 7
    %v4539 = vsub.s32 0, %v4538
    %v4540 = vrot.slane %v4362, %v4539
    %v4541 = vlaneseq
    %v4542 = vshrl.u32 %v4541, 7
    %v4543 = vsub.s32 1, %v4542
    %v4544 = vrot.slane %v4362, %v4543
    %v4545 = vlaneseq
    %v4546 = vshrl.u32 %v4545, 7
    %v4547 = vsub.s32 2, %v4546
    %v4548 = vrot.slane %v4362, %v4547
    %v4549 = vlaneseq
    %v4550 = vshrl.u32 %v4549, 7
    %v4551 = vsub.s32 3, %v4550
    %v4552 = vrot.slane %v4362, %v4551
    %v4553 = vlaneseq
    %v4554 = vshrl.u32 %v4553, 7
    %v4555 = vsub.s32 4, %v4554
    %v4556 = vrot.slane %v4362, %v4555
    %v4557 = vlaneseq
    %v4558 = vshrl.u32 %v4557, 7
    %v4559 = vsub.s32 5, %v4558
    %v4560 = vrot.slane %v4362, %v4559
    %v4561 = vlaneseq
    %v4562 = vshrl.u32 %v4561, 7
    %v4563 = vsub.s32 6, %v4562
    %v4564 = vrot.slane %v4362, %v4563
    %v4572 = vmul.f32 %v4522, %v4540
    %v4573 = vmul.f32 %v4523, %v4544
    %v4574 = vmul.f32 %v4524, %v4548
    %v4575 = vmul.f32 %v4525, %v4552
    %v4576 = vmul.f32 %v4526, %v4556
    %v4577 = vmul.f32 %v4527, %v4560
    %v4578 = vmul.f32 %v4528, %v4564
    %v4579 = vmul.f32 %v4529, %v4540
    %v4580 = vmul.f32 %v4530, %v4544
    %v4581 = vmul.f32 %v4531, %v4548
    %v4582 = vmul.f32 %v4532, %v4552
    %v4583 = vmul.f32 %v4533, %v4556
    %v4584 = vmul.f32 %v4534, %v4560
    %v4585 = vmul.f32 %v4535, %v4564
    %v4587 = vlaneseq
    %v4588 = vshrl.u32 %v4587, 7
    %v4589 = vsub.s32 0, %v4588
    %v4590 = vrot.slane %v4363, %v4589
    %v4591 = vlaneseq
    %v4592 = vshrl.u32 %v4591, 7
    %v4593 = vsub.s32 1, %v4592
    %v4594 = vrot.slane %v4363, %v4593
    %v4595 = vlaneseq
    %v4596 = vshrl.u32 %v4595, 7
    %v4597 = vsub.s32 2, %v4596
    %v4598 = vrot.slane %v4363, %v4597
    %v4599 = vlaneseq
    %v4600 = vshrl.u32 %v4599, 7
    %v4601 = vsub.s32 3, %v4600
    %v4602 = vrot.slane %v4363, %v4601
    %v4603 = vlaneseq
    %v4604 = vshrl.u32 %v4603, 7
    %v4605 = vsub.s32 4, %v4604
    %v4606 = vrot.slane %v4363, %v4605
    %v4607 = vlaneseq
    %v4608 = vshrl.u32 %v4607, 7
    %v4609 = vsub.s32 5, %v4608
    %v4610 = vrot.slane %v4363, %v4609
    %v4611 = vlaneseq
    %v4612 = vshrl.u32 %v4611, 7
    %v4613 = vsub.s32 6, %v4612
    %v4614 = vrot.slane %v4363, %v4613
    %v4622 = vadd.f32 %v4572, %v4590
    %v4623 = vadd.f32 %v4573, %v4594
    %v4624 = vadd.f32 %v4574, %v4598
    %v4625 = vadd.f32 %v4575, %v4602
    %v4626 = vadd.f32 %v4576, %v4606
    %v4627 = vadd.f32 %v4577, %v4610
    %v4628 = vadd.f32 %v4578, %v4614
    %v4629 = vadd.f32 %v4579, %v4590
    %v4630 = vadd.f32 %v4580, %v4594
    %v4631 = vadd.f32 %v4581, %v4598
    %v4632 = vadd.f32 %v4582, %v4602
    %v4633 = vadd.f32 %v4583, %v4606
    %v4634 = vadd.f32 %v4584, %v4610
    %v4635 = vadd.f32 %v4585, %v4614
    %vm4636 = vcmp.gt.f32.partialorder %v4622, 0.0
    %vm4637 = vcmp.gt.f32.partialorder %v4623, 0.0
    %vm4638 = vcmp.gt.f32.partialorder %v4624, 0.0
    %vm4639 = vcmp.gt.f32.partialorder %v4625, 0.0
    %vm4640 = vcmp.gt.f32.partialorder %v4626, 0.0
    %vm4641 = vcmp.gt.f32.partialorder %v4627, 0.0
    %vm4642 = vcmp.gt.f32.partialorder %v4628, 0.0
    %vm4643 = vcmp.gt.f32.partialorder %v4629, 0.0
    %vm4644 = vcmp.gt.f32.partialorder %v4630, 0.0
    %vm4645 = vcmp.gt.f32.partialorder %v4631, 0.0
    %vm4646 = vcmp.gt.f32.partialorder %v4632, 0.0
    %vm4647 = vcmp.gt.f32.partialorder %v4633, 0.0
    %vm4648 = vcmp.gt.f32.partialorder %v4634, 0.0
    %vm4649 = vcmp.gt.f32.partialorder %v4635, 0.0
    %v4650 = vmul.f32 %v4622, 0.01
    %v4651 = vmul.f32 %v4623, 0.01
    %v4652 = vmul.f32 %v4624, 0.01
    %v4653 = vmul.f32 %v4625, 0.01
    %v4654 = vmul.f32 %v4626, 0.01
    %v4655 = vmul.f32 %v4627, 0.01
    %v4656 = vmul.f32 %v4628, 0.01
    %v4657 = vmul.f32 %v4629, 0.01
    %v4658 = vmul.f32 %v4630, 0.01
    %v4659 = vmul.f32 %v4631, 0.01
    %v4660 = vmul.f32 %v4632, 0.01
    %v4661 = vmul.f32 %v4633, 0.01
    %v4662 = vmul.f32 %v4634, 0.01
    %v4663 = vmul.f32 %v4635, 0.01
    %v4664 = vsel %vm4636, %v4622, %v4650
    %v4665 = vsel %vm4637, %v4623, %v4651
    %v4666 = vsel %vm4638, %v4624, %v4652
    %v4667 = vsel %vm4639, %v4625, %v4653
    %v4668 = vsel %vm4640, %v4626, %v4654
    %v4669 = vsel %vm4641, %v4627, %v4655
    %v4670 = vsel %vm4642, %v4628, %v4656
    %v4671 = vsel %vm4643, %v4629, %v4657
    %v4672 = vsel %vm4644, %v4630, %v4658
    %v4673 = vsel %vm4645, %v4631, %v4659
    %v4674 = vsel %vm4646, %v4632, %v4660
    %v4675 = vsel %vm4647, %v4633, %v4661
    %v4676 = vsel %vm4648, %v4634, %v4662
    %v4677 = vsel %vm4649, %v4635, %v4663
    %v4678 = vld [vmem:[#allocation30] sm:$0xff]
    %v4679 = vld [vmem:[#allocation30 + $0x8] sm:$0xff]
    %v4680 = vld [vmem:[#allocation30 + $0x10] sm:$0xff]
    %v4681 = vld [vmem:[#allocation30 + $0x18] sm:$0xf]
    %v4682 = vld [vmem:[#allocation30 + $0x1c] sm:$0xff]
    %v4683 = vld [vmem:[#allocation30 + $0x24] sm:$0xff]
    %v4684 = vld [vmem:[#allocation30 + $0x2c] sm:$0xff]
    %v4685 = vld [vmem:[#allocation30 + $0x34] sm:$0xf]
    %v4686 = vunpack.c.l.bf16 %v4678
    %v4687 = vunpack.c.h.bf16 %v4678
    %v4688 = vunpack.c.l.bf16 %v4679
    %v4689 = vunpack.c.h.bf16 %v4679
    %v4690 = vunpack.c.l.bf16 %v4680
    %v4691 = vunpack.c.h.bf16 %v4680
    %v4692 = vunpack.c.l.bf16 %v4681
    %v4693 = vunpack.c.l.bf16 %v4682
    %v4694 = vunpack.c.h.bf16 %v4682
    %v4695 = vunpack.c.l.bf16 %v4683
    %v4696 = vunpack.c.h.bf16 %v4683
    %v4697 = vunpack.c.l.bf16 %v4684
    %v4698 = vunpack.c.h.bf16 %v4684
    %v4699 = vunpack.c.l.bf16 %v4685
    %v4700 = vmul.f32 %v4664, %v4686
    %v4701 = vmul.f32 %v4665, %v4687
    %v4702 = vmul.f32 %v4666, %v4688
    %v4703 = vmul.f32 %v4667, %v4689
    %v4704 = vmul.f32 %v4668, %v4690
    %v4705 = vmul.f32 %v4669, %v4691
    %v4706 = vmul.f32 %v4670, %v4692
    %v4707 = vmul.f32 %v4671, %v4693
    %v4708 = vmul.f32 %v4672, %v4694
    %v4709 = vmul.f32 %v4673, %v4695
    %v4710 = vmul.f32 %v4674, %v4696
    %v4711 = vmul.f32 %v4675, %v4697
    %v4712 = vmul.f32 %v4676, %v4698
    %v4713 = vmul.f32 %v4677, %v4699
    %s4714 = sshll.u32 %s1516, 4
    %4715 = dma.done %s519, %s4714
    %v4716 = vld [vmem:[#allocation4] sm:$0xff]
    %v4717 = vld [vmem:[#allocation4 + $0x8] sm:$0xff]
    %v4718 = vld [vmem:[#allocation4 + $0x10] sm:$0xff]
    %v4719 = vld [vmem:[#allocation4 + $0x18] sm:$0xff]
    %v4720 = vld [vmem:[#allocation4 + $0x20] sm:$0xff]
    %v4721 = vld [vmem:[#allocation4 + $0x28] sm:$0xff]
    %v4722 = vld [vmem:[#allocation4 + $0x30] sm:$0xff]
    %v4723 = vld [vmem:[#allocation4 + $0x38] sm:$0xff]
    %v4724 = vld [vmem:[#allocation4 + $0x40] sm:$0xff]
    %v4725 = vld [vmem:[#allocation4 + $0x48] sm:$0xff]
    %v4726 = vld [vmem:[#allocation4 + $0x50] sm:$0xff]
    %v4727 = vld [vmem:[#allocation4 + $0x58] sm:$0xff]
    %v4728 = vld [vmem:[#allocation4 + $0x60] sm:$0xff]
    %v4729 = vld [vmem:[#allocation4 + $0x68] sm:$0xff]
    %v4730 = vld [vmem:[#allocation4 + $0x70] sm:$0xff]
    %v4731 = vld [vmem:[#allocation4 + $0x78] sm:$0xff]
    %v4732 = vld [vmem:[#allocation4 + $0x80] sm:$0xff]
    %v4733 = vld [vmem:[#allocation4 + $0x88] sm:$0xff]
    %v4734 = vld [vmem:[#allocation4 + $0x90] sm:$0xff]
    %v4735 = vld [vmem:[#allocation4 + $0x98] sm:$0xff]
    %v4736 = vld [vmem:[#allocation4 + $0xa0] sm:$0xff]
    %v4737 = vld [vmem:[#allocation4 + $0xa8] sm:$0xff]
    %v4738 = vld [vmem:[#allocation4 + $0xb0] sm:$0xff]
    %v4739 = vld [vmem:[#allocation4 + $0xb8] sm:$0xff]
    %v4740 = vld [vmem:[#allocation4 + $0xc0] sm:$0xff]
    %v4741 = vld [vmem:[#allocation4 + $0xc8] sm:$0xff]
    %v4742 = vld [vmem:[#allocation4 + $0xd0] sm:$0xff]
    %v4743 = vld [vmem:[#allocation4 + $0xd8] sm:$0xff]
    %v4744 = vld [vmem:[#allocation4 + $0xe0] sm:$0xff]
    %v4745 = vld [vmem:[#allocation4 + $0xe8] sm:$0xff]
    %v4746 = vld [vmem:[#allocation4 + $0xf0] sm:$0xff]
    %v4747 = vld [vmem:[#allocation4 + $0xf8] sm:$0xff]
    %v4748 = vld [vmem:[#allocation4 + $0x100] sm:$0xff]
    %v4749 = vld [vmem:[#allocation4 + $0x108] sm:$0xff]
    %v4750 = vld [vmem:[#allocation4 + $0x110] sm:$0xff]
    %v4751 = vld [vmem:[#allocation4 + $0x118] sm:$0xff]
    %v4752 = vld [vmem:[#allocation4 + $0x120] sm:$0xff]
    %v4753 = vld [vmem:[#allocation4 + $0x128] sm:$0xff]
    %v4754 = vld [vmem:[#allocation4 + $0x130] sm:$0xff]
    %v4755 = vld [vmem:[#allocation4 + $0x138] sm:$0xff]
    %v4756 = vld [vmem:[#allocation4 + $0x140] sm:$0xff]
    %v4757 = vld [vmem:[#allocation4 + $0x148] sm:$0xff]
    %v4758 = vld [vmem:[#allocation4 + $0x150] sm:$0xff]
    %v4759 = vld [vmem:[#allocation4 + $0x158] sm:$0xff]
    %v4760 = vld [vmem:[#allocation4 + $0x160] sm:$0xff]
    %v4761 = vld [vmem:[#allocation4 + $0x168] sm:$0xff]
    %v4762 = vld [vmem:[#allocation4 + $0x170] sm:$0xff]
    %v4763 = vld [vmem:[#allocation4 + $0x178] sm:$0xff]
    %v4764 = vld [vmem:[#allocation4 + $0x180] sm:$0xff]
    %v4765 = vld [vmem:[#allocation4 + $0x188] sm:$0xff]
    %v4766 = vld [vmem:[#allocation4 + $0x190] sm:$0xff]
    %v4767 = vld [vmem:[#allocation4 + $0x198] sm:$0xff]
    %v4768 = vld [vmem:[#allocation4 + $0x1a0] sm:$0xff]
    %v4769 = vld [vmem:[#allocation4 + $0x1a8] sm:$0xff]
    %v4770 = vld [vmem:[#allocation4 + $0x1b0] sm:$0xff]
    %v4771 = vld [vmem:[#allocation4 + $0x1b8] sm:$0xff]
    %v4772 = vld [vmem:[#allocation4 + $0x1c0] sm:$0xff]
    %v4773 = vld [vmem:[#allocation4 + $0x1c8] sm:$0xff]
    %v4774 = vld [vmem:[#allocation4 + $0x1d0] sm:$0xff]
    %v4775 = vld [vmem:[#allocation4 + $0x1d8] sm:$0xff]
    %v4776 = vld [vmem:[#allocation4 + $0x1e0] sm:$0xff]
    %v4777 = vld [vmem:[#allocation4 + $0x1e8] sm:$0xff]
    %v4778 = vld [vmem:[#allocation4 + $0x1f0] sm:$0xff]
    %v4779 = vld [vmem:[#allocation4 + $0x1f8] sm:$0xff]
    %v4780 = vld [vmem:[#allocation4 + $0x200] sm:$0xff]
    %v4781 = vld [vmem:[#allocation4 + $0x208] sm:$0xff]
    %v4782 = vld [vmem:[#allocation4 + $0x210] sm:$0xff]
    %v4783 = vld [vmem:[#allocation4 + $0x218] sm:$0xff]
    %v4784 = vld [vmem:[#allocation4 + $0x220] sm:$0xff]
    %v4785 = vld [vmem:[#allocation4 + $0x228] sm:$0xff]
    %v4786 = vld [vmem:[#allocation4 + $0x230] sm:$0xff]
    %v4787 = vld [vmem:[#allocation4 + $0x238] sm:$0xff]
    %v4788 = vld [vmem:[#allocation4 + $0x240] sm:$0xff]
    %v4789 = vld [vmem:[#allocation4 + $0x248] sm:$0xff]
    %v4790 = vld [vmem:[#allocation4 + $0x250] sm:$0xff]
    %v4791 = vld [vmem:[#allocation4 + $0x258] sm:$0xff]
    %v4792 = vld [vmem:[#allocation4 + $0x260] sm:$0xff]
    %v4793 = vld [vmem:[#allocation4 + $0x268] sm:$0xff]
    %v4794 = vld [vmem:[#allocation4 + $0x270] sm:$0xff]
    %v4795 = vld [vmem:[#allocation4 + $0x278] sm:$0xff]
    %v4796 = vld [vmem:[#allocation4 + $0x280] sm:$0xff]
    %v4797 = vld [vmem:[#allocation4 + $0x288] sm:$0xff]
    %v4798 = vld [vmem:[#allocation4 + $0x290] sm:$0xff]
    %v4799 = vld [vmem:[#allocation4 + $0x298] sm:$0xff]
    %v4800 = vld [vmem:[#allocation4 + $0x2a0] sm:$0xff]
    %v4801 = vld [vmem:[#allocation4 + $0x2a8] sm:$0xff]
    %v4802 = vld [vmem:[#allocation4 + $0x2b0] sm:$0xff]
    %v4803 = vld [vmem:[#allocation4 + $0x2b8] sm:$0xff]
    %v4804 = vld [vmem:[#allocation4 + $0x2c0] sm:$0xff]
    %v4805 = vld [vmem:[#allocation4 + $0x2c8] sm:$0xff]
    %v4806 = vld [vmem:[#allocation4 + $0x2d0] sm:$0xff]
    %v4807 = vld [vmem:[#allocation4 + $0x2d8] sm:$0xff]
    %v4808 = vld [vmem:[#allocation4 + $0x2e0] sm:$0xff]
    %v4809 = vld [vmem:[#allocation4 + $0x2e8] sm:$0xff]
    %v4810 = vld [vmem:[#allocation4 + $0x2f0] sm:$0xff]
    %v4811 = vld [vmem:[#allocation4 + $0x2f8] sm:$0xff]
    %v4812 = vld [vmem:[#allocation4 + $0x300] sm:$0xff]
    %v4813 = vld [vmem:[#allocation4 + $0x308] sm:$0xff]
    %v4814 = vld [vmem:[#allocation4 + $0x310] sm:$0xff]
    %v4815 = vld [vmem:[#allocation4 + $0x318] sm:$0xff]
    %v4816 = vld [vmem:[#allocation4 + $0x320] sm:$0xff]
    %v4817 = vld [vmem:[#allocation4 + $0x328] sm:$0xff]
    %v4818 = vld [vmem:[#allocation4 + $0x330] sm:$0xff]
    %v4819 = vld [vmem:[#allocation4 + $0x338] sm:$0xff]
    %v4820 = vld [vmem:[#allocation4 + $0x340] sm:$0xff]
    %v4821 = vld [vmem:[#allocation4 + $0x348] sm:$0xff]
    %v4822 = vld [vmem:[#allocation4 + $0x350] sm:$0xff]
    %v4823 = vld [vmem:[#allocation4 + $0x358] sm:$0xff]
    %v4824 = vld [vmem:[#allocation4 + $0x360] sm:$0xff]
    %v4825 = vld [vmem:[#allocation4 + $0x368] sm:$0xff]
    %v4826 = vld [vmem:[#allocation4 + $0x370] sm:$0xff]
    %v4827 = vld [vmem:[#allocation4 + $0x378] sm:$0xff]
    %v4828 = vld [vmem:[#allocation4 + $0x380] sm:$0xff]
    %v4829 = vld [vmem:[#allocation4 + $0x388] sm:$0xff]
    %v4830 = vld [vmem:[#allocation4 + $0x390] sm:$0xff]
    %v4831 = vld [vmem:[#allocation4 + $0x398] sm:$0xff]
    %v4832 = vld [vmem:[#allocation4 + $0x3a0] sm:$0xff]
    %v4833 = vld [vmem:[#allocation4 + $0x3a8] sm:$0xff]
    %v4834 = vld [vmem:[#allocation4 + $0x3b0] sm:$0xff]
    %v4835 = vld [vmem:[#allocation4 + $0x3b8] sm:$0xff]
    %v4836 = vld [vmem:[#allocation4 + $0x3c0] sm:$0xff]
    %v4837 = vld [vmem:[#allocation4 + $0x3c8] sm:$0xff]
    %v4838 = vld [vmem:[#allocation4 + $0x3d0] sm:$0xff]
    %v4839 = vld [vmem:[#allocation4 + $0x3d8] sm:$0xff]
    %v4840 = vld [vmem:[#allocation4 + $0x3e0] sm:$0xff]
    %v4841 = vld [vmem:[#allocation4 + $0x3e8] sm:$0xff]
    %v4842 = vld [vmem:[#allocation4 + $0x3f0] sm:$0xff]
    %v4843 = vld [vmem:[#allocation4 + $0x3f8] sm:$0xff]
    %v4844 = vld [vmem:[#allocation4 + $0x400] sm:$0xff]
    %v4845 = vld [vmem:[#allocation4 + $0x408] sm:$0xff]
    %v4846 = vld [vmem:[#allocation4 + $0x410] sm:$0xff]
    %v4847 = vld [vmem:[#allocation4 + $0x418] sm:$0xff]
    %v4848 = vld [vmem:[#allocation4 + $0x420] sm:$0xff]
    %v4849 = vld [vmem:[#allocation4 + $0x428] sm:$0xff]
    %v4850 = vld [vmem:[#allocation4 + $0x430] sm:$0xff]
    %v4851 = vld [vmem:[#allocation4 + $0x438] sm:$0xff]
    %v4852 = vld [vmem:[#allocation4 + $0x440] sm:$0xff]
    %v4853 = vld [vmem:[#allocation4 + $0x448] sm:$0xff]
    %v4854 = vld [vmem:[#allocation4 + $0x450] sm:$0xff]
    %v4855 = vld [vmem:[#allocation4 + $0x458] sm:$0xff]
    %v4856 = vld [vmem:[#allocation4 + $0x460] sm:$0xff]
    %v4857 = vld [vmem:[#allocation4 + $0x468] sm:$0xff]
    %v4858 = vld [vmem:[#allocation4 + $0x470] sm:$0xff]
    %v4859 = vld [vmem:[#allocation4 + $0x478] sm:$0xff]
    %v4860 = vld [vmem:[#allocation4 + $0x480] sm:$0xff]
    %v4861 = vld [vmem:[#allocation4 + $0x488] sm:$0xff]
    %v4862 = vld [vmem:[#allocation4 + $0x490] sm:$0xff]
    %v4863 = vld [vmem:[#allocation4 + $0x498] sm:$0xff]
    %v4864 = vld [vmem:[#allocation4 + $0x4a0] sm:$0xff]
    %v4865 = vld [vmem:[#allocation4 + $0x4a8] sm:$0xff]
    %v4866 = vld [vmem:[#allocation4 + $0x4b0] sm:$0xff]
    %v4867 = vld [vmem:[#allocation4 + $0x4b8] sm:$0xff]
    %v4868 = vld [vmem:[#allocation4 + $0x4c0] sm:$0xff]
    %v4869 = vld [vmem:[#allocation4 + $0x4c8] sm:$0xff]
    %v4870 = vld [vmem:[#allocation4 + $0x4d0] sm:$0xff]
    %v4871 = vld [vmem:[#allocation4 + $0x4d8] sm:$0xff]
    %v4872 = vld [vmem:[#allocation4 + $0x4e0] sm:$0xff]
    %v4873 = vld [vmem:[#allocation4 + $0x4e8] sm:$0xff]
    %v4874 = vld [vmem:[#allocation4 + $0x4f0] sm:$0xff]
    %v4875 = vld [vmem:[#allocation4 + $0x4f8] sm:$0xff]
    %v4876 = vld [vmem:[#allocation4 + $0x500] sm:$0xff]
    %v4877 = vld [vmem:[#allocation4 + $0x508] sm:$0xff]
    %v4878 = vld [vmem:[#allocation4 + $0x510] sm:$0xff]
    %v4879 = vld [vmem:[#allocation4 + $0x518] sm:$0xff]
    %v4880 = vld [vmem:[#allocation4 + $0x520] sm:$0xff]
    %v4881 = vld [vmem:[#allocation4 + $0x528] sm:$0xff]
    %v4882 = vld [vmem:[#allocation4 + $0x530] sm:$0xff]
    %v4883 = vld [vmem:[#allocation4 + $0x538] sm:$0xff]
    %v4884 = vld [vmem:[#allocation4 + $0x540] sm:$0xff]
    %v4885 = vld [vmem:[#allocation4 + $0x548] sm:$0xff]
    %v4886 = vld [vmem:[#allocation4 + $0x550] sm:$0xff]
    %v4887 = vld [vmem:[#allocation4 + $0x558] sm:$0xff]
    %v4888 = vld [vmem:[#allocation4 + $0x560] sm:$0xff]
    %v4889 = vld [vmem:[#allocation4 + $0x568] sm:$0xff]
    %v4890 = vld [vmem:[#allocation4 + $0x570] sm:$0xff]
    %v4891 = vld [vmem:[#allocation31] sm:$0x7f]
    %v4892 = vpack.c.bf16 %v4707, %v4700
    %v4893 = vpack.c.bf16 %v4708, %v4701
    %v4894 = vpack.c.bf16 %v4709, %v4702
    %v4895 = vpack.c.bf16 %v4710, %v4703
    %v4896 = vpack.c.bf16 %v4711, %v4704
    %v4897 = vpack.c.bf16 %v4712, %v4705
    %v4898 = vpack.c.bf16 %v4713, %v4706
    %v4899 = vunpack.c.l.s8.bf16 %v4716
    %v4900 = vunpack.c.l.s8.bf16 %v4717
    %v4901 = vunpack.c.l.s8.bf16 %v4718
    %v4902 = vunpack.c.l.s8.bf16 %v4719
    %v4903 = vunpack.c.l.s8.bf16 %v4720
    %v4904 = vunpack.c.l.s8.bf16 %v4721
    %v4905 = vunpack.c.l.s8.bf16 %v4722
    %v4906 = vunpack.c.h.s8.bf16 %v4716
    %v4907 = vunpack.c.h.s8.bf16 %v4717
    %v4908 = vunpack.c.h.s8.bf16 %v4718
    %v4909 = vunpack.c.h.s8.bf16 %v4719
    %v4910 = vunpack.c.h.s8.bf16 %v4720
    %v4911 = vunpack.c.h.s8.bf16 %v4721
    %v4912 = vunpack.c.h.s8.bf16 %v4722
    %v4913 = vunpack.c.l.s8.bf16 %v4723
    %v4914 = vunpack.c.l.s8.bf16 %v4724
    %v4915 = vunpack.c.l.s8.bf16 %v4725
    %v4916 = vunpack.c.l.s8.bf16 %v4726
    %v4917 = vunpack.c.l.s8.bf16 %v4727
    %v4918 = vunpack.c.l.s8.bf16 %v4728
    %v4919 = vunpack.c.l.s8.bf16 %v4729
    %v4920 = vunpack.c.h.s8.bf16 %v4723
    %v4921 = vunpack.c.h.s8.bf16 %v4724
    %v4922 = vunpack.c.h.s8.bf16 %v4725
    %v4923 = vunpack.c.h.s8.bf16 %v4726
    %v4924 = vunpack.c.h.s8.bf16 %v4727
    %v4925 = vunpack.c.h.s8.bf16 %v4728
    %v4926 = vunpack.c.h.s8.bf16 %v4729
    %v4927 = vunpack.c.l.s8.bf16 %v4730
    %v4928 = vunpack.c.l.s8.bf16 %v4731
    %v4929 = vunpack.c.l.s8.bf16 %v4732
    %v4930 = vunpack.c.l.s8.bf16 %v4733
    %v4931 = vunpack.c.l.s8.bf16 %v4734
    %v4932 = vunpack.c.l.s8.bf16 %v4735
    %v4933 = vunpack.c.l.s8.bf16 %v4736
    %v4934 = vunpack.c.h.s8.bf16 %v4730
    %v4935 = vunpack.c.h.s8.bf16 %v4731
    %v4936 = vunpack.c.h.s8.bf16 %v4732
    %v4937 = vunpack.c.h.s8.bf16 %v4733
    %v4938 = vunpack.c.h.s8.bf16 %v4734
    %v4939 = vunpack.c.h.s8.bf16 %v4735
    %v4940 = vunpack.c.h.s8.bf16 %v4736
    %v4941 = vunpack.c.l.s8.bf16 %v4737
    %v4942 = vunpack.c.l.s8.bf16 %v4738
    %v4943 = vunpack.c.l.s8.bf16 %v4739
    %v4944 = vunpack.c.l.s8.bf16 %v4740
    %v4945 = vunpack.c.l.s8.bf16 %v4741
    %v4946 = vunpack.c.l.s8.bf16 %v4742
    %v4947 = vunpack.c.l.s8.bf16 %v4743
    %v4948 = vunpack.c.h.s8.bf16 %v4737
    %v4949 = vunpack.c.h.s8.bf16 %v4738
    %v4950 = vunpack.c.h.s8.bf16 %v4739
    %v4951 = vunpack.c.h.s8.bf16 %v4740
    %v4952 = vunpack.c.h.s8.bf16 %v4741
    %v4953 = vunpack.c.h.s8.bf16 %v4742
    %v4954 = vunpack.c.h.s8.bf16 %v4743
    %v4955 = vunpack.c.l.s8.bf16 %v4744
    %v4956 = vunpack.c.l.s8.bf16 %v4745
    %v4957 = vunpack.c.l.s8.bf16 %v4746
    %v4958 = vunpack.c.l.s8.bf16 %v4747
    %v4959 = vunpack.c.l.s8.bf16 %v4748
    %v4960 = vunpack.c.l.s8.bf16 %v4749
    %v4961 = vunpack.c.l.s8.bf16 %v4750
    %v4962 = vunpack.c.h.s8.bf16 %v4744
    %v4963 = vunpack.c.h.s8.bf16 %v4745
    %v4964 = vunpack.c.h.s8.bf16 %v4746
    %v4965 = vunpack.c.h.s8.bf16 %v4747
    %v4966 = vunpack.c.h.s8.bf16 %v4748
    %v4967 = vunpack.c.h.s8.bf16 %v4749
    %v4968 = vunpack.c.h.s8.bf16 %v4750
    %v4969 = vunpack.c.l.s8.bf16 %v4751
    %v4970 = vunpack.c.l.s8.bf16 %v4752
    %v4971 = vunpack.c.l.s8.bf16 %v4753
    %v4972 = vunpack.c.l.s8.bf16 %v4754
    %v4973 = vunpack.c.l.s8.bf16 %v4755
    %v4974 = vunpack.c.l.s8.bf16 %v4756
    %v4975 = vunpack.c.l.s8.bf16 %v4757
    %v4976 = vunpack.c.h.s8.bf16 %v4751
    %v4977 = vunpack.c.h.s8.bf16 %v4752
    %v4978 = vunpack.c.h.s8.bf16 %v4753
    %v4979 = vunpack.c.h.s8.bf16 %v4754
    %v4980 = vunpack.c.h.s8.bf16 %v4755
    %v4981 = vunpack.c.h.s8.bf16 %v4756
    %v4982 = vunpack.c.h.s8.bf16 %v4757
    %v4983 = vunpack.c.l.s8.bf16 %v4758
    %v4984 = vunpack.c.l.s8.bf16 %v4759
    %v4985 = vunpack.c.l.s8.bf16 %v4760
    %v4986 = vunpack.c.l.s8.bf16 %v4761
    %v4987 = vunpack.c.l.s8.bf16 %v4762
    %v4988 = vunpack.c.l.s8.bf16 %v4763
    %v4989 = vunpack.c.l.s8.bf16 %v4764
    %v4990 = vunpack.c.h.s8.bf16 %v4758
    %v4991 = vunpack.c.h.s8.bf16 %v4759
    %v4992 = vunpack.c.h.s8.bf16 %v4760
    %v4993 = vunpack.c.h.s8.bf16 %v4761
    %v4994 = vunpack.c.h.s8.bf16 %v4762
    %v4995 = vunpack.c.h.s8.bf16 %v4763
    %v4996 = vunpack.c.h.s8.bf16 %v4764
    %v4997 = vunpack.c.l.s8.bf16 %v4765
    %v4998 = vunpack.c.l.s8.bf16 %v4766
    %v4999 = vunpack.c.l.s8.bf16 %v4767
    %v5000 = vunpack.c.l.s8.bf16 %v4768
    %v5001 = vunpack.c.l.s8.bf16 %v4769
    %v5002 = vunpack.c.l.s8.bf16 %v4770
    %v5003 = vunpack.c.l.s8.bf16 %v4771
    %v5004 = vunpack.c.h.s8.bf16 %v4765
    %v5005 = vunpack.c.h.s8.bf16 %v4766
    %v5006 = vunpack.c.h.s8.bf16 %v4767
    %v5007 = vunpack.c.h.s8.bf16 %v4768
    %v5008 = vunpack.c.h.s8.bf16 %v4769
    %v5009 = vunpack.c.h.s8.bf16 %v4770
    %v5010 = vunpack.c.h.s8.bf16 %v4771
    %v5011 = vunpack.c.l.s8.bf16 %v4772
    %v5012 = vunpack.c.l.s8.bf16 %v4773
    %v5013 = vunpack.c.l.s8.bf16 %v4774
    %v5014 = vunpack.c.l.s8.bf16 %v4775
    %v5015 = vunpack.c.l.s8.bf16 %v4776
    %v5016 = vunpack.c.l.s8.bf16 %v4777
    %v5017 = vunpack.c.l.s8.bf16 %v4778
    %v5018 = vunpack.c.h.s8.bf16 %v4772
    %v5019 = vunpack.c.h.s8.bf16 %v4773
    %v5020 = vunpack.c.h.s8.bf16 %v4774
    %v5021 = vunpack.c.h.s8.bf16 %v4775
    %v5022 = vunpack.c.h.s8.bf16 %v4776
    %v5023 = vunpack.c.h.s8.bf16 %v4777
    %v5024 = vunpack.c.h.s8.bf16 %v4778
    %v5025 = vunpack.c.l.s8.bf16 %v4779
    %v5026 = vunpack.c.l.s8.bf16 %v4780
    %v5027 = vunpack.c.l.s8.bf16 %v4781
    %v5028 = vunpack.c.l.s8.bf16 %v4782
    %v5029 = vunpack.c.l.s8.bf16 %v4783
    %v5030 = vunpack.c.l.s8.bf16 %v4784
    %v5031 = vunpack.c.l.s8.bf16 %v4785
    %v5032 = vunpack.c.h.s8.bf16 %v4779
    %v5033 = vunpack.c.h.s8.bf16 %v4780
    %v5034 = vunpack.c.h.s8.bf16 %v4781
    %v5035 = vunpack.c.h.s8.bf16 %v4782
    %v5036 = vunpack.c.h.s8.bf16 %v4783
    %v5037 = vunpack.c.h.s8.bf16 %v4784
    %v5038 = vunpack.c.h.s8.bf16 %v4785
    %v5039 = vunpack.c.l.s8.bf16 %v4786
    %v5040 = vunpack.c.l.s8.bf16 %v4787
    %v5041 = vunpack.c.l.s8.bf16 %v4788
    %v5042 = vunpack.c.l.s8.bf16 %v4789
    %v5043 = vunpack.c.l.s8.bf16 %v4790
    %v5044 = vunpack.c.l.s8.bf16 %v4791
    %v5045 = vunpack.c.l.s8.bf16 %v4792
    %v5046 = vunpack.c.h.s8.bf16 %v4786
    %v5047 = vunpack.c.h.s8.bf16 %v4787
    %v5048 = vunpack.c.h.s8.bf16 %v4788
    %v5049 = vunpack.c.h.s8.bf16 %v4789
    %v5050 = vunpack.c.h.s8.bf16 %v4790
    %v5051 = vunpack.c.h.s8.bf16 %v4791
    %v5052 = vunpack.c.h.s8.bf16 %v4792
    %v5053 = vunpack.c.l.s8.bf16 %v4793
    %v5054 = vunpack.c.l.s8.bf16 %v4794
    %v5055 = vunpack.c.l.s8.bf16 %v4795
    %v5056 = vunpack.c.l.s8.bf16 %v4796
    %v5057 = vunpack.c.l.s8.bf16 %v4797
    %v5058 = vunpack.c.l.s8.bf16 %v4798
    %v5059 = vunpack.c.l.s8.bf16 %v4799
    %v5060 = vunpack.c.h.s8.bf16 %v4793
    %v5061 = vunpack.c.h.s8.bf16 %v4794
    %v5062 = vunpack.c.h.s8.bf16 %v4795
    %v5063 = vunpack.c.h.s8.bf16 %v4796
    %v5064 = vunpack.c.h.s8.bf16 %v4797
    %v5065 = vunpack.c.h.s8.bf16 %v4798
    %v5066 = vunpack.c.h.s8.bf16 %v4799
    %v5067 = vunpack.c.l.s8.bf16 %v4800
    %v5068 = vunpack.c.l.s8.bf16 %v4801
    %v5069 = vunpack.c.l.s8.bf16 %v4802
    %v5070 = vunpack.c.l.s8.bf16 %v4803
    %v5071 = vunpack.c.l.s8.bf16 %v4804
    %v5072 = vunpack.c.l.s8.bf16 %v4805
    %v5073 = vunpack.c.l.s8.bf16 %v4806
    %v5074 = vunpack.c.h.s8.bf16 %v4800
    %v5075 = vunpack.c.h.s8.bf16 %v4801
    %v5076 = vunpack.c.h.s8.bf16 %v4802
    %v5077 = vunpack.c.h.s8.bf16 %v4803
    %v5078 = vunpack.c.h.s8.bf16 %v4804
    %v5079 = vunpack.c.h.s8.bf16 %v4805
    %v5080 = vunpack.c.h.s8.bf16 %v4806
    %v5081 = vunpack.c.l.s8.bf16 %v4807
    %v5082 = vunpack.c.l.s8.bf16 %v4808
    %v5083 = vunpack.c.l.s8.bf16 %v4809
    %v5084 = vunpack.c.l.s8.bf16 %v4810
    %v5085 = vunpack.c.l.s8.bf16 %v4811
    %v5086 = vunpack.c.l.s8.bf16 %v4812
    %v5087 = vunpack.c.l.s8.bf16 %v4813
    %v5088 = vunpack.c.h.s8.bf16 %v4807
    %v5089 = vunpack.c.h.s8.bf16 %v4808
    %v5090 = vunpack.c.h.s8.bf16 %v4809
    %v5091 = vunpack.c.h.s8.bf16 %v4810
    %v5092 = vunpack.c.h.s8.bf16 %v4811
    %v5093 = vunpack.c.h.s8.bf16 %v4812
    %v5094 = vunpack.c.h.s8.bf16 %v4813
    %v5095 = vunpack.c.l.s8.bf16 %v4814
    %v5096 = vunpack.c.l.s8.bf16 %v4815
    %v5097 = vunpack.c.l.s8.bf16 %v4816
    %v5098 = vunpack.c.l.s8.bf16 %v4817
    %v5099 = vunpack.c.l.s8.bf16 %v4818
    %v5100 = vunpack.c.l.s8.bf16 %v4819
    %v5101 = vunpack.c.l.s8.bf16 %v4820
    %v5102 = vunpack.c.h.s8.bf16 %v4814
    %v5103 = vunpack.c.h.s8.bf16 %v4815
    %v5104 = vunpack.c.h.s8.bf16 %v4816
    %v5105 = vunpack.c.h.s8.bf16 %v4817
    %v5106 = vunpack.c.h.s8.bf16 %v4818
    %v5107 = vunpack.c.h.s8.bf16 %v4819
    %v5108 = vunpack.c.h.s8.bf16 %v4820
    %v5109 = vunpack.c.l.s8.bf16 %v4821
    %v5110 = vunpack.c.l.s8.bf16 %v4822
    %v5111 = vunpack.c.l.s8.bf16 %v4823
    %v5112 = vunpack.c.l.s8.bf16 %v4824
    %v5113 = vunpack.c.l.s8.bf16 %v4825
    %v5114 = vunpack.c.l.s8.bf16 %v4826
    %v5115 = vunpack.c.l.s8.bf16 %v4827
    %v5116 = vunpack.c.h.s8.bf16 %v4821
    %v5117 = vunpack.c.h.s8.bf16 %v4822
    %v5118 = vunpack.c.h.s8.bf16 %v4823
    %v5119 = vunpack.c.h.s8.bf16 %v4824
    %v5120 = vunpack.c.h.s8.bf16 %v4825
    %v5121 = vunpack.c.h.s8.bf16 %v4826
    %v5122 = vunpack.c.h.s8.bf16 %v4827
    %v5123 = vunpack.c.l.s8.bf16 %v4828
    %v5124 = vunpack.c.l.s8.bf16 %v4829
    %v5125 = vunpack.c.l.s8.bf16 %v4830
    %v5126 = vunpack.c.l.s8.bf16 %v4831
    %v5127 = vunpack.c.l.s8.bf16 %v4832
    %v5128 = vunpack.c.l.s8.bf16 %v4833
    %v5129 = vunpack.c.l.s8.bf16 %v4834
    %v5130 = vunpack.c.h.s8.bf16 %v4828
    %v5131 = vunpack.c.h.s8.bf16 %v4829
    %v5132 = vunpack.c.h.s8.bf16 %v4830
    %v5133 = vunpack.c.h.s8.bf16 %v4831
    %v5134 = vunpack.c.h.s8.bf16 %v4832
    %v5135 = vunpack.c.h.s8.bf16 %v4833
    %v5136 = vunpack.c.h.s8.bf16 %v4834
    %v5137 = vunpack.c.l.s8.bf16 %v4835
    %v5138 = vunpack.c.l.s8.bf16 %v4836
    %v5139 = vunpack.c.l.s8.bf16 %v4837
    %v5140 = vunpack.c.l.s8.bf16 %v4838
    %v5141 = vunpack.c.l.s8.bf16 %v4839
    %v5142 = vunpack.c.l.s8.bf16 %v4840
    %v5143 = vunpack.c.l.s8.bf16 %v4841
    %v5144 = vunpack.c.h.s8.bf16 %v4835
    %v5145 = vunpack.c.h.s8.bf16 %v4836
    %v5146 = vunpack.c.h.s8.bf16 %v4837
    %v5147 = vunpack.c.h.s8.bf16 %v4838
    %v5148 = vunpack.c.h.s8.bf16 %v4839
    %v5149 = vunpack.c.h.s8.bf16 %v4840
    %v5150 = vunpack.c.h.s8.bf16 %v4841
    %v5151 = vunpack.c.l.s8.bf16 %v4842
    %v5152 = vunpack.c.l.s8.bf16 %v4843
    %v5153 = vunpack.c.l.s8.bf16 %v4844
    %v5154 = vunpack.c.l.s8.bf16 %v4845
    %v5155 = vunpack.c.l.s8.bf16 %v4846
    %v5156 = vunpack.c.l.s8.bf16 %v4847
    %v5157 = vunpack.c.l.s8.bf16 %v4848
    %v5158 = vunpack.c.h.s8.bf16 %v4842
    %v5159 = vunpack.c.h.s8.bf16 %v4843
    %v5160 = vunpack.c.h.s8.bf16 %v4844
    %v5161 = vunpack.c.h.s8.bf16 %v4845
    %v5162 = vunpack.c.h.s8.bf16 %v4846
    %v5163 = vunpack.c.h.s8.bf16 %v4847
    %v5164 = vunpack.c.h.s8.bf16 %v4848
    %v5165 = vunpack.c.l.s8.bf16 %v4849
    %v5166 = vunpack.c.l.s8.bf16 %v4850
    %v5167 = vunpack.c.l.s8.bf16 %v4851
    %v5168 = vunpack.c.l.s8.bf16 %v4852
    %v5169 = vunpack.c.l.s8.bf16 %v4853
    %v5170 = vunpack.c.l.s8.bf16 %v4854
    %v5171 = vunpack.c.l.s8.bf16 %v4855
    %v5172 = vunpack.c.h.s8.bf16 %v4849
    %v5173 = vunpack.c.h.s8.bf16 %v4850
    %v5174 = vunpack.c.h.s8.bf16 %v4851
    %v5175 = vunpack.c.h.s8.bf16 %v4852
    %v5176 = vunpack.c.h.s8.bf16 %v4853
    %v5177 = vunpack.c.h.s8.bf16 %v4854
    %v5178 = vunpack.c.h.s8.bf16 %v4855
    %v5179 = vunpack.c.l.s8.bf16 %v4856
    %v5180 = vunpack.c.l.s8.bf16 %v4857
    %v5181 = vunpack.c.l.s8.bf16 %v4858
    %v5182 = vunpack.c.l.s8.bf16 %v4859
    %v5183 = vunpack.c.l.s8.bf16 %v4860
    %v5184 = vunpack.c.l.s8.bf16 %v4861
    %v5185 = vunpack.c.l.s8.bf16 %v4862
    %v5186 = vunpack.c.h.s8.bf16 %v4856
    %v5187 = vunpack.c.h.s8.bf16 %v4857
    %v5188 = vunpack.c.h.s8.bf16 %v4858
    %v5189 = vunpack.c.h.s8.bf16 %v4859
    %v5190 = vunpack.c.h.s8.bf16 %v4860
    %v5191 = vunpack.c.h.s8.bf16 %v4861
    %v5192 = vunpack.c.h.s8.bf16 %v4862
    %v5193 = vunpack.c.l.s8.bf16 %v4863
    %v5194 = vunpack.c.l.s8.bf16 %v4864
    %v5195 = vunpack.c.l.s8.bf16 %v4865
    %v5196 = vunpack.c.l.s8.bf16 %v4866
    %v5197 = vunpack.c.l.s8.bf16 %v4867
    %v5198 = vunpack.c.l.s8.bf16 %v4868
    %v5199 = vunpack.c.l.s8.bf16 %v4869
    %v5200 = vunpack.c.h.s8.bf16 %v4863
    %v5201 = vunpack.c.h.s8.bf16 %v4864
    %v5202 = vunpack.c.h.s8.bf16 %v4865
    %v5203 = vunpack.c.h.s8.bf16 %v4866
    %v5204 = vunpack.c.h.s8.bf16 %v4867
    %v5205 = vunpack.c.h.s8.bf16 %v4868
    %v5206 = vunpack.c.h.s8.bf16 %v4869
    %v5207 = vunpack.c.l.s8.bf16 %v4870
    %v5208 = vunpack.c.l.s8.bf16 %v4871
    %v5209 = vunpack.c.l.s8.bf16 %v4872
    %v5210 = vunpack.c.l.s8.bf16 %v4873
    %v5211 = vunpack.c.l.s8.bf16 %v4874
    %v5212 = vunpack.c.l.s8.bf16 %v4875
    %v5213 = vunpack.c.l.s8.bf16 %v4876
    %v5214 = vunpack.c.h.s8.bf16 %v4870
    %v5215 = vunpack.c.h.s8.bf16 %v4871
    %v5216 = vunpack.c.h.s8.bf16 %v4872
    %v5217 = vunpack.c.h.s8.bf16 %v4873
    %v5218 = vunpack.c.h.s8.bf16 %v4874
    %v5219 = vunpack.c.h.s8.bf16 %v4875
    %v5220 = vunpack.c.h.s8.bf16 %v4876
    %v5221 = vunpack.c.l.s8.bf16 %v4877
    %v5222 = vunpack.c.l.s8.bf16 %v4878
    %v5223 = vunpack.c.l.s8.bf16 %v4879
    %v5224 = vunpack.c.l.s8.bf16 %v4880
    %v5225 = vunpack.c.l.s8.bf16 %v4881
    %v5226 = vunpack.c.l.s8.bf16 %v4882
    %v5227 = vunpack.c.l.s8.bf16 %v4883
    %v5228 = vunpack.c.h.s8.bf16 %v4877
    %v5229 = vunpack.c.h.s8.bf16 %v4878
    %v5230 = vunpack.c.h.s8.bf16 %v4879
    %v5231 = vunpack.c.h.s8.bf16 %v4880
    %v5232 = vunpack.c.h.s8.bf16 %v4881
    %v5233 = vunpack.c.h.s8.bf16 %v4882
    %v5234 = vunpack.c.h.s8.bf16 %v4883
    %v5235 = vunpack.c.l.s8.bf16 %v4884
    %v5236 = vunpack.c.l.s8.bf16 %v4885
    %v5237 = vunpack.c.l.s8.bf16 %v4886
    %v5238 = vunpack.c.l.s8.bf16 %v4887
    %v5239 = vunpack.c.l.s8.bf16 %v4888
    %v5240 = vunpack.c.l.s8.bf16 %v4889
    %v5241 = vunpack.c.l.s8.bf16 %v4890
    %v5242 = vunpack.c.h.s8.bf16 %v4884
    %v5243 = vunpack.c.h.s8.bf16 %v4885
    %v5244 = vunpack.c.h.s8.bf16 %v4886
    %v5245 = vunpack.c.h.s8.bf16 %v4887
    %v5246 = vunpack.c.h.s8.bf16 %v4888
    %v5247 = vunpack.c.h.s8.bf16 %v4889
    %v5248 = vunpack.c.h.s8.bf16 %v4890
    %v5250 = vsel %vm1205, %v4898, 0
    %5252 = vmatprep.subr.bf16.mxu0 %v4949
    %5253 = vmatpush1.bf16.msra.mxu0 %v4948
    %5254 = vmatprep.subr.bf16.mxu0 %v4942
    %5255 = vmatpush1.bf16.msra.mxu0 %v4941
    %5256 = vmatprep.subr.bf16.mxu0 %v4935
    %5257 = vmatpush1.bf16.msra.mxu0 %v4934
    %5258 = vmatprep.subr.bf16.mxu0 %v4928
    %5259 = vmatpush1.bf16.msra.mxu0 %v4927
    %5260 = vmatprep.subr.bf16.mxu0 %v4921
    %5261 = vmatpush1.bf16.msra.mxu0 %v4920
    %5262 = vmatprep.subr.bf16.mxu0 %v4914
    %5263 = vmatpush1.bf16.msra.mxu0 %v4913
    %5264 = vmatprep.subr.bf16.mxu0 %v4907
    %5265 = vmatpush1.bf16.msra.mxu0 %v4906
    %5266 = vmatprep.subr.bf16.mxu0 %v4900
    %5267 = vmatpush1.bf16.msra.mxu0 %v4899
    %5268 = vmatprep.subr.bf16.mxu0 %v5005
    %5269 = vmatpush2.bf16.msra.mxu0 %v5004
    %5270 = vmatprep.subr.bf16.mxu0 %v4998
    %5271 = vmatpush2.bf16.msra.mxu0 %v4997
    %5272 = vmatprep.subr.bf16.mxu0 %v4991
    %5273 = vmatpush2.bf16.msra.mxu0 %v4990
    %5274 = vmatprep.subr.bf16.mxu0 %v4984
    %5275 = vmatpush2.bf16.msra.mxu0 %v4983
    %5276 = vmatprep.subr.bf16.mxu0 %v4977
    %5277 = vmatpush2.bf16.msra.mxu0 %v4976
    %5278 = vmatprep.subr.bf16.mxu0 %v4970
    %5279 = vmatpush2.bf16.msra.mxu0 %v4969
    %5280 = vmatprep.subr.bf16.mxu0 %v4963
    %5281 = vmatpush2.bf16.msra.mxu0 %v4962
    %5282 = vmatprep.subr.bf16.mxu0 %v4956
    %5283 = vmatpush2.bf16.msra.mxu0 %v4955
    %5284 = vmatprep.mubr.bf16.mxu0 %v4893
    %5285 = vmatmul.mubr.bf16.gmra.mxu0 %v4892
    %v5286 = vpop.f32.mrf.mxu0
    %v5287 = vadd.f32 0.0, %v5286
    %v5288 = vpop.f32.mrf.mxu0
    %v5289 = vadd.f32 0.0, %v5288
    %v5290 = vpop.f32.mrf.mxu0
    %v5291 = vadd.f32 0.0, %v5290
    %v5292 = vpop.f32.mrf.mxu0
    %v5293 = vadd.f32 0.0, %v5292
    %5294 = vdwg.mxu0
    %5295 = vmatprep.subr.bf16.mxu0 %v5061
    %5296 = vmatpush1.bf16.msra.mxu0 %v5060
    %5297 = vmatprep.subr.bf16.mxu0 %v5054
    %5298 = vmatpush1.bf16.msra.mxu0 %v5053
    %5299 = vmatprep.subr.bf16.mxu0 %v5047
    %5300 = vmatpush1.bf16.msra.mxu0 %v5046
    %5301 = vmatprep.subr.bf16.mxu0 %v5040
    %5302 = vmatpush1.bf16.msra.mxu0 %v5039
    %5303 = vmatprep.subr.bf16.mxu0 %v5033
    %5304 = vmatpush1.bf16.msra.mxu0 %v5032
    %5305 = vmatprep.subr.bf16.mxu0 %v5026
    %5306 = vmatpush1.bf16.msra.mxu0 %v5025
    %5307 = vmatprep.subr.bf16.mxu0 %v5019
    %5308 = vmatpush1.bf16.msra.mxu0 %v5018
    %5309 = vmatprep.subr.bf16.mxu0 %v5012
    %5310 = vmatpush1.bf16.msra.mxu0 %v5011
    %5311 = vmatprep.subr.bf16.mxu0 %v5117
    %5312 = vmatpush2.bf16.msra.mxu0 %v5116
    %5313 = vmatprep.subr.bf16.mxu0 %v5110
    %5314 = vmatpush2.bf16.msra.mxu0 %v5109
    %5315 = vmatprep.subr.bf16.mxu0 %v5103
    %5316 = vmatpush2.bf16.msra.mxu0 %v5102
    %5317 = vmatprep.subr.bf16.mxu0 %v5096
    %5318 = vmatpush2.bf16.msra.mxu0 %v5095
    %5319 = vmatprep.subr.bf16.mxu0 %v5089
    %5320 = vmatpush2.bf16.msra.mxu0 %v5088
    %5321 = vmatprep.subr.bf16.mxu0 %v5082
    %5322 = vmatpush2.bf16.msra.mxu0 %v5081
    %5323 = vmatprep.subr.bf16.mxu0 %v5075
    %5324 = vmatpush2.bf16.msra.mxu0 %v5074
    %5325 = vmatprep.subr.bf16.mxu0 %v5068
    %5326 = vmatpush2.bf16.msra.mxu0 %v5067
    %5327 = vmatprep.mubr.bf16.mxu0 %v4895
    %5328 = vmatmul.mubr.bf16.gmra.mxu0 %v4894
    %v5329 = vpop.f32.mrf.mxu0
    %v5330 = vadd.f32 %v5287, %v5329
    %v5331 = vpop.f32.mrf.mxu0
    %v5332 = vadd.f32 %v5289, %v5331
    %v5333 = vpop.f32.mrf.mxu0
    %v5334 = vadd.f32 %v5291, %v5333
    %v5335 = vpop.f32.mrf.mxu0
    %v5336 = vadd.f32 %v5293, %v5335
    %5337 = vdwg.mxu0
    %5338 = vmatprep.subr.bf16.mxu0 %v5173
    %5339 = vmatpush1.bf16.msra.mxu0 %v5172
    %5340 = vmatprep.subr.bf16.mxu0 %v5166
    %5341 = vmatpush1.bf16.msra.mxu0 %v5165
    %5342 = vmatprep.subr.bf16.mxu0 %v5159
    %5343 = vmatpush1.bf16.msra.mxu0 %v5158
    %5344 = vmatprep.subr.bf16.mxu0 %v5152
    %5345 = vmatpush1.bf16.msra.mxu0 %v5151
    %5346 = vmatprep.subr.bf16.mxu0 %v5145
    %5347 = vmatpush1.bf16.msra.mxu0 %v5144
    %5348 = vmatprep.subr.bf16.mxu0 %v5138
    %5349 = vmatpush1.bf16.msra.mxu0 %v5137
    %5350 = vmatprep.subr.bf16.mxu0 %v5131
    %5351 = vmatpush1.bf16.msra.mxu0 %v5130
    %5352 = vmatprep.subr.bf16.mxu0 %v5124
    %5353 = vmatpush1.bf16.msra.mxu0 %v5123
    %5354 = vmatprep.subr.bf16.mxu0 %v5229
    %5355 = vmatpush2.bf16.msra.mxu0 %v5228
    %5356 = vmatprep.subr.bf16.mxu0 %v5222
    %5357 = vmatpush2.bf16.msra.mxu0 %v5221
    %5358 = vmatprep.subr.bf16.mxu0 %v5215
    %5359 = vmatpush2.bf16.msra.mxu0 %v5214
    %5360 = vmatprep.subr.bf16.mxu0 %v5208
    %5361 = vmatpush2.bf16.msra.mxu0 %v5207
    %5362 = vmatprep.subr.bf16.mxu0 %v5201
    %5363 = vmatpush2.bf16.msra.mxu0 %v5200
    %5364 = vmatprep.subr.bf16.mxu0 %v5194
    %5365 = vmatpush2.bf16.msra.mxu0 %v5193
    %5366 = vmatprep.subr.bf16.mxu0 %v5187
    %5367 = vmatpush2.bf16.msra.mxu0 %v5186
    %5368 = vmatprep.subr.bf16.mxu0 %v5180
    %5369 = vmatpush2.bf16.msra.mxu0 %v5179
    %5370 = vmatprep.mubr.bf16.mxu0 %v4897
    %5371 = vmatmul.mubr.bf16.gmra.mxu0 %v4896
    %v5372 = vpop.f32.mrf.mxu0
    %v5373 = vadd.f32 %v5330, %v5372
    %v5374 = vpop.f32.mrf.mxu0
    %v5375 = vadd.f32 %v5332, %v5374
    %v5376 = vpop.f32.mrf.mxu0
    %v5377 = vadd.f32 %v5334, %v5376
    %v5378 = vpop.f32.mrf.mxu0
    %v5379 = vadd.f32 %v5336, %v5378
    %5380 = vdwg.mxu0
    %5381 = vmatprep.subr.bf16.mxu0 0
    %5382 = vmatpush1.bf16.msra.mxu0 0
    %5383 = vmatprep.subr.bf16.mxu0 0
    %5384 = vmatpush1.bf16.msra.mxu0 0
    %5385 = vmatprep.subr.bf16.mxu0 0
    %5386 = vmatpush1.bf16.msra.mxu0 0
    %5387 = vmatprep.subr.bf16.mxu0 0
    %5388 = vmatpush1.bf16.msra.mxu0 0
    %5389 = vmatprep.subr.bf16.mxu0 0
    %5390 = vmatpush1.bf16.msra.mxu0 0
    %5391 = vmatprep.subr.bf16.mxu0 0
    %5392 = vmatpush1.bf16.msra.mxu0 0
    %5393 = vmatprep.subr.bf16.mxu0 %v5243
    %5394 = vmatpush1.bf16.msra.mxu0 %v5242
    %5395 = vmatprep.subr.bf16.mxu0 %v5236
    %5396 = vmatpush1.bf16.msra.mxu0 %v5235
    %5397 = vmatprep.subr.bf16.mxu0 0
    %5398 = vmatpush2.bf16.msra.mxu0 0
    %5399 = vmatprep.subr.bf16.mxu0 0
    %5400 = vmatpush2.bf16.msra.mxu0 0
    %5401 = vmatprep.subr.bf16.mxu0 0
    %5402 = vmatpush2.bf16.msra.mxu0 0
    %5403 = vmatprep.subr.bf16.mxu0 0
    %5404 = vmatpush2.bf16.msra.mxu0 0
    %5405 = vmatprep.subr.bf16.mxu0 0
    %5406 = vmatpush2.bf16.msra.mxu0 0
    %5407 = vmatprep.subr.bf16.mxu0 0
    %5408 = vmatpush2.bf16.msra.mxu0 0
    %5409 = vmatprep.subr.bf16.mxu0 0
    %5410 = vmatpush2.bf16.msra.mxu0 0
    %5411 = vmatprep.subr.bf16.mxu0 0
    %5412 = vmatpush2.bf16.msra.mxu0 0
    %5413 = vmatprep.mubr.bf16.mxu0 0
    %5414 = vmatmul.mubr.bf16.gmra.mxu0 %v5250
    %v5415 = vpop.f32.mrf.mxu0
    %v5416 = vadd.f32 %v5373, %v5415
    %v5417 = vpop.f32.mrf.mxu0
    %v5418 = vadd.f32 %v5375, %v5417
    %v5419 = vpop.f32.mrf.mxu0
    %v5420 = vadd.f32 %v5377, %v5419
    %v5421 = vpop.f32.mrf.mxu0
    %v5422 = vadd.f32 %v5379, %v5421
    %5423 = vdwg.mxu0
    %5424 = vmatprep.subr.bf16.mxu0 %v4951
    %5425 = vmatpush1.bf16.msra.mxu0 %v4950
    %5426 = vmatprep.subr.bf16.mxu0 %v4944
    %5427 = vmatpush1.bf16.msra.mxu0 %v4943
    %5428 = vmatprep.subr.bf16.mxu0 %v4937
    %5429 = vmatpush1.bf16.msra.mxu0 %v4936
    %5430 = vmatprep.subr.bf16.mxu0 %v4930
    %5431 = vmatpush1.bf16.msra.mxu0 %v4929
    %5432 = vmatprep.subr.bf16.mxu0 %v4923
    %5433 = vmatpush1.bf16.msra.mxu0 %v4922
    %5434 = vmatprep.subr.bf16.mxu0 %v4916
    %5435 = vmatpush1.bf16.msra.mxu0 %v4915
    %5436 = vmatprep.subr.bf16.mxu0 %v4909
    %5437 = vmatpush1.bf16.msra.mxu0 %v4908
    %5438 = vmatprep.subr.bf16.mxu0 %v4902
    %5439 = vmatpush1.bf16.msra.mxu0 %v4901
    %5440 = vmatprep.subr.bf16.mxu0 %v5007
    %5441 = vmatpush2.bf16.msra.mxu0 %v5006
    %5442 = vmatprep.subr.bf16.mxu0 %v5000
    %5443 = vmatpush2.bf16.msra.mxu0 %v4999
    %5444 = vmatprep.subr.bf16.mxu0 %v4993
    %5445 = vmatpush2.bf16.msra.mxu0 %v4992
    %5446 = vmatprep.subr.bf16.mxu0 %v4986
    %5447 = vmatpush2.bf16.msra.mxu0 %v4985
    %5448 = vmatprep.subr.bf16.mxu0 %v4979
    %5449 = vmatpush2.bf16.msra.mxu0 %v4978
    %5450 = vmatprep.subr.bf16.mxu0 %v4972
    %5451 = vmatpush2.bf16.msra.mxu0 %v4971
    %5452 = vmatprep.subr.bf16.mxu0 %v4965
    %5453 = vmatpush2.bf16.msra.mxu0 %v4964
    %5454 = vmatprep.subr.bf16.mxu0 %v4958
    %5455 = vmatpush2.bf16.msra.mxu0 %v4957
    %5456 = vmatprep.mubr.bf16.mxu0 %v4893
    %5457 = vmatmul.mubr.bf16.gmra.mxu0 %v4892
    %v5458 = vpop.f32.mrf.mxu0
    %v5459 = vadd.f32 0.0, %v5458
    %v5460 = vpop.f32.mrf.mxu0
    %v5461 = vadd.f32 0.0, %v5460
    %v5462 = vpop.f32.mrf.mxu0
    %v5463 = vadd.f32 0.0, %v5462
    %v5464 = vpop.f32.mrf.mxu0
    %v5465 = vadd.f32 0.0, %v5464
    %5466 = vdwg.mxu0
    %5467 = vmatprep.subr.bf16.mxu0 %v5063
    %5468 = vmatpush1.bf16.msra.mxu0 %v5062
    %5469 = vmatprep.subr.bf16.mxu0 %v5056
    %5470 = vmatpush1.bf16.msra.mxu0 %v5055
    %5471 = vmatprep.subr.bf16.mxu0 %v5049
    %5472 = vmatpush1.bf16.msra.mxu0 %v5048
    %5473 = vmatprep.subr.bf16.mxu0 %v5042
    %5474 = vmatpush1.bf16.msra.mxu0 %v5041
    %5475 = vmatprep.subr.bf16.mxu0 %v5035
    %5476 = vmatpush1.bf16.msra.mxu0 %v5034
    %5477 = vmatprep.subr.bf16.mxu0 %v5028
    %5478 = vmatpush1.bf16.msra.mxu0 %v5027
    %5479 = vmatprep.subr.bf16.mxu0 %v5021
    %5480 = vmatpush1.bf16.msra.mxu0 %v5020
    %5481 = vmatprep.subr.bf16.mxu0 %v5014
    %5482 = vmatpush1.bf16.msra.mxu0 %v5013
    %5483 = vmatprep.subr.bf16.mxu0 %v5119
    %5484 = vmatpush2.bf16.msra.mxu0 %v5118
    %5485 = vmatprep.subr.bf16.mxu0 %v5112
    %5486 = vmatpush2.bf16.msra.mxu0 %v5111
    %5487 = vmatprep.subr.bf16.mxu0 %v5105
    %5488 = vmatpush2.bf16.msra.mxu0 %v5104
    %5489 = vmatprep.subr.bf16.mxu0 %v5098
    %5490 = vmatpush2.bf16.msra.mxu0 %v5097
    %5491 = vmatprep.subr.bf16.mxu0 %v5091
    %5492 = vmatpush2.bf16.msra.mxu0 %v5090
    %5493 = vmatprep.subr.bf16.mxu0 %v5084
    %5494 = vmatpush2.bf16.msra.mxu0 %v5083
    %5495 = vmatprep.subr.bf16.mxu0 %v5077
    %5496 = vmatpush2.bf16.msra.mxu0 %v5076
    %5497 = vmatprep.subr.bf16.mxu0 %v5070
    %5498 = vmatpush2.bf16.msra.mxu0 %v5069
    %5499 = vmatprep.mubr.bf16.mxu0 %v4895
    %5500 = vmatmul.mubr.bf16.gmra.mxu0 %v4894
    %v5501 = vpop.f32.mrf.mxu0
    %v5502 = vadd.f32 %v5459, %v5501
    %v5503 = vpop.f32.mrf.mxu0
    %v5504 = vadd.f32 %v5461, %v5503
    %v5505 = vpop.f32.mrf.mxu0
    %v5506 = vadd.f32 %v5463, %v5505
    %v5507 = vpop.f32.mrf.mxu0
    %v5508 = vadd.f32 %v5465, %v5507
    %5509 = vdwg.mxu0
    %5510 = vmatprep.subr.bf16.mxu0 %v5175
    %5511 = vmatpush1.bf16.msra.mxu0 %v5174
    %5512 = vmatprep.subr.bf16.mxu0 %v5168
    %5513 = vmatpush1.bf16.msra.mxu0 %v5167
    %5514 = vmatprep.subr.bf16.mxu0 %v5161
    %5515 = vmatpush1.bf16.msra.mxu0 %v5160
    %5516 = vmatprep.subr.bf16.mxu0 %v5154
    %5517 = vmatpush1.bf16.msra.mxu0 %v5153
    %5518 = vmatprep.subr.bf16.mxu0 %v5147
    %5519 = vmatpush1.bf16.msra.mxu0 %v5146
    %5520 = vmatprep.subr.bf16.mxu0 %v5140
    %5521 = vmatpush1.bf16.msra.mxu0 %v5139
    %5522 = vmatprep.subr.bf16.mxu0 %v5133
    %5523 = vmatpush1.bf16.msra.mxu0 %v5132
    %5524 = vmatprep.subr.bf16.mxu0 %v5126
    %5525 = vmatpush1.bf16.msra.mxu0 %v5125
    %5526 = vmatprep.subr.bf16.mxu0 %v5231
    %5527 = vmatpush2.bf16.msra.mxu0 %v5230
    %5528 = vmatprep.subr.bf16.mxu0 %v5224
    %5529 = vmatpush2.bf16.msra.mxu0 %v5223
    %5530 = vmatprep.subr.bf16.mxu0 %v5217
    %5531 = vmatpush2.bf16.msra.mxu0 %v5216
    %5532 = vmatprep.subr.bf16.mxu0 %v5210
    %5533 = vmatpush2.bf16.msra.mxu0 %v5209
    %5534 = vmatprep.subr.bf16.mxu0 %v5203
    %5535 = vmatpush2.bf16.msra.mxu0 %v5202
    %5536 = vmatprep.subr.bf16.mxu0 %v5196
    %5537 = vmatpush2.bf16.msra.mxu0 %v5195
    %5538 = vmatprep.subr.bf16.mxu0 %v5189
    %5539 = vmatpush2.bf16.msra.mxu0 %v5188
    %5540 = vmatprep.subr.bf16.mxu0 %v5182
    %5541 = vmatpush2.bf16.msra.mxu0 %v5181
    %5542 = vmatprep.mubr.bf16.mxu0 %v4897
    %5543 = vmatmul.mubr.bf16.gmra.mxu0 %v4896
    %v5544 = vpop.f32.mrf.mxu0
    %v5545 = vadd.f32 %v5502, %v5544
    %v5546 = vpop.f32.mrf.mxu0
    %v5547 = vadd.f32 %v5504, %v5546
    %v5548 = vpop.f32.mrf.mxu0
    %v5549 = vadd.f32 %v5506, %v5548
    %v5550 = vpop.f32.mrf.mxu0
    %v5551 = vadd.f32 %v5508, %v5550
    %5552 = vdwg.mxu0
    %5553 = vmatprep.subr.bf16.mxu0 0
    %5554 = vmatpush1.bf16.msra.mxu0 0
    %5555 = vmatprep.subr.bf16.mxu0 0
    %5556 = vmatpush1.bf16.msra.mxu0 0
    %5557 = vmatprep.subr.bf16.mxu0 0
    %5558 = vmatpush1.bf16.msra.mxu0 0
    %5559 = vmatprep.subr.bf16.mxu0 0
    %5560 = vmatpush1.bf16.msra.mxu0 0
    %5561 = vmatprep.subr.bf16.mxu0 0
    %5562 = vmatpush1.bf16.msra.mxu0 0
    %5563 = vmatprep.subr.bf16.mxu0 0
    %5564 = vmatpush1.bf16.msra.mxu0 0
    %5565 = vmatprep.subr.bf16.mxu0 %v5245
    %5566 = vmatpush1.bf16.msra.mxu0 %v5244
    %5567 = vmatprep.subr.bf16.mxu0 %v5238
    %5568 = vmatpush1.bf16.msra.mxu0 %v5237
    %5569 = vmatprep.subr.bf16.mxu0 0
    %5570 = vmatpush2.bf16.msra.mxu0 0
    %5571 = vmatprep.subr.bf16.mxu0 0
    %5572 = vmatpush2.bf16.msra.mxu0 0
    %5573 = vmatprep.subr.bf16.mxu0 0
    %5574 = vmatpush2.bf16.msra.mxu0 0
    %5575 = vmatprep.subr.bf16.mxu0 0
    %5576 = vmatpush2.bf16.msra.mxu0 0
    %5577 = vmatprep.subr.bf16.mxu0 0
    %5578 = vmatpush2.bf16.msra.mxu0 0
    %5579 = vmatprep.subr.bf16.mxu0 0
    %5580 = vmatpush2.bf16.msra.mxu0 0
    %5581 = vmatprep.subr.bf16.mxu0 0
    %5582 = vmatpush2.bf16.msra.mxu0 0
    %5583 = vmatprep.subr.bf16.mxu0 0
    %5584 = vmatpush2.bf16.msra.mxu0 0
    %5585 = vmatprep.mubr.bf16.mxu0 0
    %5586 = vmatmul.mubr.bf16.gmra.mxu0 %v5250
    %v5587 = vpop.f32.mrf.mxu0
    %v5588 = vadd.f32 %v5545, %v5587
    %v5589 = vpop.f32.mrf.mxu0
    %v5590 = vadd.f32 %v5547, %v5589
    %v5591 = vpop.f32.mrf.mxu0
    %v5592 = vadd.f32 %v5549, %v5591
    %v5593 = vpop.f32.mrf.mxu0
    %v5594 = vadd.f32 %v5551, %v5593
    %5595 = vdwg.mxu0
    %5596 = vmatprep.subr.bf16.mxu0 %v4953
    %5597 = vmatpush1.bf16.msra.mxu0 %v4952
    %5598 = vmatprep.subr.bf16.mxu0 %v4946
    %5599 = vmatpush1.bf16.msra.mxu0 %v4945
    %5600 = vmatprep.subr.bf16.mxu0 %v4939
    %5601 = vmatpush1.bf16.msra.mxu0 %v4938
    %5602 = vmatprep.subr.bf16.mxu0 %v4932
    %5603 = vmatpush1.bf16.msra.mxu0 %v4931
    %5604 = vmatprep.subr.bf16.mxu0 %v4925
    %5605 = vmatpush1.bf16.msra.mxu0 %v4924
    %5606 = vmatprep.subr.bf16.mxu0 %v4918
    %5607 = vmatpush1.bf16.msra.mxu0 %v4917
    %5608 = vmatprep.subr.bf16.mxu0 %v4911
    %5609 = vmatpush1.bf16.msra.mxu0 %v4910
    %5610 = vmatprep.subr.bf16.mxu0 %v4904
    %5611 = vmatpush1.bf16.msra.mxu0 %v4903
    %5612 = vmatprep.subr.bf16.mxu0 %v5009
    %5613 = vmatpush2.bf16.msra.mxu0 %v5008
    %5614 = vmatprep.subr.bf16.mxu0 %v5002
    %5615 = vmatpush2.bf16.msra.mxu0 %v5001
    %5616 = vmatprep.subr.bf16.mxu0 %v4995
    %5617 = vmatpush2.bf16.msra.mxu0 %v4994
    %5618 = vmatprep.subr.bf16.mxu0 %v4988
    %5619 = vmatpush2.bf16.msra.mxu0 %v4987
    %5620 = vmatprep.subr.bf16.mxu0 %v4981
    %5621 = vmatpush2.bf16.msra.mxu0 %v4980
    %5622 = vmatprep.subr.bf16.mxu0 %v4974
    %5623 = vmatpush2.bf16.msra.mxu0 %v4973
    %5624 = vmatprep.subr.bf16.mxu0 %v4967
    %5625 = vmatpush2.bf16.msra.mxu0 %v4966
    %5626 = vmatprep.subr.bf16.mxu0 %v4960
    %5627 = vmatpush2.bf16.msra.mxu0 %v4959
    %5628 = vmatprep.mubr.bf16.mxu0 %v4893
    %5629 = vmatmul.mubr.bf16.gmra.mxu0 %v4892
    %v5630 = vpop.f32.mrf.mxu0
    %v5631 = vadd.f32 0.0, %v5630
    %v5632 = vpop.f32.mrf.mxu0
    %v5633 = vadd.f32 0.0, %v5632
    %v5634 = vpop.f32.mrf.mxu0
    %v5635 = vadd.f32 0.0, %v5634
    %v5636 = vpop.f32.mrf.mxu0
    %v5637 = vadd.f32 0.0, %v5636
    %5638 = vdwg.mxu0
    %5639 = vmatprep.subr.bf16.mxu0 %v5065
    %5640 = vmatpush1.bf16.msra.mxu0 %v5064
    %5641 = vmatprep.subr.bf16.mxu0 %v5058
    %5642 = vmatpush1.bf16.msra.mxu0 %v5057
    %5643 = vmatprep.subr.bf16.mxu0 %v5051
    %5644 = vmatpush1.bf16.msra.mxu0 %v5050
    %5645 = vmatprep.subr.bf16.mxu0 %v5044
    %5646 = vmatpush1.bf16.msra.mxu0 %v5043
    %5647 = vmatprep.subr.bf16.mxu0 %v5037
    %5648 = vmatpush1.bf16.msra.mxu0 %v5036
    %5649 = vmatprep.subr.bf16.mxu0 %v5030
    %5650 = vmatpush1.bf16.msra.mxu0 %v5029
    %5651 = vmatprep.subr.bf16.mxu0 %v5023
    %5652 = vmatpush1.bf16.msra.mxu0 %v5022
    %5653 = vmatprep.subr.bf16.mxu0 %v5016
    %5654 = vmatpush1.bf16.msra.mxu0 %v5015
    %5655 = vmatprep.subr.bf16.mxu0 %v5121
    %5656 = vmatpush2.bf16.msra.mxu0 %v5120
    %5657 = vmatprep.subr.bf16.mxu0 %v5114
    %5658 = vmatpush2.bf16.msra.mxu0 %v5113
    %5659 = vmatprep.subr.bf16.mxu0 %v5107
    %5660 = vmatpush2.bf16.msra.mxu0 %v5106
    %5661 = vmatprep.subr.bf16.mxu0 %v5100
    %5662 = vmatpush2.bf16.msra.mxu0 %v5099
    %5663 = vmatprep.subr.bf16.mxu0 %v5093
    %5664 = vmatpush2.bf16.msra.mxu0 %v5092
    %5665 = vmatprep.subr.bf16.mxu0 %v5086
    %5666 = vmatpush2.bf16.msra.mxu0 %v5085
    %5667 = vmatprep.subr.bf16.mxu0 %v5079
    %5668 = vmatpush2.bf16.msra.mxu0 %v5078
    %5669 = vmatprep.subr.bf16.mxu0 %v5072
    %5670 = vmatpush2.bf16.msra.mxu0 %v5071
    %5671 = vmatprep.mubr.bf16.mxu0 %v4895
    %5672 = vmatmul.mubr.bf16.gmra.mxu0 %v4894
    %v5673 = vpop.f32.mrf.mxu0
    %v5674 = vadd.f32 %v5631, %v5673
    %v5675 = vpop.f32.mrf.mxu0
    %v5676 = vadd.f32 %v5633, %v5675
    %v5677 = vpop.f32.mrf.mxu0
    %v5678 = vadd.f32 %v5635, %v5677
    %v5679 = vpop.f32.mrf.mxu0
    %v5680 = vadd.f32 %v5637, %v5679
    %5681 = vdwg.mxu0
    %5682 = vmatprep.subr.bf16.mxu0 %v5177
    %5683 = vmatpush1.bf16.msra.mxu0 %v5176
    %5684 = vmatprep.subr.bf16.mxu0 %v5170
    %5685 = vmatpush1.bf16.msra.mxu0 %v5169
    %5686 = vmatprep.subr.bf16.mxu0 %v5163
    %5687 = vmatpush1.bf16.msra.mxu0 %v5162
    %5688 = vmatprep.subr.bf16.mxu0 %v5156
    %5689 = vmatpush1.bf16.msra.mxu0 %v5155
    %5690 = vmatprep.subr.bf16.mxu0 %v5149
    %5691 = vmatpush1.bf16.msra.mxu0 %v5148
    %5692 = vmatprep.subr.bf16.mxu0 %v5142
    %5693 = vmatpush1.bf16.msra.mxu0 %v5141
    %5694 = vmatprep.subr.bf16.mxu0 %v5135
    %5695 = vmatpush1.bf16.msra.mxu0 %v5134
    %5696 = vmatprep.subr.bf16.mxu0 %v5128
    %5697 = vmatpush1.bf16.msra.mxu0 %v5127
    %5698 = vmatprep.subr.bf16.mxu0 %v5233
    %5699 = vmatpush2.bf16.msra.mxu0 %v5232
    %5700 = vmatprep.subr.bf16.mxu0 %v5226
    %5701 = vmatpush2.bf16.msra.mxu0 %v5225
    %5702 = vmatprep.subr.bf16.mxu0 %v5219
    %5703 = vmatpush2.bf16.msra.mxu0 %v5218
    %5704 = vmatprep.subr.bf16.mxu0 %v5212
    %5705 = vmatpush2.bf16.msra.mxu0 %v5211
    %5706 = vmatprep.subr.bf16.mxu0 %v5205
    %5707 = vmatpush2.bf16.msra.mxu0 %v5204
    %5708 = vmatprep.subr.bf16.mxu0 %v5198
    %5709 = vmatpush2.bf16.msra.mxu0 %v5197
    %5710 = vmatprep.subr.bf16.mxu0 %v5191
    %5711 = vmatpush2.bf16.msra.mxu0 %v5190
    %5712 = vmatprep.subr.bf16.mxu0 %v5184
    %5713 = vmatpush2.bf16.msra.mxu0 %v5183
    %5714 = vmatprep.mubr.bf16.mxu0 %v4897
    %5715 = vmatmul.mubr.bf16.gmra.mxu0 %v4896
    %v5716 = vpop.f32.mrf.mxu0
    %v5717 = vadd.f32 %v5674, %v5716
    %v5718 = vpop.f32.mrf.mxu0
    %v5719 = vadd.f32 %v5676, %v5718
    %v5720 = vpop.f32.mrf.mxu0
    %v5721 = vadd.f32 %v5678, %v5720
    %v5722 = vpop.f32.mrf.mxu0
    %v5723 = vadd.f32 %v5680, %v5722
    %5724 = vdwg.mxu0
    %5725 = vmatprep.subr.bf16.mxu0 0
    %5726 = vmatpush1.bf16.msra.mxu0 0
    %5727 = vmatprep.subr.bf16.mxu0 0
    %5728 = vmatpush1.bf16.msra.mxu0 0
    %5729 = vmatprep.subr.bf16.mxu0 0
    %5730 = vmatpush1.bf16.msra.mxu0 0
    %5731 = vmatprep.subr.bf16.mxu0 0
    %5732 = vmatpush1.bf16.msra.mxu0 0
    %5733 = vmatprep.subr.bf16.mxu0 0
    %5734 = vmatpush1.bf16.msra.mxu0 0
    %5735 = vmatprep.subr.bf16.mxu0 0
    %5736 = vmatpush1.bf16.msra.mxu0 0
    %5737 = vmatprep.subr.bf16.mxu0 %v5247
    %5738 = vmatpush1.bf16.msra.mxu0 %v5246
    %5739 = vmatprep.subr.bf16.mxu0 %v5240
    %5740 = vmatpush1.bf16.msra.mxu0 %v5239
    %5741 = vmatprep.subr.bf16.mxu0 0
    %5742 = vmatpush2.bf16.msra.mxu0 0
    %5743 = vmatprep.subr.bf16.mxu0 0
    %5744 = vmatpush2.bf16.msra.mxu0 0
    %5745 = vmatprep.subr.bf16.mxu0 0
    %5746 = vmatpush2.bf16.msra.mxu0 0
    %5747 = vmatprep.subr.bf16.mxu0 0
    %5748 = vmatpush2.bf16.msra.mxu0 0
    %5749 = vmatprep.subr.bf16.mxu0 0
    %5750 = vmatpush2.bf16.msra.mxu0 0
    %5751 = vmatprep.subr.bf16.mxu0 0
    %5752 = vmatpush2.bf16.msra.mxu0 0
    %5753 = vmatprep.subr.bf16.mxu0 0
    %5754 = vmatpush2.bf16.msra.mxu0 0
    %5755 = vmatprep.subr.bf16.mxu0 0
    %5756 = vmatpush2.bf16.msra.mxu0 0
    %5757 = vmatprep.mubr.bf16.mxu0 0
    %5758 = vmatmul.mubr.bf16.gmra.mxu0 %v5250
    %v5759 = vpop.f32.mrf.mxu0
    %v5760 = vadd.f32 %v5717, %v5759
    %v5761 = vpop.f32.mrf.mxu0
    %v5762 = vadd.f32 %v5719, %v5761
    %v5763 = vpop.f32.mrf.mxu0
    %v5764 = vadd.f32 %v5721, %v5763
    %v5765 = vpop.f32.mrf.mxu0
    %v5766 = vadd.f32 %v5723, %v5765
    %5767 = vdwg.mxu0
    %5768 = vmatprep.subr.bf16.mxu0 0
    %5769 = vmatpush1.bf16.msra.mxu0 %v4954
    %5770 = vmatprep.subr.bf16.mxu0 0
    %5771 = vmatpush1.bf16.msra.mxu0 %v4947
    %5772 = vmatprep.subr.bf16.mxu0 0
    %5773 = vmatpush1.bf16.msra.mxu0 %v4940
    %5774 = vmatprep.subr.bf16.mxu0 0
    %5775 = vmatpush1.bf16.msra.mxu0 %v4933
    %5776 = vmatprep.subr.bf16.mxu0 0
    %5777 = vmatpush1.bf16.msra.mxu0 %v4926
    %5778 = vmatprep.subr.bf16.mxu0 0
    %5779 = vmatpush1.bf16.msra.mxu0 %v4919
    %5780 = vmatprep.subr.bf16.mxu0 0
    %5781 = vmatpush1.bf16.msra.mxu0 %v4912
    %5782 = vmatprep.subr.bf16.mxu0 0
    %5783 = vmatpush1.bf16.msra.mxu0 %v4905
    %5784 = vmatprep.subr.bf16.mxu0 0
    %5785 = vmatpush2.bf16.msra.mxu0 %v5010
    %5786 = vmatprep.subr.bf16.mxu0 0
    %5787 = vmatpush2.bf16.msra.mxu0 %v5003
    %5788 = vmatprep.subr.bf16.mxu0 0
    %5789 = vmatpush2.bf16.msra.mxu0 %v4996
    %5790 = vmatprep.subr.bf16.mxu0 0
    %5791 = vmatpush2.bf16.msra.mxu0 %v4989
    %5792 = vmatprep.subr.bf16.mxu0 0
    %5793 = vmatpush2.bf16.msra.mxu0 %v4982
    %5794 = vmatprep.subr.bf16.mxu0 0
    %5795 = vmatpush2.bf16.msra.mxu0 %v4975
    %5796 = vmatprep.subr.bf16.mxu0 0
    %5797 = vmatpush2.bf16.msra.mxu0 %v4968
    %5798 = vmatprep.subr.bf16.mxu0 0
    %5799 = vmatpush2.bf16.msra.mxu0 %v4961
    %5800 = vmatprep.mubr.bf16.mxu0 %v4893
    %5801 = vmatmul.mubr.bf16.gmra.mxu0 %v4892
    %v5802 = vpop.f32.mrf.mxu0
    %v5803 = vadd.f32 0.0, %v5802
    %v5804 = vpop.f32.mrf.mxu0
    %v5805 = vpop.f32.mrf.mxu0
    %v5806 = vadd.f32 0.0, %v5805
    %v5807 = vpop.f32.mrf.mxu0
    %5808 = vdwg.mxu0
    %5809 = vmatprep.subr.bf16.mxu0 0
    %5810 = vmatpush1.bf16.msra.mxu0 %v5066
    %5811 = vmatprep.subr.bf16.mxu0 0
    %5812 = vmatpush1.bf16.msra.mxu0 %v5059
    %5813 = vmatprep.subr.bf16.mxu0 0
    %5814 = vmatpush1.bf16.msra.mxu0 %v5052
    %5815 = vmatprep.subr.bf16.mxu0 0
    %5816 = vmatpush1.bf16.msra.mxu0 %v5045
    %5817 = vmatprep.subr.bf16.mxu0 0
    %5818 = vmatpush1.bf16.msra.mxu0 %v5038
    %5819 = vmatprep.subr.bf16.mxu0 0
    %5820 = vmatpush1.bf16.msra.mxu0 %v5031
    %5821 = vmatprep.subr.bf16.mxu0 0
    %5822 = vmatpush1.bf16.msra.mxu0 %v5024
    %5823 = vmatprep.subr.bf16.mxu0 0
    %5824 = vmatpush1.bf16.msra.mxu0 %v5017
    %5825 = vmatprep.subr.bf16.mxu0 0
    %5826 = vmatpush2.bf16.msra.mxu0 %v5122
    %5827 = vmatprep.subr.bf16.mxu0 0
    %5828 = vmatpush2.bf16.msra.mxu0 %v5115
    %5829 = vmatprep.subr.bf16.mxu0 0
    %5830 = vmatpush2.bf16.msra.mxu0 %v5108
    %5831 = vmatprep.subr.bf16.mxu0 0
    %5832 = vmatpush2.bf16.msra.mxu0 %v5101
    %5833 = vmatprep.subr.bf16.mxu0 0
    %5834 = vmatpush2.bf16.msra.mxu0 %v5094
    %5835 = vmatprep.subr.bf16.mxu0 0
    %5836 = vmatpush2.bf16.msra.mxu0 %v5087
    %5837 = vmatprep.subr.bf16.mxu0 0
    %5838 = vmatpush2.bf16.msra.mxu0 %v5080
    %5839 = vmatprep.subr.bf16.mxu0 0
    %5840 = vmatpush2.bf16.msra.mxu0 %v5073
    %5841 = vmatprep.mubr.bf16.mxu0 %v4895
    %5842 = vmatmul.mubr.bf16.gmra.mxu0 %v4894
    %v5843 = vpop.f32.mrf.mxu0
    %v5844 = vadd.f32 %v5803, %v5843
    %v5845 = vpop.f32.mrf.mxu0
    %v5846 = vpop.f32.mrf.mxu0
    %v5847 = vadd.f32 %v5806, %v5846
    %v5848 = vpop.f32.mrf.mxu0
    %5849 = vdwg.mxu0
    %5850 = vmatprep.subr.bf16.mxu0 0
    %5851 = vmatpush1.bf16.msra.mxu0 %v5178
    %5852 = vmatprep.subr.bf16.mxu0 0
    %5853 = vmatpush1.bf16.msra.mxu0 %v5171
    %5854 = vmatprep.subr.bf16.mxu0 0
    %5855 = vmatpush1.bf16.msra.mxu0 %v5164
    %5856 = vmatprep.subr.bf16.mxu0 0
    %5857 = vmatpush1.bf16.msra.mxu0 %v5157
    %5858 = vmatprep.subr.bf16.mxu0 0
    %5859 = vmatpush1.bf16.msra.mxu0 %v5150
    %5860 = vmatprep.subr.bf16.mxu0 0
    %5861 = vmatpush1.bf16.msra.mxu0 %v5143
    %5862 = vmatprep.subr.bf16.mxu0 0
    %5863 = vmatpush1.bf16.msra.mxu0 %v5136
    %5864 = vmatprep.subr.bf16.mxu0 0
    %5865 = vmatpush1.bf16.msra.mxu0 %v5129
    %5866 = vmatprep.subr.bf16.mxu0 0
    %5867 = vmatpush2.bf16.msra.mxu0 %v5234
    %5868 = vmatprep.subr.bf16.mxu0 0
    %5869 = vmatpush2.bf16.msra.mxu0 %v5227
    %5870 = vmatprep.subr.bf16.mxu0 0
    %5871 = vmatpush2.bf16.msra.mxu0 %v5220
    %5872 = vmatprep.subr.bf16.mxu0 0
    %5873 = vmatpush2.bf16.msra.mxu0 %v5213
    %5874 = vmatprep.subr.bf16.mxu0 0
    %5875 = vmatpush2.bf16.msra.mxu0 %v5206
    %5876 = vmatprep.subr.bf16.mxu0 0
    %5877 = vmatpush2.bf16.msra.mxu0 %v5199
    %5878 = vmatprep.subr.bf16.mxu0 0
    %5879 = vmatpush2.bf16.msra.mxu0 %v5192
    %5880 = vmatprep.subr.bf16.mxu0 0
    %5881 = vmatpush2.bf16.msra.mxu0 %v5185
    %5882 = vmatprep.mubr.bf16.mxu0 %v4897
    %5883 = vmatmul.mubr.bf16.gmra.mxu0 %v4896
    %v5884 = vpop.f32.mrf.mxu0
    %v5885 = vadd.f32 %v5844, %v5884
    %v5886 = vpop.f32.mrf.mxu0
    %v5887 = vpop.f32.mrf.mxu0
    %v5888 = vadd.f32 %v5847, %v5887
    %v5889 = vpop.f32.mrf.mxu0
    %5890 = vdwg.mxu0
    %5891 = vmatprep.subr.bf16.mxu0 0
    %5892 = vmatpush1.bf16.msra.mxu0 0
    %5893 = vmatprep.subr.bf16.mxu0 0
    %5894 = vmatpush1.bf16.msra.mxu0 0
    %5895 = vmatprep.subr.bf16.mxu0 0
    %5896 = vmatpush1.bf16.msra.mxu0 0
    %5897 = vmatprep.subr.bf16.mxu0 0
    %5898 = vmatpush1.bf16.msra.mxu0 0
    %5899 = vmatprep.subr.bf16.mxu0 0
    %5900 = vmatpush1.bf16.msra.mxu0 0
    %5901 = vmatprep.subr.bf16.mxu0 0
    %5902 = vmatpush1.bf16.msra.mxu0 0
    %5903 = vmatprep.subr.bf16.mxu0 0
    %5904 = vmatpush1.bf16.msra.mxu0 %v5248
    %5905 = vmatprep.subr.bf16.mxu0 0
    %5906 = vmatpush1.bf16.msra.mxu0 %v5241
    %5907 = vmatprep.subr.bf16.mxu0 0
    %5908 = vmatpush2.bf16.msra.mxu0 0
    %5909 = vmatprep.subr.bf16.mxu0 0
    %5910 = vmatpush2.bf16.msra.mxu0 0
    %5911 = vmatprep.subr.bf16.mxu0 0
    %5912 = vmatpush2.bf16.msra.mxu0 0
    %5913 = vmatprep.subr.bf16.mxu0 0
    %5914 = vmatpush2.bf16.msra.mxu0 0
    %5915 = vmatprep.subr.bf16.mxu0 0
    %5916 = vmatpush2.bf16.msra.mxu0 0
    %5917 = vmatprep.subr.bf16.mxu0 0
    %5918 = vmatpush2.bf16.msra.mxu0 0
    %5919 = vmatprep.subr.bf16.mxu0 0
    %5920 = vmatpush2.bf16.msra.mxu0 0
    %5921 = vmatprep.subr.bf16.mxu0 0
    %5922 = vmatpush2.bf16.msra.mxu0 0
    %5923 = vmatprep.mubr.bf16.mxu0 0
    %5924 = vmatmul.mubr.bf16.gmra.mxu0 %v5250
    %v5925 = vpop.f32.mrf.mxu0
    %v5926 = vadd.f32 %v5885, %v5925
    %v5927 = vpop.f32.mrf.mxu0
    %v5928 = vpop.f32.mrf.mxu0
    %v5929 = vadd.f32 %v5888, %v5928
    %v5930 = vpop.f32.mrf.mxu0
    %5931 = vdwg.mxu0
    %v5933 = vlaneseq
    %v5934 = vshrl.u32 %v5933, 7
    %v5935 = vsub.s32 0, %v5934
    %v5936 = vrot.slane %v4891, %v5935
    %v5937 = vlaneseq
    %v5938 = vshrl.u32 %v5937, 7
    %v5939 = vsub.s32 1, %v5938
    %v5940 = vrot.slane %v4891, %v5939
    %v5941 = vlaneseq
    %v5942 = vshrl.u32 %v5941, 7
    %v5943 = vsub.s32 2, %v5942
    %v5944 = vrot.slane %v4891, %v5943
    %v5945 = vlaneseq
    %v5946 = vshrl.u32 %v5945, 7
    %v5947 = vsub.s32 3, %v5946
    %v5948 = vrot.slane %v4891, %v5947
    %v5949 = vlaneseq
    %v5950 = vshrl.u32 %v5949, 7
    %v5951 = vsub.s32 4, %v5950
    %v5952 = vrot.slane %v4891, %v5951
    %v5953 = vlaneseq
    %v5954 = vshrl.u32 %v5953, 7
    %v5955 = vsub.s32 5, %v5954
    %v5956 = vrot.slane %v4891, %v5955
    %v5957 = vlaneseq
    %v5958 = vshrl.u32 %v5957, 7
    %v5959 = vsub.s32 6, %v5958
    %v5960 = vrot.slane %v4891, %v5959
    %v5968 = vmul.f32 %v5416, %v5936
    %v5969 = vmul.f32 %v5418, %v5940
    %v5970 = vmul.f32 %v5588, %v5944
    %v5971 = vmul.f32 %v5590, %v5948
    %v5972 = vmul.f32 %v5760, %v5952
    %v5973 = vmul.f32 %v5762, %v5956
    %v5974 = vmul.f32 %v5926, %v5960
    %v5975 = vmul.f32 %v5420, %v5936
    %v5976 = vmul.f32 %v5422, %v5940
    %v5977 = vmul.f32 %v5592, %v5944
    %v5978 = vmul.f32 %v5594, %v5948
    %v5979 = vmul.f32 %v5764, %v5952
    %v5980 = vmul.f32 %v5766, %v5956
    %v5981 = vmul.f32 %v5929, %v5960
    %v5982 = vld [vmem:[#allocation33] sm:$0x7f]
    %v5983 = vld [vmem:[#allocation34] sm:$0x7f]
    %v5984 = vadd.f32 %v5968, %v5975
    %v5985 = vrot.slane %v5984, 4
    %v5986 = vadd.f32 %v5984, %v5985
    %v5987 = vrot.slane %v5986, 2
    %v5988 = vadd.f32 %v5986, %v5987
    %v5989 = vrot.slane %v5988, 1
    %v5990 = vadd.f32 %v5988, %v5989
    %v5991 = vadd.f32 %v5969, %v5976
    %v5992 = vrot.slane %v5991, 4
    %v5993 = vadd.f32 %v5991, %v5992
    %v5994 = vrot.slane %v5993, 2
    %v5995 = vadd.f32 %v5993, %v5994
    %v5996 = vrot.slane %v5995, 1
    %v5997 = vadd.f32 %v5995, %v5996
    %v5998 = vadd.f32 %v5970, %v5977
    %v5999 = vrot.slane %v5998, 4
    %v6000 = vadd.f32 %v5998, %v5999
    %v6001 = vrot.slane %v6000, 2
    %v6002 = vadd.f32 %v6000, %v6001
    %v6003 = vrot.slane %v6002, 1
    %v6004 = vadd.f32 %v6002, %v6003
    %v6005 = vadd.f32 %v5971, %v5978
    %v6006 = vrot.slane %v6005, 4
    %v6007 = vadd.f32 %v6005, %v6006
    %v6008 = vrot.slane %v6007, 2
    %v6009 = vadd.f32 %v6007, %v6008
    %v6010 = vrot.slane %v6009, 1
    %v6011 = vadd.f32 %v6009, %v6010
    %v6012 = vadd.f32 %v5972, %v5979
    %v6013 = vrot.slane %v6012, 4
    %v6014 = vadd.f32 %v6012, %v6013
    %v6015 = vrot.slane %v6014, 2
    %v6016 = vadd.f32 %v6014, %v6015
    %v6017 = vrot.slane %v6016, 1
    %v6018 = vadd.f32 %v6016, %v6017
    %v6019 = vadd.f32 %v5973, %v5980
    %v6020 = vrot.slane %v6019, 4
    %v6021 = vadd.f32 %v6019, %v6020
    %v6022 = vrot.slane %v6021, 2
    %v6023 = vadd.f32 %v6021, %v6022
    %v6024 = vrot.slane %v6023, 1
    %v6025 = vadd.f32 %v6023, %v6024
    %v6026 = vsel %vm1205, %v5974, 0.0
    %v6027 = vsel %vm1205, %v5981, 0.0
    %v6028 = vadd.f32 %v6026, %v6027
    %v6029 = vrot.slane %v6028, 4
    %v6030 = vadd.f32 %v6028, %v6029
    %v6031 = vrot.slane %v6030, 2
    %v6032 = vadd.f32 %v6030, %v6031
    %v6033 = vrot.slane %v6032, 1
    %v6034 = vadd.f32 %v6032, %v6033
    %v6035 = vmul.f32 %v5990, %v1215
    %v6036 = vmul.f32 %v5997, %v1215
    %v6037 = vmul.f32 %v6004, %v1215
    %v6038 = vmul.f32 %v6011, %v1215
    %v6039 = vmul.f32 %v6018, %v1215
    %v6040 = vmul.f32 %v6025, %v1215
    %v6041 = vmul.f32 %v6034, %v1215
    %v6042 = vsub.f32 %v5968, %v6035
    %v6043 = vsub.f32 %v5969, %v6036
    %v6044 = vsub.f32 %v5970, %v6037
    %v6045 = vsub.f32 %v5971, %v6038
    %v6046 = vsub.f32 %v5972, %v6039
    %v6047 = vsub.f32 %v5973, %v6040
    %v6048 = vsub.f32 %v5974, %v6041
    %v6049 = vsub.f32 %v5975, %v6035
    %v6050 = vsub.f32 %v5976, %v6036
    %v6051 = vsub.f32 %v5977, %v6037
    %v6052 = vsub.f32 %v5978, %v6038
    %v6053 = vsub.f32 %v5979, %v6039
    %v6054 = vsub.f32 %v5980, %v6040
    %v6055 = vsub.f32 %v5981, %v6041
    %v6056 = vmul.f32 %v6042, %v6042
    %v6057 = vmul.f32 %v6043, %v6043
    %v6058 = vmul.f32 %v6044, %v6044
    %v6059 = vmul.f32 %v6045, %v6045
    %v6060 = vmul.f32 %v6046, %v6046
    %v6061 = vmul.f32 %v6047, %v6047
    %v6062 = vmul.f32 %v6048, %v6048
    %v6063 = vmul.f32 %v6049, %v6049
    %v6064 = vmul.f32 %v6050, %v6050
    %v6065 = vmul.f32 %v6051, %v6051
    %v6066 = vmul.f32 %v6052, %v6052
    %v6067 = vmul.f32 %v6053, %v6053
    %v6068 = vmul.f32 %v6054, %v6054
    %v6069 = vmul.f32 %v6055, %v6055
    %v6070 = vadd.f32 %v6056, %v6063
    %v6071 = vrot.slane %v6070, 4
    %v6072 = vadd.f32 %v6070, %v6071
    %v6073 = vrot.slane %v6072, 2
    %v6074 = vadd.f32 %v6072, %v6073
    %v6075 = vrot.slane %v6074, 1
    %v6076 = vadd.f32 %v6074, %v6075
    %v6077 = vadd.f32 %v6057, %v6064
    %v6078 = vrot.slane %v6077, 4
    %v6079 = vadd.f32 %v6077, %v6078
    %v6080 = vrot.slane %v6079, 2
    %v6081 = vadd.f32 %v6079, %v6080
    %v6082 = vrot.slane %v6081, 1
    %v6083 = vadd.f32 %v6081, %v6082
    %v6084 = vadd.f32 %v6058, %v6065
    %v6085 = vrot.slane %v6084, 4
    %v6086 = vadd.f32 %v6084, %v6085
    %v6087 = vrot.slane %v6086, 2
    %v6088 = vadd.f32 %v6086, %v6087
    %v6089 = vrot.slane %v6088, 1
    %v6090 = vadd.f32 %v6088, %v6089
    %v6091 = vadd.f32 %v6059, %v6066
    %v6092 = vrot.slane %v6091, 4
    %v6093 = vadd.f32 %v6091, %v6092
    %v6094 = vrot.slane %v6093, 2
    %v6095 = vadd.f32 %v6093, %v6094
    %v6096 = vrot.slane %v6095, 1
    %v6097 = vadd.f32 %v6095, %v6096
    %v6098 = vadd.f32 %v6060, %v6067
    %v6099 = vrot.slane %v6098, 4
    %v6100 = vadd.f32 %v6098, %v6099
    %v6101 = vrot.slane %v6100, 2
    %v6102 = vadd.f32 %v6100, %v6101
    %v6103 = vrot.slane %v6102, 1
    %v6104 = vadd.f32 %v6102, %v6103
    %v6105 = vadd.f32 %v6061, %v6068
    %v6106 = vrot.slane %v6105, 4
    %v6107 = vadd.f32 %v6105, %v6106
    %v6108 = vrot.slane %v6107, 2
    %v6109 = vadd.f32 %v6107, %v6108
    %v6110 = vrot.slane %v6109, 1
    %v6111 = vadd.f32 %v6109, %v6110
    %v6112 = vsel %vm1205, %v6062, 0.0
    %v6113 = vsel %vm1205, %v6069, 0.0
    %v6114 = vadd.f32 %v6112, %v6113
    %v6115 = vrot.slane %v6114, 4
    %v6116 = vadd.f32 %v6114, %v6115
    %v6117 = vrot.slane %v6116, 2
    %v6118 = vadd.f32 %v6116, %v6117
    %v6119 = vrot.slane %v6118, 1
    %v6120 = vadd.f32 %v6118, %v6119
    %v6121 = vmul.f32 %v6076, %v1215
    %v6122 = vmul.f32 %v6083, %v1215
    %v6123 = vmul.f32 %v6090, %v1215
    %v6124 = vmul.f32 %v6097, %v1215
    %v6125 = vmul.f32 %v6104, %v1215
    %v6126 = vmul.f32 %v6111, %v1215
    %v6127 = vmul.f32 %v6120, %v1215
    %v6128 = vadd.f32 %v6121, 1e-05
    %v6129 = vadd.f32 %v6122, 1e-05
    %v6130 = vadd.f32 %v6123, 1e-05
    %v6131 = vadd.f32 %v6124, 1e-05
    %v6132 = vadd.f32 %v6125, 1e-05
    %v6133 = vadd.f32 %v6126, 1e-05
    %v6134 = vadd.f32 %v6127, 1e-05
    %v6135 = vrsqrt.pop %v6128
    %v6136 = vrsqrt.pop %v6129
    %v6137 = vrsqrt.pop %v6130
    %v6138 = vrsqrt.pop %v6131
    %v6139 = vrsqrt.pop %v6132
    %v6140 = vrsqrt.pop %v6133
    %v6141 = vrsqrt.pop %v6134
    %v6142 = vmul.f32 %v6042, %v6135
    %v6143 = vmul.f32 %v6043, %v6136
    %v6144 = vmul.f32 %v6044, %v6137
    %v6145 = vmul.f32 %v6045, %v6138
    %v6146 = vmul.f32 %v6046, %v6139
    %v6147 = vmul.f32 %v6047, %v6140
    %v6148 = vmul.f32 %v6048, %v6141
    %v6149 = vmul.f32 %v6049, %v6135
    %v6150 = vmul.f32 %v6050, %v6136
    %v6151 = vmul.f32 %v6051, %v6137
    %v6152 = vmul.f32 %v6052, %v6138
    %v6153 = vmul.f32 %v6053, %v6139
    %v6154 = vmul.f32 %v6054, %v6140
    %v6155 = vmul.f32 %v6055, %v6141
    %v6157 = vlaneseq
    %v6158 = vshrl.u32 %v6157, 7
    %v6159 = vsub.s32 0, %v6158
    %v6160 = vrot.slane %v5982, %v6159
    %v6161 = vlaneseq
    %v6162 = vshrl.u32 %v6161, 7
    %v6163 = vsub.s32 1, %v6162
    %v6164 = vrot.slane %v5982, %v6163
    %v6165 = vlaneseq
    %v6166 = vshrl.u32 %v6165, 7
    %v6167 = vsub.s32 2, %v6166
    %v6168 = vrot.slane %v5982, %v6167
    %v6169 = vlaneseq
    %v6170 = vshrl.u32 %v6169, 7
    %v6171 = vsub.s32 3, %v6170
    %v6172 = vrot.slane %v5982, %v6171
    %v6173 = vlaneseq
    %v6174 = vshrl.u32 %v6173, 7
    %v6175 = vsub.s32 4, %v6174
    %v6176 = vrot.slane %v5982, %v6175
    %v6177 = vlaneseq
    %v6178 = vshrl.u32 %v6177, 7
    %v6179 = vsub.s32 5, %v6178
    %v6180 = vrot.slane %v5982, %v6179
    %v6181 = vlaneseq
    %v6182 = vshrl.u32 %v6181, 7
    %v6183 = vsub.s32 6, %v6182
    %v6184 = vrot.slane %v5982, %v6183
    %v6192 = vmul.f32 %v6142, %v6160
    %v6193 = vmul.f32 %v6143, %v6164
    %v6194 = vmul.f32 %v6144, %v6168
    %v6195 = vmul.f32 %v6145, %v6172
    %v6196 = vmul.f32 %v6146, %v6176
    %v6197 = vmul.f32 %v6147, %v6180
    %v6198 = vmul.f32 %v6148, %v6184
    %v6199 = vmul.f32 %v6149, %v6160
    %v6200 = vmul.f32 %v6150, %v6164
    %v6201 = vmul.f32 %v6151, %v6168
    %v6202 = vmul.f32 %v6152, %v6172
    %v6203 = vmul.f32 %v6153, %v6176
    %v6204 = vmul.f32 %v6154, %v6180
    %v6205 = vmul.f32 %v6155, %v6184
    %v6207 = vlaneseq
    %v6208 = vshrl.u32 %v6207, 7
    %v6209 = vsub.s32 0, %v6208
    %v6210 = vrot.slane %v5983, %v6209
    %v6211 = vlaneseq
    %v6212 = vshrl.u32 %v6211, 7
    %v6213 = vsub.s32 1, %v6212
    %v6214 = vrot.slane %v5983, %v6213
    %v6215 = vlaneseq
    %v6216 = vshrl.u32 %v6215, 7
    %v6217 = vsub.s32 2, %v6216
    %v6218 = vrot.slane %v5983, %v6217
    %v6219 = vlaneseq
    %v6220 = vshrl.u32 %v6219, 7
    %v6221 = vsub.s32 3, %v6220
    %v6222 = vrot.slane %v5983, %v6221
    %v6223 = vlaneseq
    %v6224 = vshrl.u32 %v6223, 7
    %v6225 = vsub.s32 4, %v6224
    %v6226 = vrot.slane %v5983, %v6225
    %v6227 = vlaneseq
    %v6228 = vshrl.u32 %v6227, 7
    %v6229 = vsub.s32 5, %v6228
    %v6230 = vrot.slane %v5983, %v6229
    %v6231 = vlaneseq
    %v6232 = vshrl.u32 %v6231, 7
    %v6233 = vsub.s32 6, %v6232
    %v6234 = vrot.slane %v5983, %v6233
    %v6242 = vadd.f32 %v6192, %v6210
    %v6243 = vadd.f32 %v6193, %v6214
    %v6244 = vadd.f32 %v6194, %v6218
    %v6245 = vadd.f32 %v6195, %v6222
    %v6246 = vadd.f32 %v6196, %v6226
    %v6247 = vadd.f32 %v6197, %v6230
    %v6248 = vadd.f32 %v6198, %v6234
    %v6249 = vadd.f32 %v6199, %v6210
    %v6250 = vadd.f32 %v6200, %v6214
    %v6251 = vadd.f32 %v6201, %v6218
    %v6252 = vadd.f32 %v6202, %v6222
    %v6253 = vadd.f32 %v6203, %v6226
    %v6254 = vadd.f32 %v6204, %v6230
    %v6255 = vadd.f32 %v6205, %v6234
    %vm6256 = vcmp.gt.f32.partialorder %v6242, 0.0
    %vm6257 = vcmp.gt.f32.partialorder %v6243, 0.0
    %vm6258 = vcmp.gt.f32.partialorder %v6244, 0.0
    %vm6259 = vcmp.gt.f32.partialorder %v6245, 0.0
    %vm6260 = vcmp.gt.f32.partialorder %v6246, 0.0
    %vm6261 = vcmp.gt.f32.partialorder %v6247, 0.0
    %vm6262 = vcmp.gt.f32.partialorder %v6248, 0.0
    %vm6263 = vcmp.gt.f32.partialorder %v6249, 0.0
    %vm6264 = vcmp.gt.f32.partialorder %v6250, 0.0
    %vm6265 = vcmp.gt.f32.partialorder %v6251, 0.0
    %vm6266 = vcmp.gt.f32.partialorder %v6252, 0.0
    %vm6267 = vcmp.gt.f32.partialorder %v6253, 0.0
    %vm6268 = vcmp.gt.f32.partialorder %v6254, 0.0
    %vm6269 = vcmp.gt.f32.partialorder %v6255, 0.0
    %v6270 = vmul.f32 %v6242, 0.01
    %v6271 = vmul.f32 %v6243, 0.01
    %v6272 = vmul.f32 %v6244, 0.01
    %v6273 = vmul.f32 %v6245, 0.01
    %v6274 = vmul.f32 %v6246, 0.01
    %v6275 = vmul.f32 %v6247, 0.01
    %v6276 = vmul.f32 %v6248, 0.01
    %v6277 = vmul.f32 %v6249, 0.01
    %v6278 = vmul.f32 %v6250, 0.01
    %v6279 = vmul.f32 %v6251, 0.01
    %v6280 = vmul.f32 %v6252, 0.01
    %v6281 = vmul.f32 %v6253, 0.01
    %v6282 = vmul.f32 %v6254, 0.01
    %v6283 = vmul.f32 %v6255, 0.01
    %v6284 = vsel %vm6256, %v6242, %v6270
    %v6285 = vsel %vm6257, %v6243, %v6271
    %v6286 = vsel %vm6258, %v6244, %v6272
    %v6287 = vsel %vm6259, %v6245, %v6273
    %v6288 = vsel %vm6260, %v6246, %v6274
    %v6289 = vsel %vm6261, %v6247, %v6275
    %v6290 = vsel %vm6262, %v6248, %v6276
    %v6291 = vsel %vm6263, %v6249, %v6277
    %v6292 = vsel %vm6264, %v6250, %v6278
    %v6293 = vsel %vm6265, %v6251, %v6279
    %v6294 = vsel %vm6266, %v6252, %v6280
    %v6295 = vsel %vm6267, %v6253, %v6281
    %v6296 = vsel %vm6268, %v6254, %v6282
    %v6297 = vsel %vm6269, %v6255, %v6283
    %v6298 = vld [vmem:[#allocation36] sm:$0xff]
    %v6299 = vld [vmem:[#allocation36 + $0x8] sm:$0xff]
    %v6300 = vld [vmem:[#allocation36 + $0x10] sm:$0xff]
    %v6301 = vld [vmem:[#allocation36 + $0x18] sm:$0xf]
    %v6302 = vld [vmem:[#allocation36 + $0x1c] sm:$0xff]
    %v6303 = vld [vmem:[#allocation36 + $0x24] sm:$0xff]
    %v6304 = vld [vmem:[#allocation36 + $0x2c] sm:$0xff]
    %v6305 = vld [vmem:[#allocation36 + $0x34] sm:$0xf]
    %v6306 = vunpack.c.l.bf16 %v6298
    %v6307 = vunpack.c.h.bf16 %v6298
    %v6308 = vunpack.c.l.bf16 %v6299
    %v6309 = vunpack.c.h.bf16 %v6299
    %v6310 = vunpack.c.l.bf16 %v6300
    %v6311 = vunpack.c.h.bf16 %v6300
    %v6312 = vunpack.c.l.bf16 %v6301
    %v6313 = vunpack.c.l.bf16 %v6302
    %v6314 = vunpack.c.h.bf16 %v6302
    %v6315 = vunpack.c.l.bf16 %v6303
    %v6316 = vunpack.c.h.bf16 %v6303
    %v6317 = vunpack.c.l.bf16 %v6304
    %v6318 = vunpack.c.h.bf16 %v6304
    %v6319 = vunpack.c.l.bf16 %v6305
    %v6320 = vmul.f32 %v6284, %v6306
    %v6321 = vmul.f32 %v6285, %v6307
    %v6322 = vmul.f32 %v6286, %v6308
    %v6323 = vmul.f32 %v6287, %v6309
    %v6324 = vmul.f32 %v6288, %v6310
    %v6325 = vmul.f32 %v6289, %v6311
    %v6326 = vmul.f32 %v6290, %v6312
    %v6327 = vmul.f32 %v6291, %v6313
    %v6328 = vmul.f32 %v6292, %v6314
    %v6329 = vmul.f32 %v6293, %v6315
    %v6330 = vmul.f32 %v6294, %v6316
    %v6331 = vmul.f32 %v6295, %v6317
    %v6332 = vmul.f32 %v6296, %v6318
    %v6333 = vmul.f32 %v6297, %v6319
    %s6334 = smul.u32 %s1515, 2
    %s6335 = sshll.u32 %s6334, 4
    %6336 = dma.done %s1519, %s6335
    %v6337 = vld [vmem:[#allocation5] sm:$0xff]
    %v6338 = vld [vmem:[#allocation5 + $0x8] sm:$0xff]
    %v6339 = vld [vmem:[#allocation5 + $0x10] sm:$0xff]
    %v6340 = vld [vmem:[#allocation5 + $0x18] sm:$0xff]
    %v6341 = vld [vmem:[#allocation5 + $0x20] sm:$0xff]
    %v6342 = vld [vmem:[#allocation5 + $0x28] sm:$0xff]
    %v6343 = vld [vmem:[#allocation5 + $0x30] sm:$0xff]
    %v6344 = vld [vmem:[#allocation5 + $0x38] sm:$0xff]
    %v6345 = vld [vmem:[#allocation5 + $0x40] sm:$0xff]
    %v6346 = vld [vmem:[#allocation5 + $0x48] sm:$0xff]
    %v6347 = vld [vmem:[#allocation5 + $0x50] sm:$0xff]
    %v6348 = vld [vmem:[#allocation5 + $0x58] sm:$0xff]
    %v6349 = vld [vmem:[#allocation5 + $0x60] sm:$0xff]
    %v6350 = vld [vmem:[#allocation5 + $0x68] sm:$0xff]
    %v6351 = vld [vmem:[#allocation5 + $0x70] sm:$0xff]
    %v6352 = vld [vmem:[#allocation5 + $0x78] sm:$0xff]
    %v6353 = vld [vmem:[#allocation5 + $0x80] sm:$0xff]
    %v6354 = vld [vmem:[#allocation5 + $0x88] sm:$0xff]
    %v6355 = vld [vmem:[#allocation5 + $0x90] sm:$0xff]
    %v6356 = vld [vmem:[#allocation5 + $0x98] sm:$0xff]
    %v6357 = vld [vmem:[#allocation5 + $0xa0] sm:$0xff]
    %v6358 = vld [vmem:[#allocation5 + $0xa8] sm:$0xff]
    %v6359 = vld [vmem:[#allocation5 + $0xb0] sm:$0xff]
    %v6360 = vld [vmem:[#allocation5 + $0xb8] sm:$0xff]
    %v6361 = vld [vmem:[#allocation5 + $0xc0] sm:$0xff]
    %v6362 = vld [vmem:[#allocation5 + $0xc8] sm:$0xff]
    %v6363 = vld [vmem:[#allocation5 + $0xd0] sm:$0xff]
    %v6364 = vld [vmem:[#allocation5 + $0xd8] sm:$0xff]
    %v6365 = vld [vmem:[#allocation5 + $0xe0] sm:$0xff]
    %v6366 = vld [vmem:[#allocation5 + $0xe8] sm:$0xff]
    %v6367 = vld [vmem:[#allocation5 + $0xf0] sm:$0xff]
    %v6368 = vld [vmem:[#allocation5 + $0xf8] sm:$0xff]
    %v6369 = vld [vmem:[#allocation5 + $0x100] sm:$0xff]
    %v6370 = vld [vmem:[#allocation5 + $0x108] sm:$0xff]
    %v6371 = vld [vmem:[#allocation5 + $0x110] sm:$0xff]
    %v6372 = vld [vmem:[#allocation5 + $0x118] sm:$0xff]
    %v6373 = vld [vmem:[#allocation5 + $0x120] sm:$0xff]
    %v6374 = vld [vmem:[#allocation5 + $0x128] sm:$0xff]
    %v6375 = vld [vmem:[#allocation5 + $0x130] sm:$0xff]
    %v6376 = vld [vmem:[#allocation5 + $0x138] sm:$0xff]
    %v6377 = vld [vmem:[#allocation5 + $0x140] sm:$0xff]
    %v6378 = vld [vmem:[#allocation5 + $0x148] sm:$0xff]
    %v6379 = vld [vmem:[#allocation5 + $0x150] sm:$0xff]
    %v6380 = vld [vmem:[#allocation5 + $0x158] sm:$0xff]
    %v6381 = vld [vmem:[#allocation5 + $0x160] sm:$0xff]
    %v6382 = vld [vmem:[#allocation5 + $0x168] sm:$0xff]
    %v6383 = vld [vmem:[#allocation5 + $0x170] sm:$0xff]
    %v6384 = vld [vmem:[#allocation5 + $0x178] sm:$0xff]
    %v6385 = vld [vmem:[#allocation5 + $0x180] sm:$0xff]
    %v6386 = vld [vmem:[#allocation5 + $0x188] sm:$0xff]
    %v6387 = vld [vmem:[%s47] sm:$0x3]
    %v6388 = vpack.c.bf16 %v6327, %v6320
    %v6389 = vpack.c.bf16 %v6328, %v6321
    %v6390 = vpack.c.bf16 %v6329, %v6322
    %v6391 = vpack.c.bf16 %v6330, %v6323
    %v6392 = vpack.c.bf16 %v6331, %v6324
    %v6393 = vpack.c.bf16 %v6332, %v6325
    %v6394 = vpack.c.bf16 %v6333, %v6326
    %v6395 = vunpack.c.l.s8.bf16 %v6337
    %v6396 = vunpack.c.l.s8.bf16 %v6338
    %v6397 = vunpack.c.h.s8.bf16 %v6337
    %v6398 = vunpack.c.h.s8.bf16 %v6338
    %v6399 = vunpack.c.l.s8.bf16 %v6339
    %v6400 = vunpack.c.l.s8.bf16 %v6340
    %v6401 = vunpack.c.h.s8.bf16 %v6339
    %v6402 = vunpack.c.h.s8.bf16 %v6340
    %v6403 = vunpack.c.l.s8.bf16 %v6341
    %v6404 = vunpack.c.l.s8.bf16 %v6342
    %v6405 = vunpack.c.h.s8.bf16 %v6341
    %v6406 = vunpack.c.h.s8.bf16 %v6342
    %v6407 = vunpack.c.l.s8.bf16 %v6343
    %v6408 = vunpack.c.l.s8.bf16 %v6344
    %v6409 = vunpack.c.h.s8.bf16 %v6343
    %v6410 = vunpack.c.h.s8.bf16 %v6344
    %v6411 = vunpack.c.l.s8.bf16 %v6345
    %v6412 = vunpack.c.l.s8.bf16 %v6346
    %v6413 = vunpack.c.h.s8.bf16 %v6345
    %v6414 = vunpack.c.h.s8.bf16 %v6346
    %v6415 = vunpack.c.l.s8.bf16 %v6347
    %v6416 = vunpack.c.l.s8.bf16 %v6348
    %v6417 = vunpack.c.h.s8.bf16 %v6347
    %v6418 = vunpack.c.h.s8.bf16 %v6348
    %v6419 = vunpack.c.l.s8.bf16 %v6349
    %v6420 = vunpack.c.l.s8.bf16 %v6350
    %v6421 = vunpack.c.h.s8.bf16 %v6349
    %v6422 = vunpack.c.h.s8.bf16 %v6350
    %v6423 = vunpack.c.l.s8.bf16 %v6351
    %v6424 = vunpack.c.l.s8.bf16 %v6352
    %v6425 = vunpack.c.h.s8.bf16 %v6351
    %v6426 = vunpack.c.h.s8.bf16 %v6352
    %v6427 = vunpack.c.l.s8.bf16 %v6353
    %v6428 = vunpack.c.l.s8.bf16 %v6354
    %v6429 = vunpack.c.h.s8.bf16 %v6353
    %v6430 = vunpack.c.h.s8.bf16 %v6354
    %v6431 = vunpack.c.l.s8.bf16 %v6355
    %v6432 = vunpack.c.l.s8.bf16 %v6356
    %v6433 = vunpack.c.h.s8.bf16 %v6355
    %v6434 = vunpack.c.h.s8.bf16 %v6356
    %v6435 = vunpack.c.l.s8.bf16 %v6357
    %v6436 = vunpack.c.l.s8.bf16 %v6358
    %v6437 = vunpack.c.h.s8.bf16 %v6357
    %v6438 = vunpack.c.h.s8.bf16 %v6358
    %v6439 = vunpack.c.l.s8.bf16 %v6359
    %v6440 = vunpack.c.l.s8.bf16 %v6360
    %v6441 = vunpack.c.h.s8.bf16 %v6359
    %v6442 = vunpack.c.h.s8.bf16 %v6360
    %v6443 = vunpack.c.l.s8.bf16 %v6361
    %v6444 = vunpack.c.l.s8.bf16 %v6362
    %v6445 = vunpack.c.h.s8.bf16 %v6361
    %v6446 = vunpack.c.h.s8.bf16 %v6362
    %v6447 = vunpack.c.l.s8.bf16 %v6363
    %v6448 = vunpack.c.l.s8.bf16 %v6364
    %v6449 = vunpack.c.h.s8.bf16 %v6363
    %v6450 = vunpack.c.h.s8.bf16 %v6364
    %v6451 = vunpack.c.l.s8.bf16 %v6365
    %v6452 = vunpack.c.l.s8.bf16 %v6366
    %v6453 = vunpack.c.h.s8.bf16 %v6365
    %v6454 = vunpack.c.h.s8.bf16 %v6366
    %v6455 = vunpack.c.l.s8.bf16 %v6367
    %v6456 = vunpack.c.l.s8.bf16 %v6368
    %v6457 = vunpack.c.h.s8.bf16 %v6367
    %v6458 = vunpack.c.h.s8.bf16 %v6368
    %v6459 = vunpack.c.l.s8.bf16 %v6369
    %v6460 = vunpack.c.l.s8.bf16 %v6370
    %v6461 = vunpack.c.h.s8.bf16 %v6369
    %v6462 = vunpack.c.h.s8.bf16 %v6370
    %v6463 = vunpack.c.l.s8.bf16 %v6371
    %v6464 = vunpack.c.l.s8.bf16 %v6372
    %v6465 = vunpack.c.h.s8.bf16 %v6371
    %v6466 = vunpack.c.h.s8.bf16 %v6372
    %v6467 = vunpack.c.l.s8.bf16 %v6373
    %v6468 = vunpack.c.l.s8.bf16 %v6374
    %v6469 = vunpack.c.h.s8.bf16 %v6373
    %v6470 = vunpack.c.h.s8.bf16 %v6374
    %v6471 = vunpack.c.l.s8.bf16 %v6375
    %v6472 = vunpack.c.l.s8.bf16 %v6376
    %v6473 = vunpack.c.h.s8.bf16 %v6375
    %v6474 = vunpack.c.h.s8.bf16 %v6376
    %v6475 = vunpack.c.l.s8.bf16 %v6377
    %v6476 = vunpack.c.l.s8.bf16 %v6378
    %v6477 = vunpack.c.h.s8.bf16 %v6377
    %v6478 = vunpack.c.h.s8.bf16 %v6378
    %v6479 = vunpack.c.l.s8.bf16 %v6379
    %v6480 = vunpack.c.l.s8.bf16 %v6380
    %v6481 = vunpack.c.h.s8.bf16 %v6379
    %v6482 = vunpack.c.h.s8.bf16 %v6380
    %v6483 = vunpack.c.l.s8.bf16 %v6381
    %v6484 = vunpack.c.l.s8.bf16 %v6382
    %v6485 = vunpack.c.h.s8.bf16 %v6381
    %v6486 = vunpack.c.h.s8.bf16 %v6382
    %v6487 = vunpack.c.l.s8.bf16 %v6383
    %v6488 = vunpack.c.l.s8.bf16 %v6384
    %v6489 = vunpack.c.h.s8.bf16 %v6383
    %v6490 = vunpack.c.h.s8.bf16 %v6384
    %v6491 = vunpack.c.l.s8.bf16 %v6385
    %v6492 = vunpack.c.l.s8.bf16 %v6386
    %v6493 = vunpack.c.h.s8.bf16 %v6385
    %v6494 = vunpack.c.h.s8.bf16 %v6386
    %v6496 = vsel %vm1205, %v6394, 0
    %6498 = vmatprep.subr.bf16.mxu0 %v6410
    %6499 = vmatpush1.bf16.msra.mxu0 %v6409
    %6500 = vmatprep.subr.bf16.mxu0 %v6408
    %6501 = vmatpush1.bf16.msra.mxu0 %v6407
    %6502 = vmatprep.subr.bf16.mxu0 %v6406
    %6503 = vmatpush1.bf16.msra.mxu0 %v6405
    %6504 = vmatprep.subr.bf16.mxu0 %v6404
    %6505 = vmatpush1.bf16.msra.mxu0 %v6403
    %6506 = vmatprep.subr.bf16.mxu0 %v6402
    %6507 = vmatpush1.bf16.msra.mxu0 %v6401
    %6508 = vmatprep.subr.bf16.mxu0 %v6400
    %6509 = vmatpush1.bf16.msra.mxu0 %v6399
    %6510 = vmatprep.subr.bf16.mxu0 %v6398
    %6511 = vmatpush1.bf16.msra.mxu0 %v6397
    %6512 = vmatprep.subr.bf16.mxu0 %v6396
    %6513 = vmatpush1.bf16.msra.mxu0 %v6395
    %6514 = vmatprep.subr.bf16.mxu0 %v6426
    %6515 = vmatpush2.bf16.msra.mxu0 %v6425
    %6516 = vmatprep.subr.bf16.mxu0 %v6424
    %6517 = vmatpush2.bf16.msra.mxu0 %v6423
    %6518 = vmatprep.subr.bf16.mxu0 %v6422
    %6519 = vmatpush2.bf16.msra.mxu0 %v6421
    %6520 = vmatprep.subr.bf16.mxu0 %v6420
    %6521 = vmatpush2.bf16.msra.mxu0 %v6419
    %6522 = vmatprep.subr.bf16.mxu0 %v6418
    %6523 = vmatpush2.bf16.msra.mxu0 %v6417
    %6524 = vmatprep.subr.bf16.mxu0 %v6416
    %6525 = vmatpush2.bf16.msra.mxu0 %v6415
    %6526 = vmatprep.subr.bf16.mxu0 %v6414
    %6527 = vmatpush2.bf16.msra.mxu0 %v6413
    %6528 = vmatprep.subr.bf16.mxu0 %v6412
    %6529 = vmatpush2.bf16.msra.mxu0 %v6411
    %6530 = vmatprep.mubr.bf16.mxu0 %v6389
    %6531 = vmatmul.mubr.bf16.gmra.mxu0 %v6388
    %v6532 = vpop.f32.mrf.mxu0
    %v6533 = vadd.f32 0.0, %v6532
    %v6534 = vpop.f32.mrf.mxu0
    %v6535 = vadd.f32 0.0, %v6534
    %v6536 = vpop.f32.mrf.mxu0
    %v6537 = vadd.f32 0.0, %v6536
    %v6538 = vpop.f32.mrf.mxu0
    %v6539 = vadd.f32 0.0, %v6538
    %6540 = vdwg.mxu0
    %6541 = vmatprep.subr.bf16.mxu0 %v6442
    %6542 = vmatpush1.bf16.msra.mxu0 %v6441
    %6543 = vmatprep.subr.bf16.mxu0 %v6440
    %6544 = vmatpush1.bf16.msra.mxu0 %v6439
    %6545 = vmatprep.subr.bf16.mxu0 %v6438
    %6546 = vmatpush1.bf16.msra.mxu0 %v6437
    %6547 = vmatprep.subr.bf16.mxu0 %v6436
    %6548 = vmatpush1.bf16.msra.mxu0 %v6435
    %6549 = vmatprep.subr.bf16.mxu0 %v6434
    %6550 = vmatpush1.bf16.msra.mxu0 %v6433
    %6551 = vmatprep.subr.bf16.mxu0 %v6432
    %6552 = vmatpush1.bf16.msra.mxu0 %v6431
    %6553 = vmatprep.subr.bf16.mxu0 %v6430
    %6554 = vmatpush1.bf16.msra.mxu0 %v6429
    %6555 = vmatprep.subr.bf16.mxu0 %v6428
    %6556 = vmatpush1.bf16.msra.mxu0 %v6427
    %6557 = vmatprep.subr.bf16.mxu0 %v6458
    %6558 = vmatpush2.bf16.msra.mxu0 %v6457
    %6559 = vmatprep.subr.bf16.mxu0 %v6456
    %6560 = vmatpush2.bf16.msra.mxu0 %v6455
    %6561 = vmatprep.subr.bf16.mxu0 %v6454
    %6562 = vmatpush2.bf16.msra.mxu0 %v6453
    %6563 = vmatprep.subr.bf16.mxu0 %v6452
    %6564 = vmatpush2.bf16.msra.mxu0 %v6451
    %6565 = vmatprep.subr.bf16.mxu0 %v6450
    %6566 = vmatpush2.bf16.msra.mxu0 %v6449
    %6567 = vmatprep.subr.bf16.mxu0 %v6448
    %6568 = vmatpush2.bf16.msra.mxu0 %v6447
    %6569 = vmatprep.subr.bf16.mxu0 %v6446
    %6570 = vmatpush2.bf16.msra.mxu0 %v6445
    %6571 = vmatprep.subr.bf16.mxu0 %v6444
    %6572 = vmatpush2.bf16.msra.mxu0 %v6443
    %6573 = vmatprep.mubr.bf16.mxu0 %v6391
    %6574 = vmatmul.mubr.bf16.gmra.mxu0 %v6390
    %v6575 = vpop.f32.mrf.mxu0
    %v6576 = vadd.f32 %v6533, %v6575
    %v6577 = vpop.f32.mrf.mxu0
    %v6578 = vadd.f32 %v6535, %v6577
    %v6579 = vpop.f32.mrf.mxu0
    %v6580 = vadd.f32 %v6537, %v6579
    %v6581 = vpop.f32.mrf.mxu0
    %v6582 = vadd.f32 %v6539, %v6581
    %6583 = vdwg.mxu0
    %6584 = vmatprep.subr.bf16.mxu0 %v6474
    %6585 = vmatpush1.bf16.msra.mxu0 %v6473
    %6586 = vmatprep.subr.bf16.mxu0 %v6472
    %6587 = vmatpush1.bf16.msra.mxu0 %v6471
    %6588 = vmatprep.subr.bf16.mxu0 %v6470
    %6589 = vmatpush1.bf16.msra.mxu0 %v6469
    %6590 = vmatprep.subr.bf16.mxu0 %v6468
    %6591 = vmatpush1.bf16.msra.mxu0 %v6467
    %6592 = vmatprep.subr.bf16.mxu0 %v6466
    %6593 = vmatpush1.bf16.msra.mxu0 %v6465
    %6594 = vmatprep.subr.bf16.mxu0 %v6464
    %6595 = vmatpush1.bf16.msra.mxu0 %v6463
    %6596 = vmatprep.subr.bf16.mxu0 %v6462
    %6597 = vmatpush1.bf16.msra.mxu0 %v6461
    %6598 = vmatprep.subr.bf16.mxu0 %v6460
    %6599 = vmatpush1.bf16.msra.mxu0 %v6459
    %6600 = vmatprep.subr.bf16.mxu0 %v6490
    %6601 = vmatpush2.bf16.msra.mxu0 %v6489
    %6602 = vmatprep.subr.bf16.mxu0 %v6488
    %6603 = vmatpush2.bf16.msra.mxu0 %v6487
    %6604 = vmatprep.subr.bf16.mxu0 %v6486
    %6605 = vmatpush2.bf16.msra.mxu0 %v6485
    %6606 = vmatprep.subr.bf16.mxu0 %v6484
    %6607 = vmatpush2.bf16.msra.mxu0 %v6483
    %6608 = vmatprep.subr.bf16.mxu0 %v6482
    %6609 = vmatpush2.bf16.msra.mxu0 %v6481
    %6610 = vmatprep.subr.bf16.mxu0 %v6480
    %6611 = vmatpush2.bf16.msra.mxu0 %v6479
    %6612 = vmatprep.subr.bf16.mxu0 %v6478
    %6613 = vmatpush2.bf16.msra.mxu0 %v6477
    %6614 = vmatprep.subr.bf16.mxu0 %v6476
    %6615 = vmatpush2.bf16.msra.mxu0 %v6475
    %6616 = vmatprep.mubr.bf16.mxu0 %v6393
    %6617 = vmatmul.mubr.bf16.gmra.mxu0 %v6392
    %v6618 = vpop.f32.mrf.mxu0
    %v6619 = vadd.f32 %v6576, %v6618
    %v6620 = vpop.f32.mrf.mxu0
    %v6621 = vadd.f32 %v6578, %v6620
    %v6622 = vpop.f32.mrf.mxu0
    %v6623 = vadd.f32 %v6580, %v6622
    %v6624 = vpop.f32.mrf.mxu0
    %v6625 = vadd.f32 %v6582, %v6624
    %6626 = vdwg.mxu0
    %6627 = vmatprep.subr.bf16.mxu0 0
    %6628 = vmatpush1.bf16.msra.mxu0 0
    %6629 = vmatprep.subr.bf16.mxu0 0
    %6630 = vmatpush1.bf16.msra.mxu0 0
    %6631 = vmatprep.subr.bf16.mxu0 0
    %6632 = vmatpush1.bf16.msra.mxu0 0
    %6633 = vmatprep.subr.bf16.mxu0 0
    %6634 = vmatpush1.bf16.msra.mxu0 0
    %6635 = vmatprep.subr.bf16.mxu0 0
    %6636 = vmatpush1.bf16.msra.mxu0 0
    %6637 = vmatprep.subr.bf16.mxu0 0
    %6638 = vmatpush1.bf16.msra.mxu0 0
    %6639 = vmatprep.subr.bf16.mxu0 %v6494
    %6640 = vmatpush1.bf16.msra.mxu0 %v6493
    %6641 = vmatprep.subr.bf16.mxu0 %v6492
    %6642 = vmatpush1.bf16.msra.mxu0 %v6491
    %6643 = vmatprep.subr.bf16.mxu0 0
    %6644 = vmatpush2.bf16.msra.mxu0 0
    %6645 = vmatprep.subr.bf16.mxu0 0
    %6646 = vmatpush2.bf16.msra.mxu0 0
    %6647 = vmatprep.subr.bf16.mxu0 0
    %6648 = vmatpush2.bf16.msra.mxu0 0
    %6649 = vmatprep.subr.bf16.mxu0 0
    %6650 = vmatpush2.bf16.msra.mxu0 0
    %6651 = vmatprep.subr.bf16.mxu0 0
    %6652 = vmatpush2.bf16.msra.mxu0 0
    %6653 = vmatprep.subr.bf16.mxu0 0
    %6654 = vmatpush2.bf16.msra.mxu0 0
    %6655 = vmatprep.subr.bf16.mxu0 0
    %6656 = vmatpush2.bf16.msra.mxu0 0
    %6657 = vmatprep.subr.bf16.mxu0 0
    %6658 = vmatpush2.bf16.msra.mxu0 0
    %6659 = vmatprep.mubr.bf16.mxu0 0
    %6660 = vmatmul.mubr.bf16.gmra.mxu0 %v6496
    %v6661 = vpop.f32.mrf.mxu0
    %v6662 = vadd.f32 %v6619, %v6661
    %v6663 = vpop.f32.mrf.mxu0
    %v6664 = vadd.f32 %v6621, %v6663
    %v6665 = vpop.f32.mrf.mxu0
    %v6666 = vadd.f32 %v6623, %v6665
    %v6667 = vpop.f32.mrf.mxu0
    %v6668 = vadd.f32 %v6625, %v6667
    %6669 = vdwg.mxu0
    %v6671 = vlaneseq
    %v6672 = vshrl.u32 %v6671, 7
    %v6673 = vsub.s32 0, %v6672
    %v6674 = vrot.slane %v6387, %v6673
    %v6675 = vlaneseq
    %v6676 = vshrl.u32 %v6675, 7
    %v6677 = vsub.s32 1, %v6676
    %v6678 = vrot.slane %v6387, %v6677
    %v6681 = vmul.f32 %v6662, %v6674
    %v6682 = vmul.f32 %v6664, %v6678
    %v6683 = vmul.f32 %v6666, %v6674
    %v6684 = vmul.f32 %v6668, %v6678
    %v6685 = vld [vmem:[#allocation37] sm:$0x3]
    %v6687 = vlaneseq
    %v6688 = vshrl.u32 %v6687, 7
    %v6689 = vsub.s32 0, %v6688
    %v6690 = vrot.slane %v6685, %v6689
    %v6691 = vlaneseq
    %v6692 = vshrl.u32 %v6691, 7
    %v6693 = vsub.s32 1, %v6692
    %v6694 = vrot.slane %v6685, %v6693
    %v6697 = vadd.f32 %v6681, %v6690
    %v6698 = vadd.f32 %v6682, %v6694
    %v6699 = vadd.f32 %v6683, %v6690
    %v6700 = vadd.f32 %v6684, %v6694
    %v6701 = vmax.f32 %v6697, 0.0
    %v6702 = vmax.f32 %v6698, 0.0
    %v6703 = vmax.f32 %v6699, 0.0
    %v6704 = vmax.f32 %v6700, 0.0
    %6705 = vst [vmem:[#allocation39] sm:$0xff] %v6701
    %6706 = vst [vmem:[#allocation39 + $0x8] sm:$0xff] %v6702
    %6707 = vst [vmem:[#allocation39 + $0x10] sm:$0xff] %v6703
    %6708 = vst [vmem:[#allocation39 + $0x18] sm:$0xff] %v6704
    // Predicated region
    $region258: #{cvae_forward.1} parent=1 // pred_check
      _
    $region259: #{cvae_forward.1} parent=1 // pred_check_branch
      %6710 = sbr.rel (0) target = $region261
    $region260: #{cvae_forward.1} parent=1 // pred_region
      %s6712 = ssub.s32 512, 512
      %6713 = vsyncadd [#allocation9], %s6712
      %s6714 = sshll.u32 [#allocation39], 4
      %s6715 = int_to_ptr.vmem [resolvable:$true] %s6714
      %6720 = dma.vmem_to_hbm [thread:$0]  %s6715, 512, %s59, [#allocation9], 256, 256, 16
    $region261: #{cvae_forward.1} parent=1 // pred_fallthru
      _
    // Predicated region
    $region262: #{cvae_forward.1} parent=1 // pred_check
      _
    $region263: #{cvae_forward.1} parent=1 // pred_check_branch
      %6722 = sbr.rel (0) target = $region265
    $region264: #{cvae_forward.1} parent=1 // pred_region
      _
    $region265: #{cvae_forward.1} parent=1 // pred_fallthru
      _
    // Predicated region
    $region266: #{cvae_forward.1} parent=1 // pred_check
      _
    $region267: #{cvae_forward.1} parent=1 // pred_check_branch
      %6724 = sbr.rel (0) target = $region269
    $region268: #{cvae_forward.1} parent=1 // pred_region
      %6725 = dma.done [#allocation9], 512
    $region269: #{cvae_forward.1} parent=1 // pred_fallthru
      _
    // Predicated region
    $region270: #{cvae_forward.1} parent=1 // pred_check
      _
    $region271: #{cvae_forward.1} parent=1 // pred_check_branch
      %6727 = sbr.rel (0) target = $region273
    $region272: #{cvae_forward.1} parent=1 // pred_region
      _
    $region273: #{cvae_forward.1} parent=1 // pred_fallthru
      _
    %6728 = vsyncpa [#allocation8], 1
    %6729 = vsyncpa [#allocation11], 1
    %6730 = vsyncpa [#allocation14], 1
    %6731 = vsyncpa [#allocation17], 1
    %6732 = vsyncpa [#allocation20], 1
    %6733 = vsyncpa [#allocation23], 1
    %6734 = vsyncpa [#allocation26], 1
    %6735 = vsyncpa [#allocation29], 1
    %6736 = vsyncpa [#allocation32], 1
    %6737 = vsyncpa [#allocation35], 1
    %6738 = vsyncpa [#allocation38], 1
    %6739 = vsyncpa [#allocation9], 1
  %6740 = vsyncmov [#allocation6]
  %s6741 = vpop.sfrf %6740
  %p6742 = scmp.eq.s32.totalorder %s6741, 0
  %p6743 = pneg %p6742
  %6745 = shalt.err (%p6743)
  %s6746 = scalar_lea.sflag [#allocation6], 1
  %6747 = vsyncmov %s6746
  %s6748 = vpop.sfrf %6747
  %p6749 = scmp.eq.s32.totalorder %s6748, 0
  %p6750 = pneg %p6749
  %6752 = shalt.err (%p6750)
  %s6753 = scalar_lea.sflag [#allocation6], 2
  %6754 = vsyncmov %s6753
  %s6755 = vpop.sfrf %6754
  %p6756 = scmp.eq.s32.totalorder %s6755, 0
  %p6757 = pneg %p6756
  %6759 = shalt.err (%p6757)
  %s6760 = scalar_lea.sflag [#allocation6], 3
  %6761 = vsyncmov %s6760
  %s6762 = vpop.sfrf %6761
  %p6763 = scmp.eq.s32.totalorder %s6762, 0
  %p6764 = pneg %p6763
  %6766 = shalt.err (%p6764)

</llo_original>
